<compile_context>
chip_gen: v7x
topology: tpu7x:2x2x1
jax: 0.10.0
libtpu: 0.0.40
codegen_flags: <defaults>
</compile_context>

<pallas_src>
import jax
import jax.numpy as jnp
import numpy as np
from jax.experimental import pallas as pl
from jax.experimental.pallas import tpu as pltpu  # noqa: F401

# ----------------------------- small config ---------------------------------
B = 2
AUDIO_LEN = 170
CONV1_K, CONV1_S = 10, 5              # first conv feature-extractor layer
CONV2_K, CONV2_S = 3, 2               # second conv feature-extractor layer
CONV_DIM = 16
T1 = (AUDIO_LEN - CONV1_K) // CONV1_S + 1        # 33
T2 = (T1 - CONV2_K) // CONV2_S + 1               # 16 (encoder sequence length)
HIDDEN = 32
N_HEADS = 4
HEAD_DIM = HIDDEN // N_HEADS
FFN = 64
N_LAYERS = 2
LSTM_H = 16
DLSTM = 2 * LSTM_H                                # 32: per-batch BiLSTM output dim
LSTM_LAYERS = 2
POOL_A = 16

GW = B * DLSTM          # 64: width of one gate group, lane layout [f0 b0 f1 b1]
GATES_W = 4 * GW        # 256: [i | f | g | o] gate groups
CARRY_W = B * DLSTM     # 64: packed carry [h_f0 h_b0 h_f1 h_b1]
SLAB_W = 256


# ----------------------------- slab layouts ----------------------------------
def _build_layouts():
    voff, r = {}, 0

    def vadd(name):
        nonlocal r
        voff[name] = r
        r += 1

    for name in ("fp_ln_g", "fp_ln_b", "fp_b", "enc_ln_g", "enc_ln_b",
                 "pool_ba", "pool_bf"):
        vadd(name)
    for l in range(N_LAYERS):
        for name in ("bqkv", "bo", "ln1_g", "ln1_b", "b1", "b2", "ln2_g", "ln2_b"):
            vadd(f"{name}{l}")
    for l in range(LSTM_LAYERS):
        vadd(f"lstm_b{l}")
    v_rows = r

    woff, r = {}, 0

    def wadd(name, rows):
        nonlocal r
        woff[name] = r
        r += rows

    wadd("sel2t", T1)                       # (33, 3*T2) conv2 tap selection
    for j in range(CONV2_K):
        wadd(f"w2t{j}", CONV_DIM)           # (cout, cin) per tap
    wadd("fp_w", CONV_DIM)                  # (16, 32)
    for l in range(N_LAYERS):
        wadd(f"wqkv{l}", HIDDEN)            # (32, 96)
        wadd(f"wo{l}", HIDDEN)              # (32, 32)
        wadd(f"w1{l}", HIDDEN)              # (32, 64)
        wadd(f"w2{l}", FFN)                 # (64, 32)
    for l in range(LSTM_LAYERS):
        wadd(f"wih{l}", B * HIDDEN)         # (64, 256)
        wadd(f"whh{l}", CARRY_W)            # (64, 256)
    wadd("pool_wa", CARRY_W)                # (64, 32) block-diag over batch
    wadd("pool_va", B * POOL_A)             # (32, 2)  block-diag over batch
    wadd("pool_wf", DLSTM)                  # (32, 1)
    w_rows = r
    return voff, v_rows, woff, w_rows


_VOFF, _V_ROWS, _WOFF, _W_ROWS = _build_layouts()
_V_ROWS_PAD = (_V_ROWS + 7) // 8 * 8
_W_ROWS_PAD = (_W_ROWS + 7) // 8 * 8


# ----------------------------- the fused kernel ------------------------------
def _mos_forward_kernel(x_ref, sel1_ref, cols_ref, v_ref, w_ref, o_ref):
    f32, bf16 = jnp.float32, jnp.bfloat16

    def vrow(name, width):                       # (1, width) f32 bias / LN row
        r = _VOFF[name]
        return v_ref[r:r + 1, 0:width]

    def wmat(name, rows, cols):                  # (rows, cols) bf16 weight block
        r = _WOFF[name]
        return w_ref[r:r + rows, 0:cols]

    def ln(t, g, b, eps=1e-5):
        mu = jnp.mean(t, axis=-1, keepdims=True)
        var = jnp.mean((t - mu) ** 2, axis=-1, keepdims=True)
        return (t - mu) * jax.lax.rsqrt(var + eps) * g + b

    def gelu(t):
        # TODO(synk): tanh approximation (PyTorch nn.GELU default is exact erf).
        return jax.nn.gelu(t, approximate=True)

    # ---------------- conv feature extractor ----------------
    # All CONV1_K strided tap gathers for BOTH batches in one selection matmul:
    #   taps1[b, j*T1 + t] = x[b, 5*t + j]
    taps1 = jnp.dot(x_ref[...].astype(bf16), sel1_ref[...],
                    preferred_element_type=f32)                       # (B, 10*T1)
    gn_g = cols_ref[:, 0:1]                                            # (C, 1)
    gn_b = cols_ref[:, 1:2]
    sel2 = wmat("sel2t", T1, CONV2_K * T2)                             # (33, 48)

    hT_blocks = []
    for b in range(B):                       # conv runs channels-on-rows / time-on-lanes
        tb = taps1[b:b + 1, :]                                         # (1, 330)
        zt = jnp.zeros((CONV_DIM, T1), f32)
        for j in range(CONV1_K):             # conv1 (k=10, s=5, no bias): 10 tap FMAs
            w1j = cols_ref[:, 2 + j:3 + j]                             # (C, 1) = conv1_w[j, :]
            zt = zt + w1j * tb[:, j * T1:(j + 1) * T1]
        # GroupNorm(num_groups == num_channels) over time + GELU
        mu = jnp.mean(zt, axis=1, keepdims=True)
        var = jnp.mean((zt - mu) ** 2, axis=1, keepdims=True)
        zt = (zt - mu) * jax.lax.rsqrt(var + 1e-5) * gn_g + gn_b
        zt = gelu(zt)
        # conv2 (k=3, s=2, no bias): one strided tap-selection matmul + 3 tap matmuls
        taps2 = jnp.dot(zt.astype(bf16), sel2, preferred_element_type=f32)   # (C, 48)
        h2 = jnp.zeros((CONV_DIM, T2), f32)
        for j in range(CONV2_K):
            h2 = h2 + jnp.dot(wmat(f"w2t{j}", CONV_DIM, CONV_DIM),
                              taps2[:, j * T2:(j + 1) * T2].astype(bf16),
                              preferred_element_type=f32)
        hT_blocks.append(gelu(h2))                                      # (C, T2)

    hT = jnp.concatenate(hT_blocks, axis=1)                             # (C, B*T2)
    h = jnp.transpose(hT)                                               # (B*T2, C), rows b-major

    # ---------------- feature projection + encoder LN ----------------
    h = ln(h, vrow("fp_ln_g", CONV_DIM), vrow("fp_ln_b", CONV_DIM))
    h = (jnp.dot(h.astype(bf16), wmat("fp_w", CONV_DIM, HIDDEN),
                 preferred_element_type=f32) + vrow("fp_b", HIDDEN))
    # TODO(synk): WavLM weight-normed grouped positional conv embedding omitted.
    h = ln(h, vrow("enc_ln_g", HIDDEN), vrow("enc_ln_b", HIDDEN))        # (B*T2, HIDDEN)

    # ---------------- transformer encoder (post-LN, both batches stacked) ------
    scale = 1.0 / float(HEAD_DIM) ** 0.5
    for l in range(N_LAYERS):
        qkv = (jnp.dot(h.astype(bf16), wmat(f"wqkv{l}", HIDDEN, 3 * HIDDEN),
                       preferred_element_type=f32)
               + vrow(f"bqkv{l}", 3 * HIDDEN))                           # (B*T2, 3H)
        qkv_bf = qkv.astype(bf16)
        ctx_rows = []
        for b in range(B):
            r0 = b * T2
            q_b = qkv_bf[r0:r0 + T2, 0:HIDDEN]
            k_b = qkv_bf[r0:r0 + T2, HIDDEN:2 * HIDDEN]
            v_b = qkv_bf[r0:r0 + T2, 2 * HIDDEN:3 * HIDDEN]
            heads = []
            for hd in range(N_HEADS):
                lo, hi = hd * HEAD_DIM, (hd + 1) * HEAD_DIM
                # TODO(synk): WavLM gated relative position bias not implemented.
                s = jax.lax.dot_general(
                    q_b[:, lo:hi], k_b[:, lo:hi],
                    (((1,), (1,)), ((), ())),
                    preferred_element_type=f32) * scale                 # (T2, T2)
                s = s - jnp.max(s, axis=-1, keepdims=True)
                p = jnp.exp(s)
                p = p * pl.reciprocal(jnp.sum(p, axis=-1, keepdims=True), approx=True)
                heads.append(jnp.dot(p.astype(bf16), v_b[:, lo:hi],
                                     preferred_element_type=f32))       # (T2, HEAD_DIM)
            ctx_rows.append(jnp.concatenate(heads, axis=1))              # (T2, HIDDEN)
        ctx = jnp.concatenate(ctx_rows, axis=0)                          # (B*T2, HIDDEN)
        attn = (jnp.dot(ctx.astype(bf16), wmat(f"wo{l}", HIDDEN, HIDDEN),
                        preferred_element_type=f32) + vrow(f"bo{l}", HIDDEN))
        h = ln(h + attn, vrow(f"ln1_g{l}", HIDDEN), vrow(f"ln1_b{l}", HIDDEN))
        ff = gelu(jnp.dot(h.astype(bf16), wmat(f"w1{l}", HIDDEN, FFN),
                          preferred_element_type=f32) + vrow(f"b1{l}", FFN))
        ff = (jnp.dot(ff.astype(bf16), wmat(f"w2{l}", FFN, HIDDEN),
                      preferred_element_type=f32) + vrow(f"b2{l}", HIDDEN))
        h = ln(h + ff, vrow(f"ln2_g{l}", HIDDEN), vrow(f"ln2_b{l}", HIDDEN))

    # ---------------- BiLSTM head: fwd + bwd + both batches fused per step -------
    # Gate lanes (256): [i | f | g | o] groups of 64, each group = [f0 b0 f1 b1];
    # carry lanes (64): [h_f0 h_b0 h_f1 h_b1].  One recurrent matmul per step.
    lane_g = jax.lax.broadcasted_iota(jnp.int32, (1, GATES_W), 1)
    fwd_mask_g = (lane_g % DLSTM) < LSTM_H
    lane_c = jax.lax.broadcasted_iota(jnp.int32, (1, CARRY_W), 1)
    fwd_mask_c = (lane_c % DLSTM) < LSTM_H

    # lane-stack the two batches: hl[t, b*HIDDEN + d] = h[b*T2 + t, d]
    hl = jnp.concatenate([h[0:T2, :], h[T2:2 * T2, :]], axis=1)          # (T2, 64)
    for l in range(LSTM_LAYERS):
        xg = (jnp.dot(hl.astype(bf16), wmat(f"wih{l}", B * HIDDEN, GATES_W),
                      preferred_element_type=f32)
              + vrow(f"lstm_b{l}", GATES_W))                             # (T2, 256)
        whh = wmat(f"whh{l}", CARRY_W, GATES_W)                          # (64, 256) bf16
        h_t = jnp.zeros((1, CARRY_W), f32)
        c_t = jnp.zeros((1, CARRY_W), f32)
        states = []
        for t in range(T2):                                              # unrolled recurrence
            # fwd lanes take the projection of input at time t, bwd lanes at T2-1-t.
            xsel = jnp.where(fwd_mask_g, xg[t:t + 1, :], xg[T2 - 1 - t:T2 - t, :])
            gates = xsel + jnp.dot(h_t.astype(bf16), whh, preferred_element_type=f32)
            sig = jax.nn.sigmoid(gates)                                  # one full-width sigmoid
            gg = jnp.tanh(gates[:, 2 * GW:3 * GW])
            c_t = sig[:, GW:2 * GW] * c_t + sig[:, 0:GW] * gg
            h_t = sig[:, 3 * GW:4 * GW] * jnp.tanh(c_t)
            states.append(h_t)
        # register-resident output assembly: fwd part of time t came from step t,
        # bwd part from step T2-1-t; one lane select per row, one concat per layer.
        hl = jnp.concatenate(
            [jnp.where(fwd_mask_c, states[t], states[T2 - 1 - t]) for t in range(T2)],
            axis=0)                                                      # (T2, 64)

    # ---------------- attention pooling + final linear ----------------
    e = jnp.tanh(jnp.dot(hl.astype(bf16), wmat("pool_wa", CARRY_W, B * POOL_A),
                         preferred_element_type=f32) + vrow("pool_ba", B * POOL_A))
    sc = jnp.dot(e.astype(bf16), wmat("pool_va", B * POOL_A, B),
                 preferred_element_type=f32)                             # (T2, B)
    sc = sc - jnp.max(sc, axis=0, keepdims=True)
    a = jnp.exp(sc)
    a = a * pl.reciprocal(jnp.sum(a, axis=0, keepdims=True), approx=True)
    wf = wmat("pool_wf", DLSTM, 1)                                       # (32, 1)
    bf_bias = vrow("pool_bf", 1)                                         # (1, 1)
    outs = []
    for b in range(B):
        pooled = jnp.sum(a[:, b:b + 1] * hl[:, b * DLSTM:(b + 1) * DLSTM],
                         axis=0, keepdims=True)                          # (1, 32)
        outs.append(jnp.dot(pooled.astype(bf16), wf, preferred_element_type=f32)
                    + bf_bias)
    o_ref[...] = jnp.concatenate(outs, axis=0)                           # (B, 1)


# ----------------------------- parameter setup --------------------------------
class _ParamGen:
    def __init__(self, seed):
        self._key = jax.random.PRNGKey(seed)
        self._count = 0

    def __call__(self, shape, scale=0.1):
        self._count += 1
        k = jax.random.fold_in(self._key, self._count)
        return np.asarray(scale * jax.random.normal(k, shape, dtype=jnp.float32))


def build_params(seed=1234):
    """Create scaled-down module parameters and pack them into the kernel slabs."""
    pg = _ParamGen(seed)
    H2 = DLSTM

    # -------- logical parameters (WavLM base: conv_bias=False; dropout = eval no-op) ----
    conv1_w = pg((CONV1_K, CONV_DIM))                     # (10, 16)
    conv2_w = pg((CONV2_K, CONV_DIM, CONV_DIM))           # (3, cin, cout)
    gn_g = np.ones(CONV_DIM, np.float32)
    gn_b = np.zeros(CONV_DIM, np.float32)
    fp_w = pg((CONV_DIM, HIDDEN))
    pool_wa, pool_va, pool_wf = pg((H2, POOL_A)), pg((POOL_A, 1)), pg((H2, 1))
    enc = [dict(wqkv=np.concatenate([pg((HIDDEN, HIDDEN)) for _ in range(3)], axis=1),
                wo=pg((HIDDEN, HIDDEN)), w1=pg((HIDDEN, FFN)), w2=pg((FFN, HIDDEN)))
           for _ in range(N_LAYERS)]
    # TODO(synk): when porting real torch weights, b_ih + b_hh must be summed into
    # b_f / b_b and the [i, f, g, o] gate order respected (zero-init here).
    lstm = [dict(wih_f=pg((HIDDEN, 4 * LSTM_H)), wih_b=pg((HIDDEN, 4 * LSTM_H)),
                 whh_f=pg((LSTM_H, 4 * LSTM_H)), whh_b=pg((LSTM_H, 4 * LSTM_H)),
                 b_f=np.zeros(4 * LSTM_H, np.float32),
                 b_b=np.zeros(4 * LSTM_H, np.float32))
            for _ in range(LSTM_LAYERS)]

    # -------- f32 vector slab (one bias / LN vector per row) --------
    v_slab = np.zeros((_V_ROWS_PAD, SLAB_W), np.float32)

    def put_v(name, vec):
        vec = np.asarray(vec, np.float32).reshape(-1)
        v_slab[_VOFF[name], :vec.shape[0]] = vec

    put_v("fp_ln_g", np.ones(CONV_DIM)); put_v("fp_ln_b", np.zeros(CONV_DIM))
    put_v("fp_b", np.zeros(HIDDEN))
    put_v("enc_ln_g", np.ones(HIDDEN)); put_v("enc_ln_b", np.zeros(HIDDEN))
    put_v("pool_ba", np.tile(np.zeros(POOL_A, np.float32), B))
    put_v("pool_bf", np.zeros(1))
    for l in range(N_LAYERS):
        put_v(f"bqkv{l}", np.zeros(3 * HIDDEN)); put_v(f"bo{l}", np.zeros(HIDDEN))
        put_v(f"ln1_g{l}", np.ones(HIDDEN)); put_v(f"ln1_b{l}", np.zeros(HIDDEN))
        put_v(f"b1{l}", np.zeros(FFN)); put_v(f"b2{l}", np.zeros(HIDDEN))
        put_v(f"ln2_g{l}", np.ones(HIDDEN)); put_v(f"ln2_b{l}", np.zeros(HIDDEN))
    for l in range(LSTM_LAYERS):
        row = np.zeros(GATES_W, np.float32)
        for g in range(4):
            for bb in range(B):
                base = g * GW + bb * H2
                row[base:base + LSTM_H] = lstm[l]["b_f"][g * LSTM_H:(g + 1) * LSTM_H]
                row[base + LSTM_H:base + H2] = lstm[l]["b_b"][g * LSTM_H:(g + 1) * LSTM_H]
        put_v(f"lstm_b{l}", row)

    # -------- bf16 matrix slab --------
    w_slab = np.zeros((_W_ROWS_PAD, SLAB_W), np.float32)

    def put_w(name, mat):
        mat = np.asarray(mat, np.float32)
        r, c = mat.shape
        w_slab[_WOFF[name]:_WOFF[name] + r, 0:c] = mat

    tgt2 = (np.arange(CONV2_K)[:, None] + CONV2_S * np.arange(T2)[None, :]).reshape(-1)
    put_w("sel2t", (np.arange(T1)[:, None] == tgt2[None, :]).astype(np.float32))
    for j in range(CONV2_K):
        put_w(f"w2t{j}", conv2_w[j].T)                         # (cout, cin)
    put_w("fp_w", fp_w)
    for l in range(N_LAYERS):
        put_w(f"wqkv{l}", enc[l]["wqkv"]); put_w(f"wo{l}", enc[l]["wo"])
        put_w(f"w1{l}", enc[l]["w1"]); put_w(f"w2{l}", enc[l]["w2"])
    # BiLSTM weights scattered into the [i|f|g|o] x [f0 b0 f1 b1] gate layout,
    # replicated block-diagonally over the two lane-stacked batch elements.
    for l in range(LSTM_LAYERS):
        d_in = HIDDEN                                          # == DLSTM for every layer here
        wih = np.zeros((B * d_in, GATES_W), np.float32)
        whh = np.zeros((CARRY_W, GATES_W), np.float32)
        for bb in range(B):
            for g in range(4):
                base = g * GW + bb * H2
                gsl = slice(g * LSTM_H, (g + 1) * LSTM_H)
                wih[bb * d_in:(bb + 1) * d_in, base:base + LSTM_H] = lstm[l]["wih_f"][:, gsl]
                wih[bb * d_in:(bb + 1) * d_in, base + LSTM_H:base + H2] = lstm[l]["wih_b"][:, gsl]
                r0 = bb * H2
                whh[r0:r0 + LSTM_H, base:base + LSTM_H] = lstm[l]["whh_f"][:, gsl]
                whh[r0 + LSTM_H:r0 + H2, base + LSTM_H:base + H2] = lstm[l]["whh_b"][:, gsl]
        put_w(f"wih{l}", wih); put_w(f"whh{l}", whh)
    # pooling weights, block-diagonal over the two lane-stacked batch elements
    wa_bd = np.zeros((CARRY_W, B * POOL_A), np.float32)
    va_bd = np.zeros((B * POOL_A, B), np.float32)
    for bb in range(B):
        wa_bd[bb * H2:(bb + 1) * H2, bb * POOL_A:(bb + 1) * POOL_A] = pool_wa
        va_bd[bb * POOL_A:(bb + 1) * POOL_A, bb:bb + 1] = pool_va
    put_w("pool_wa", wa_bd); put_w("pool_va", va_bd); put_w("pool_wf", pool_wf)

    # -------- conv1 tap-gather selection + column-oriented conv params --------
    tgt1 = (np.arange(CONV1_K)[:, None] + CONV1_S * np.arange(T1)[None, :]).reshape(-1)
    sel1 = (np.arange(AUDIO_LEN)[:, None] == tgt1[None, :]).astype(np.float32)  # (L, 10*T1)
    conv_cols = np.zeros((CONV_DIM, 16), np.float32)
    conv_cols[:, 0] = gn_g
    conv_cols[:, 1] = gn_b
    conv_cols[:, 2:2 + CONV1_K] = conv1_w.T

    return {
        "sel1": jnp.asarray(sel1).astype(jnp.bfloat16),
        "conv_cols": jnp.asarray(conv_cols),
        "v_slab": jnp.asarray(v_slab),
        "w_slab": jnp.asarray(w_slab).astype(jnp.bfloat16),
    }


# ----------------------------- wrapper ---------------------------------------
@jax.jit
def mos_predictor_forward(params, x):
    """x: (B, AUDIO_LEN) raw audio -> (B, 1) MOS prediction (attention_mask=None path)."""
    assert x.shape == (B, AUDIO_LEN)
    # Single kernel invocation, whole arrays resident in VMEM; both batch
    # elements are processed in one pass (rows / lanes stacked), which is the
    # fast path on single-TensorCore v5e/v6e.
    return pl.pallas_call(
        _mos_forward_kernel,
        out_shape=jax.ShapeDtypeStruct((B, 1), jnp.float32),
    )(x, params["sel1"], params["conv_cols"], params["v_slab"], params["w_slab"])


if __name__ == "__main__":
    params = build_params(seed=1234)
    x = jax.random.normal(jax.random.PRNGKey(0), (B, AUDIO_LEN), dtype=jnp.float32)
    out = jax.block_until_ready(mos_predictor_forward(params, x))
    assert out.shape == (B, 1)
    assert bool(jnp.all(jnp.isfinite(out)))
    print("KERNEL_OK")
</pallas_src>

<mosaic_0001>
module attributes {stable_mosaic.version = 11 : i64} {
  func.func @_mos_forward_kernel(%arg0: memref<2x170xf32, #tpu.memory_space<vmem>>, %arg1: memref<170x330xbf16, #tpu.memory_space<vmem>>, %arg2: memref<16x16xf32, #tpu.memory_space<vmem>>, %arg3: memref<32x256xf32, #tpu.memory_space<vmem>>, %arg4: memref<808x256xbf16, #tpu.memory_space<vmem>>, %arg5: memref<2x1xf32, #tpu.memory_space<vmem>>) attributes {dimension_semantics = [], scalar_prefetch = 0 : i64, scratch_operands = 0 : i64, tpu.core_type = #tpu.core_type<tc>} {
    %c0 = arith.constant 0 : index
    %c0_0 = arith.constant 0 : index
    %0 = vector.load %arg0[%c0, %c0_0] : memref<2x170xf32, #tpu.memory_space<vmem>>, vector<2x170xf32>
    %1 = arith.truncf %0 : vector<2x170xf32> to vector<2x170xbf16>
    %c0_1 = arith.constant 0 : index
    %c0_2 = arith.constant 0 : index
    %2 = vector.load %arg1[%c0_1, %c0_2] : memref<170x330xbf16, #tpu.memory_space<vmem>>, vector<170x330xbf16>
    %cst = arith.constant dense<0.000000e+00> : vector<2x330xf32>
    %3 = tpu.matmul %1, %2, %cst {dimension_numbers = #tpu.dot_dimension_numbers<[1], [0], [0], [1], [0, 0, 1, 1], [], []>} : vector<2x170xbf16>, vector<170x330xbf16>, vector<2x330xf32> -> vector<2x330xf32>
    %c0_3 = arith.constant 0 : index
    %c0_4 = arith.constant 0 : index
    %4 = vector.load %arg2[%c0_3, %c0_4] : memref<16x16xf32, #tpu.memory_space<vmem>>, vector<16x1xf32>
    %c0_5 = arith.constant 0 : index
    %c1 = arith.constant 1 : index
    %5 = vector.load %arg2[%c0_5, %c1] : memref<16x16xf32, #tpu.memory_space<vmem>>, vector<16x1xf32>
    %c0_6 = arith.constant 0 : index
    %c0_7 = arith.constant 0 : index
    %6 = vector.load %arg4[%c0_6, %c0_7] : memref<808x256xbf16, #tpu.memory_space<vmem>>, vector<33x48xbf16>
    %7 = vector.extract_strided_slice %3 {offsets = [0, 0], sizes = [1, 330], strides = [1, 1]} : vector<2x330xf32> to vector<1x330xf32>
    %cst_8 = arith.constant 0.000000e+00 : f32
    %8 = vector.broadcast %cst_8 : f32 to vector<16x33xf32>
    %c0_9 = arith.constant 0 : index
    %c2 = arith.constant 2 : index
    %9 = vector.load %arg2[%c0_9, %c2] : memref<16x16xf32, #tpu.memory_space<vmem>>, vector<16x1xf32>
    %10 = vector.extract_strided_slice %7 {offsets = [0, 0], sizes = [1, 33], strides = [1, 1]} : vector<1x330xf32> to vector<1x33xf32>
    %11 = vector.broadcast %9 : vector<16x1xf32> to vector<16x33xf32>
    %12 = vector.broadcast %10 : vector<1x33xf32> to vector<16x33xf32>
    %13 = arith.mulf %11, %12 : vector<16x33xf32>
    %14 = arith.addf %8, %13 : vector<16x33xf32>
    %c0_10 = arith.constant 0 : index
    %c3 = arith.constant 3 : index
    %15 = vector.load %arg2[%c0_10, %c3] : memref<16x16xf32, #tpu.memory_space<vmem>>, vector<16x1xf32>
    %16 = vector.extract_strided_slice %7 {offsets = [0, 33], sizes = [1, 33], strides = [1, 1]} : vector<1x330xf32> to vector<1x33xf32>
    %17 = vector.broadcast %15 : vector<16x1xf32> to vector<16x33xf32>
    %18 = vector.broadcast %16 : vector<1x33xf32> to vector<16x33xf32>
    %19 = arith.mulf %17, %18 : vector<16x33xf32>
    %20 = arith.addf %14, %19 : vector<16x33xf32>
    %c0_11 = arith.constant 0 : index
    %c4 = arith.constant 4 : index
    %21 = vector.load %arg2[%c0_11, %c4] : memref<16x16xf32, #tpu.memory_space<vmem>>, vector<16x1xf32>
    %22 = vector.extract_strided_slice %7 {offsets = [0, 66], sizes = [1, 33], strides = [1, 1]} : vector<1x330xf32> to vector<1x33xf32>
    %23 = vector.broadcast %21 : vector<16x1xf32> to vector<16x33xf32>
    %24 = vector.broadcast %22 : vector<1x33xf32> to vector<16x33xf32>
    %25 = arith.mulf %23, %24 : vector<16x33xf32>
    %26 = arith.addf %20, %25 : vector<16x33xf32>
    %c0_12 = arith.constant 0 : index
    %c5 = arith.constant 5 : index
    %27 = vector.load %arg2[%c0_12, %c5] : memref<16x16xf32, #tpu.memory_space<vmem>>, vector<16x1xf32>
    %28 = vector.extract_strided_slice %7 {offsets = [0, 99], sizes = [1, 33], strides = [1, 1]} : vector<1x330xf32> to vector<1x33xf32>
    %29 = vector.broadcast %27 : vector<16x1xf32> to vector<16x33xf32>
    %30 = vector.broadcast %28 : vector<1x33xf32> to vector<16x33xf32>
    %31 = arith.mulf %29, %30 : vector<16x33xf32>
    %32 = arith.addf %26, %31 : vector<16x33xf32>
    %c0_13 = arith.constant 0 : index
    %c6 = arith.constant 6 : index
    %33 = vector.load %arg2[%c0_13, %c6] : memref<16x16xf32, #tpu.memory_space<vmem>>, vector<16x1xf32>
    %34 = vector.extract_strided_slice %7 {offsets = [0, 132], sizes = [1, 33], strides = [1, 1]} : vector<1x330xf32> to vector<1x33xf32>
    %35 = vector.broadcast %33 : vector<16x1xf32> to vector<16x33xf32>
    %36 = vector.broadcast %34 : vector<1x33xf32> to vector<16x33xf32>
    %37 = arith.mulf %35, %36 : vector<16x33xf32>
    %38 = arith.addf %32, %37 : vector<16x33xf32>
    %c0_14 = arith.constant 0 : index
    %c7 = arith.constant 7 : index
    %39 = vector.load %arg2[%c0_14, %c7] : memref<16x16xf32, #tpu.memory_space<vmem>>, vector<16x1xf32>
    %40 = vector.extract_strided_slice %7 {offsets = [0, 165], sizes = [1, 33], strides = [1, 1]} : vector<1x330xf32> to vector<1x33xf32>
    %41 = vector.broadcast %39 : vector<16x1xf32> to vector<16x33xf32>
    %42 = vector.broadcast %40 : vector<1x33xf32> to vector<16x33xf32>
    %43 = arith.mulf %41, %42 : vector<16x33xf32>
    %44 = arith.addf %38, %43 : vector<16x33xf32>
    %c0_15 = arith.constant 0 : index
    %c8 = arith.constant 8 : index
    %45 = vector.load %arg2[%c0_15, %c8] : memref<16x16xf32, #tpu.memory_space<vmem>>, vector<16x1xf32>
    %46 = vector.extract_strided_slice %7 {offsets = [0, 198], sizes = [1, 33], strides = [1, 1]} : vector<1x330xf32> to vector<1x33xf32>
    %47 = vector.broadcast %45 : vector<16x1xf32> to vector<16x33xf32>
    %48 = vector.broadcast %46 : vector<1x33xf32> to vector<16x33xf32>
    %49 = arith.mulf %47, %48 : vector<16x33xf32>
    %50 = arith.addf %44, %49 : vector<16x33xf32>
    %c0_16 = arith.constant 0 : index
    %c9 = arith.constant 9 : index
    %51 = vector.load %arg2[%c0_16, %c9] : memref<16x16xf32, #tpu.memory_space<vmem>>, vector<16x1xf32>
    %52 = vector.extract_strided_slice %7 {offsets = [0, 231], sizes = [1, 33], strides = [1, 1]} : vector<1x330xf32> to vector<1x33xf32>
    %53 = vector.broadcast %51 : vector<16x1xf32> to vector<16x33xf32>
    %54 = vector.broadcast %52 : vector<1x33xf32> to vector<16x33xf32>
    %55 = arith.mulf %53, %54 : vector<16x33xf32>
    %56 = arith.addf %50, %55 : vector<16x33xf32>
    %c0_17 = arith.constant 0 : index
    %c10 = arith.constant 10 : index
    %57 = vector.load %arg2[%c0_17, %c10] : memref<16x16xf32, #tpu.memory_space<vmem>>, vector<16x1xf32>
    %58 = vector.extract_strided_slice %7 {offsets = [0, 264], sizes = [1, 33], strides = [1, 1]} : vector<1x330xf32> to vector<1x33xf32>
    %59 = vector.broadcast %57 : vector<16x1xf32> to vector<16x33xf32>
    %60 = vector.broadcast %58 : vector<1x33xf32> to vector<16x33xf32>
    %61 = arith.mulf %59, %60 : vector<16x33xf32>
    %62 = arith.addf %56, %61 : vector<16x33xf32>
    %c0_18 = arith.constant 0 : index
    %c11 = arith.constant 11 : index
    %63 = vector.load %arg2[%c0_18, %c11] : memref<16x16xf32, #tpu.memory_space<vmem>>, vector<16x1xf32>
    %64 = vector.extract_strided_slice %7 {offsets = [0, 297], sizes = [1, 33], strides = [1, 1]} : vector<1x330xf32> to vector<1x33xf32>
    %65 = vector.broadcast %63 : vector<16x1xf32> to vector<16x33xf32>
    %66 = vector.broadcast %64 : vector<1x33xf32> to vector<16x33xf32>
    %67 = arith.mulf %65, %66 : vector<16x33xf32>
    %68 = arith.addf %62, %67 : vector<16x33xf32>
    %cst_19 = arith.constant dense<0.000000e+00> : vector<16xf32>
    %69 = vector.multi_reduction <add>, %68, %cst_19 [1] : vector<16x33xf32> to vector<16xf32>
    %70 = vector.shape_cast %69 : vector<16xf32> to vector<16x1xf32>
    %cst_20 = arith.constant 3.300000e+01 : f32
    %71 = vector.broadcast %cst_20 : f32 to vector<16x1xf32>
    %72 = arith.divf %70, %71 : vector<16x1xf32>
    %73 = vector.broadcast %72 : vector<16x1xf32> to vector<16x33xf32>
    %74 = arith.subf %68, %73 : vector<16x33xf32>
    %75 = arith.mulf %74, %74 : vector<16x33xf32>
    %cst_21 = arith.constant dense<0.000000e+00> : vector<16xf32>
    %76 = vector.multi_reduction <add>, %75, %cst_21 [1] : vector<16x33xf32> to vector<16xf32>
    %77 = vector.shape_cast %76 : vector<16xf32> to vector<16x1xf32>
    %cst_22 = arith.constant 3.300000e+01 : f32
    %78 = vector.broadcast %cst_22 : f32 to vector<16x1xf32>
    %79 = arith.divf %77, %78 : vector<16x1xf32>
    %80 = vector.broadcast %72 : vector<16x1xf32> to vector<16x33xf32>
    %81 = arith.subf %68, %80 : vector<16x33xf32>
    %cst_23 = arith.constant 9.99999974E-6 : f32
    %82 = vector.broadcast %cst_23 : f32 to vector<16x1xf32>
    %83 = arith.addf %79, %82 : vector<16x1xf32>
    %84 = math.rsqrt %83 : vector<16x1xf32>
    %85 = vector.broadcast %84 : vector<16x1xf32> to vector<16x33xf32>
    %86 = arith.mulf %81, %85 : vector<16x33xf32>
    %87 = vector.broadcast %4 : vector<16x1xf32> to vector<16x33xf32>
    %88 = arith.mulf %86, %87 : vector<16x33xf32>
    %89 = vector.broadcast %5 : vector<16x1xf32> to vector<16x33xf32>
    %90 = arith.addf %88, %89 : vector<16x33xf32>
    %91 = arith.mulf %90, %90 : vector<16x33xf32>
    %92 = arith.mulf %90, %91 : vector<16x33xf32>
    %cst_24 = arith.constant 4.471500e-02 : f32
    %93 = vector.broadcast %cst_24 : f32 to vector<16x33xf32>
    %94 = arith.mulf %93, %92 : vector<16x33xf32>
    %95 = arith.addf %90, %94 : vector<16x33xf32>
    %cst_25 = arith.constant 0.797884583 : f32
    %96 = vector.broadcast %cst_25 : f32 to vector<16x33xf32>
    %97 = arith.mulf %96, %95 : vector<16x33xf32>
    %98 = math.tanh %97 : vector<16x33xf32>
    %cst_26 = arith.constant 1.000000e+00 : f32
    %99 = vector.broadcast %cst_26 : f32 to vector<16x33xf32>
    %100 = arith.addf %99, %98 : vector<16x33xf32>
    %cst_27 = arith.constant 5.000000e-01 : f32
    %101 = vector.broadcast %cst_27 : f32 to vector<16x33xf32>
    %102 = arith.mulf %101, %100 : vector<16x33xf32>
    %103 = arith.mulf %90, %102 : vector<16x33xf32>
    %104 = arith.truncf %103 : vector<16x33xf32> to vector<16x33xbf16>
    %cst_28 = arith.constant dense<0.000000e+00> : vector<16x48xf32>
    %105 = tpu.matmul %104, %6, %cst_28 {dimension_numbers = #tpu.dot_dimension_numbers<[1], [0], [0], [1], [0, 0, 1, 1], [], []>} : vector<16x33xbf16>, vector<33x48xbf16>, vector<16x48xf32> -> vector<16x48xf32>
    %cst_29 = arith.constant 0.000000e+00 : f32
    %106 = vector.broadcast %cst_29 : f32 to vector<16x16xf32>
    %c33 = arith.constant 33 : index
    %c0_30 = arith.constant 0 : index
    %107 = vector.load %arg4[%c33, %c0_30] : memref<808x256xbf16, #tpu.memory_space<vmem>>, vector<16x16xbf16>
    %108 = vector.extract_strided_slice %105 {offsets = [0, 0], sizes = [16, 16], strides = [1, 1]} : vector<16x48xf32> to vector<16x16xf32>
    %109 = arith.truncf %108 : vector<16x16xf32> to vector<16x16xbf16>
    %cst_31 = arith.constant dense<0.000000e+00> : vector<16x16xf32>
    %110 = tpu.matmul %107, %109, %cst_31 {dimension_numbers = #tpu.dot_dimension_numbers<[1], [0], [0], [1], [0, 0, 1, 1], [], []>} : vector<16x16xbf16>, vector<16x16xbf16>, vector<16x16xf32> -> vector<16x16xf32>
    %111 = arith.addf %106, %110 : vector<16x16xf32>
    %c49 = arith.constant 49 : index
    %c0_32 = arith.constant 0 : index
    %112 = vector.load %arg4[%c49, %c0_32] : memref<808x256xbf16, #tpu.memory_space<vmem>>, vector<16x16xbf16>
    %113 = vector.extract_strided_slice %105 {offsets = [0, 16], sizes = [16, 16], strides = [1, 1]} : vector<16x48xf32> to vector<16x16xf32>
    %114 = arith.truncf %113 : vector<16x16xf32> to vector<16x16xbf16>
    %cst_33 = arith.constant dense<0.000000e+00> : vector<16x16xf32>
    %115 = tpu.matmul %112, %114, %cst_33 {dimension_numbers = #tpu.dot_dimension_numbers<[1], [0], [0], [1], [0, 0, 1, 1], [], []>} : vector<16x16xbf16>, vector<16x16xbf16>, vector<16x16xf32> -> vector<16x16xf32>
    %116 = arith.addf %111, %115 : vector<16x16xf32>
    %c65 = arith.constant 65 : index
    %c0_34 = arith.constant 0 : index
    %117 = vector.load %arg4[%c65, %c0_34] : memref<808x256xbf16, #tpu.memory_space<vmem>>, vector<16x16xbf16>
    %118 = vector.extract_strided_slice %105 {offsets = [0, 32], sizes = [16, 16], strides = [1, 1]} : vector<16x48xf32> to vector<16x16xf32>
    %119 = arith.truncf %118 : vector<16x16xf32> to vector<16x16xbf16>
    %cst_35 = arith.constant dense<0.000000e+00> : vector<16x16xf32>
    %120 = tpu.matmul %117, %119, %cst_35 {dimension_numbers = #tpu.dot_dimension_numbers<[1], [0], [0], [1], [0, 0, 1, 1], [], []>} : vector<16x16xbf16>, vector<16x16xbf16>, vector<16x16xf32> -> vector<16x16xf32>
    %121 = arith.addf %116, %120 : vector<16x16xf32>
    %122 = arith.mulf %121, %121 : vector<16x16xf32>
    %123 = arith.mulf %121, %122 : vector<16x16xf32>
    %cst_36 = arith.constant 4.471500e-02 : f32
    %124 = vector.broadcast %cst_36 : f32 to vector<16x16xf32>
    %125 = arith.mulf %124, %123 : vector<16x16xf32>
    %126 = arith.addf %121, %125 : vector<16x16xf32>
    %cst_37 = arith.constant 0.797884583 : f32
    %127 = vector.broadcast %cst_37 : f32 to vector<16x16xf32>
    %128 = arith.mulf %127, %126 : vector<16x16xf32>
    %129 = math.tanh %128 : vector<16x16xf32>
    %cst_38 = arith.constant 1.000000e+00 : f32
    %130 = vector.broadcast %cst_38 : f32 to vector<16x16xf32>
    %131 = arith.addf %130, %129 : vector<16x16xf32>
    %cst_39 = arith.constant 5.000000e-01 : f32
    %132 = vector.broadcast %cst_39 : f32 to vector<16x16xf32>
    %133 = arith.mulf %132, %131 : vector<16x16xf32>
    %134 = arith.mulf %121, %133 : vector<16x16xf32>
    %135 = vector.extract_strided_slice %3 {offsets = [1, 0], sizes = [1, 330], strides = [1, 1]} : vector<2x330xf32> to vector<1x330xf32>
    %cst_40 = arith.constant 0.000000e+00 : f32
    %136 = vector.broadcast %cst_40 : f32 to vector<16x33xf32>
    %c0_41 = arith.constant 0 : index
    %c2_42 = arith.constant 2 : index
    %137 = vector.load %arg2[%c0_41, %c2_42] : memref<16x16xf32, #tpu.memory_space<vmem>>, vector<16x1xf32>
    %138 = vector.extract_strided_slice %135 {offsets = [0, 0], sizes = [1, 33], strides = [1, 1]} : vector<1x330xf32> to vector<1x33xf32>
    %139 = vector.broadcast %137 : vector<16x1xf32> to vector<16x33xf32>
    %140 = vector.broadcast %138 : vector<1x33xf32> to vector<16x33xf32>
    %141 = arith.mulf %139, %140 : vector<16x33xf32>
    %142 = arith.addf %136, %141 : vector<16x33xf32>
    %c0_43 = arith.constant 0 : index
    %c3_44 = arith.constant 3 : index
    %143 = vector.load %arg2[%c0_43, %c3_44] : memref<16x16xf32, #tpu.memory_space<vmem>>, vector<16x1xf32>
    %144 = vector.extract_strided_slice %135 {offsets = [0, 33], sizes = [1, 33], strides = [1, 1]} : vector<1x330xf32> to vector<1x33xf32>
    %145 = vector.broadcast %143 : vector<16x1xf32> to vector<16x33xf32>
    %146 = vector.broadcast %144 : vector<1x33xf32> to vector<16x33xf32>
    %147 = arith.mulf %145, %146 : vector<16x33xf32>
    %148 = arith.addf %142, %147 : vector<16x33xf32>
    %c0_45 = arith.constant 0 : index
    %c4_46 = arith.constant 4 : index
    %149 = vector.load %arg2[%c0_45, %c4_46] : memref<16x16xf32, #tpu.memory_space<vmem>>, vector<16x1xf32>
    %150 = vector.extract_strided_slice %135 {offsets = [0, 66], sizes = [1, 33], strides = [1, 1]} : vector<1x330xf32> to vector<1x33xf32>
    %151 = vector.broadcast %149 : vector<16x1xf32> to vector<16x33xf32>
    %152 = vector.broadcast %150 : vector<1x33xf32> to vector<16x33xf32>
    %153 = arith.mulf %151, %152 : vector<16x33xf32>
    %154 = arith.addf %148, %153 : vector<16x33xf32>
    %c0_47 = arith.constant 0 : index
    %c5_48 = arith.constant 5 : index
    %155 = vector.load %arg2[%c0_47, %c5_48] : memref<16x16xf32, #tpu.memory_space<vmem>>, vector<16x1xf32>
    %156 = vector.extract_strided_slice %135 {offsets = [0, 99], sizes = [1, 33], strides = [1, 1]} : vector<1x330xf32> to vector<1x33xf32>
    %157 = vector.broadcast %155 : vector<16x1xf32> to vector<16x33xf32>
    %158 = vector.broadcast %156 : vector<1x33xf32> to vector<16x33xf32>
    %159 = arith.mulf %157, %158 : vector<16x33xf32>
    %160 = arith.addf %154, %159 : vector<16x33xf32>
    %c0_49 = arith.constant 0 : index
    %c6_50 = arith.constant 6 : index
    %161 = vector.load %arg2[%c0_49, %c6_50] : memref<16x16xf32, #tpu.memory_space<vmem>>, vector<16x1xf32>
    %162 = vector.extract_strided_slice %135 {offsets = [0, 132], sizes = [1, 33], strides = [1, 1]} : vector<1x330xf32> to vector<1x33xf32>
    %163 = vector.broadcast %161 : vector<16x1xf32> to vector<16x33xf32>
    %164 = vector.broadcast %162 : vector<1x33xf32> to vector<16x33xf32>
    %165 = arith.mulf %163, %164 : vector<16x33xf32>
    %166 = arith.addf %160, %165 : vector<16x33xf32>
    %c0_51 = arith.constant 0 : index
    %c7_52 = arith.constant 7 : index
    %167 = vector.load %arg2[%c0_51, %c7_52] : memref<16x16xf32, #tpu.memory_space<vmem>>, vector<16x1xf32>
    %168 = vector.extract_strided_slice %135 {offsets = [0, 165], sizes = [1, 33], strides = [1, 1]} : vector<1x330xf32> to vector<1x33xf32>
    %169 = vector.broadcast %167 : vector<16x1xf32> to vector<16x33xf32>
    %170 = vector.broadcast %168 : vector<1x33xf32> to vector<16x33xf32>
    %171 = arith.mulf %169, %170 : vector<16x33xf32>
    %172 = arith.addf %166, %171 : vector<16x33xf32>
    %c0_53 = arith.constant 0 : index
    %c8_54 = arith.constant 8 : index
    %173 = vector.load %arg2[%c0_53, %c8_54] : memref<16x16xf32, #tpu.memory_space<vmem>>, vector<16x1xf32>
    %174 = vector.extract_strided_slice %135 {offsets = [0, 198], sizes = [1, 33], strides = [1, 1]} : vector<1x330xf32> to vector<1x33xf32>
    %175 = vector.broadcast %173 : vector<16x1xf32> to vector<16x33xf32>
    %176 = vector.broadcast %174 : vector<1x33xf32> to vector<16x33xf32>
    %177 = arith.mulf %175, %176 : vector<16x33xf32>
    %178 = arith.addf %172, %177 : vector<16x33xf32>
    %c0_55 = arith.constant 0 : index
    %c9_56 = arith.constant 9 : index
    %179 = vector.load %arg2[%c0_55, %c9_56] : memref<16x16xf32, #tpu.memory_space<vmem>>, vector<16x1xf32>
    %180 = vector.extract_strided_slice %135 {offsets = [0, 231], sizes = [1, 33], strides = [1, 1]} : vector<1x330xf32> to vector<1x33xf32>
    %181 = vector.broadcast %179 : vector<16x1xf32> to vector<16x33xf32>
    %182 = vector.broadcast %180 : vector<1x33xf32> to vector<16x33xf32>
    %183 = arith.mulf %181, %182 : vector<16x33xf32>
    %184 = arith.addf %178, %183 : vector<16x33xf32>
    %c0_57 = arith.constant 0 : index
    %c10_58 = arith.constant 10 : index
    %185 = vector.load %arg2[%c0_57, %c10_58] : memref<16x16xf32, #tpu.memory_space<vmem>>, vector<16x1xf32>
    %186 = vector.extract_strided_slice %135 {offsets = [0, 264], sizes = [1, 33], strides = [1, 1]} : vector<1x330xf32> to vector<1x33xf32>
    %187 = vector.broadcast %185 : vector<16x1xf32> to vector<16x33xf32>
    %188 = vector.broadcast %186 : vector<1x33xf32> to vector<16x33xf32>
    %189 = arith.mulf %187, %188 : vector<16x33xf32>
    %190 = arith.addf %184, %189 : vector<16x33xf32>
    %c0_59 = arith.constant 0 : index
    %c11_60 = arith.constant 11 : index
    %191 = vector.load %arg2[%c0_59, %c11_60] : memref<16x16xf32, #tpu.memory_space<vmem>>, vector<16x1xf32>
    %192 = vector.extract_strided_slice %135 {offsets = [0, 297], sizes = [1, 33], strides = [1, 1]} : vector<1x330xf32> to vector<1x33xf32>
    %193 = vector.broadcast %191 : vector<16x1xf32> to vector<16x33xf32>
    %194 = vector.broadcast %192 : vector<1x33xf32> to vector<16x33xf32>
    %195 = arith.mulf %193, %194 : vector<16x33xf32>
    %196 = arith.addf %190, %195 : vector<16x33xf32>
    %cst_61 = arith.constant dense<0.000000e+00> : vector<16xf32>
    %197 = vector.multi_reduction <add>, %196, %cst_61 [1] : vector<16x33xf32> to vector<16xf32>
    %198 = vector.shape_cast %197 : vector<16xf32> to vector<16x1xf32>
    %cst_62 = arith.constant 3.300000e+01 : f32
    %199 = vector.broadcast %cst_62 : f32 to vector<16x1xf32>
    %200 = arith.divf %198, %199 : vector<16x1xf32>
    %201 = vector.broadcast %200 : vector<16x1xf32> to vector<16x33xf32>
    %202 = arith.subf %196, %201 : vector<16x33xf32>
    %203 = arith.mulf %202, %202 : vector<16x33xf32>
    %cst_63 = arith.constant dense<0.000000e+00> : vector<16xf32>
    %204 = vector.multi_reduction <add>, %203, %cst_63 [1] : vector<16x33xf32> to vector<16xf32>
    %205 = vector.shape_cast %204 : vector<16xf32> to vector<16x1xf32>
    %cst_64 = arith.constant 3.300000e+01 : f32
    %206 = vector.broadcast %cst_64 : f32 to vector<16x1xf32>
    %207 = arith.divf %205, %206 : vector<16x1xf32>
    %208 = vector.broadcast %200 : vector<16x1xf32> to vector<16x33xf32>
    %209 = arith.subf %196, %208 : vector<16x33xf32>
    %cst_65 = arith.constant 9.99999974E-6 : f32
    %210 = vector.broadcast %cst_65 : f32 to vector<16x1xf32>
    %211 = arith.addf %207, %210 : vector<16x1xf32>
    %212 = math.rsqrt %211 : vector<16x1xf32>
    %213 = vector.broadcast %212 : vector<16x1xf32> to vector<16x33xf32>
    %214 = arith.mulf %209, %213 : vector<16x33xf32>
    %215 = vector.broadcast %4 : vector<16x1xf32> to vector<16x33xf32>
    %216 = arith.mulf %214, %215 : vector<16x33xf32>
    %217 = vector.broadcast %5 : vector<16x1xf32> to vector<16x33xf32>
    %218 = arith.addf %216, %217 : vector<16x33xf32>
    %219 = arith.mulf %218, %218 : vector<16x33xf32>
    %220 = arith.mulf %218, %219 : vector<16x33xf32>
    %cst_66 = arith.constant 4.471500e-02 : f32
    %221 = vector.broadcast %cst_66 : f32 to vector<16x33xf32>
    %222 = arith.mulf %221, %220 : vector<16x33xf32>
    %223 = arith.addf %218, %222 : vector<16x33xf32>
    %cst_67 = arith.constant 0.797884583 : f32
    %224 = vector.broadcast %cst_67 : f32 to vector<16x33xf32>
    %225 = arith.mulf %224, %223 : vector<16x33xf32>
    %226 = math.tanh %225 : vector<16x33xf32>
    %cst_68 = arith.constant 1.000000e+00 : f32
    %227 = vector.broadcast %cst_68 : f32 to vector<16x33xf32>
    %228 = arith.addf %227, %226 : vector<16x33xf32>
    %cst_69 = arith.constant 5.000000e-01 : f32
    %229 = vector.broadcast %cst_69 : f32 to vector<16x33xf32>
    %230 = arith.mulf %229, %228 : vector<16x33xf32>
    %231 = arith.mulf %218, %230 : vector<16x33xf32>
    %232 = arith.truncf %231 : vector<16x33xf32> to vector<16x33xbf16>
    %cst_70 = arith.constant dense<0.000000e+00> : vector<16x48xf32>
    %233 = tpu.matmul %232, %6, %cst_70 {dimension_numbers = #tpu.dot_dimension_numbers<[1], [0], [0], [1], [0, 0, 1, 1], [], []>} : vector<16x33xbf16>, vector<33x48xbf16>, vector<16x48xf32> -> vector<16x48xf32>
    %cst_71 = arith.constant 0.000000e+00 : f32
    %234 = vector.broadcast %cst_71 : f32 to vector<16x16xf32>
    %c33_72 = arith.constant 33 : index
    %c0_73 = arith.constant 0 : index
    %235 = vector.load %arg4[%c33_72, %c0_73] : memref<808x256xbf16, #tpu.memory_space<vmem>>, vector<16x16xbf16>
    %236 = vector.extract_strided_slice %233 {offsets = [0, 0], sizes = [16, 16], strides = [1, 1]} : vector<16x48xf32> to vector<16x16xf32>
    %237 = arith.truncf %236 : vector<16x16xf32> to vector<16x16xbf16>
    %cst_74 = arith.constant dense<0.000000e+00> : vector<16x16xf32>
    %238 = tpu.matmul %235, %237, %cst_74 {dimension_numbers = #tpu.dot_dimension_numbers<[1], [0], [0], [1], [0, 0, 1, 1], [], []>} : vector<16x16xbf16>, vector<16x16xbf16>, vector<16x16xf32> -> vector<16x16xf32>
    %239 = arith.addf %234, %238 : vector<16x16xf32>
    %c49_75 = arith.constant 49 : index
    %c0_76 = arith.constant 0 : index
    %240 = vector.load %arg4[%c49_75, %c0_76] : memref<808x256xbf16, #tpu.memory_space<vmem>>, vector<16x16xbf16>
    %241 = vector.extract_strided_slice %233 {offsets = [0, 16], sizes = [16, 16], strides = [1, 1]} : vector<16x48xf32> to vector<16x16xf32>
    %242 = arith.truncf %241 : vector<16x16xf32> to vector<16x16xbf16>
    %cst_77 = arith.constant dense<0.000000e+00> : vector<16x16xf32>
    %243 = tpu.matmul %240, %242, %cst_77 {dimension_numbers = #tpu.dot_dimension_numbers<[1], [0], [0], [1], [0, 0, 1, 1], [], []>} : vector<16x16xbf16>, vector<16x16xbf16>, vector<16x16xf32> -> vector<16x16xf32>
    %244 = arith.addf %239, %243 : vector<16x16xf32>
    %c65_78 = arith.constant 65 : index
    %c0_79 = arith.constant 0 : index
    %245 = vector.load %arg4[%c65_78, %c0_79] : memref<808x256xbf16, #tpu.memory_space<vmem>>, vector<16x16xbf16>
    %246 = vector.extract_strided_slice %233 {offsets = [0, 32], sizes = [16, 16], strides = [1, 1]} : vector<16x48xf32> to vector<16x16xf32>
    %247 = arith.truncf %246 : vector<16x16xf32> to vector<16x16xbf16>
    %cst_80 = arith.constant dense<0.000000e+00> : vector<16x16xf32>
    %248 = tpu.matmul %245, %247, %cst_80 {dimension_numbers = #tpu.dot_dimension_numbers<[1], [0], [0], [1], [0, 0, 1, 1], [], []>} : vector<16x16xbf16>, vector<16x16xbf16>, vector<16x16xf32> -> vector<16x16xf32>
    %249 = arith.addf %244, %248 : vector<16x16xf32>
    %250 = arith.mulf %249, %249 : vector<16x16xf32>
    %251 = arith.mulf %249, %250 : vector<16x16xf32>
    %cst_81 = arith.constant 4.471500e-02 : f32
    %252 = vector.broadcast %cst_81 : f32 to vector<16x16xf32>
    %253 = arith.mulf %252, %251 : vector<16x16xf32>
    %254 = arith.addf %249, %253 : vector<16x16xf32>
    %cst_82 = arith.constant 0.797884583 : f32
    %255 = vector.broadcast %cst_82 : f32 to vector<16x16xf32>
    %256 = arith.mulf %255, %254 : vector<16x16xf32>
    %257 = math.tanh %256 : vector<16x16xf32>
    %cst_83 = arith.constant 1.000000e+00 : f32
    %258 = vector.broadcast %cst_83 : f32 to vector<16x16xf32>
    %259 = arith.addf %258, %257 : vector<16x16xf32>
    %cst_84 = arith.constant 5.000000e-01 : f32
    %260 = vector.broadcast %cst_84 : f32 to vector<16x16xf32>
    %261 = arith.mulf %260, %259 : vector<16x16xf32>
    %262 = arith.mulf %249, %261 : vector<16x16xf32>
    %263 = tpu.concatenate %134, %262 in 1 : vector<16x16xf32>, vector<16x16xf32> -> vector<16x32xf32>
    %264 = tpu.transpose %263, [1, 0] : vector<16x32xf32> -> vector<32x16xf32>
    %c0_85 = arith.constant 0 : index
    %c0_86 = arith.constant 0 : index
    %265 = vector.load %arg3[%c0_85, %c0_86] : memref<32x256xf32, #tpu.memory_space<vmem>>, vector<1x16xf32>
    %c1_87 = arith.constant 1 : index
    %c0_88 = arith.constant 0 : index
    %266 = vector.load %arg3[%c1_87, %c0_88] : memref<32x256xf32, #tpu.memory_space<vmem>>, vector<1x16xf32>
    %cst_89 = arith.constant dense<0.000000e+00> : vector<32xf32>
    %267 = vector.multi_reduction <add>, %264, %cst_89 [1] : vector<32x16xf32> to vector<32xf32>
    %268 = vector.shape_cast %267 : vector<32xf32> to vector<32x1xf32>
    %cst_90 = arith.constant 1.600000e+01 : f32
    %269 = vector.broadcast %cst_90 : f32 to vector<32x1xf32>
    %270 = arith.divf %268, %269 : vector<32x1xf32>
    %271 = vector.broadcast %270 : vector<32x1xf32> to vector<32x16xf32>
    %272 = arith.subf %264, %271 : vector<32x16xf32>
    %273 = arith.mulf %272, %272 : vector<32x16xf32>
    %cst_91 = arith.constant dense<0.000000e+00> : vector<32xf32>
    %274 = vector.multi_reduction <add>, %273, %cst_91 [1] : vector<32x16xf32> to vector<32xf32>
    %275 = vector.shape_cast %274 : vector<32xf32> to vector<32x1xf32>
    %cst_92 = arith.constant 1.600000e+01 : f32
    %276 = vector.broadcast %cst_92 : f32 to vector<32x1xf32>
    %277 = arith.divf %275, %276 : vector<32x1xf32>
    %278 = vector.broadcast %270 : vector<32x1xf32> to vector<32x16xf32>
    %279 = arith.subf %264, %278 : vector<32x16xf32>
    %cst_93 = arith.constant 9.99999974E-6 : f32
    %280 = vector.broadcast %cst_93 : f32 to vector<32x1xf32>
    %281 = arith.addf %277, %280 : vector<32x1xf32>
    %282 = math.rsqrt %281 : vector<32x1xf32>
    %283 = vector.broadcast %282 : vector<32x1xf32> to vector<32x16xf32>
    %284 = arith.mulf %279, %283 : vector<32x16xf32>
    %285 = vector.broadcast %265 : vector<1x16xf32> to vector<32x16xf32>
    %286 = arith.mulf %284, %285 : vector<32x16xf32>
    %287 = vector.broadcast %266 : vector<1x16xf32> to vector<32x16xf32>
    %288 = arith.addf %286, %287 : vector<32x16xf32>
    %289 = arith.truncf %288 : vector<32x16xf32> to vector<32x16xbf16>
    %c81 = arith.constant 81 : index
    %c0_94 = arith.constant 0 : index
    %290 = vector.load %arg4[%c81, %c0_94] : memref<808x256xbf16, #tpu.memory_space<vmem>>, vector<16x32xbf16>
    %cst_95 = arith.constant dense<0.000000e+00> : vector<32x32xf32>
    %291 = tpu.matmul %289, %290, %cst_95 {dimension_numbers = #tpu.dot_dimension_numbers<[1], [0], [0], [1], [0, 0, 1, 1], [], []>} : vector<32x16xbf16>, vector<16x32xbf16>, vector<32x32xf32> -> vector<32x32xf32>
    %c2_96 = arith.constant 2 : index
    %c0_97 = arith.constant 0 : index
    %292 = vector.load %arg3[%c2_96, %c0_97] : memref<32x256xf32, #tpu.memory_space<vmem>>, vector<1x32xf32>
    %293 = vector.broadcast %292 : vector<1x32xf32> to vector<32x32xf32>
    %294 = arith.addf %291, %293 : vector<32x32xf32>
    %c3_98 = arith.constant 3 : index
    %c0_99 = arith.constant 0 : index
    %295 = vector.load %arg3[%c3_98, %c0_99] : memref<32x256xf32, #tpu.memory_space<vmem>>, vector<1x32xf32>
    %c4_100 = arith.constant 4 : index
    %c0_101 = arith.constant 0 : index
    %296 = vector.load %arg3[%c4_100, %c0_101] : memref<32x256xf32, #tpu.memory_space<vmem>>, vector<1x32xf32>
    %cst_102 = arith.constant dense<0.000000e+00> : vector<32xf32>
    %297 = vector.multi_reduction <add>, %294, %cst_102 [1] : vector<32x32xf32> to vector<32xf32>
    %298 = vector.shape_cast %297 : vector<32xf32> to vector<32x1xf32>
    %cst_103 = arith.constant 3.200000e+01 : f32
    %299 = vector.broadcast %cst_103 : f32 to vector<32x1xf32>
    %300 = arith.divf %298, %299 : vector<32x1xf32>
    %301 = vector.broadcast %300 : vector<32x1xf32> to vector<32x32xf32>
    %302 = arith.subf %294, %301 : vector<32x32xf32>
    %303 = arith.mulf %302, %302 : vector<32x32xf32>
    %cst_104 = arith.constant dense<0.000000e+00> : vector<32xf32>
    %304 = vector.multi_reduction <add>, %303, %cst_104 [1] : vector<32x32xf32> to vector<32xf32>
    %305 = vector.shape_cast %304 : vector<32xf32> to vector<32x1xf32>
    %cst_105 = arith.constant 3.200000e+01 : f32
    %306 = vector.broadcast %cst_105 : f32 to vector<32x1xf32>
    %307 = arith.divf %305, %306 : vector<32x1xf32>
    %308 = vector.broadcast %300 : vector<32x1xf32> to vector<32x32xf32>
    %309 = arith.subf %294, %308 : vector<32x32xf32>
    %cst_106 = arith.constant 9.99999974E-6 : f32
    %310 = vector.broadcast %cst_106 : f32 to vector<32x1xf32>
    %311 = arith.addf %307, %310 : vector<32x1xf32>
    %312 = math.rsqrt %311 : vector<32x1xf32>
    %313 = vector.broadcast %312 : vector<32x1xf32> to vector<32x32xf32>
    %314 = arith.mulf %309, %313 : vector<32x32xf32>
    %315 = vector.broadcast %295 : vector<1x32xf32> to vector<32x32xf32>
    %316 = arith.mulf %314, %315 : vector<32x32xf32>
    %317 = vector.broadcast %296 : vector<1x32xf32> to vector<32x32xf32>
    %318 = arith.addf %316, %317 : vector<32x32xf32>
    %319 = arith.truncf %318 : vector<32x32xf32> to vector<32x32xbf16>
    %c97 = arith.constant 97 : index
    %c0_107 = arith.constant 0 : index
    %320 = vector.load %arg4[%c97, %c0_107] : memref<808x256xbf16, #tpu.memory_space<vmem>>, vector<32x96xbf16>
    %cst_108 = arith.constant dense<0.000000e+00> : vector<32x96xf32>
    %321 = tpu.matmul %319, %320, %cst_108 {dimension_numbers = #tpu.dot_dimension_numbers<[1], [0], [0], [1], [0, 0, 1, 1], [], []>} : vector<32x32xbf16>, vector<32x96xbf16>, vector<32x96xf32> -> vector<32x96xf32>
    %c7_109 = arith.constant 7 : index
    %c0_110 = arith.constant 0 : index
    %322 = vector.load %arg3[%c7_109, %c0_110] : memref<32x256xf32, #tpu.memory_space<vmem>>, vector<1x96xf32>
    %323 = vector.broadcast %322 : vector<1x96xf32> to vector<32x96xf32>
    %324 = arith.addf %321, %323 : vector<32x96xf32>
    %325 = arith.truncf %324 : vector<32x96xf32> to vector<32x96xbf16>
    %326 = vector.extract_strided_slice %325 {offsets = [0, 0], sizes = [16, 32], strides = [1, 1]} : vector<32x96xbf16> to vector<16x32xbf16>
    %327 = vector.extract_strided_slice %325 {offsets = [0, 32], sizes = [16, 32], strides = [1, 1]} : vector<32x96xbf16> to vector<16x32xbf16>
    %328 = vector.extract_strided_slice %325 {offsets = [0, 64], sizes = [16, 32], strides = [1, 1]} : vector<32x96xbf16> to vector<16x32xbf16>
    %329 = vector.extract_strided_slice %326 {offsets = [0, 0], sizes = [16, 8], strides = [1, 1]} : vector<16x32xbf16> to vector<16x8xbf16>
    %330 = vector.extract_strided_slice %327 {offsets = [0, 0], sizes = [16, 8], strides = [1, 1]} : vector<16x32xbf16> to vector<16x8xbf16>
    %cst_111 = arith.constant dense<0.000000e+00> : vector<16x16xf32>
    %331 = tpu.matmul %329, %330, %cst_111 {dimension_numbers = #tpu.dot_dimension_numbers<[1], [1], [0], [0], [0, 0, 1, 0], [], []>} : vector<16x8xbf16>, vector<16x8xbf16>, vector<16x16xf32> -> vector<16x16xf32>
    %cst_112 = arith.constant 0.353553385 : f32
    %332 = vector.broadcast %cst_112 : f32 to vector<16x16xf32>
    %333 = arith.mulf %331, %332 : vector<16x16xf32>
    %cst_113 = arith.constant dense<0xFF800000> : vector<16xf32>
    %334 = vector.multi_reduction <maximumf>, %333, %cst_113 [1] : vector<16x16xf32> to vector<16xf32>
    %335 = vector.shape_cast %334 : vector<16xf32> to vector<16x1xf32>
    %336 = vector.broadcast %335 : vector<16x1xf32> to vector<16x16xf32>
    %337 = arith.subf %333, %336 : vector<16x16xf32>
    %338 = math.exp %337 : vector<16x16xf32>
    %cst_114 = arith.constant dense<0.000000e+00> : vector<16xf32>
    %339 = vector.multi_reduction <add>, %338, %cst_114 [1] : vector<16x16xf32> to vector<16xf32>
    %340 = vector.shape_cast %339 : vector<16xf32> to vector<16x1xf32>
    %341 = tpu.reciprocal %340 {approx = true} : vector<16x1xf32> -> vector<16x1xf32>
    %342 = vector.broadcast %341 : vector<16x1xf32> to vector<16x16xf32>
    %343 = arith.mulf %338, %342 : vector<16x16xf32>
    %344 = arith.truncf %343 : vector<16x16xf32> to vector<16x16xbf16>
    %345 = vector.extract_strided_slice %328 {offsets = [0, 0], sizes = [16, 8], strides = [1, 1]} : vector<16x32xbf16> to vector<16x8xbf16>
    %cst_115 = arith.constant dense<0.000000e+00> : vector<16x8xf32>
    %346 = tpu.matmul %344, %345, %cst_115 {dimension_numbers = #tpu.dot_dimension_numbers<[1], [0], [0], [1], [0, 0, 1, 1], [], []>} : vector<16x16xbf16>, vector<16x8xbf16>, vector<16x8xf32> -> vector<16x8xf32>
    %347 = vector.extract_strided_slice %326 {offsets = [0, 8], sizes = [16, 8], strides = [1, 1]} : vector<16x32xbf16> to vector<16x8xbf16>
    %348 = vector.extract_strided_slice %327 {offsets = [0, 8], sizes = [16, 8], strides = [1, 1]} : vector<16x32xbf16> to vector<16x8xbf16>
    %cst_116 = arith.constant dense<0.000000e+00> : vector<16x16xf32>
    %349 = tpu.matmul %347, %348, %cst_116 {dimension_numbers = #tpu.dot_dimension_numbers<[1], [1], [0], [0], [0, 0, 1, 0], [], []>} : vector<16x8xbf16>, vector<16x8xbf16>, vector<16x16xf32> -> vector<16x16xf32>
    %cst_117 = arith.constant 0.353553385 : f32
    %350 = vector.broadcast %cst_117 : f32 to vector<16x16xf32>
    %351 = arith.mulf %349, %350 : vector<16x16xf32>
    %cst_118 = arith.constant dense<0xFF800000> : vector<16xf32>
    %352 = vector.multi_reduction <maximumf>, %351, %cst_118 [1] : vector<16x16xf32> to vector<16xf32>
    %353 = vector.shape_cast %352 : vector<16xf32> to vector<16x1xf32>
    %354 = vector.broadcast %353 : vector<16x1xf32> to vector<16x16xf32>
    %355 = arith.subf %351, %354 : vector<16x16xf32>
    %356 = math.exp %355 : vector<16x16xf32>
    %cst_119 = arith.constant dense<0.000000e+00> : vector<16xf32>
    %357 = vector.multi_reduction <add>, %356, %cst_119 [1] : vector<16x16xf32> to vector<16xf32>
    %358 = vector.shape_cast %357 : vector<16xf32> to vector<16x1xf32>
    %359 = tpu.reciprocal %358 {approx = true} : vector<16x1xf32> -> vector<16x1xf32>
    %360 = vector.broadcast %359 : vector<16x1xf32> to vector<16x16xf32>
    %361 = arith.mulf %356, %360 : vector<16x16xf32>
    %362 = arith.truncf %361 : vector<16x16xf32> to vector<16x16xbf16>
    %363 = vector.extract_strided_slice %328 {offsets = [0, 8], sizes = [16, 8], strides = [1, 1]} : vector<16x32xbf16> to vector<16x8xbf16>
    %cst_120 = arith.constant dense<0.000000e+00> : vector<16x8xf32>
    %364 = tpu.matmul %362, %363, %cst_120 {dimension_numbers = #tpu.dot_dimension_numbers<[1], [0], [0], [1], [0, 0, 1, 1], [], []>} : vector<16x16xbf16>, vector<16x8xbf16>, vector<16x8xf32> -> vector<16x8xf32>
    %365 = vector.extract_strided_slice %326 {offsets = [0, 16], sizes = [16, 8], strides = [1, 1]} : vector<16x32xbf16> to vector<16x8xbf16>
    %366 = vector.extract_strided_slice %327 {offsets = [0, 16], sizes = [16, 8], strides = [1, 1]} : vector<16x32xbf16> to vector<16x8xbf16>
    %cst_121 = arith.constant dense<0.000000e+00> : vector<16x16xf32>
    %367 = tpu.matmul %365, %366, %cst_121 {dimension_numbers = #tpu.dot_dimension_numbers<[1], [1], [0], [0], [0, 0, 1, 0], [], []>} : vector<16x8xbf16>, vector<16x8xbf16>, vector<16x16xf32> -> vector<16x16xf32>
    %cst_122 = arith.constant 0.353553385 : f32
    %368 = vector.broadcast %cst_122 : f32 to vector<16x16xf32>
    %369 = arith.mulf %367, %368 : vector<16x16xf32>
    %cst_123 = arith.constant dense<0xFF800000> : vector<16xf32>
    %370 = vector.multi_reduction <maximumf>, %369, %cst_123 [1] : vector<16x16xf32> to vector<16xf32>
    %371 = vector.shape_cast %370 : vector<16xf32> to vector<16x1xf32>
    %372 = vector.broadcast %371 : vector<16x1xf32> to vector<16x16xf32>
    %373 = arith.subf %369, %372 : vector<16x16xf32>
    %374 = math.exp %373 : vector<16x16xf32>
    %cst_124 = arith.constant dense<0.000000e+00> : vector<16xf32>
    %375 = vector.multi_reduction <add>, %374, %cst_124 [1] : vector<16x16xf32> to vector<16xf32>
    %376 = vector.shape_cast %375 : vector<16xf32> to vector<16x1xf32>
    %377 = tpu.reciprocal %376 {approx = true} : vector<16x1xf32> -> vector<16x1xf32>
    %378 = vector.broadcast %377 : vector<16x1xf32> to vector<16x16xf32>
    %379 = arith.mulf %374, %378 : vector<16x16xf32>
    %380 = arith.truncf %379 : vector<16x16xf32> to vector<16x16xbf16>
    %381 = vector.extract_strided_slice %328 {offsets = [0, 16], sizes = [16, 8], strides = [1, 1]} : vector<16x32xbf16> to vector<16x8xbf16>
    %cst_125 = arith.constant dense<0.000000e+00> : vector<16x8xf32>
    %382 = tpu.matmul %380, %381, %cst_125 {dimension_numbers = #tpu.dot_dimension_numbers<[1], [0], [0], [1], [0, 0, 1, 1], [], []>} : vector<16x16xbf16>, vector<16x8xbf16>, vector<16x8xf32> -> vector<16x8xf32>
    %383 = vector.extract_strided_slice %326 {offsets = [0, 24], sizes = [16, 8], strides = [1, 1]} : vector<16x32xbf16> to vector<16x8xbf16>
    %384 = vector.extract_strided_slice %327 {offsets = [0, 24], sizes = [16, 8], strides = [1, 1]} : vector<16x32xbf16> to vector<16x8xbf16>
    %cst_126 = arith.constant dense<0.000000e+00> : vector<16x16xf32>
    %385 = tpu.matmul %383, %384, %cst_126 {dimension_numbers = #tpu.dot_dimension_numbers<[1], [1], [0], [0], [0, 0, 1, 0], [], []>} : vector<16x8xbf16>, vector<16x8xbf16>, vector<16x16xf32> -> vector<16x16xf32>
    %cst_127 = arith.constant 0.353553385 : f32
    %386 = vector.broadcast %cst_127 : f32 to vector<16x16xf32>
    %387 = arith.mulf %385, %386 : vector<16x16xf32>
    %cst_128 = arith.constant dense<0xFF800000> : vector<16xf32>
    %388 = vector.multi_reduction <maximumf>, %387, %cst_128 [1] : vector<16x16xf32> to vector<16xf32>
    %389 = vector.shape_cast %388 : vector<16xf32> to vector<16x1xf32>
    %390 = vector.broadcast %389 : vector<16x1xf32> to vector<16x16xf32>
    %391 = arith.subf %387, %390 : vector<16x16xf32>
    %392 = math.exp %391 : vector<16x16xf32>
    %cst_129 = arith.constant dense<0.000000e+00> : vector<16xf32>
    %393 = vector.multi_reduction <add>, %392, %cst_129 [1] : vector<16x16xf32> to vector<16xf32>
    %394 = vector.shape_cast %393 : vector<16xf32> to vector<16x1xf32>
    %395 = tpu.reciprocal %394 {approx = true} : vector<16x1xf32> -> vector<16x1xf32>
    %396 = vector.broadcast %395 : vector<16x1xf32> to vector<16x16xf32>
    %397 = arith.mulf %392, %396 : vector<16x16xf32>
    %398 = arith.truncf %397 : vector<16x16xf32> to vector<16x16xbf16>
    %399 = vector.extract_strided_slice %328 {offsets = [0, 24], sizes = [16, 8], strides = [1, 1]} : vector<16x32xbf16> to vector<16x8xbf16>
    %cst_130 = arith.constant dense<0.000000e+00> : vector<16x8xf32>
    %400 = tpu.matmul %398, %399, %cst_130 {dimension_numbers = #tpu.dot_dimension_numbers<[1], [0], [0], [1], [0, 0, 1, 1], [], []>} : vector<16x16xbf16>, vector<16x8xbf16>, vector<16x8xf32> -> vector<16x8xf32>
    %401 = tpu.concatenate %346, %364, %382, %400 in 1 : vector<16x8xf32>, vector<16x8xf32>, vector<16x8xf32>, vector<16x8xf32> -> vector<16x32xf32>
    %402 = vector.extract_strided_slice %325 {offsets = [16, 0], sizes = [16, 32], strides = [1, 1]} : vector<32x96xbf16> to vector<16x32xbf16>
    %403 = vector.extract_strided_slice %325 {offsets = [16, 32], sizes = [16, 32], strides = [1, 1]} : vector<32x96xbf16> to vector<16x32xbf16>
    %404 = vector.extract_strided_slice %325 {offsets = [16, 64], sizes = [16, 32], strides = [1, 1]} : vector<32x96xbf16> to vector<16x32xbf16>
    %405 = vector.extract_strided_slice %402 {offsets = [0, 0], sizes = [16, 8], strides = [1, 1]} : vector<16x32xbf16> to vector<16x8xbf16>
    %406 = vector.extract_strided_slice %403 {offsets = [0, 0], sizes = [16, 8], strides = [1, 1]} : vector<16x32xbf16> to vector<16x8xbf16>
    %cst_131 = arith.constant dense<0.000000e+00> : vector<16x16xf32>
    %407 = tpu.matmul %405, %406, %cst_131 {dimension_numbers = #tpu.dot_dimension_numbers<[1], [1], [0], [0], [0, 0, 1, 0], [], []>} : vector<16x8xbf16>, vector<16x8xbf16>, vector<16x16xf32> -> vector<16x16xf32>
    %cst_132 = arith.constant 0.353553385 : f32
    %408 = vector.broadcast %cst_132 : f32 to vector<16x16xf32>
    %409 = arith.mulf %407, %408 : vector<16x16xf32>
    %cst_133 = arith.constant dense<0xFF800000> : vector<16xf32>
    %410 = vector.multi_reduction <maximumf>, %409, %cst_133 [1] : vector<16x16xf32> to vector<16xf32>
    %411 = vector.shape_cast %410 : vector<16xf32> to vector<16x1xf32>
    %412 = vector.broadcast %411 : vector<16x1xf32> to vector<16x16xf32>
    %413 = arith.subf %409, %412 : vector<16x16xf32>
    %414 = math.exp %413 : vector<16x16xf32>
    %cst_134 = arith.constant dense<0.000000e+00> : vector<16xf32>
    %415 = vector.multi_reduction <add>, %414, %cst_134 [1] : vector<16x16xf32> to vector<16xf32>
    %416 = vector.shape_cast %415 : vector<16xf32> to vector<16x1xf32>
    %417 = tpu.reciprocal %416 {approx = true} : vector<16x1xf32> -> vector<16x1xf32>
    %418 = vector.broadcast %417 : vector<16x1xf32> to vector<16x16xf32>
    %419 = arith.mulf %414, %418 : vector<16x16xf32>
    %420 = arith.truncf %419 : vector<16x16xf32> to vector<16x16xbf16>
    %421 = vector.extract_strided_slice %404 {offsets = [0, 0], sizes = [16, 8], strides = [1, 1]} : vector<16x32xbf16> to vector<16x8xbf16>
    %cst_135 = arith.constant dense<0.000000e+00> : vector<16x8xf32>
    %422 = tpu.matmul %420, %421, %cst_135 {dimension_numbers = #tpu.dot_dimension_numbers<[1], [0], [0], [1], [0, 0, 1, 1], [], []>} : vector<16x16xbf16>, vector<16x8xbf16>, vector<16x8xf32> -> vector<16x8xf32>
    %423 = vector.extract_strided_slice %402 {offsets = [0, 8], sizes = [16, 8], strides = [1, 1]} : vector<16x32xbf16> to vector<16x8xbf16>
    %424 = vector.extract_strided_slice %403 {offsets = [0, 8], sizes = [16, 8], strides = [1, 1]} : vector<16x32xbf16> to vector<16x8xbf16>
    %cst_136 = arith.constant dense<0.000000e+00> : vector<16x16xf32>
    %425 = tpu.matmul %423, %424, %cst_136 {dimension_numbers = #tpu.dot_dimension_numbers<[1], [1], [0], [0], [0, 0, 1, 0], [], []>} : vector<16x8xbf16>, vector<16x8xbf16>, vector<16x16xf32> -> vector<16x16xf32>
    %cst_137 = arith.constant 0.353553385 : f32
    %426 = vector.broadcast %cst_137 : f32 to vector<16x16xf32>
    %427 = arith.mulf %425, %426 : vector<16x16xf32>
    %cst_138 = arith.constant dense<0xFF800000> : vector<16xf32>
    %428 = vector.multi_reduction <maximumf>, %427, %cst_138 [1] : vector<16x16xf32> to vector<16xf32>
    %429 = vector.shape_cast %428 : vector<16xf32> to vector<16x1xf32>
    %430 = vector.broadcast %429 : vector<16x1xf32> to vector<16x16xf32>
    %431 = arith.subf %427, %430 : vector<16x16xf32>
    %432 = math.exp %431 : vector<16x16xf32>
    %cst_139 = arith.constant dense<0.000000e+00> : vector<16xf32>
    %433 = vector.multi_reduction <add>, %432, %cst_139 [1] : vector<16x16xf32> to vector<16xf32>
    %434 = vector.shape_cast %433 : vector<16xf32> to vector<16x1xf32>
    %435 = tpu.reciprocal %434 {approx = true} : vector<16x1xf32> -> vector<16x1xf32>
    %436 = vector.broadcast %435 : vector<16x1xf32> to vector<16x16xf32>
    %437 = arith.mulf %432, %436 : vector<16x16xf32>
    %438 = arith.truncf %437 : vector<16x16xf32> to vector<16x16xbf16>
    %439 = vector.extract_strided_slice %404 {offsets = [0, 8], sizes = [16, 8], strides = [1, 1]} : vector<16x32xbf16> to vector<16x8xbf16>
    %cst_140 = arith.constant dense<0.000000e+00> : vector<16x8xf32>
    %440 = tpu.matmul %438, %439, %cst_140 {dimension_numbers = #tpu.dot_dimension_numbers<[1], [0], [0], [1], [0, 0, 1, 1], [], []>} : vector<16x16xbf16>, vector<16x8xbf16>, vector<16x8xf32> -> vector<16x8xf32>
    %441 = vector.extract_strided_slice %402 {offsets = [0, 16], sizes = [16, 8], strides = [1, 1]} : vector<16x32xbf16> to vector<16x8xbf16>
    %442 = vector.extract_strided_slice %403 {offsets = [0, 16], sizes = [16, 8], strides = [1, 1]} : vector<16x32xbf16> to vector<16x8xbf16>
    %cst_141 = arith.constant dense<0.000000e+00> : vector<16x16xf32>
    %443 = tpu.matmul %441, %442, %cst_141 {dimension_numbers = #tpu.dot_dimension_numbers<[1], [1], [0], [0], [0, 0, 1, 0], [], []>} : vector<16x8xbf16>, vector<16x8xbf16>, vector<16x16xf32> -> vector<16x16xf32>
    %cst_142 = arith.constant 0.353553385 : f32
    %444 = vector.broadcast %cst_142 : f32 to vector<16x16xf32>
    %445 = arith.mulf %443, %444 : vector<16x16xf32>
    %cst_143 = arith.constant dense<0xFF800000> : vector<16xf32>
    %446 = vector.multi_reduction <maximumf>, %445, %cst_143 [1] : vector<16x16xf32> to vector<16xf32>
    %447 = vector.shape_cast %446 : vector<16xf32> to vector<16x1xf32>
    %448 = vector.broadcast %447 : vector<16x1xf32> to vector<16x16xf32>
    %449 = arith.subf %445, %448 : vector<16x16xf32>
    %450 = math.exp %449 : vector<16x16xf32>
    %cst_144 = arith.constant dense<0.000000e+00> : vector<16xf32>
    %451 = vector.multi_reduction <add>, %450, %cst_144 [1] : vector<16x16xf32> to vector<16xf32>
    %452 = vector.shape_cast %451 : vector<16xf32> to vector<16x1xf32>
    %453 = tpu.reciprocal %452 {approx = true} : vector<16x1xf32> -> vector<16x1xf32>
    %454 = vector.broadcast %453 : vector<16x1xf32> to vector<16x16xf32>
    %455 = arith.mulf %450, %454 : vector<16x16xf32>
    %456 = arith.truncf %455 : vector<16x16xf32> to vector<16x16xbf16>
    %457 = vector.extract_strided_slice %404 {offsets = [0, 16], sizes = [16, 8], strides = [1, 1]} : vector<16x32xbf16> to vector<16x8xbf16>
    %cst_145 = arith.constant dense<0.000000e+00> : vector<16x8xf32>
    %458 = tpu.matmul %456, %457, %cst_145 {dimension_numbers = #tpu.dot_dimension_numbers<[1], [0], [0], [1], [0, 0, 1, 1], [], []>} : vector<16x16xbf16>, vector<16x8xbf16>, vector<16x8xf32> -> vector<16x8xf32>
    %459 = vector.extract_strided_slice %402 {offsets = [0, 24], sizes = [16, 8], strides = [1, 1]} : vector<16x32xbf16> to vector<16x8xbf16>
    %460 = vector.extract_strided_slice %403 {offsets = [0, 24], sizes = [16, 8], strides = [1, 1]} : vector<16x32xbf16> to vector<16x8xbf16>
    %cst_146 = arith.constant dense<0.000000e+00> : vector<16x16xf32>
    %461 = tpu.matmul %459, %460, %cst_146 {dimension_numbers = #tpu.dot_dimension_numbers<[1], [1], [0], [0], [0, 0, 1, 0], [], []>} : vector<16x8xbf16>, vector<16x8xbf16>, vector<16x16xf32> -> vector<16x16xf32>
    %cst_147 = arith.constant 0.353553385 : f32
    %462 = vector.broadcast %cst_147 : f32 to vector<16x16xf32>
    %463 = arith.mulf %461, %462 : vector<16x16xf32>
    %cst_148 = arith.constant dense<0xFF800000> : vector<16xf32>
    %464 = vector.multi_reduction <maximumf>, %463, %cst_148 [1] : vector<16x16xf32> to vector<16xf32>
    %465 = vector.shape_cast %464 : vector<16xf32> to vector<16x1xf32>
    %466 = vector.broadcast %465 : vector<16x1xf32> to vector<16x16xf32>
    %467 = arith.subf %463, %466 : vector<16x16xf32>
    %468 = math.exp %467 : vector<16x16xf32>
    %cst_149 = arith.constant dense<0.000000e+00> : vector<16xf32>
    %469 = vector.multi_reduction <add>, %468, %cst_149 [1] : vector<16x16xf32> to vector<16xf32>
    %470 = vector.shape_cast %469 : vector<16xf32> to vector<16x1xf32>
    %471 = tpu.reciprocal %470 {approx = true} : vector<16x1xf32> -> vector<16x1xf32>
    %472 = vector.broadcast %471 : vector<16x1xf32> to vector<16x16xf32>
    %473 = arith.mulf %468, %472 : vector<16x16xf32>
    %474 = arith.truncf %473 : vector<16x16xf32> to vector<16x16xbf16>
    %475 = vector.extract_strided_slice %404 {offsets = [0, 24], sizes = [16, 8], strides = [1, 1]} : vector<16x32xbf16> to vector<16x8xbf16>
    %cst_150 = arith.constant dense<0.000000e+00> : vector<16x8xf32>
    %476 = tpu.matmul %474, %475, %cst_150 {dimension_numbers = #tpu.dot_dimension_numbers<[1], [0], [0], [1], [0, 0, 1, 1], [], []>} : vector<16x16xbf16>, vector<16x8xbf16>, vector<16x8xf32> -> vector<16x8xf32>
    %477 = tpu.concatenate %422, %440, %458, %476 in 1 : vector<16x8xf32>, vector<16x8xf32>, vector<16x8xf32>, vector<16x8xf32> -> vector<16x32xf32>
    %478 = tpu.concatenate %401, %477 in 0 : vector<16x32xf32>, vector<16x32xf32> -> vector<32x32xf32>
    %479 = arith.truncf %478 : vector<32x32xf32> to vector<32x32xbf16>
    %c129 = arith.constant 129 : index
    %c0_151 = arith.constant 0 : index
    %480 = vector.load %arg4[%c129, %c0_151] : memref<808x256xbf16, #tpu.memory_space<vmem>>, vector<32x32xbf16>
    %cst_152 = arith.constant dense<0.000000e+00> : vector<32x32xf32>
    %481 = tpu.matmul %479, %480, %cst_152 {dimension_numbers = #tpu.dot_dimension_numbers<[1], [0], [0], [1], [0, 0, 1, 1], [], []>} : vector<32x32xbf16>, vector<32x32xbf16>, vector<32x32xf32> -> vector<32x32xf32>
    %c8_153 = arith.constant 8 : index
    %c0_154 = arith.constant 0 : index
    %482 = vector.load %arg3[%c8_153, %c0_154] : memref<32x256xf32, #tpu.memory_space<vmem>>, vector<1x32xf32>
    %483 = vector.broadcast %482 : vector<1x32xf32> to vector<32x32xf32>
    %484 = arith.addf %481, %483 : vector<32x32xf32>
    %485 = arith.addf %318, %484 : vector<32x32xf32>
    %c9_155 = arith.constant 9 : index
    %c0_156 = arith.constant 0 : index
    %486 = vector.load %arg3[%c9_155, %c0_156] : memref<32x256xf32, #tpu.memory_space<vmem>>, vector<1x32xf32>
    %c10_157 = arith.constant 10 : index
    %c0_158 = arith.constant 0 : index
    %487 = vector.load %arg3[%c10_157, %c0_158] : memref<32x256xf32, #tpu.memory_space<vmem>>, vector<1x32xf32>
    %cst_159 = arith.constant dense<0.000000e+00> : vector<32xf32>
    %488 = vector.multi_reduction <add>, %485, %cst_159 [1] : vector<32x32xf32> to vector<32xf32>
    %489 = vector.shape_cast %488 : vector<32xf32> to vector<32x1xf32>
    %cst_160 = arith.constant 3.200000e+01 : f32
    %490 = vector.broadcast %cst_160 : f32 to vector<32x1xf32>
    %491 = arith.divf %489, %490 : vector<32x1xf32>
    %492 = vector.broadcast %491 : vector<32x1xf32> to vector<32x32xf32>
    %493 = arith.subf %485, %492 : vector<32x32xf32>
    %494 = arith.mulf %493, %493 : vector<32x32xf32>
    %cst_161 = arith.constant dense<0.000000e+00> : vector<32xf32>
    %495 = vector.multi_reduction <add>, %494, %cst_161 [1] : vector<32x32xf32> to vector<32xf32>
    %496 = vector.shape_cast %495 : vector<32xf32> to vector<32x1xf32>
    %cst_162 = arith.constant 3.200000e+01 : f32
    %497 = vector.broadcast %cst_162 : f32 to vector<32x1xf32>
    %498 = arith.divf %496, %497 : vector<32x1xf32>
    %499 = vector.broadcast %491 : vector<32x1xf32> to vector<32x32xf32>
    %500 = arith.subf %485, %499 : vector<32x32xf32>
    %cst_163 = arith.constant 9.99999974E-6 : f32
    %501 = vector.broadcast %cst_163 : f32 to vector<32x1xf32>
    %502 = arith.addf %498, %501 : vector<32x1xf32>
    %503 = math.rsqrt %502 : vector<32x1xf32>
    %504 = vector.broadcast %503 : vector<32x1xf32> to vector<32x32xf32>
    %505 = arith.mulf %500, %504 : vector<32x32xf32>
    %506 = vector.broadcast %486 : vector<1x32xf32> to vector<32x32xf32>
    %507 = arith.mulf %505, %506 : vector<32x32xf32>
    %508 = vector.broadcast %487 : vector<1x32xf32> to vector<32x32xf32>
    %509 = arith.addf %507, %508 : vector<32x32xf32>
    %510 = arith.truncf %509 : vector<32x32xf32> to vector<32x32xbf16>
    %c161 = arith.constant 161 : index
    %c0_164 = arith.constant 0 : index
    %511 = vector.load %arg4[%c161, %c0_164] : memref<808x256xbf16, #tpu.memory_space<vmem>>, vector<32x64xbf16>
    %cst_165 = arith.constant dense<0.000000e+00> : vector<32x64xf32>
    %512 = tpu.matmul %510, %511, %cst_165 {dimension_numbers = #tpu.dot_dimension_numbers<[1], [0], [0], [1], [0, 0, 1, 1], [], []>} : vector<32x32xbf16>, vector<32x64xbf16>, vector<32x64xf32> -> vector<32x64xf32>
    %c11_166 = arith.constant 11 : index
    %c0_167 = arith.constant 0 : index
    %513 = vector.load %arg3[%c11_166, %c0_167] : memref<32x256xf32, #tpu.memory_space<vmem>>, vector<1x64xf32>
    %514 = vector.broadcast %513 : vector<1x64xf32> to vector<32x64xf32>
    %515 = arith.addf %512, %514 : vector<32x64xf32>
    %516 = arith.mulf %515, %515 : vector<32x64xf32>
    %517 = arith.mulf %515, %516 : vector<32x64xf32>
    %cst_168 = arith.constant 4.471500e-02 : f32
    %518 = vector.broadcast %cst_168 : f32 to vector<32x64xf32>
    %519 = arith.mulf %518, %517 : vector<32x64xf32>
    %520 = arith.addf %515, %519 : vector<32x64xf32>
    %cst_169 = arith.constant 0.797884583 : f32
    %521 = vector.broadcast %cst_169 : f32 to vector<32x64xf32>
    %522 = arith.mulf %521, %520 : vector<32x64xf32>
    %523 = math.tanh %522 : vector<32x64xf32>
    %cst_170 = arith.constant 1.000000e+00 : f32
    %524 = vector.broadcast %cst_170 : f32 to vector<32x64xf32>
    %525 = arith.addf %524, %523 : vector<32x64xf32>
    %cst_171 = arith.constant 5.000000e-01 : f32
    %526 = vector.broadcast %cst_171 : f32 to vector<32x64xf32>
    %527 = arith.mulf %526, %525 : vector<32x64xf32>
    %528 = arith.mulf %515, %527 : vector<32x64xf32>
    %529 = arith.truncf %528 : vector<32x64xf32> to vector<32x64xbf16>
    %c193 = arith.constant 193 : index
    %c0_172 = arith.constant 0 : index
    %530 = vector.load %arg4[%c193, %c0_172] : memref<808x256xbf16, #tpu.memory_space<vmem>>, vector<64x32xbf16>
    %cst_173 = arith.constant dense<0.000000e+00> : vector<32x32xf32>
    %531 = tpu.matmul %529, %530, %cst_173 {dimension_numbers = #tpu.dot_dimension_numbers<[1], [0], [0], [1], [0, 0, 1, 1], [], []>} : vector<32x64xbf16>, vector<64x32xbf16>, vector<32x32xf32> -> vector<32x32xf32>
    %c12 = arith.constant 12 : index
    %c0_174 = arith.constant 0 : index
    %532 = vector.load %arg3[%c12, %c0_174] : memref<32x256xf32, #tpu.memory_space<vmem>>, vector<1x32xf32>
    %533 = vector.broadcast %532 : vector<1x32xf32> to vector<32x32xf32>
    %534 = arith.addf %531, %533 : vector<32x32xf32>
    %535 = arith.addf %509, %534 : vector<32x32xf32>
    %c13 = arith.constant 13 : index
    %c0_175 = arith.constant 0 : index
    %536 = vector.load %arg3[%c13, %c0_175] : memref<32x256xf32, #tpu.memory_space<vmem>>, vector<1x32xf32>
    %c14 = arith.constant 14 : index
    %c0_176 = arith.constant 0 : index
    %537 = vector.load %arg3[%c14, %c0_176] : memref<32x256xf32, #tpu.memory_space<vmem>>, vector<1x32xf32>
    %cst_177 = arith.constant dense<0.000000e+00> : vector<32xf32>
    %538 = vector.multi_reduction <add>, %535, %cst_177 [1] : vector<32x32xf32> to vector<32xf32>
    %539 = vector.shape_cast %538 : vector<32xf32> to vector<32x1xf32>
    %cst_178 = arith.constant 3.200000e+01 : f32
    %540 = vector.broadcast %cst_178 : f32 to vector<32x1xf32>
    %541 = arith.divf %539, %540 : vector<32x1xf32>
    %542 = vector.broadcast %541 : vector<32x1xf32> to vector<32x32xf32>
    %543 = arith.subf %535, %542 : vector<32x32xf32>
    %544 = arith.mulf %543, %543 : vector<32x32xf32>
    %cst_179 = arith.constant dense<0.000000e+00> : vector<32xf32>
    %545 = vector.multi_reduction <add>, %544, %cst_179 [1] : vector<32x32xf32> to vector<32xf32>
    %546 = vector.shape_cast %545 : vector<32xf32> to vector<32x1xf32>
    %cst_180 = arith.constant 3.200000e+01 : f32
    %547 = vector.broadcast %cst_180 : f32 to vector<32x1xf32>
    %548 = arith.divf %546, %547 : vector<32x1xf32>
    %549 = vector.broadcast %541 : vector<32x1xf32> to vector<32x32xf32>
    %550 = arith.subf %535, %549 : vector<32x32xf32>
    %cst_181 = arith.constant 9.99999974E-6 : f32
    %551 = vector.broadcast %cst_181 : f32 to vector<32x1xf32>
    %552 = arith.addf %548, %551 : vector<32x1xf32>
    %553 = math.rsqrt %552 : vector<32x1xf32>
    %554 = vector.broadcast %553 : vector<32x1xf32> to vector<32x32xf32>
    %555 = arith.mulf %550, %554 : vector<32x32xf32>
    %556 = vector.broadcast %536 : vector<1x32xf32> to vector<32x32xf32>
    %557 = arith.mulf %555, %556 : vector<32x32xf32>
    %558 = vector.broadcast %537 : vector<1x32xf32> to vector<32x32xf32>
    %559 = arith.addf %557, %558 : vector<32x32xf32>
    %560 = arith.truncf %559 : vector<32x32xf32> to vector<32x32xbf16>
    %c257 = arith.constant 257 : index
    %c0_182 = arith.constant 0 : index
    %561 = vector.load %arg4[%c257, %c0_182] : memref<808x256xbf16, #tpu.memory_space<vmem>>, vector<32x96xbf16>
    %cst_183 = arith.constant dense<0.000000e+00> : vector<32x96xf32>
    %562 = tpu.matmul %560, %561, %cst_183 {dimension_numbers = #tpu.dot_dimension_numbers<[1], [0], [0], [1], [0, 0, 1, 1], [], []>} : vector<32x32xbf16>, vector<32x96xbf16>, vector<32x96xf32> -> vector<32x96xf32>
    %c15 = arith.constant 15 : index
    %c0_184 = arith.constant 0 : index
    %563 = vector.load %arg3[%c15, %c0_184] : memref<32x256xf32, #tpu.memory_space<vmem>>, vector<1x96xf32>
    %564 = vector.broadcast %563 : vector<1x96xf32> to vector<32x96xf32>
    %565 = arith.addf %562, %564 : vector<32x96xf32>
    %566 = arith.truncf %565 : vector<32x96xf32> to vector<32x96xbf16>
    %567 = vector.extract_strided_slice %566 {offsets = [0, 0], sizes = [16, 32], strides = [1, 1]} : vector<32x96xbf16> to vector<16x32xbf16>
    %568 = vector.extract_strided_slice %566 {offsets = [0, 32], sizes = [16, 32], strides = [1, 1]} : vector<32x96xbf16> to vector<16x32xbf16>
    %569 = vector.extract_strided_slice %566 {offsets = [0, 64], sizes = [16, 32], strides = [1, 1]} : vector<32x96xbf16> to vector<16x32xbf16>
    %570 = vector.extract_strided_slice %567 {offsets = [0, 0], sizes = [16, 8], strides = [1, 1]} : vector<16x32xbf16> to vector<16x8xbf16>
    %571 = vector.extract_strided_slice %568 {offsets = [0, 0], sizes = [16, 8], strides = [1, 1]} : vector<16x32xbf16> to vector<16x8xbf16>
    %cst_185 = arith.constant dense<0.000000e+00> : vector<16x16xf32>
    %572 = tpu.matmul %570, %571, %cst_185 {dimension_numbers = #tpu.dot_dimension_numbers<[1], [1], [0], [0], [0, 0, 1, 0], [], []>} : vector<16x8xbf16>, vector<16x8xbf16>, vector<16x16xf32> -> vector<16x16xf32>
    %cst_186 = arith.constant 0.353553385 : f32
    %573 = vector.broadcast %cst_186 : f32 to vector<16x16xf32>
    %574 = arith.mulf %572, %573 : vector<16x16xf32>
    %cst_187 = arith.constant dense<0xFF800000> : vector<16xf32>
    %575 = vector.multi_reduction <maximumf>, %574, %cst_187 [1] : vector<16x16xf32> to vector<16xf32>
    %576 = vector.shape_cast %575 : vector<16xf32> to vector<16x1xf32>
    %577 = vector.broadcast %576 : vector<16x1xf32> to vector<16x16xf32>
    %578 = arith.subf %574, %577 : vector<16x16xf32>
    %579 = math.exp %578 : vector<16x16xf32>
    %cst_188 = arith.constant dense<0.000000e+00> : vector<16xf32>
    %580 = vector.multi_reduction <add>, %579, %cst_188 [1] : vector<16x16xf32> to vector<16xf32>
    %581 = vector.shape_cast %580 : vector<16xf32> to vector<16x1xf32>
    %582 = tpu.reciprocal %581 {approx = true} : vector<16x1xf32> -> vector<16x1xf32>
    %583 = vector.broadcast %582 : vector<16x1xf32> to vector<16x16xf32>
    %584 = arith.mulf %579, %583 : vector<16x16xf32>
    %585 = arith.truncf %584 : vector<16x16xf32> to vector<16x16xbf16>
    %586 = vector.extract_strided_slice %569 {offsets = [0, 0], sizes = [16, 8], strides = [1, 1]} : vector<16x32xbf16> to vector<16x8xbf16>
    %cst_189 = arith.constant dense<0.000000e+00> : vector<16x8xf32>
    %587 = tpu.matmul %585, %586, %cst_189 {dimension_numbers = #tpu.dot_dimension_numbers<[1], [0], [0], [1], [0, 0, 1, 1], [], []>} : vector<16x16xbf16>, vector<16x8xbf16>, vector<16x8xf32> -> vector<16x8xf32>
    %588 = vector.extract_strided_slice %567 {offsets = [0, 8], sizes = [16, 8], strides = [1, 1]} : vector<16x32xbf16> to vector<16x8xbf16>
    %589 = vector.extract_strided_slice %568 {offsets = [0, 8], sizes = [16, 8], strides = [1, 1]} : vector<16x32xbf16> to vector<16x8xbf16>
    %cst_190 = arith.constant dense<0.000000e+00> : vector<16x16xf32>
    %590 = tpu.matmul %588, %589, %cst_190 {dimension_numbers = #tpu.dot_dimension_numbers<[1], [1], [0], [0], [0, 0, 1, 0], [], []>} : vector<16x8xbf16>, vector<16x8xbf16>, vector<16x16xf32> -> vector<16x16xf32>
    %cst_191 = arith.constant 0.353553385 : f32
    %591 = vector.broadcast %cst_191 : f32 to vector<16x16xf32>
    %592 = arith.mulf %590, %591 : vector<16x16xf32>
    %cst_192 = arith.constant dense<0xFF800000> : vector<16xf32>
    %593 = vector.multi_reduction <maximumf>, %592, %cst_192 [1] : vector<16x16xf32> to vector<16xf32>
    %594 = vector.shape_cast %593 : vector<16xf32> to vector<16x1xf32>
    %595 = vector.broadcast %594 : vector<16x1xf32> to vector<16x16xf32>
    %596 = arith.subf %592, %595 : vector<16x16xf32>
    %597 = math.exp %596 : vector<16x16xf32>
    %cst_193 = arith.constant dense<0.000000e+00> : vector<16xf32>
    %598 = vector.multi_reduction <add>, %597, %cst_193 [1] : vector<16x16xf32> to vector<16xf32>
    %599 = vector.shape_cast %598 : vector<16xf32> to vector<16x1xf32>
    %600 = tpu.reciprocal %599 {approx = true} : vector<16x1xf32> -> vector<16x1xf32>
    %601 = vector.broadcast %600 : vector<16x1xf32> to vector<16x16xf32>
    %602 = arith.mulf %597, %601 : vector<16x16xf32>
    %603 = arith.truncf %602 : vector<16x16xf32> to vector<16x16xbf16>
    %604 = vector.extract_strided_slice %569 {offsets = [0, 8], sizes = [16, 8], strides = [1, 1]} : vector<16x32xbf16> to vector<16x8xbf16>
    %cst_194 = arith.constant dense<0.000000e+00> : vector<16x8xf32>
    %605 = tpu.matmul %603, %604, %cst_194 {dimension_numbers = #tpu.dot_dimension_numbers<[1], [0], [0], [1], [0, 0, 1, 1], [], []>} : vector<16x16xbf16>, vector<16x8xbf16>, vector<16x8xf32> -> vector<16x8xf32>
    %606 = vector.extract_strided_slice %567 {offsets = [0, 16], sizes = [16, 8], strides = [1, 1]} : vector<16x32xbf16> to vector<16x8xbf16>
    %607 = vector.extract_strided_slice %568 {offsets = [0, 16], sizes = [16, 8], strides = [1, 1]} : vector<16x32xbf16> to vector<16x8xbf16>
    %cst_195 = arith.constant dense<0.000000e+00> : vector<16x16xf32>
    %608 = tpu.matmul %606, %607, %cst_195 {dimension_numbers = #tpu.dot_dimension_numbers<[1], [1], [0], [0], [0, 0, 1, 0], [], []>} : vector<16x8xbf16>, vector<16x8xbf16>, vector<16x16xf32> -> vector<16x16xf32>
    %cst_196 = arith.constant 0.353553385 : f32
    %609 = vector.broadcast %cst_196 : f32 to vector<16x16xf32>
    %610 = arith.mulf %608, %609 : vector<16x16xf32>
    %cst_197 = arith.constant dense<0xFF800000> : vector<16xf32>
    %611 = vector.multi_reduction <maximumf>, %610, %cst_197 [1] : vector<16x16xf32> to vector<16xf32>
    %612 = vector.shape_cast %611 : vector<16xf32> to vector<16x1xf32>
    %613 = vector.broadcast %612 : vector<16x1xf32> to vector<16x16xf32>
    %614 = arith.subf %610, %613 : vector<16x16xf32>
    %615 = math.exp %614 : vector<16x16xf32>
    %cst_198 = arith.constant dense<0.000000e+00> : vector<16xf32>
    %616 = vector.multi_reduction <add>, %615, %cst_198 [1] : vector<16x16xf32> to vector<16xf32>
    %617 = vector.shape_cast %616 : vector<16xf32> to vector<16x1xf32>
    %618 = tpu.reciprocal %617 {approx = true} : vector<16x1xf32> -> vector<16x1xf32>
    %619 = vector.broadcast %618 : vector<16x1xf32> to vector<16x16xf32>
    %620 = arith.mulf %615, %619 : vector<16x16xf32>
    %621 = arith.truncf %620 : vector<16x16xf32> to vector<16x16xbf16>
    %622 = vector.extract_strided_slice %569 {offsets = [0, 16], sizes = [16, 8], strides = [1, 1]} : vector<16x32xbf16> to vector<16x8xbf16>
    %cst_199 = arith.constant dense<0.000000e+00> : vector<16x8xf32>
    %623 = tpu.matmul %621, %622, %cst_199 {dimension_numbers = #tpu.dot_dimension_numbers<[1], [0], [0], [1], [0, 0, 1, 1], [], []>} : vector<16x16xbf16>, vector<16x8xbf16>, vector<16x8xf32> -> vector<16x8xf32>
    %624 = vector.extract_strided_slice %567 {offsets = [0, 24], sizes = [16, 8], strides = [1, 1]} : vector<16x32xbf16> to vector<16x8xbf16>
    %625 = vector.extract_strided_slice %568 {offsets = [0, 24], sizes = [16, 8], strides = [1, 1]} : vector<16x32xbf16> to vector<16x8xbf16>
    %cst_200 = arith.constant dense<0.000000e+00> : vector<16x16xf32>
    %626 = tpu.matmul %624, %625, %cst_200 {dimension_numbers = #tpu.dot_dimension_numbers<[1], [1], [0], [0], [0, 0, 1, 0], [], []>} : vector<16x8xbf16>, vector<16x8xbf16>, vector<16x16xf32> -> vector<16x16xf32>
    %cst_201 = arith.constant 0.353553385 : f32
    %627 = vector.broadcast %cst_201 : f32 to vector<16x16xf32>
    %628 = arith.mulf %626, %627 : vector<16x16xf32>
    %cst_202 = arith.constant dense<0xFF800000> : vector<16xf32>
    %629 = vector.multi_reduction <maximumf>, %628, %cst_202 [1] : vector<16x16xf32> to vector<16xf32>
    %630 = vector.shape_cast %629 : vector<16xf32> to vector<16x1xf32>
    %631 = vector.broadcast %630 : vector<16x1xf32> to vector<16x16xf32>
    %632 = arith.subf %628, %631 : vector<16x16xf32>
    %633 = math.exp %632 : vector<16x16xf32>
    %cst_203 = arith.constant dense<0.000000e+00> : vector<16xf32>
    %634 = vector.multi_reduction <add>, %633, %cst_203 [1] : vector<16x16xf32> to vector<16xf32>
    %635 = vector.shape_cast %634 : vector<16xf32> to vector<16x1xf32>
    %636 = tpu.reciprocal %635 {approx = true} : vector<16x1xf32> -> vector<16x1xf32>
    %637 = vector.broadcast %636 : vector<16x1xf32> to vector<16x16xf32>
    %638 = arith.mulf %633, %637 : vector<16x16xf32>
    %639 = arith.truncf %638 : vector<16x16xf32> to vector<16x16xbf16>
    %640 = vector.extract_strided_slice %569 {offsets = [0, 24], sizes = [16, 8], strides = [1, 1]} : vector<16x32xbf16> to vector<16x8xbf16>
    %cst_204 = arith.constant dense<0.000000e+00> : vector<16x8xf32>
    %641 = tpu.matmul %639, %640, %cst_204 {dimension_numbers = #tpu.dot_dimension_numbers<[1], [0], [0], [1], [0, 0, 1, 1], [], []>} : vector<16x16xbf16>, vector<16x8xbf16>, vector<16x8xf32> -> vector<16x8xf32>
    %642 = tpu.concatenate %587, %605, %623, %641 in 1 : vector<16x8xf32>, vector<16x8xf32>, vector<16x8xf32>, vector<16x8xf32> -> vector<16x32xf32>
    %643 = vector.extract_strided_slice %566 {offsets = [16, 0], sizes = [16, 32], strides = [1, 1]} : vector<32x96xbf16> to vector<16x32xbf16>
    %644 = vector.extract_strided_slice %566 {offsets = [16, 32], sizes = [16, 32], strides = [1, 1]} : vector<32x96xbf16> to vector<16x32xbf16>
    %645 = vector.extract_strided_slice %566 {offsets = [16, 64], sizes = [16, 32], strides = [1, 1]} : vector<32x96xbf16> to vector<16x32xbf16>
    %646 = vector.extract_strided_slice %643 {offsets = [0, 0], sizes = [16, 8], strides = [1, 1]} : vector<16x32xbf16> to vector<16x8xbf16>
    %647 = vector.extract_strided_slice %644 {offsets = [0, 0], sizes = [16, 8], strides = [1, 1]} : vector<16x32xbf16> to vector<16x8xbf16>
    %cst_205 = arith.constant dense<0.000000e+00> : vector<16x16xf32>
    %648 = tpu.matmul %646, %647, %cst_205 {dimension_numbers = #tpu.dot_dimension_numbers<[1], [1], [0], [0], [0, 0, 1, 0], [], []>} : vector<16x8xbf16>, vector<16x8xbf16>, vector<16x16xf32> -> vector<16x16xf32>
    %cst_206 = arith.constant 0.353553385 : f32
    %649 = vector.broadcast %cst_206 : f32 to vector<16x16xf32>
    %650 = arith.mulf %648, %649 : vector<16x16xf32>
    %cst_207 = arith.constant dense<0xFF800000> : vector<16xf32>
    %651 = vector.multi_reduction <maximumf>, %650, %cst_207 [1] : vector<16x16xf32> to vector<16xf32>
    %652 = vector.shape_cast %651 : vector<16xf32> to vector<16x1xf32>
    %653 = vector.broadcast %652 : vector<16x1xf32> to vector<16x16xf32>
    %654 = arith.subf %650, %653 : vector<16x16xf32>
    %655 = math.exp %654 : vector<16x16xf32>
    %cst_208 = arith.constant dense<0.000000e+00> : vector<16xf32>
    %656 = vector.multi_reduction <add>, %655, %cst_208 [1] : vector<16x16xf32> to vector<16xf32>
    %657 = vector.shape_cast %656 : vector<16xf32> to vector<16x1xf32>
    %658 = tpu.reciprocal %657 {approx = true} : vector<16x1xf32> -> vector<16x1xf32>
    %659 = vector.broadcast %658 : vector<16x1xf32> to vector<16x16xf32>
    %660 = arith.mulf %655, %659 : vector<16x16xf32>
    %661 = arith.truncf %660 : vector<16x16xf32> to vector<16x16xbf16>
    %662 = vector.extract_strided_slice %645 {offsets = [0, 0], sizes = [16, 8], strides = [1, 1]} : vector<16x32xbf16> to vector<16x8xbf16>
    %cst_209 = arith.constant dense<0.000000e+00> : vector<16x8xf32>
    %663 = tpu.matmul %661, %662, %cst_209 {dimension_numbers = #tpu.dot_dimension_numbers<[1], [0], [0], [1], [0, 0, 1, 1], [], []>} : vector<16x16xbf16>, vector<16x8xbf16>, vector<16x8xf32> -> vector<16x8xf32>
    %664 = vector.extract_strided_slice %643 {offsets = [0, 8], sizes = [16, 8], strides = [1, 1]} : vector<16x32xbf16> to vector<16x8xbf16>
    %665 = vector.extract_strided_slice %644 {offsets = [0, 8], sizes = [16, 8], strides = [1, 1]} : vector<16x32xbf16> to vector<16x8xbf16>
    %cst_210 = arith.constant dense<0.000000e+00> : vector<16x16xf32>
    %666 = tpu.matmul %664, %665, %cst_210 {dimension_numbers = #tpu.dot_dimension_numbers<[1], [1], [0], [0], [0, 0, 1, 0], [], []>} : vector<16x8xbf16>, vector<16x8xbf16>, vector<16x16xf32> -> vector<16x16xf32>
    %cst_211 = arith.constant 0.353553385 : f32
    %667 = vector.broadcast %cst_211 : f32 to vector<16x16xf32>
    %668 = arith.mulf %666, %667 : vector<16x16xf32>
    %cst_212 = arith.constant dense<0xFF800000> : vector<16xf32>
    %669 = vector.multi_reduction <maximumf>, %668, %cst_212 [1] : vector<16x16xf32> to vector<16xf32>
    %670 = vector.shape_cast %669 : vector<16xf32> to vector<16x1xf32>
    %671 = vector.broadcast %670 : vector<16x1xf32> to vector<16x16xf32>
    %672 = arith.subf %668, %671 : vector<16x16xf32>
    %673 = math.exp %672 : vector<16x16xf32>
    %cst_213 = arith.constant dense<0.000000e+00> : vector<16xf32>
    %674 = vector.multi_reduction <add>, %673, %cst_213 [1] : vector<16x16xf32> to vector<16xf32>
    %675 = vector.shape_cast %674 : vector<16xf32> to vector<16x1xf32>
    %676 = tpu.reciprocal %675 {approx = true} : vector<16x1xf32> -> vector<16x1xf32>
    %677 = vector.broadcast %676 : vector<16x1xf32> to vector<16x16xf32>
    %678 = arith.mulf %673, %677 : vector<16x16xf32>
    %679 = arith.truncf %678 : vector<16x16xf32> to vector<16x16xbf16>
    %680 = vector.extract_strided_slice %645 {offsets = [0, 8], sizes = [16, 8], strides = [1, 1]} : vector<16x32xbf16> to vector<16x8xbf16>
    %cst_214 = arith.constant dense<0.000000e+00> : vector<16x8xf32>
    %681 = tpu.matmul %679, %680, %cst_214 {dimension_numbers = #tpu.dot_dimension_numbers<[1], [0], [0], [1], [0, 0, 1, 1], [], []>} : vector<16x16xbf16>, vector<16x8xbf16>, vector<16x8xf32> -> vector<16x8xf32>
    %682 = vector.extract_strided_slice %643 {offsets = [0, 16], sizes = [16, 8], strides = [1, 1]} : vector<16x32xbf16> to vector<16x8xbf16>
    %683 = vector.extract_strided_slice %644 {offsets = [0, 16], sizes = [16, 8], strides = [1, 1]} : vector<16x32xbf16> to vector<16x8xbf16>
    %cst_215 = arith.constant dense<0.000000e+00> : vector<16x16xf32>
    %684 = tpu.matmul %682, %683, %cst_215 {dimension_numbers = #tpu.dot_dimension_numbers<[1], [1], [0], [0], [0, 0, 1, 0], [], []>} : vector<16x8xbf16>, vector<16x8xbf16>, vector<16x16xf32> -> vector<16x16xf32>
    %cst_216 = arith.constant 0.353553385 : f32
    %685 = vector.broadcast %cst_216 : f32 to vector<16x16xf32>
    %686 = arith.mulf %684, %685 : vector<16x16xf32>
    %cst_217 = arith.constant dense<0xFF800000> : vector<16xf32>
    %687 = vector.multi_reduction <maximumf>, %686, %cst_217 [1] : vector<16x16xf32> to vector<16xf32>
    %688 = vector.shape_cast %687 : vector<16xf32> to vector<16x1xf32>
    %689 = vector.broadcast %688 : vector<16x1xf32> to vector<16x16xf32>
    %690 = arith.subf %686, %689 : vector<16x16xf32>
    %691 = math.exp %690 : vector<16x16xf32>
    %cst_218 = arith.constant dense<0.000000e+00> : vector<16xf32>
    %692 = vector.multi_reduction <add>, %691, %cst_218 [1] : vector<16x16xf32> to vector<16xf32>
    %693 = vector.shape_cast %692 : vector<16xf32> to vector<16x1xf32>
    %694 = tpu.reciprocal %693 {approx = true} : vector<16x1xf32> -> vector<16x1xf32>
    %695 = vector.broadcast %694 : vector<16x1xf32> to vector<16x16xf32>
    %696 = arith.mulf %691, %695 : vector<16x16xf32>
    %697 = arith.truncf %696 : vector<16x16xf32> to vector<16x16xbf16>
    %698 = vector.extract_strided_slice %645 {offsets = [0, 16], sizes = [16, 8], strides = [1, 1]} : vector<16x32xbf16> to vector<16x8xbf16>
    %cst_219 = arith.constant dense<0.000000e+00> : vector<16x8xf32>
    %699 = tpu.matmul %697, %698, %cst_219 {dimension_numbers = #tpu.dot_dimension_numbers<[1], [0], [0], [1], [0, 0, 1, 1], [], []>} : vector<16x16xbf16>, vector<16x8xbf16>, vector<16x8xf32> -> vector<16x8xf32>
    %700 = vector.extract_strided_slice %643 {offsets = [0, 24], sizes = [16, 8], strides = [1, 1]} : vector<16x32xbf16> to vector<16x8xbf16>
    %701 = vector.extract_strided_slice %644 {offsets = [0, 24], sizes = [16, 8], strides = [1, 1]} : vector<16x32xbf16> to vector<16x8xbf16>
    %cst_220 = arith.constant dense<0.000000e+00> : vector<16x16xf32>
    %702 = tpu.matmul %700, %701, %cst_220 {dimension_numbers = #tpu.dot_dimension_numbers<[1], [1], [0], [0], [0, 0, 1, 0], [], []>} : vector<16x8xbf16>, vector<16x8xbf16>, vector<16x16xf32> -> vector<16x16xf32>
    %cst_221 = arith.constant 0.353553385 : f32
    %703 = vector.broadcast %cst_221 : f32 to vector<16x16xf32>
    %704 = arith.mulf %702, %703 : vector<16x16xf32>
    %cst_222 = arith.constant dense<0xFF800000> : vector<16xf32>
    %705 = vector.multi_reduction <maximumf>, %704, %cst_222 [1] : vector<16x16xf32> to vector<16xf32>
    %706 = vector.shape_cast %705 : vector<16xf32> to vector<16x1xf32>
    %707 = vector.broadcast %706 : vector<16x1xf32> to vector<16x16xf32>
    %708 = arith.subf %704, %707 : vector<16x16xf32>
    %709 = math.exp %708 : vector<16x16xf32>
    %cst_223 = arith.constant dense<0.000000e+00> : vector<16xf32>
    %710 = vector.multi_reduction <add>, %709, %cst_223 [1] : vector<16x16xf32> to vector<16xf32>
    %711 = vector.shape_cast %710 : vector<16xf32> to vector<16x1xf32>
    %712 = tpu.reciprocal %711 {approx = true} : vector<16x1xf32> -> vector<16x1xf32>
    %713 = vector.broadcast %712 : vector<16x1xf32> to vector<16x16xf32>
    %714 = arith.mulf %709, %713 : vector<16x16xf32>
    %715 = arith.truncf %714 : vector<16x16xf32> to vector<16x16xbf16>
    %716 = vector.extract_strided_slice %645 {offsets = [0, 24], sizes = [16, 8], strides = [1, 1]} : vector<16x32xbf16> to vector<16x8xbf16>
    %cst_224 = arith.constant dense<0.000000e+00> : vector<16x8xf32>
    %717 = tpu.matmul %715, %716, %cst_224 {dimension_numbers = #tpu.dot_dimension_numbers<[1], [0], [0], [1], [0, 0, 1, 1], [], []>} : vector<16x16xbf16>, vector<16x8xbf16>, vector<16x8xf32> -> vector<16x8xf32>
    %718 = tpu.concatenate %663, %681, %699, %717 in 1 : vector<16x8xf32>, vector<16x8xf32>, vector<16x8xf32>, vector<16x8xf32> -> vector<16x32xf32>
    %719 = tpu.concatenate %642, %718 in 0 : vector<16x32xf32>, vector<16x32xf32> -> vector<32x32xf32>
    %720 = arith.truncf %719 : vector<32x32xf32> to vector<32x32xbf16>
    %c289 = arith.constant 289 : index
    %c0_225 = arith.constant 0 : index
    %721 = vector.load %arg4[%c289, %c0_225] : memref<808x256xbf16, #tpu.memory_space<vmem>>, vector<32x32xbf16>
    %cst_226 = arith.constant dense<0.000000e+00> : vector<32x32xf32>
    %722 = tpu.matmul %720, %721, %cst_226 {dimension_numbers = #tpu.dot_dimension_numbers<[1], [0], [0], [1], [0, 0, 1, 1], [], []>} : vector<32x32xbf16>, vector<32x32xbf16>, vector<32x32xf32> -> vector<32x32xf32>
    %c16 = arith.constant 16 : index
    %c0_227 = arith.constant 0 : index
    %723 = vector.load %arg3[%c16, %c0_227] : memref<32x256xf32, #tpu.memory_space<vmem>>, vector<1x32xf32>
    %724 = vector.broadcast %723 : vector<1x32xf32> to vector<32x32xf32>
    %725 = arith.addf %722, %724 : vector<32x32xf32>
    %726 = arith.addf %559, %725 : vector<32x32xf32>
    %c17 = arith.constant 17 : index
    %c0_228 = arith.constant 0 : index
    %727 = vector.load %arg3[%c17, %c0_228] : memref<32x256xf32, #tpu.memory_space<vmem>>, vector<1x32xf32>
    %c18 = arith.constant 18 : index
    %c0_229 = arith.constant 0 : index
    %728 = vector.load %arg3[%c18, %c0_229] : memref<32x256xf32, #tpu.memory_space<vmem>>, vector<1x32xf32>
    %cst_230 = arith.constant dense<0.000000e+00> : vector<32xf32>
    %729 = vector.multi_reduction <add>, %726, %cst_230 [1] : vector<32x32xf32> to vector<32xf32>
    %730 = vector.shape_cast %729 : vector<32xf32> to vector<32x1xf32>
    %cst_231 = arith.constant 3.200000e+01 : f32
    %731 = vector.broadcast %cst_231 : f32 to vector<32x1xf32>
    %732 = arith.divf %730, %731 : vector<32x1xf32>
    %733 = vector.broadcast %732 : vector<32x1xf32> to vector<32x32xf32>
    %734 = arith.subf %726, %733 : vector<32x32xf32>
    %735 = arith.mulf %734, %734 : vector<32x32xf32>
    %cst_232 = arith.constant dense<0.000000e+00> : vector<32xf32>
    %736 = vector.multi_reduction <add>, %735, %cst_232 [1] : vector<32x32xf32> to vector<32xf32>
    %737 = vector.shape_cast %736 : vector<32xf32> to vector<32x1xf32>
    %cst_233 = arith.constant 3.200000e+01 : f32
    %738 = vector.broadcast %cst_233 : f32 to vector<32x1xf32>
    %739 = arith.divf %737, %738 : vector<32x1xf32>
    %740 = vector.broadcast %732 : vector<32x1xf32> to vector<32x32xf32>
    %741 = arith.subf %726, %740 : vector<32x32xf32>
    %cst_234 = arith.constant 9.99999974E-6 : f32
    %742 = vector.broadcast %cst_234 : f32 to vector<32x1xf32>
    %743 = arith.addf %739, %742 : vector<32x1xf32>
    %744 = math.rsqrt %743 : vector<32x1xf32>
    %745 = vector.broadcast %744 : vector<32x1xf32> to vector<32x32xf32>
    %746 = arith.mulf %741, %745 : vector<32x32xf32>
    %747 = vector.broadcast %727 : vector<1x32xf32> to vector<32x32xf32>
    %748 = arith.mulf %746, %747 : vector<32x32xf32>
    %749 = vector.broadcast %728 : vector<1x32xf32> to vector<32x32xf32>
    %750 = arith.addf %748, %749 : vector<32x32xf32>
    %751 = arith.truncf %750 : vector<32x32xf32> to vector<32x32xbf16>
    %c321 = arith.constant 321 : index
    %c0_235 = arith.constant 0 : index
    %752 = vector.load %arg4[%c321, %c0_235] : memref<808x256xbf16, #tpu.memory_space<vmem>>, vector<32x64xbf16>
    %cst_236 = arith.constant dense<0.000000e+00> : vector<32x64xf32>
    %753 = tpu.matmul %751, %752, %cst_236 {dimension_numbers = #tpu.dot_dimension_numbers<[1], [0], [0], [1], [0, 0, 1, 1], [], []>} : vector<32x32xbf16>, vector<32x64xbf16>, vector<32x64xf32> -> vector<32x64xf32>
    %c19 = arith.constant 19 : index
    %c0_237 = arith.constant 0 : index
    %754 = vector.load %arg3[%c19, %c0_237] : memref<32x256xf32, #tpu.memory_space<vmem>>, vector<1x64xf32>
    %755 = vector.broadcast %754 : vector<1x64xf32> to vector<32x64xf32>
    %756 = arith.addf %753, %755 : vector<32x64xf32>
    %757 = arith.mulf %756, %756 : vector<32x64xf32>
    %758 = arith.mulf %756, %757 : vector<32x64xf32>
    %cst_238 = arith.constant 4.471500e-02 : f32
    %759 = vector.broadcast %cst_238 : f32 to vector<32x64xf32>
    %760 = arith.mulf %759, %758 : vector<32x64xf32>
    %761 = arith.addf %756, %760 : vector<32x64xf32>
    %cst_239 = arith.constant 0.797884583 : f32
    %762 = vector.broadcast %cst_239 : f32 to vector<32x64xf32>
    %763 = arith.mulf %762, %761 : vector<32x64xf32>
    %764 = math.tanh %763 : vector<32x64xf32>
    %cst_240 = arith.constant 1.000000e+00 : f32
    %765 = vector.broadcast %cst_240 : f32 to vector<32x64xf32>
    %766 = arith.addf %765, %764 : vector<32x64xf32>
    %cst_241 = arith.constant 5.000000e-01 : f32
    %767 = vector.broadcast %cst_241 : f32 to vector<32x64xf32>
    %768 = arith.mulf %767, %766 : vector<32x64xf32>
    %769 = arith.mulf %756, %768 : vector<32x64xf32>
    %770 = arith.truncf %769 : vector<32x64xf32> to vector<32x64xbf16>
    %c353 = arith.constant 353 : index
    %c0_242 = arith.constant 0 : index
    %771 = vector.load %arg4[%c353, %c0_242] : memref<808x256xbf16, #tpu.memory_space<vmem>>, vector<64x32xbf16>
    %cst_243 = arith.constant dense<0.000000e+00> : vector<32x32xf32>
    %772 = tpu.matmul %770, %771, %cst_243 {dimension_numbers = #tpu.dot_dimension_numbers<[1], [0], [0], [1], [0, 0, 1, 1], [], []>} : vector<32x64xbf16>, vector<64x32xbf16>, vector<32x32xf32> -> vector<32x32xf32>
    %c20 = arith.constant 20 : index
    %c0_244 = arith.constant 0 : index
    %773 = vector.load %arg3[%c20, %c0_244] : memref<32x256xf32, #tpu.memory_space<vmem>>, vector<1x32xf32>
    %774 = vector.broadcast %773 : vector<1x32xf32> to vector<32x32xf32>
    %775 = arith.addf %772, %774 : vector<32x32xf32>
    %776 = arith.addf %750, %775 : vector<32x32xf32>
    %c21 = arith.constant 21 : index
    %c0_245 = arith.constant 0 : index
    %777 = vector.load %arg3[%c21, %c0_245] : memref<32x256xf32, #tpu.memory_space<vmem>>, vector<1x32xf32>
    %c22 = arith.constant 22 : index
    %c0_246 = arith.constant 0 : index
    %778 = vector.load %arg3[%c22, %c0_246] : memref<32x256xf32, #tpu.memory_space<vmem>>, vector<1x32xf32>
    %cst_247 = arith.constant dense<0.000000e+00> : vector<32xf32>
    %779 = vector.multi_reduction <add>, %776, %cst_247 [1] : vector<32x32xf32> to vector<32xf32>
    %780 = vector.shape_cast %779 : vector<32xf32> to vector<32x1xf32>
    %cst_248 = arith.constant 3.200000e+01 : f32
    %781 = vector.broadcast %cst_248 : f32 to vector<32x1xf32>
    %782 = arith.divf %780, %781 : vector<32x1xf32>
    %783 = vector.broadcast %782 : vector<32x1xf32> to vector<32x32xf32>
    %784 = arith.subf %776, %783 : vector<32x32xf32>
    %785 = arith.mulf %784, %784 : vector<32x32xf32>
    %cst_249 = arith.constant dense<0.000000e+00> : vector<32xf32>
    %786 = vector.multi_reduction <add>, %785, %cst_249 [1] : vector<32x32xf32> to vector<32xf32>
    %787 = vector.shape_cast %786 : vector<32xf32> to vector<32x1xf32>
    %cst_250 = arith.constant 3.200000e+01 : f32
    %788 = vector.broadcast %cst_250 : f32 to vector<32x1xf32>
    %789 = arith.divf %787, %788 : vector<32x1xf32>
    %790 = vector.broadcast %782 : vector<32x1xf32> to vector<32x32xf32>
    %791 = arith.subf %776, %790 : vector<32x32xf32>
    %cst_251 = arith.constant 9.99999974E-6 : f32
    %792 = vector.broadcast %cst_251 : f32 to vector<32x1xf32>
    %793 = arith.addf %789, %792 : vector<32x1xf32>
    %794 = math.rsqrt %793 : vector<32x1xf32>
    %795 = vector.broadcast %794 : vector<32x1xf32> to vector<32x32xf32>
    %796 = arith.mulf %791, %795 : vector<32x32xf32>
    %797 = vector.broadcast %777 : vector<1x32xf32> to vector<32x32xf32>
    %798 = arith.mulf %796, %797 : vector<32x32xf32>
    %799 = vector.broadcast %778 : vector<1x32xf32> to vector<32x32xf32>
    %800 = arith.addf %798, %799 : vector<32x32xf32>
    %801 = tpu.iota {dimensions = array<i32: 1>} : vector<1x256xi32>
    %c32_i32 = arith.constant 32 : i32
    %c0_i32 = arith.constant 0 : i32
    %802 = arith.cmpi eq, %c32_i32, %c0_i32 : i32
    %c1_i32 = arith.constant 1 : i32
    %803 = arith.select %802, %c1_i32, %c32_i32 : i32
    %804 = vector.broadcast %803 : i32 to vector<1x256xi32>
    %805 = arith.remsi %801, %804 : vector<1x256xi32>
    %c0_i32_252 = arith.constant 0 : i32
    %806 = vector.broadcast %c0_i32_252 : i32 to vector<1x256xi32>
    %807 = arith.cmpi ne, %805, %806 : vector<1x256xi32>
    %c0_i32_253 = arith.constant 0 : i32
    %808 = vector.broadcast %c0_i32_253 : i32 to vector<1x256xi32>
    %809 = arith.cmpi slt, %805, %808 : vector<1x256xi32>
    %c0_i32_254 = arith.constant 0 : i32
    %810 = arith.cmpi slt, %803, %c0_i32_254 : i32
    %811 = vector.broadcast %810 : i1 to vector<1x256xi1>
    %812 = vector.broadcast %811 : vector<1x256xi1> to vector<1x256xi1>
    %813 = arith.xori %809, %812 : vector<1x256xi1>
    %814 = arith.andi %813, %807 : vector<1x256xi1>
    %815 = vector.broadcast %803 : i32 to vector<1x256xi32>
    %816 = arith.addi %805, %815 : vector<1x256xi32>
    %817 = arith.select %814, %816, %805 : vector<1x256xi1>, vector<1x256xi32>
    %c16_i32 = arith.constant 16 : i32
    %818 = vector.broadcast %c16_i32 : i32 to vector<1x256xi32>
    %819 = arith.cmpi slt, %817, %818 : vector<1x256xi32>
    %820 = tpu.iota {dimensions = array<i32: 1>} : vector<1x64xi32>
    %c32_i32_255 = arith.constant 32 : i32
    %c0_i32_256 = arith.constant 0 : i32
    %821 = arith.cmpi eq, %c32_i32_255, %c0_i32_256 : i32
    %c1_i32_257 = arith.constant 1 : i32
    %822 = arith.select %821, %c1_i32_257, %c32_i32_255 : i32
    %823 = vector.broadcast %822 : i32 to vector<1x64xi32>
    %824 = arith.remsi %820, %823 : vector<1x64xi32>
    %c0_i32_258 = arith.constant 0 : i32
    %825 = vector.broadcast %c0_i32_258 : i32 to vector<1x64xi32>
    %826 = arith.cmpi ne, %824, %825 : vector<1x64xi32>
    %c0_i32_259 = arith.constant 0 : i32
    %827 = vector.broadcast %c0_i32_259 : i32 to vector<1x64xi32>
    %828 = arith.cmpi slt, %824, %827 : vector<1x64xi32>
    %c0_i32_260 = arith.constant 0 : i32
    %829 = arith.cmpi slt, %822, %c0_i32_260 : i32
    %830 = vector.broadcast %829 : i1 to vector<1x64xi1>
    %831 = vector.broadcast %830 : vector<1x64xi1> to vector<1x64xi1>
    %832 = arith.xori %828, %831 : vector<1x64xi1>
    %833 = arith.andi %832, %826 : vector<1x64xi1>
    %834 = vector.broadcast %822 : i32 to vector<1x64xi32>
    %835 = arith.addi %824, %834 : vector<1x64xi32>
    %836 = arith.select %833, %835, %824 : vector<1x64xi1>, vector<1x64xi32>
    %c16_i32_261 = arith.constant 16 : i32
    %837 = vector.broadcast %c16_i32_261 : i32 to vector<1x64xi32>
    %838 = arith.cmpi slt, %836, %837 : vector<1x64xi32>
    %839 = vector.extract_strided_slice %800 {offsets = [0, 0], sizes = [16, 32], strides = [1, 1]} : vector<32x32xf32> to vector<16x32xf32>
    %840 = vector.extract_strided_slice %800 {offsets = [16, 0], sizes = [16, 32], strides = [1, 1]} : vector<32x32xf32> to vector<16x32xf32>
    %841 = tpu.concatenate %839, %840 in 1 : vector<16x32xf32>, vector<16x32xf32> -> vector<16x64xf32>
    %842 = arith.truncf %841 : vector<16x64xf32> to vector<16x64xbf16>
    %c417 = arith.constant 417 : index
    %c0_262 = arith.constant 0 : index
    %843 = vector.load %arg4[%c417, %c0_262] : memref<808x256xbf16, #tpu.memory_space<vmem>>, vector<64x256xbf16>
    %cst_263 = arith.constant dense<0.000000e+00> : vector<16x256xf32>
    %844 = tpu.matmul %842, %843, %cst_263 {dimension_numbers = #tpu.dot_dimension_numbers<[1], [0], [0], [1], [0, 0, 1, 1], [], []>} : vector<16x64xbf16>, vector<64x256xbf16>, vector<16x256xf32> -> vector<16x256xf32>
    %c23 = arith.constant 23 : index
    %c0_264 = arith.constant 0 : index
    %845 = vector.load %arg3[%c23, %c0_264] : memref<32x256xf32, #tpu.memory_space<vmem>>, vector<1x256xf32>
    %846 = vector.broadcast %845 : vector<1x256xf32> to vector<16x256xf32>
    %847 = arith.addf %844, %846 : vector<16x256xf32>
    %c481 = arith.constant 481 : index
    %c0_265 = arith.constant 0 : index
    %848 = vector.load %arg4[%c481, %c0_265] : memref<808x256xbf16, #tpu.memory_space<vmem>>, vector<64x256xbf16>
    %cst_266 = arith.constant 0.000000e+00 : f32
    %849 = vector.broadcast %cst_266 : f32 to vector<1x64xf32>
    %cst_267 = arith.constant 0.000000e+00 : f32
    %850 = vector.broadcast %cst_267 : f32 to vector<1x64xf32>
    %851 = vector.extract_strided_slice %847 {offsets = [0, 0], sizes = [1, 256], strides = [1, 1]} : vector<16x256xf32> to vector<1x256xf32>
    %852 = vector.extract_strided_slice %847 {offsets = [15, 0], sizes = [1, 256], strides = [1, 1]} : vector<16x256xf32> to vector<1x256xf32>
    %853 = arith.select %819, %851, %852 : vector<1x256xi1>, vector<1x256xf32>
    %854 = arith.truncf %849 : vector<1x64xf32> to vector<1x64xbf16>
    %cst_268 = arith.constant dense<0.000000e+00> : vector<1x256xf32>
    %855 = tpu.matmul %854, %848, %cst_268 {dimension_numbers = #tpu.dot_dimension_numbers<[1], [0], [0], [1], [0, 0, 1, 1], [], []>} : vector<1x64xbf16>, vector<64x256xbf16>, vector<1x256xf32> -> vector<1x256xf32>
    %856 = arith.addf %853, %855 : vector<1x256xf32>
    %857 = arith.negf %856 : vector<1x256xf32>
    %858 = math.exp %857 : vector<1x256xf32>
    %cst_269 = arith.constant 1.000000e+00 : f32
    %859 = vector.broadcast %cst_269 : f32 to vector<1x256xf32>
    %860 = arith.addf %859, %858 : vector<1x256xf32>
    %861 = arith.divf %859, %860 : vector<1x256xf32>
    %862 = vector.extract_strided_slice %856 {offsets = [0, 128], sizes = [1, 64], strides = [1, 1]} : vector<1x256xf32> to vector<1x64xf32>
    %863 = math.tanh %862 : vector<1x64xf32>
    %864 = vector.extract_strided_slice %861 {offsets = [0, 64], sizes = [1, 64], strides = [1, 1]} : vector<1x256xf32> to vector<1x64xf32>
    %865 = arith.mulf %864, %850 : vector<1x64xf32>
    %866 = vector.extract_strided_slice %861 {offsets = [0, 0], sizes = [1, 64], strides = [1, 1]} : vector<1x256xf32> to vector<1x64xf32>
    %867 = arith.mulf %866, %863 : vector<1x64xf32>
    %868 = arith.addf %865, %867 : vector<1x64xf32>
    %869 = vector.extract_strided_slice %861 {offsets = [0, 192], sizes = [1, 64], strides = [1, 1]} : vector<1x256xf32> to vector<1x64xf32>
    %870 = math.tanh %868 : vector<1x64xf32>
    %871 = arith.mulf %869, %870 : vector<1x64xf32>
    %872 = vector.extract_strided_slice %847 {offsets = [1, 0], sizes = [1, 256], strides = [1, 1]} : vector<16x256xf32> to vector<1x256xf32>
    %873 = vector.extract_strided_slice %847 {offsets = [14, 0], sizes = [1, 256], strides = [1, 1]} : vector<16x256xf32> to vector<1x256xf32>
    %874 = arith.select %819, %872, %873 : vector<1x256xi1>, vector<1x256xf32>
    %875 = arith.truncf %871 : vector<1x64xf32> to vector<1x64xbf16>
    %cst_270 = arith.constant dense<0.000000e+00> : vector<1x256xf32>
    %876 = tpu.matmul %875, %848, %cst_270 {dimension_numbers = #tpu.dot_dimension_numbers<[1], [0], [0], [1], [0, 0, 1, 1], [], []>} : vector<1x64xbf16>, vector<64x256xbf16>, vector<1x256xf32> -> vector<1x256xf32>
    %877 = arith.addf %874, %876 : vector<1x256xf32>
    %878 = arith.negf %877 : vector<1x256xf32>
    %879 = math.exp %878 : vector<1x256xf32>
    %cst_271 = arith.constant 1.000000e+00 : f32
    %880 = vector.broadcast %cst_271 : f32 to vector<1x256xf32>
    %881 = arith.addf %880, %879 : vector<1x256xf32>
    %882 = arith.divf %880, %881 : vector<1x256xf32>
    %883 = vector.extract_strided_slice %877 {offsets = [0, 128], sizes = [1, 64], strides = [1, 1]} : vector<1x256xf32> to vector<1x64xf32>
    %884 = math.tanh %883 : vector<1x64xf32>
    %885 = vector.extract_strided_slice %882 {offsets = [0, 64], sizes = [1, 64], strides = [1, 1]} : vector<1x256xf32> to vector<1x64xf32>
    %886 = arith.mulf %885, %868 : vector<1x64xf32>
    %887 = vector.extract_strided_slice %882 {offsets = [0, 0], sizes = [1, 64], strides = [1, 1]} : vector<1x256xf32> to vector<1x64xf32>
    %888 = arith.mulf %887, %884 : vector<1x64xf32>
    %889 = arith.addf %886, %888 : vector<1x64xf32>
    %890 = vector.extract_strided_slice %882 {offsets = [0, 192], sizes = [1, 64], strides = [1, 1]} : vector<1x256xf32> to vector<1x64xf32>
    %891 = math.tanh %889 : vector<1x64xf32>
    %892 = arith.mulf %890, %891 : vector<1x64xf32>
    %893 = vector.extract_strided_slice %847 {offsets = [2, 0], sizes = [1, 256], strides = [1, 1]} : vector<16x256xf32> to vector<1x256xf32>
    %894 = vector.extract_strided_slice %847 {offsets = [13, 0], sizes = [1, 256], strides = [1, 1]} : vector<16x256xf32> to vector<1x256xf32>
    %895 = arith.select %819, %893, %894 : vector<1x256xi1>, vector<1x256xf32>
    %896 = arith.truncf %892 : vector<1x64xf32> to vector<1x64xbf16>
    %cst_272 = arith.constant dense<0.000000e+00> : vector<1x256xf32>
    %897 = tpu.matmul %896, %848, %cst_272 {dimension_numbers = #tpu.dot_dimension_numbers<[1], [0], [0], [1], [0, 0, 1, 1], [], []>} : vector<1x64xbf16>, vector<64x256xbf16>, vector<1x256xf32> -> vector<1x256xf32>
    %898 = arith.addf %895, %897 : vector<1x256xf32>
    %899 = arith.negf %898 : vector<1x256xf32>
    %900 = math.exp %899 : vector<1x256xf32>
    %cst_273 = arith.constant 1.000000e+00 : f32
    %901 = vector.broadcast %cst_273 : f32 to vector<1x256xf32>
    %902 = arith.addf %901, %900 : vector<1x256xf32>
    %903 = arith.divf %901, %902 : vector<1x256xf32>
    %904 = vector.extract_strided_slice %898 {offsets = [0, 128], sizes = [1, 64], strides = [1, 1]} : vector<1x256xf32> to vector<1x64xf32>
    %905 = math.tanh %904 : vector<1x64xf32>
    %906 = vector.extract_strided_slice %903 {offsets = [0, 64], sizes = [1, 64], strides = [1, 1]} : vector<1x256xf32> to vector<1x64xf32>
    %907 = arith.mulf %906, %889 : vector<1x64xf32>
    %908 = vector.extract_strided_slice %903 {offsets = [0, 0], sizes = [1, 64], strides = [1, 1]} : vector<1x256xf32> to vector<1x64xf32>
    %909 = arith.mulf %908, %905 : vector<1x64xf32>
    %910 = arith.addf %907, %909 : vector<1x64xf32>
    %911 = vector.extract_strided_slice %903 {offsets = [0, 192], sizes = [1, 64], strides = [1, 1]} : vector<1x256xf32> to vector<1x64xf32>
    %912 = math.tanh %910 : vector<1x64xf32>
    %913 = arith.mulf %911, %912 : vector<1x64xf32>
    %914 = vector.extract_strided_slice %847 {offsets = [3, 0], sizes = [1, 256], strides = [1, 1]} : vector<16x256xf32> to vector<1x256xf32>
    %915 = vector.extract_strided_slice %847 {offsets = [12, 0], sizes = [1, 256], strides = [1, 1]} : vector<16x256xf32> to vector<1x256xf32>
    %916 = arith.select %819, %914, %915 : vector<1x256xi1>, vector<1x256xf32>
    %917 = arith.truncf %913 : vector<1x64xf32> to vector<1x64xbf16>
    %cst_274 = arith.constant dense<0.000000e+00> : vector<1x256xf32>
    %918 = tpu.matmul %917, %848, %cst_274 {dimension_numbers = #tpu.dot_dimension_numbers<[1], [0], [0], [1], [0, 0, 1, 1], [], []>} : vector<1x64xbf16>, vector<64x256xbf16>, vector<1x256xf32> -> vector<1x256xf32>
    %919 = arith.addf %916, %918 : vector<1x256xf32>
    %920 = arith.negf %919 : vector<1x256xf32>
    %921 = math.exp %920 : vector<1x256xf32>
    %cst_275 = arith.constant 1.000000e+00 : f32
    %922 = vector.broadcast %cst_275 : f32 to vector<1x256xf32>
    %923 = arith.addf %922, %921 : vector<1x256xf32>
    %924 = arith.divf %922, %923 : vector<1x256xf32>
    %925 = vector.extract_strided_slice %919 {offsets = [0, 128], sizes = [1, 64], strides = [1, 1]} : vector<1x256xf32> to vector<1x64xf32>
    %926 = math.tanh %925 : vector<1x64xf32>
    %927 = vector.extract_strided_slice %924 {offsets = [0, 64], sizes = [1, 64], strides = [1, 1]} : vector<1x256xf32> to vector<1x64xf32>
    %928 = arith.mulf %927, %910 : vector<1x64xf32>
    %929 = vector.extract_strided_slice %924 {offsets = [0, 0], sizes = [1, 64], strides = [1, 1]} : vector<1x256xf32> to vector<1x64xf32>
    %930 = arith.mulf %929, %926 : vector<1x64xf32>
    %931 = arith.addf %928, %930 : vector<1x64xf32>
    %932 = vector.extract_strided_slice %924 {offsets = [0, 192], sizes = [1, 64], strides = [1, 1]} : vector<1x256xf32> to vector<1x64xf32>
    %933 = math.tanh %931 : vector<1x64xf32>
    %934 = arith.mulf %932, %933 : vector<1x64xf32>
    %935 = vector.extract_strided_slice %847 {offsets = [4, 0], sizes = [1, 256], strides = [1, 1]} : vector<16x256xf32> to vector<1x256xf32>
    %936 = vector.extract_strided_slice %847 {offsets = [11, 0], sizes = [1, 256], strides = [1, 1]} : vector<16x256xf32> to vector<1x256xf32>
    %937 = arith.select %819, %935, %936 : vector<1x256xi1>, vector<1x256xf32>
    %938 = arith.truncf %934 : vector<1x64xf32> to vector<1x64xbf16>
    %cst_276 = arith.constant dense<0.000000e+00> : vector<1x256xf32>
    %939 = tpu.matmul %938, %848, %cst_276 {dimension_numbers = #tpu.dot_dimension_numbers<[1], [0], [0], [1], [0, 0, 1, 1], [], []>} : vector<1x64xbf16>, vector<64x256xbf16>, vector<1x256xf32> -> vector<1x256xf32>
    %940 = arith.addf %937, %939 : vector<1x256xf32>
    %941 = arith.negf %940 : vector<1x256xf32>
    %942 = math.exp %941 : vector<1x256xf32>
    %cst_277 = arith.constant 1.000000e+00 : f32
    %943 = vector.broadcast %cst_277 : f32 to vector<1x256xf32>
    %944 = arith.addf %943, %942 : vector<1x256xf32>
    %945 = arith.divf %943, %944 : vector<1x256xf32>
    %946 = vector.extract_strided_slice %940 {offsets = [0, 128], sizes = [1, 64], strides = [1, 1]} : vector<1x256xf32> to vector<1x64xf32>
    %947 = math.tanh %946 : vector<1x64xf32>
    %948 = vector.extract_strided_slice %945 {offsets = [0, 64], sizes = [1, 64], strides = [1, 1]} : vector<1x256xf32> to vector<1x64xf32>
    %949 = arith.mulf %948, %931 : vector<1x64xf32>
    %950 = vector.extract_strided_slice %945 {offsets = [0, 0], sizes = [1, 64], strides = [1, 1]} : vector<1x256xf32> to vector<1x64xf32>
    %951 = arith.mulf %950, %947 : vector<1x64xf32>
    %952 = arith.addf %949, %951 : vector<1x64xf32>
    %953 = vector.extract_strided_slice %945 {offsets = [0, 192], sizes = [1, 64], strides = [1, 1]} : vector<1x256xf32> to vector<1x64xf32>
    %954 = math.tanh %952 : vector<1x64xf32>
    %955 = arith.mulf %953, %954 : vector<1x64xf32>
    %956 = vector.extract_strided_slice %847 {offsets = [5, 0], sizes = [1, 256], strides = [1, 1]} : vector<16x256xf32> to vector<1x256xf32>
    %957 = vector.extract_strided_slice %847 {offsets = [10, 0], sizes = [1, 256], strides = [1, 1]} : vector<16x256xf32> to vector<1x256xf32>
    %958 = arith.select %819, %956, %957 : vector<1x256xi1>, vector<1x256xf32>
    %959 = arith.truncf %955 : vector<1x64xf32> to vector<1x64xbf16>
    %cst_278 = arith.constant dense<0.000000e+00> : vector<1x256xf32>
    %960 = tpu.matmul %959, %848, %cst_278 {dimension_numbers = #tpu.dot_dimension_numbers<[1], [0], [0], [1], [0, 0, 1, 1], [], []>} : vector<1x64xbf16>, vector<64x256xbf16>, vector<1x256xf32> -> vector<1x256xf32>
    %961 = arith.addf %958, %960 : vector<1x256xf32>
    %962 = arith.negf %961 : vector<1x256xf32>
    %963 = math.exp %962 : vector<1x256xf32>
    %cst_279 = arith.constant 1.000000e+00 : f32
    %964 = vector.broadcast %cst_279 : f32 to vector<1x256xf32>
    %965 = arith.addf %964, %963 : vector<1x256xf32>
    %966 = arith.divf %964, %965 : vector<1x256xf32>
    %967 = vector.extract_strided_slice %961 {offsets = [0, 128], sizes = [1, 64], strides = [1, 1]} : vector<1x256xf32> to vector<1x64xf32>
    %968 = math.tanh %967 : vector<1x64xf32>
    %969 = vector.extract_strided_slice %966 {offsets = [0, 64], sizes = [1, 64], strides = [1, 1]} : vector<1x256xf32> to vector<1x64xf32>
    %970 = arith.mulf %969, %952 : vector<1x64xf32>
    %971 = vector.extract_strided_slice %966 {offsets = [0, 0], sizes = [1, 64], strides = [1, 1]} : vector<1x256xf32> to vector<1x64xf32>
    %972 = arith.mulf %971, %968 : vector<1x64xf32>
    %973 = arith.addf %970, %972 : vector<1x64xf32>
    %974 = vector.extract_strided_slice %966 {offsets = [0, 192], sizes = [1, 64], strides = [1, 1]} : vector<1x256xf32> to vector<1x64xf32>
    %975 = math.tanh %973 : vector<1x64xf32>
    %976 = arith.mulf %974, %975 : vector<1x64xf32>
    %977 = vector.extract_strided_slice %847 {offsets = [6, 0], sizes = [1, 256], strides = [1, 1]} : vector<16x256xf32> to vector<1x256xf32>
    %978 = vector.extract_strided_slice %847 {offsets = [9, 0], sizes = [1, 256], strides = [1, 1]} : vector<16x256xf32> to vector<1x256xf32>
    %979 = arith.select %819, %977, %978 : vector<1x256xi1>, vector<1x256xf32>
    %980 = arith.truncf %976 : vector<1x64xf32> to vector<1x64xbf16>
    %cst_280 = arith.constant dense<0.000000e+00> : vector<1x256xf32>
    %981 = tpu.matmul %980, %848, %cst_280 {dimension_numbers = #tpu.dot_dimension_numbers<[1], [0], [0], [1], [0, 0, 1, 1], [], []>} : vector<1x64xbf16>, vector<64x256xbf16>, vector<1x256xf32> -> vector<1x256xf32>
    %982 = arith.addf %979, %981 : vector<1x256xf32>
    %983 = arith.negf %982 : vector<1x256xf32>
    %984 = math.exp %983 : vector<1x256xf32>
    %cst_281 = arith.constant 1.000000e+00 : f32
    %985 = vector.broadcast %cst_281 : f32 to vector<1x256xf32>
    %986 = arith.addf %985, %984 : vector<1x256xf32>
    %987 = arith.divf %985, %986 : vector<1x256xf32>
    %988 = vector.extract_strided_slice %982 {offsets = [0, 128], sizes = [1, 64], strides = [1, 1]} : vector<1x256xf32> to vector<1x64xf32>
    %989 = math.tanh %988 : vector<1x64xf32>
    %990 = vector.extract_strided_slice %987 {offsets = [0, 64], sizes = [1, 64], strides = [1, 1]} : vector<1x256xf32> to vector<1x64xf32>
    %991 = arith.mulf %990, %973 : vector<1x64xf32>
    %992 = vector.extract_strided_slice %987 {offsets = [0, 0], sizes = [1, 64], strides = [1, 1]} : vector<1x256xf32> to vector<1x64xf32>
    %993 = arith.mulf %992, %989 : vector<1x64xf32>
    %994 = arith.addf %991, %993 : vector<1x64xf32>
    %995 = vector.extract_strided_slice %987 {offsets = [0, 192], sizes = [1, 64], strides = [1, 1]} : vector<1x256xf32> to vector<1x64xf32>
    %996 = math.tanh %994 : vector<1x64xf32>
    %997 = arith.mulf %995, %996 : vector<1x64xf32>
    %998 = vector.extract_strided_slice %847 {offsets = [7, 0], sizes = [1, 256], strides = [1, 1]} : vector<16x256xf32> to vector<1x256xf32>
    %999 = vector.extract_strided_slice %847 {offsets = [8, 0], sizes = [1, 256], strides = [1, 1]} : vector<16x256xf32> to vector<1x256xf32>
    %1000 = arith.select %819, %998, %999 : vector<1x256xi1>, vector<1x256xf32>
    %1001 = arith.truncf %997 : vector<1x64xf32> to vector<1x64xbf16>
    %cst_282 = arith.constant dense<0.000000e+00> : vector<1x256xf32>
    %1002 = tpu.matmul %1001, %848, %cst_282 {dimension_numbers = #tpu.dot_dimension_numbers<[1], [0], [0], [1], [0, 0, 1, 1], [], []>} : vector<1x64xbf16>, vector<64x256xbf16>, vector<1x256xf32> -> vector<1x256xf32>
    %1003 = arith.addf %1000, %1002 : vector<1x256xf32>
    %1004 = arith.negf %1003 : vector<1x256xf32>
    %1005 = math.exp %1004 : vector<1x256xf32>
    %cst_283 = arith.constant 1.000000e+00 : f32
    %1006 = vector.broadcast %cst_283 : f32 to vector<1x256xf32>
    %1007 = arith.addf %1006, %1005 : vector<1x256xf32>
    %1008 = arith.divf %1006, %1007 : vector<1x256xf32>
    %1009 = vector.extract_strided_slice %1003 {offsets = [0, 128], sizes = [1, 64], strides = [1, 1]} : vector<1x256xf32> to vector<1x64xf32>
    %1010 = math.tanh %1009 : vector<1x64xf32>
    %1011 = vector.extract_strided_slice %1008 {offsets = [0, 64], sizes = [1, 64], strides = [1, 1]} : vector<1x256xf32> to vector<1x64xf32>
    %1012 = arith.mulf %1011, %994 : vector<1x64xf32>
    %1013 = vector.extract_strided_slice %1008 {offsets = [0, 0], sizes = [1, 64], strides = [1, 1]} : vector<1x256xf32> to vector<1x64xf32>
    %1014 = arith.mulf %1013, %1010 : vector<1x64xf32>
    %1015 = arith.addf %1012, %1014 : vector<1x64xf32>
    %1016 = vector.extract_strided_slice %1008 {offsets = [0, 192], sizes = [1, 64], strides = [1, 1]} : vector<1x256xf32> to vector<1x64xf32>
    %1017 = math.tanh %1015 : vector<1x64xf32>
    %1018 = arith.mulf %1016, %1017 : vector<1x64xf32>
    %1019 = vector.extract_strided_slice %847 {offsets = [8, 0], sizes = [1, 256], strides = [1, 1]} : vector<16x256xf32> to vector<1x256xf32>
    %1020 = vector.extract_strided_slice %847 {offsets = [7, 0], sizes = [1, 256], strides = [1, 1]} : vector<16x256xf32> to vector<1x256xf32>
    %1021 = arith.select %819, %1019, %1020 : vector<1x256xi1>, vector<1x256xf32>
    %1022 = arith.truncf %1018 : vector<1x64xf32> to vector<1x64xbf16>
    %cst_284 = arith.constant dense<0.000000e+00> : vector<1x256xf32>
    %1023 = tpu.matmul %1022, %848, %cst_284 {dimension_numbers = #tpu.dot_dimension_numbers<[1], [0], [0], [1], [0, 0, 1, 1], [], []>} : vector<1x64xbf16>, vector<64x256xbf16>, vector<1x256xf32> -> vector<1x256xf32>
    %1024 = arith.addf %1021, %1023 : vector<1x256xf32>
    %1025 = arith.negf %1024 : vector<1x256xf32>
    %1026 = math.exp %1025 : vector<1x256xf32>
    %cst_285 = arith.constant 1.000000e+00 : f32
    %1027 = vector.broadcast %cst_285 : f32 to vector<1x256xf32>
    %1028 = arith.addf %1027, %1026 : vector<1x256xf32>
    %1029 = arith.divf %1027, %1028 : vector<1x256xf32>
    %1030 = vector.extract_strided_slice %1024 {offsets = [0, 128], sizes = [1, 64], strides = [1, 1]} : vector<1x256xf32> to vector<1x64xf32>
    %1031 = math.tanh %1030 : vector<1x64xf32>
    %1032 = vector.extract_strided_slice %1029 {offsets = [0, 64], sizes = [1, 64], strides = [1, 1]} : vector<1x256xf32> to vector<1x64xf32>
    %1033 = arith.mulf %1032, %1015 : vector<1x64xf32>
    %1034 = vector.extract_strided_slice %1029 {offsets = [0, 0], sizes = [1, 64], strides = [1, 1]} : vector<1x256xf32> to vector<1x64xf32>
    %1035 = arith.mulf %1034, %1031 : vector<1x64xf32>
    %1036 = arith.addf %1033, %1035 : vector<1x64xf32>
    %1037 = vector.extract_strided_slice %1029 {offsets = [0, 192], sizes = [1, 64], strides = [1, 1]} : vector<1x256xf32> to vector<1x64xf32>
    %1038 = math.tanh %1036 : vector<1x64xf32>
    %1039 = arith.mulf %1037, %1038 : vector<1x64xf32>
    %1040 = vector.extract_strided_slice %847 {offsets = [9, 0], sizes = [1, 256], strides = [1, 1]} : vector<16x256xf32> to vector<1x256xf32>
    %1041 = vector.extract_strided_slice %847 {offsets = [6, 0], sizes = [1, 256], strides = [1, 1]} : vector<16x256xf32> to vector<1x256xf32>
    %1042 = arith.select %819, %1040, %1041 : vector<1x256xi1>, vector<1x256xf32>
    %1043 = arith.truncf %1039 : vector<1x64xf32> to vector<1x64xbf16>
    %cst_286 = arith.constant dense<0.000000e+00> : vector<1x256xf32>
    %1044 = tpu.matmul %1043, %848, %cst_286 {dimension_numbers = #tpu.dot_dimension_numbers<[1], [0], [0], [1], [0, 0, 1, 1], [], []>} : vector<1x64xbf16>, vector<64x256xbf16>, vector<1x256xf32> -> vector<1x256xf32>
    %1045 = arith.addf %1042, %1044 : vector<1x256xf32>
    %1046 = arith.negf %1045 : vector<1x256xf32>
    %1047 = math.exp %1046 : vector<1x256xf32>
    %cst_287 = arith.constant 1.000000e+00 : f32
    %1048 = vector.broadcast %cst_287 : f32 to vector<1x256xf32>
    %1049 = arith.addf %1048, %1047 : vector<1x256xf32>
    %1050 = arith.divf %1048, %1049 : vector<1x256xf32>
    %1051 = vector.extract_strided_slice %1045 {offsets = [0, 128], sizes = [1, 64], strides = [1, 1]} : vector<1x256xf32> to vector<1x64xf32>
    %1052 = math.tanh %1051 : vector<1x64xf32>
    %1053 = vector.extract_strided_slice %1050 {offsets = [0, 64], sizes = [1, 64], strides = [1, 1]} : vector<1x256xf32> to vector<1x64xf32>
    %1054 = arith.mulf %1053, %1036 : vector<1x64xf32>
    %1055 = vector.extract_strided_slice %1050 {offsets = [0, 0], sizes = [1, 64], strides = [1, 1]} : vector<1x256xf32> to vector<1x64xf32>
    %1056 = arith.mulf %1055, %1052 : vector<1x64xf32>
    %1057 = arith.addf %1054, %1056 : vector<1x64xf32>
    %1058 = vector.extract_strided_slice %1050 {offsets = [0, 192], sizes = [1, 64], strides = [1, 1]} : vector<1x256xf32> to vector<1x64xf32>
    %1059 = math.tanh %1057 : vector<1x64xf32>
    %1060 = arith.mulf %1058, %1059 : vector<1x64xf32>
    %1061 = vector.extract_strided_slice %847 {offsets = [10, 0], sizes = [1, 256], strides = [1, 1]} : vector<16x256xf32> to vector<1x256xf32>
    %1062 = vector.extract_strided_slice %847 {offsets = [5, 0], sizes = [1, 256], strides = [1, 1]} : vector<16x256xf32> to vector<1x256xf32>
    %1063 = arith.select %819, %1061, %1062 : vector<1x256xi1>, vector<1x256xf32>
    %1064 = arith.truncf %1060 : vector<1x64xf32> to vector<1x64xbf16>
    %cst_288 = arith.constant dense<0.000000e+00> : vector<1x256xf32>
    %1065 = tpu.matmul %1064, %848, %cst_288 {dimension_numbers = #tpu.dot_dimension_numbers<[1], [0], [0], [1], [0, 0, 1, 1], [], []>} : vector<1x64xbf16>, vector<64x256xbf16>, vector<1x256xf32> -> vector<1x256xf32>
    %1066 = arith.addf %1063, %1065 : vector<1x256xf32>
    %1067 = arith.negf %1066 : vector<1x256xf32>
    %1068 = math.exp %1067 : vector<1x256xf32>
    %cst_289 = arith.constant 1.000000e+00 : f32
    %1069 = vector.broadcast %cst_289 : f32 to vector<1x256xf32>
    %1070 = arith.addf %1069, %1068 : vector<1x256xf32>
    %1071 = arith.divf %1069, %1070 : vector<1x256xf32>
    %1072 = vector.extract_strided_slice %1066 {offsets = [0, 128], sizes = [1, 64], strides = [1, 1]} : vector<1x256xf32> to vector<1x64xf32>
    %1073 = math.tanh %1072 : vector<1x64xf32>
    %1074 = vector.extract_strided_slice %1071 {offsets = [0, 64], sizes = [1, 64], strides = [1, 1]} : vector<1x256xf32> to vector<1x64xf32>
    %1075 = arith.mulf %1074, %1057 : vector<1x64xf32>
    %1076 = vector.extract_strided_slice %1071 {offsets = [0, 0], sizes = [1, 64], strides = [1, 1]} : vector<1x256xf32> to vector<1x64xf32>
    %1077 = arith.mulf %1076, %1073 : vector<1x64xf32>
    %1078 = arith.addf %1075, %1077 : vector<1x64xf32>
    %1079 = vector.extract_strided_slice %1071 {offsets = [0, 192], sizes = [1, 64], strides = [1, 1]} : vector<1x256xf32> to vector<1x64xf32>
    %1080 = math.tanh %1078 : vector<1x64xf32>
    %1081 = arith.mulf %1079, %1080 : vector<1x64xf32>
    %1082 = vector.extract_strided_slice %847 {offsets = [11, 0], sizes = [1, 256], strides = [1, 1]} : vector<16x256xf32> to vector<1x256xf32>
    %1083 = vector.extract_strided_slice %847 {offsets = [4, 0], sizes = [1, 256], strides = [1, 1]} : vector<16x256xf32> to vector<1x256xf32>
    %1084 = arith.select %819, %1082, %1083 : vector<1x256xi1>, vector<1x256xf32>
    %1085 = arith.truncf %1081 : vector<1x64xf32> to vector<1x64xbf16>
    %cst_290 = arith.constant dense<0.000000e+00> : vector<1x256xf32>
    %1086 = tpu.matmul %1085, %848, %cst_290 {dimension_numbers = #tpu.dot_dimension_numbers<[1], [0], [0], [1], [0, 0, 1, 1], [], []>} : vector<1x64xbf16>, vector<64x256xbf16>, vector<1x256xf32> -> vector<1x256xf32>
    %1087 = arith.addf %1084, %1086 : vector<1x256xf32>
    %1088 = arith.negf %1087 : vector<1x256xf32>
    %1089 = math.exp %1088 : vector<1x256xf32>
    %cst_291 = arith.constant 1.000000e+00 : f32
    %1090 = vector.broadcast %cst_291 : f32 to vector<1x256xf32>
    %1091 = arith.addf %1090, %1089 : vector<1x256xf32>
    %1092 = arith.divf %1090, %1091 : vector<1x256xf32>
    %1093 = vector.extract_strided_slice %1087 {offsets = [0, 128], sizes = [1, 64], strides = [1, 1]} : vector<1x256xf32> to vector<1x64xf32>
    %1094 = math.tanh %1093 : vector<1x64xf32>
    %1095 = vector.extract_strided_slice %1092 {offsets = [0, 64], sizes = [1, 64], strides = [1, 1]} : vector<1x256xf32> to vector<1x64xf32>
    %1096 = arith.mulf %1095, %1078 : vector<1x64xf32>
    %1097 = vector.extract_strided_slice %1092 {offsets = [0, 0], sizes = [1, 64], strides = [1, 1]} : vector<1x256xf32> to vector<1x64xf32>
    %1098 = arith.mulf %1097, %1094 : vector<1x64xf32>
    %1099 = arith.addf %1096, %1098 : vector<1x64xf32>
    %1100 = vector.extract_strided_slice %1092 {offsets = [0, 192], sizes = [1, 64], strides = [1, 1]} : vector<1x256xf32> to vector<1x64xf32>
    %1101 = math.tanh %1099 : vector<1x64xf32>
    %1102 = arith.mulf %1100, %1101 : vector<1x64xf32>
    %1103 = vector.extract_strided_slice %847 {offsets = [12, 0], sizes = [1, 256], strides = [1, 1]} : vector<16x256xf32> to vector<1x256xf32>
    %1104 = vector.extract_strided_slice %847 {offsets = [3, 0], sizes = [1, 256], strides = [1, 1]} : vector<16x256xf32> to vector<1x256xf32>
    %1105 = arith.select %819, %1103, %1104 : vector<1x256xi1>, vector<1x256xf32>
    %1106 = arith.truncf %1102 : vector<1x64xf32> to vector<1x64xbf16>
    %cst_292 = arith.constant dense<0.000000e+00> : vector<1x256xf32>
    %1107 = tpu.matmul %1106, %848, %cst_292 {dimension_numbers = #tpu.dot_dimension_numbers<[1], [0], [0], [1], [0, 0, 1, 1], [], []>} : vector<1x64xbf16>, vector<64x256xbf16>, vector<1x256xf32> -> vector<1x256xf32>
    %1108 = arith.addf %1105, %1107 : vector<1x256xf32>
    %1109 = arith.negf %1108 : vector<1x256xf32>
    %1110 = math.exp %1109 : vector<1x256xf32>
    %cst_293 = arith.constant 1.000000e+00 : f32
    %1111 = vector.broadcast %cst_293 : f32 to vector<1x256xf32>
    %1112 = arith.addf %1111, %1110 : vector<1x256xf32>
    %1113 = arith.divf %1111, %1112 : vector<1x256xf32>
    %1114 = vector.extract_strided_slice %1108 {offsets = [0, 128], sizes = [1, 64], strides = [1, 1]} : vector<1x256xf32> to vector<1x64xf32>
    %1115 = math.tanh %1114 : vector<1x64xf32>
    %1116 = vector.extract_strided_slice %1113 {offsets = [0, 64], sizes = [1, 64], strides = [1, 1]} : vector<1x256xf32> to vector<1x64xf32>
    %1117 = arith.mulf %1116, %1099 : vector<1x64xf32>
    %1118 = vector.extract_strided_slice %1113 {offsets = [0, 0], sizes = [1, 64], strides = [1, 1]} : vector<1x256xf32> to vector<1x64xf32>
    %1119 = arith.mulf %1118, %1115 : vector<1x64xf32>
    %1120 = arith.addf %1117, %1119 : vector<1x64xf32>
    %1121 = vector.extract_strided_slice %1113 {offsets = [0, 192], sizes = [1, 64], strides = [1, 1]} : vector<1x256xf32> to vector<1x64xf32>
    %1122 = math.tanh %1120 : vector<1x64xf32>
    %1123 = arith.mulf %1121, %1122 : vector<1x64xf32>
    %1124 = vector.extract_strided_slice %847 {offsets = [13, 0], sizes = [1, 256], strides = [1, 1]} : vector<16x256xf32> to vector<1x256xf32>
    %1125 = vector.extract_strided_slice %847 {offsets = [2, 0], sizes = [1, 256], strides = [1, 1]} : vector<16x256xf32> to vector<1x256xf32>
    %1126 = arith.select %819, %1124, %1125 : vector<1x256xi1>, vector<1x256xf32>
    %1127 = arith.truncf %1123 : vector<1x64xf32> to vector<1x64xbf16>
    %cst_294 = arith.constant dense<0.000000e+00> : vector<1x256xf32>
    %1128 = tpu.matmul %1127, %848, %cst_294 {dimension_numbers = #tpu.dot_dimension_numbers<[1], [0], [0], [1], [0, 0, 1, 1], [], []>} : vector<1x64xbf16>, vector<64x256xbf16>, vector<1x256xf32> -> vector<1x256xf32>
    %1129 = arith.addf %1126, %1128 : vector<1x256xf32>
    %1130 = arith.negf %1129 : vector<1x256xf32>
    %1131 = math.exp %1130 : vector<1x256xf32>
    %cst_295 = arith.constant 1.000000e+00 : f32
    %1132 = vector.broadcast %cst_295 : f32 to vector<1x256xf32>
    %1133 = arith.addf %1132, %1131 : vector<1x256xf32>
    %1134 = arith.divf %1132, %1133 : vector<1x256xf32>
    %1135 = vector.extract_strided_slice %1129 {offsets = [0, 128], sizes = [1, 64], strides = [1, 1]} : vector<1x256xf32> to vector<1x64xf32>
    %1136 = math.tanh %1135 : vector<1x64xf32>
    %1137 = vector.extract_strided_slice %1134 {offsets = [0, 64], sizes = [1, 64], strides = [1, 1]} : vector<1x256xf32> to vector<1x64xf32>
    %1138 = arith.mulf %1137, %1120 : vector<1x64xf32>
    %1139 = vector.extract_strided_slice %1134 {offsets = [0, 0], sizes = [1, 64], strides = [1, 1]} : vector<1x256xf32> to vector<1x64xf32>
    %1140 = arith.mulf %1139, %1136 : vector<1x64xf32>
    %1141 = arith.addf %1138, %1140 : vector<1x64xf32>
    %1142 = vector.extract_strided_slice %1134 {offsets = [0, 192], sizes = [1, 64], strides = [1, 1]} : vector<1x256xf32> to vector<1x64xf32>
    %1143 = math.tanh %1141 : vector<1x64xf32>
    %1144 = arith.mulf %1142, %1143 : vector<1x64xf32>
    %1145 = vector.extract_strided_slice %847 {offsets = [14, 0], sizes = [1, 256], strides = [1, 1]} : vector<16x256xf32> to vector<1x256xf32>
    %1146 = vector.extract_strided_slice %847 {offsets = [1, 0], sizes = [1, 256], strides = [1, 1]} : vector<16x256xf32> to vector<1x256xf32>
    %1147 = arith.select %819, %1145, %1146 : vector<1x256xi1>, vector<1x256xf32>
    %1148 = arith.truncf %1144 : vector<1x64xf32> to vector<1x64xbf16>
    %cst_296 = arith.constant dense<0.000000e+00> : vector<1x256xf32>
    %1149 = tpu.matmul %1148, %848, %cst_296 {dimension_numbers = #tpu.dot_dimension_numbers<[1], [0], [0], [1], [0, 0, 1, 1], [], []>} : vector<1x64xbf16>, vector<64x256xbf16>, vector<1x256xf32> -> vector<1x256xf32>
    %1150 = arith.addf %1147, %1149 : vector<1x256xf32>
    %1151 = arith.negf %1150 : vector<1x256xf32>
    %1152 = math.exp %1151 : vector<1x256xf32>
    %cst_297 = arith.constant 1.000000e+00 : f32
    %1153 = vector.broadcast %cst_297 : f32 to vector<1x256xf32>
    %1154 = arith.addf %1153, %1152 : vector<1x256xf32>
    %1155 = arith.divf %1153, %1154 : vector<1x256xf32>
    %1156 = vector.extract_strided_slice %1150 {offsets = [0, 128], sizes = [1, 64], strides = [1, 1]} : vector<1x256xf32> to vector<1x64xf32>
    %1157 = math.tanh %1156 : vector<1x64xf32>
    %1158 = vector.extract_strided_slice %1155 {offsets = [0, 64], sizes = [1, 64], strides = [1, 1]} : vector<1x256xf32> to vector<1x64xf32>
    %1159 = arith.mulf %1158, %1141 : vector<1x64xf32>
    %1160 = vector.extract_strided_slice %1155 {offsets = [0, 0], sizes = [1, 64], strides = [1, 1]} : vector<1x256xf32> to vector<1x64xf32>
    %1161 = arith.mulf %1160, %1157 : vector<1x64xf32>
    %1162 = arith.addf %1159, %1161 : vector<1x64xf32>
    %1163 = vector.extract_strided_slice %1155 {offsets = [0, 192], sizes = [1, 64], strides = [1, 1]} : vector<1x256xf32> to vector<1x64xf32>
    %1164 = math.tanh %1162 : vector<1x64xf32>
    %1165 = arith.mulf %1163, %1164 : vector<1x64xf32>
    %1166 = vector.extract_strided_slice %847 {offsets = [15, 0], sizes = [1, 256], strides = [1, 1]} : vector<16x256xf32> to vector<1x256xf32>
    %1167 = vector.extract_strided_slice %847 {offsets = [0, 0], sizes = [1, 256], strides = [1, 1]} : vector<16x256xf32> to vector<1x256xf32>
    %1168 = arith.select %819, %1166, %1167 : vector<1x256xi1>, vector<1x256xf32>
    %1169 = arith.truncf %1165 : vector<1x64xf32> to vector<1x64xbf16>
    %cst_298 = arith.constant dense<0.000000e+00> : vector<1x256xf32>
    %1170 = tpu.matmul %1169, %848, %cst_298 {dimension_numbers = #tpu.dot_dimension_numbers<[1], [0], [0], [1], [0, 0, 1, 1], [], []>} : vector<1x64xbf16>, vector<64x256xbf16>, vector<1x256xf32> -> vector<1x256xf32>
    %1171 = arith.addf %1168, %1170 : vector<1x256xf32>
    %1172 = arith.negf %1171 : vector<1x256xf32>
    %1173 = math.exp %1172 : vector<1x256xf32>
    %cst_299 = arith.constant 1.000000e+00 : f32
    %1174 = vector.broadcast %cst_299 : f32 to vector<1x256xf32>
    %1175 = arith.addf %1174, %1173 : vector<1x256xf32>
    %1176 = arith.divf %1174, %1175 : vector<1x256xf32>
    %1177 = vector.extract_strided_slice %1171 {offsets = [0, 128], sizes = [1, 64], strides = [1, 1]} : vector<1x256xf32> to vector<1x64xf32>
    %1178 = math.tanh %1177 : vector<1x64xf32>
    %1179 = vector.extract_strided_slice %1176 {offsets = [0, 64], sizes = [1, 64], strides = [1, 1]} : vector<1x256xf32> to vector<1x64xf32>
    %1180 = arith.mulf %1179, %1162 : vector<1x64xf32>
    %1181 = vector.extract_strided_slice %1176 {offsets = [0, 0], sizes = [1, 64], strides = [1, 1]} : vector<1x256xf32> to vector<1x64xf32>
    %1182 = arith.mulf %1181, %1178 : vector<1x64xf32>
    %1183 = arith.addf %1180, %1182 : vector<1x64xf32>
    %1184 = vector.extract_strided_slice %1176 {offsets = [0, 192], sizes = [1, 64], strides = [1, 1]} : vector<1x256xf32> to vector<1x64xf32>
    %1185 = math.tanh %1183 : vector<1x64xf32>
    %1186 = arith.mulf %1184, %1185 : vector<1x64xf32>
    %1187 = arith.select %838, %871, %1186 : vector<1x64xi1>, vector<1x64xf32>
    %1188 = arith.select %838, %892, %1165 : vector<1x64xi1>, vector<1x64xf32>
    %1189 = arith.select %838, %913, %1144 : vector<1x64xi1>, vector<1x64xf32>
    %1190 = arith.select %838, %934, %1123 : vector<1x64xi1>, vector<1x64xf32>
    %1191 = arith.select %838, %955, %1102 : vector<1x64xi1>, vector<1x64xf32>
    %1192 = arith.select %838, %976, %1081 : vector<1x64xi1>, vector<1x64xf32>
    %1193 = arith.select %838, %997, %1060 : vector<1x64xi1>, vector<1x64xf32>
    %1194 = arith.select %838, %1018, %1039 : vector<1x64xi1>, vector<1x64xf32>
    %1195 = arith.select %838, %1039, %1018 : vector<1x64xi1>, vector<1x64xf32>
    %1196 = arith.select %838, %1060, %997 : vector<1x64xi1>, vector<1x64xf32>
    %1197 = arith.select %838, %1081, %976 : vector<1x64xi1>, vector<1x64xf32>
    %1198 = arith.select %838, %1102, %955 : vector<1x64xi1>, vector<1x64xf32>
    %1199 = arith.select %838, %1123, %934 : vector<1x64xi1>, vector<1x64xf32>
    %1200 = arith.select %838, %1144, %913 : vector<1x64xi1>, vector<1x64xf32>
    %1201 = arith.select %838, %1165, %892 : vector<1x64xi1>, vector<1x64xf32>
    %1202 = arith.select %838, %1186, %871 : vector<1x64xi1>, vector<1x64xf32>
    %1203 = tpu.concatenate %1187, %1188, %1189, %1190, %1191, %1192, %1193, %1194, %1195, %1196, %1197, %1198, %1199, %1200, %1201, %1202 in 0 : vector<1x64xf32>, vector<1x64xf32>, vector<1x64xf32>, vector<1x64xf32>, vector<1x64xf32>, vector<1x64xf32>, vector<1x64xf32>, vector<1x64xf32>, vector<1x64xf32>, vector<1x64xf32>, vector<1x64xf32>, vector<1x64xf32>, vector<1x64xf32>, vector<1x64xf32>, vector<1x64xf32>, vector<1x64xf32> -> vector<16x64xf32>
    %1204 = arith.truncf %1203 : vector<16x64xf32> to vector<16x64xbf16>
    %c545 = arith.constant 545 : index
    %c0_300 = arith.constant 0 : index
    %1205 = vector.load %arg4[%c545, %c0_300] : memref<808x256xbf16, #tpu.memory_space<vmem>>, vector<64x256xbf16>
    %cst_301 = arith.constant dense<0.000000e+00> : vector<16x256xf32>
    %1206 = tpu.matmul %1204, %1205, %cst_301 {dimension_numbers = #tpu.dot_dimension_numbers<[1], [0], [0], [1], [0, 0, 1, 1], [], []>} : vector<16x64xbf16>, vector<64x256xbf16>, vector<16x256xf32> -> vector<16x256xf32>
    %c24 = arith.constant 24 : index
    %c0_302 = arith.constant 0 : index
    %1207 = vector.load %arg3[%c24, %c0_302] : memref<32x256xf32, #tpu.memory_space<vmem>>, vector<1x256xf32>
    %1208 = vector.broadcast %1207 : vector<1x256xf32> to vector<16x256xf32>
    %1209 = arith.addf %1206, %1208 : vector<16x256xf32>
    %c609 = arith.constant 609 : index
    %c0_303 = arith.constant 0 : index
    %1210 = vector.load %arg4[%c609, %c0_303] : memref<808x256xbf16, #tpu.memory_space<vmem>>, vector<64x256xbf16>
    %cst_304 = arith.constant 0.000000e+00 : f32
    %1211 = vector.broadcast %cst_304 : f32 to vector<1x64xf32>
    %cst_305 = arith.constant 0.000000e+00 : f32
    %1212 = vector.broadcast %cst_305 : f32 to vector<1x64xf32>
    %1213 = vector.extract_strided_slice %1209 {offsets = [0, 0], sizes = [1, 256], strides = [1, 1]} : vector<16x256xf32> to vector<1x256xf32>
    %1214 = vector.extract_strided_slice %1209 {offsets = [15, 0], sizes = [1, 256], strides = [1, 1]} : vector<16x256xf32> to vector<1x256xf32>
    %1215 = arith.select %819, %1213, %1214 : vector<1x256xi1>, vector<1x256xf32>
    %1216 = arith.truncf %1211 : vector<1x64xf32> to vector<1x64xbf16>
    %cst_306 = arith.constant dense<0.000000e+00> : vector<1x256xf32>
    %1217 = tpu.matmul %1216, %1210, %cst_306 {dimension_numbers = #tpu.dot_dimension_numbers<[1], [0], [0], [1], [0, 0, 1, 1], [], []>} : vector<1x64xbf16>, vector<64x256xbf16>, vector<1x256xf32> -> vector<1x256xf32>
    %1218 = arith.addf %1215, %1217 : vector<1x256xf32>
    %1219 = arith.negf %1218 : vector<1x256xf32>
    %1220 = math.exp %1219 : vector<1x256xf32>
    %cst_307 = arith.constant 1.000000e+00 : f32
    %1221 = vector.broadcast %cst_307 : f32 to vector<1x256xf32>
    %1222 = arith.addf %1221, %1220 : vector<1x256xf32>
    %1223 = arith.divf %1221, %1222 : vector<1x256xf32>
    %1224 = vector.extract_strided_slice %1218 {offsets = [0, 128], sizes = [1, 64], strides = [1, 1]} : vector<1x256xf32> to vector<1x64xf32>
    %1225 = math.tanh %1224 : vector<1x64xf32>
    %1226 = vector.extract_strided_slice %1223 {offsets = [0, 64], sizes = [1, 64], strides = [1, 1]} : vector<1x256xf32> to vector<1x64xf32>
    %1227 = arith.mulf %1226, %1212 : vector<1x64xf32>
    %1228 = vector.extract_strided_slice %1223 {offsets = [0, 0], sizes = [1, 64], strides = [1, 1]} : vector<1x256xf32> to vector<1x64xf32>
    %1229 = arith.mulf %1228, %1225 : vector<1x64xf32>
    %1230 = arith.addf %1227, %1229 : vector<1x64xf32>
    %1231 = vector.extract_strided_slice %1223 {offsets = [0, 192], sizes = [1, 64], strides = [1, 1]} : vector<1x256xf32> to vector<1x64xf32>
    %1232 = math.tanh %1230 : vector<1x64xf32>
    %1233 = arith.mulf %1231, %1232 : vector<1x64xf32>
    %1234 = vector.extract_strided_slice %1209 {offsets = [1, 0], sizes = [1, 256], strides = [1, 1]} : vector<16x256xf32> to vector<1x256xf32>
    %1235 = vector.extract_strided_slice %1209 {offsets = [14, 0], sizes = [1, 256], strides = [1, 1]} : vector<16x256xf32> to vector<1x256xf32>
    %1236 = arith.select %819, %1234, %1235 : vector<1x256xi1>, vector<1x256xf32>
    %1237 = arith.truncf %1233 : vector<1x64xf32> to vector<1x64xbf16>
    %cst_308 = arith.constant dense<0.000000e+00> : vector<1x256xf32>
    %1238 = tpu.matmul %1237, %1210, %cst_308 {dimension_numbers = #tpu.dot_dimension_numbers<[1], [0], [0], [1], [0, 0, 1, 1], [], []>} : vector<1x64xbf16>, vector<64x256xbf16>, vector<1x256xf32> -> vector<1x256xf32>
    %1239 = arith.addf %1236, %1238 : vector<1x256xf32>
    %1240 = arith.negf %1239 : vector<1x256xf32>
    %1241 = math.exp %1240 : vector<1x256xf32>
    %cst_309 = arith.constant 1.000000e+00 : f32
    %1242 = vector.broadcast %cst_309 : f32 to vector<1x256xf32>
    %1243 = arith.addf %1242, %1241 : vector<1x256xf32>
    %1244 = arith.divf %1242, %1243 : vector<1x256xf32>
    %1245 = vector.extract_strided_slice %1239 {offsets = [0, 128], sizes = [1, 64], strides = [1, 1]} : vector<1x256xf32> to vector<1x64xf32>
    %1246 = math.tanh %1245 : vector<1x64xf32>
    %1247 = vector.extract_strided_slice %1244 {offsets = [0, 64], sizes = [1, 64], strides = [1, 1]} : vector<1x256xf32> to vector<1x64xf32>
    %1248 = arith.mulf %1247, %1230 : vector<1x64xf32>
    %1249 = vector.extract_strided_slice %1244 {offsets = [0, 0], sizes = [1, 64], strides = [1, 1]} : vector<1x256xf32> to vector<1x64xf32>
    %1250 = arith.mulf %1249, %1246 : vector<1x64xf32>
    %1251 = arith.addf %1248, %1250 : vector<1x64xf32>
    %1252 = vector.extract_strided_slice %1244 {offsets = [0, 192], sizes = [1, 64], strides = [1, 1]} : vector<1x256xf32> to vector<1x64xf32>
    %1253 = math.tanh %1251 : vector<1x64xf32>
    %1254 = arith.mulf %1252, %1253 : vector<1x64xf32>
    %1255 = vector.extract_strided_slice %1209 {offsets = [2, 0], sizes = [1, 256], strides = [1, 1]} : vector<16x256xf32> to vector<1x256xf32>
    %1256 = vector.extract_strided_slice %1209 {offsets = [13, 0], sizes = [1, 256], strides = [1, 1]} : vector<16x256xf32> to vector<1x256xf32>
    %1257 = arith.select %819, %1255, %1256 : vector<1x256xi1>, vector<1x256xf32>
    %1258 = arith.truncf %1254 : vector<1x64xf32> to vector<1x64xbf16>
    %cst_310 = arith.constant dense<0.000000e+00> : vector<1x256xf32>
    %1259 = tpu.matmul %1258, %1210, %cst_310 {dimension_numbers = #tpu.dot_dimension_numbers<[1], [0], [0], [1], [0, 0, 1, 1], [], []>} : vector<1x64xbf16>, vector<64x256xbf16>, vector<1x256xf32> -> vector<1x256xf32>
    %1260 = arith.addf %1257, %1259 : vector<1x256xf32>
    %1261 = arith.negf %1260 : vector<1x256xf32>
    %1262 = math.exp %1261 : vector<1x256xf32>
    %cst_311 = arith.constant 1.000000e+00 : f32
    %1263 = vector.broadcast %cst_311 : f32 to vector<1x256xf32>
    %1264 = arith.addf %1263, %1262 : vector<1x256xf32>
    %1265 = arith.divf %1263, %1264 : vector<1x256xf32>
    %1266 = vector.extract_strided_slice %1260 {offsets = [0, 128], sizes = [1, 64], strides = [1, 1]} : vector<1x256xf32> to vector<1x64xf32>
    %1267 = math.tanh %1266 : vector<1x64xf32>
    %1268 = vector.extract_strided_slice %1265 {offsets = [0, 64], sizes = [1, 64], strides = [1, 1]} : vector<1x256xf32> to vector<1x64xf32>
    %1269 = arith.mulf %1268, %1251 : vector<1x64xf32>
    %1270 = vector.extract_strided_slice %1265 {offsets = [0, 0], sizes = [1, 64], strides = [1, 1]} : vector<1x256xf32> to vector<1x64xf32>
    %1271 = arith.mulf %1270, %1267 : vector<1x64xf32>
    %1272 = arith.addf %1269, %1271 : vector<1x64xf32>
    %1273 = vector.extract_strided_slice %1265 {offsets = [0, 192], sizes = [1, 64], strides = [1, 1]} : vector<1x256xf32> to vector<1x64xf32>
    %1274 = math.tanh %1272 : vector<1x64xf32>
    %1275 = arith.mulf %1273, %1274 : vector<1x64xf32>
    %1276 = vector.extract_strided_slice %1209 {offsets = [3, 0], sizes = [1, 256], strides = [1, 1]} : vector<16x256xf32> to vector<1x256xf32>
    %1277 = vector.extract_strided_slice %1209 {offsets = [12, 0], sizes = [1, 256], strides = [1, 1]} : vector<16x256xf32> to vector<1x256xf32>
    %1278 = arith.select %819, %1276, %1277 : vector<1x256xi1>, vector<1x256xf32>
    %1279 = arith.truncf %1275 : vector<1x64xf32> to vector<1x64xbf16>
    %cst_312 = arith.constant dense<0.000000e+00> : vector<1x256xf32>
    %1280 = tpu.matmul %1279, %1210, %cst_312 {dimension_numbers = #tpu.dot_dimension_numbers<[1], [0], [0], [1], [0, 0, 1, 1], [], []>} : vector<1x64xbf16>, vector<64x256xbf16>, vector<1x256xf32> -> vector<1x256xf32>
    %1281 = arith.addf %1278, %1280 : vector<1x256xf32>
    %1282 = arith.negf %1281 : vector<1x256xf32>
    %1283 = math.exp %1282 : vector<1x256xf32>
    %cst_313 = arith.constant 1.000000e+00 : f32
    %1284 = vector.broadcast %cst_313 : f32 to vector<1x256xf32>
    %1285 = arith.addf %1284, %1283 : vector<1x256xf32>
    %1286 = arith.divf %1284, %1285 : vector<1x256xf32>
    %1287 = vector.extract_strided_slice %1281 {offsets = [0, 128], sizes = [1, 64], strides = [1, 1]} : vector<1x256xf32> to vector<1x64xf32>
    %1288 = math.tanh %1287 : vector<1x64xf32>
    %1289 = vector.extract_strided_slice %1286 {offsets = [0, 64], sizes = [1, 64], strides = [1, 1]} : vector<1x256xf32> to vector<1x64xf32>
    %1290 = arith.mulf %1289, %1272 : vector<1x64xf32>
    %1291 = vector.extract_strided_slice %1286 {offsets = [0, 0], sizes = [1, 64], strides = [1, 1]} : vector<1x256xf32> to vector<1x64xf32>
    %1292 = arith.mulf %1291, %1288 : vector<1x64xf32>
    %1293 = arith.addf %1290, %1292 : vector<1x64xf32>
    %1294 = vector.extract_strided_slice %1286 {offsets = [0, 192], sizes = [1, 64], strides = [1, 1]} : vector<1x256xf32> to vector<1x64xf32>
    %1295 = math.tanh %1293 : vector<1x64xf32>
    %1296 = arith.mulf %1294, %1295 : vector<1x64xf32>
    %1297 = vector.extract_strided_slice %1209 {offsets = [4, 0], sizes = [1, 256], strides = [1, 1]} : vector<16x256xf32> to vector<1x256xf32>
    %1298 = vector.extract_strided_slice %1209 {offsets = [11, 0], sizes = [1, 256], strides = [1, 1]} : vector<16x256xf32> to vector<1x256xf32>
    %1299 = arith.select %819, %1297, %1298 : vector<1x256xi1>, vector<1x256xf32>
    %1300 = arith.truncf %1296 : vector<1x64xf32> to vector<1x64xbf16>
    %cst_314 = arith.constant dense<0.000000e+00> : vector<1x256xf32>
    %1301 = tpu.matmul %1300, %1210, %cst_314 {dimension_numbers = #tpu.dot_dimension_numbers<[1], [0], [0], [1], [0, 0, 1, 1], [], []>} : vector<1x64xbf16>, vector<64x256xbf16>, vector<1x256xf32> -> vector<1x256xf32>
    %1302 = arith.addf %1299, %1301 : vector<1x256xf32>
    %1303 = arith.negf %1302 : vector<1x256xf32>
    %1304 = math.exp %1303 : vector<1x256xf32>
    %cst_315 = arith.constant 1.000000e+00 : f32
    %1305 = vector.broadcast %cst_315 : f32 to vector<1x256xf32>
    %1306 = arith.addf %1305, %1304 : vector<1x256xf32>
    %1307 = arith.divf %1305, %1306 : vector<1x256xf32>
    %1308 = vector.extract_strided_slice %1302 {offsets = [0, 128], sizes = [1, 64], strides = [1, 1]} : vector<1x256xf32> to vector<1x64xf32>
    %1309 = math.tanh %1308 : vector<1x64xf32>
    %1310 = vector.extract_strided_slice %1307 {offsets = [0, 64], sizes = [1, 64], strides = [1, 1]} : vector<1x256xf32> to vector<1x64xf32>
    %1311 = arith.mulf %1310, %1293 : vector<1x64xf32>
    %1312 = vector.extract_strided_slice %1307 {offsets = [0, 0], sizes = [1, 64], strides = [1, 1]} : vector<1x256xf32> to vector<1x64xf32>
    %1313 = arith.mulf %1312, %1309 : vector<1x64xf32>
    %1314 = arith.addf %1311, %1313 : vector<1x64xf32>
    %1315 = vector.extract_strided_slice %1307 {offsets = [0, 192], sizes = [1, 64], strides = [1, 1]} : vector<1x256xf32> to vector<1x64xf32>
    %1316 = math.tanh %1314 : vector<1x64xf32>
    %1317 = arith.mulf %1315, %1316 : vector<1x64xf32>
    %1318 = vector.extract_strided_slice %1209 {offsets = [5, 0], sizes = [1, 256], strides = [1, 1]} : vector<16x256xf32> to vector<1x256xf32>
    %1319 = vector.extract_strided_slice %1209 {offsets = [10, 0], sizes = [1, 256], strides = [1, 1]} : vector<16x256xf32> to vector<1x256xf32>
    %1320 = arith.select %819, %1318, %1319 : vector<1x256xi1>, vector<1x256xf32>
    %1321 = arith.truncf %1317 : vector<1x64xf32> to vector<1x64xbf16>
    %cst_316 = arith.constant dense<0.000000e+00> : vector<1x256xf32>
    %1322 = tpu.matmul %1321, %1210, %cst_316 {dimension_numbers = #tpu.dot_dimension_numbers<[1], [0], [0], [1], [0, 0, 1, 1], [], []>} : vector<1x64xbf16>, vector<64x256xbf16>, vector<1x256xf32> -> vector<1x256xf32>
    %1323 = arith.addf %1320, %1322 : vector<1x256xf32>
    %1324 = arith.negf %1323 : vector<1x256xf32>
    %1325 = math.exp %1324 : vector<1x256xf32>
    %cst_317 = arith.constant 1.000000e+00 : f32
    %1326 = vector.broadcast %cst_317 : f32 to vector<1x256xf32>
    %1327 = arith.addf %1326, %1325 : vector<1x256xf32>
    %1328 = arith.divf %1326, %1327 : vector<1x256xf32>
    %1329 = vector.extract_strided_slice %1323 {offsets = [0, 128], sizes = [1, 64], strides = [1, 1]} : vector<1x256xf32> to vector<1x64xf32>
    %1330 = math.tanh %1329 : vector<1x64xf32>
    %1331 = vector.extract_strided_slice %1328 {offsets = [0, 64], sizes = [1, 64], strides = [1, 1]} : vector<1x256xf32> to vector<1x64xf32>
    %1332 = arith.mulf %1331, %1314 : vector<1x64xf32>
    %1333 = vector.extract_strided_slice %1328 {offsets = [0, 0], sizes = [1, 64], strides = [1, 1]} : vector<1x256xf32> to vector<1x64xf32>
    %1334 = arith.mulf %1333, %1330 : vector<1x64xf32>
    %1335 = arith.addf %1332, %1334 : vector<1x64xf32>
    %1336 = vector.extract_strided_slice %1328 {offsets = [0, 192], sizes = [1, 64], strides = [1, 1]} : vector<1x256xf32> to vector<1x64xf32>
    %1337 = math.tanh %1335 : vector<1x64xf32>
    %1338 = arith.mulf %1336, %1337 : vector<1x64xf32>
    %1339 = vector.extract_strided_slice %1209 {offsets = [6, 0], sizes = [1, 256], strides = [1, 1]} : vector<16x256xf32> to vector<1x256xf32>
    %1340 = vector.extract_strided_slice %1209 {offsets = [9, 0], sizes = [1, 256], strides = [1, 1]} : vector<16x256xf32> to vector<1x256xf32>
    %1341 = arith.select %819, %1339, %1340 : vector<1x256xi1>, vector<1x256xf32>
    %1342 = arith.truncf %1338 : vector<1x64xf32> to vector<1x64xbf16>
    %cst_318 = arith.constant dense<0.000000e+00> : vector<1x256xf32>
    %1343 = tpu.matmul %1342, %1210, %cst_318 {dimension_numbers = #tpu.dot_dimension_numbers<[1], [0], [0], [1], [0, 0, 1, 1], [], []>} : vector<1x64xbf16>, vector<64x256xbf16>, vector<1x256xf32> -> vector<1x256xf32>
    %1344 = arith.addf %1341, %1343 : vector<1x256xf32>
    %1345 = arith.negf %1344 : vector<1x256xf32>
    %1346 = math.exp %1345 : vector<1x256xf32>
    %cst_319 = arith.constant 1.000000e+00 : f32
    %1347 = vector.broadcast %cst_319 : f32 to vector<1x256xf32>
    %1348 = arith.addf %1347, %1346 : vector<1x256xf32>
    %1349 = arith.divf %1347, %1348 : vector<1x256xf32>
    %1350 = vector.extract_strided_slice %1344 {offsets = [0, 128], sizes = [1, 64], strides = [1, 1]} : vector<1x256xf32> to vector<1x64xf32>
    %1351 = math.tanh %1350 : vector<1x64xf32>
    %1352 = vector.extract_strided_slice %1349 {offsets = [0, 64], sizes = [1, 64], strides = [1, 1]} : vector<1x256xf32> to vector<1x64xf32>
    %1353 = arith.mulf %1352, %1335 : vector<1x64xf32>
    %1354 = vector.extract_strided_slice %1349 {offsets = [0, 0], sizes = [1, 64], strides = [1, 1]} : vector<1x256xf32> to vector<1x64xf32>
    %1355 = arith.mulf %1354, %1351 : vector<1x64xf32>
    %1356 = arith.addf %1353, %1355 : vector<1x64xf32>
    %1357 = vector.extract_strided_slice %1349 {offsets = [0, 192], sizes = [1, 64], strides = [1, 1]} : vector<1x256xf32> to vector<1x64xf32>
    %1358 = math.tanh %1356 : vector<1x64xf32>
    %1359 = arith.mulf %1357, %1358 : vector<1x64xf32>
    %1360 = vector.extract_strided_slice %1209 {offsets = [7, 0], sizes = [1, 256], strides = [1, 1]} : vector<16x256xf32> to vector<1x256xf32>
    %1361 = vector.extract_strided_slice %1209 {offsets = [8, 0], sizes = [1, 256], strides = [1, 1]} : vector<16x256xf32> to vector<1x256xf32>
    %1362 = arith.select %819, %1360, %1361 : vector<1x256xi1>, vector<1x256xf32>
    %1363 = arith.truncf %1359 : vector<1x64xf32> to vector<1x64xbf16>
    %cst_320 = arith.constant dense<0.000000e+00> : vector<1x256xf32>
    %1364 = tpu.matmul %1363, %1210, %cst_320 {dimension_numbers = #tpu.dot_dimension_numbers<[1], [0], [0], [1], [0, 0, 1, 1], [], []>} : vector<1x64xbf16>, vector<64x256xbf16>, vector<1x256xf32> -> vector<1x256xf32>
    %1365 = arith.addf %1362, %1364 : vector<1x256xf32>
    %1366 = arith.negf %1365 : vector<1x256xf32>
    %1367 = math.exp %1366 : vector<1x256xf32>
    %cst_321 = arith.constant 1.000000e+00 : f32
    %1368 = vector.broadcast %cst_321 : f32 to vector<1x256xf32>
    %1369 = arith.addf %1368, %1367 : vector<1x256xf32>
    %1370 = arith.divf %1368, %1369 : vector<1x256xf32>
    %1371 = vector.extract_strided_slice %1365 {offsets = [0, 128], sizes = [1, 64], strides = [1, 1]} : vector<1x256xf32> to vector<1x64xf32>
    %1372 = math.tanh %1371 : vector<1x64xf32>
    %1373 = vector.extract_strided_slice %1370 {offsets = [0, 64], sizes = [1, 64], strides = [1, 1]} : vector<1x256xf32> to vector<1x64xf32>
    %1374 = arith.mulf %1373, %1356 : vector<1x64xf32>
    %1375 = vector.extract_strided_slice %1370 {offsets = [0, 0], sizes = [1, 64], strides = [1, 1]} : vector<1x256xf32> to vector<1x64xf32>
    %1376 = arith.mulf %1375, %1372 : vector<1x64xf32>
    %1377 = arith.addf %1374, %1376 : vector<1x64xf32>
    %1378 = vector.extract_strided_slice %1370 {offsets = [0, 192], sizes = [1, 64], strides = [1, 1]} : vector<1x256xf32> to vector<1x64xf32>
    %1379 = math.tanh %1377 : vector<1x64xf32>
    %1380 = arith.mulf %1378, %1379 : vector<1x64xf32>
    %1381 = vector.extract_strided_slice %1209 {offsets = [8, 0], sizes = [1, 256], strides = [1, 1]} : vector<16x256xf32> to vector<1x256xf32>
    %1382 = vector.extract_strided_slice %1209 {offsets = [7, 0], sizes = [1, 256], strides = [1, 1]} : vector<16x256xf32> to vector<1x256xf32>
    %1383 = arith.select %819, %1381, %1382 : vector<1x256xi1>, vector<1x256xf32>
    %1384 = arith.truncf %1380 : vector<1x64xf32> to vector<1x64xbf16>
    %cst_322 = arith.constant dense<0.000000e+00> : vector<1x256xf32>
    %1385 = tpu.matmul %1384, %1210, %cst_322 {dimension_numbers = #tpu.dot_dimension_numbers<[1], [0], [0], [1], [0, 0, 1, 1], [], []>} : vector<1x64xbf16>, vector<64x256xbf16>, vector<1x256xf32> -> vector<1x256xf32>
    %1386 = arith.addf %1383, %1385 : vector<1x256xf32>
    %1387 = arith.negf %1386 : vector<1x256xf32>
    %1388 = math.exp %1387 : vector<1x256xf32>
    %cst_323 = arith.constant 1.000000e+00 : f32
    %1389 = vector.broadcast %cst_323 : f32 to vector<1x256xf32>
    %1390 = arith.addf %1389, %1388 : vector<1x256xf32>
    %1391 = arith.divf %1389, %1390 : vector<1x256xf32>
    %1392 = vector.extract_strided_slice %1386 {offsets = [0, 128], sizes = [1, 64], strides = [1, 1]} : vector<1x256xf32> to vector<1x64xf32>
    %1393 = math.tanh %1392 : vector<1x64xf32>
    %1394 = vector.extract_strided_slice %1391 {offsets = [0, 64], sizes = [1, 64], strides = [1, 1]} : vector<1x256xf32> to vector<1x64xf32>
    %1395 = arith.mulf %1394, %1377 : vector<1x64xf32>
    %1396 = vector.extract_strided_slice %1391 {offsets = [0, 0], sizes = [1, 64], strides = [1, 1]} : vector<1x256xf32> to vector<1x64xf32>
    %1397 = arith.mulf %1396, %1393 : vector<1x64xf32>
    %1398 = arith.addf %1395, %1397 : vector<1x64xf32>
    %1399 = vector.extract_strided_slice %1391 {offsets = [0, 192], sizes = [1, 64], strides = [1, 1]} : vector<1x256xf32> to vector<1x64xf32>
    %1400 = math.tanh %1398 : vector<1x64xf32>
    %1401 = arith.mulf %1399, %1400 : vector<1x64xf32>
    %1402 = vector.extract_strided_slice %1209 {offsets = [9, 0], sizes = [1, 256], strides = [1, 1]} : vector<16x256xf32> to vector<1x256xf32>
    %1403 = vector.extract_strided_slice %1209 {offsets = [6, 0], sizes = [1, 256], strides = [1, 1]} : vector<16x256xf32> to vector<1x256xf32>
    %1404 = arith.select %819, %1402, %1403 : vector<1x256xi1>, vector<1x256xf32>
    %1405 = arith.truncf %1401 : vector<1x64xf32> to vector<1x64xbf16>
    %cst_324 = arith.constant dense<0.000000e+00> : vector<1x256xf32>
    %1406 = tpu.matmul %1405, %1210, %cst_324 {dimension_numbers = #tpu.dot_dimension_numbers<[1], [0], [0], [1], [0, 0, 1, 1], [], []>} : vector<1x64xbf16>, vector<64x256xbf16>, vector<1x256xf32> -> vector<1x256xf32>
    %1407 = arith.addf %1404, %1406 : vector<1x256xf32>
    %1408 = arith.negf %1407 : vector<1x256xf32>
    %1409 = math.exp %1408 : vector<1x256xf32>
    %cst_325 = arith.constant 1.000000e+00 : f32
    %1410 = vector.broadcast %cst_325 : f32 to vector<1x256xf32>
    %1411 = arith.addf %1410, %1409 : vector<1x256xf32>
    %1412 = arith.divf %1410, %1411 : vector<1x256xf32>
    %1413 = vector.extract_strided_slice %1407 {offsets = [0, 128], sizes = [1, 64], strides = [1, 1]} : vector<1x256xf32> to vector<1x64xf32>
    %1414 = math.tanh %1413 : vector<1x64xf32>
    %1415 = vector.extract_strided_slice %1412 {offsets = [0, 64], sizes = [1, 64], strides = [1, 1]} : vector<1x256xf32> to vector<1x64xf32>
    %1416 = arith.mulf %1415, %1398 : vector<1x64xf32>
    %1417 = vector.extract_strided_slice %1412 {offsets = [0, 0], sizes = [1, 64], strides = [1, 1]} : vector<1x256xf32> to vector<1x64xf32>
    %1418 = arith.mulf %1417, %1414 : vector<1x64xf32>
    %1419 = arith.addf %1416, %1418 : vector<1x64xf32>
    %1420 = vector.extract_strided_slice %1412 {offsets = [0, 192], sizes = [1, 64], strides = [1, 1]} : vector<1x256xf32> to vector<1x64xf32>
    %1421 = math.tanh %1419 : vector<1x64xf32>
    %1422 = arith.mulf %1420, %1421 : vector<1x64xf32>
    %1423 = vector.extract_strided_slice %1209 {offsets = [10, 0], sizes = [1, 256], strides = [1, 1]} : vector<16x256xf32> to vector<1x256xf32>
    %1424 = vector.extract_strided_slice %1209 {offsets = [5, 0], sizes = [1, 256], strides = [1, 1]} : vector<16x256xf32> to vector<1x256xf32>
    %1425 = arith.select %819, %1423, %1424 : vector<1x256xi1>, vector<1x256xf32>
    %1426 = arith.truncf %1422 : vector<1x64xf32> to vector<1x64xbf16>
    %cst_326 = arith.constant dense<0.000000e+00> : vector<1x256xf32>
    %1427 = tpu.matmul %1426, %1210, %cst_326 {dimension_numbers = #tpu.dot_dimension_numbers<[1], [0], [0], [1], [0, 0, 1, 1], [], []>} : vector<1x64xbf16>, vector<64x256xbf16>, vector<1x256xf32> -> vector<1x256xf32>
    %1428 = arith.addf %1425, %1427 : vector<1x256xf32>
    %1429 = arith.negf %1428 : vector<1x256xf32>
    %1430 = math.exp %1429 : vector<1x256xf32>
    %cst_327 = arith.constant 1.000000e+00 : f32
    %1431 = vector.broadcast %cst_327 : f32 to vector<1x256xf32>
    %1432 = arith.addf %1431, %1430 : vector<1x256xf32>
    %1433 = arith.divf %1431, %1432 : vector<1x256xf32>
    %1434 = vector.extract_strided_slice %1428 {offsets = [0, 128], sizes = [1, 64], strides = [1, 1]} : vector<1x256xf32> to vector<1x64xf32>
    %1435 = math.tanh %1434 : vector<1x64xf32>
    %1436 = vector.extract_strided_slice %1433 {offsets = [0, 64], sizes = [1, 64], strides = [1, 1]} : vector<1x256xf32> to vector<1x64xf32>
    %1437 = arith.mulf %1436, %1419 : vector<1x64xf32>
    %1438 = vector.extract_strided_slice %1433 {offsets = [0, 0], sizes = [1, 64], strides = [1, 1]} : vector<1x256xf32> to vector<1x64xf32>
    %1439 = arith.mulf %1438, %1435 : vector<1x64xf32>
    %1440 = arith.addf %1437, %1439 : vector<1x64xf32>
    %1441 = vector.extract_strided_slice %1433 {offsets = [0, 192], sizes = [1, 64], strides = [1, 1]} : vector<1x256xf32> to vector<1x64xf32>
    %1442 = math.tanh %1440 : vector<1x64xf32>
    %1443 = arith.mulf %1441, %1442 : vector<1x64xf32>
    %1444 = vector.extract_strided_slice %1209 {offsets = [11, 0], sizes = [1, 256], strides = [1, 1]} : vector<16x256xf32> to vector<1x256xf32>
    %1445 = vector.extract_strided_slice %1209 {offsets = [4, 0], sizes = [1, 256], strides = [1, 1]} : vector<16x256xf32> to vector<1x256xf32>
    %1446 = arith.select %819, %1444, %1445 : vector<1x256xi1>, vector<1x256xf32>
    %1447 = arith.truncf %1443 : vector<1x64xf32> to vector<1x64xbf16>
    %cst_328 = arith.constant dense<0.000000e+00> : vector<1x256xf32>
    %1448 = tpu.matmul %1447, %1210, %cst_328 {dimension_numbers = #tpu.dot_dimension_numbers<[1], [0], [0], [1], [0, 0, 1, 1], [], []>} : vector<1x64xbf16>, vector<64x256xbf16>, vector<1x256xf32> -> vector<1x256xf32>
    %1449 = arith.addf %1446, %1448 : vector<1x256xf32>
    %1450 = arith.negf %1449 : vector<1x256xf32>
    %1451 = math.exp %1450 : vector<1x256xf32>
    %cst_329 = arith.constant 1.000000e+00 : f32
    %1452 = vector.broadcast %cst_329 : f32 to vector<1x256xf32>
    %1453 = arith.addf %1452, %1451 : vector<1x256xf32>
    %1454 = arith.divf %1452, %1453 : vector<1x256xf32>
    %1455 = vector.extract_strided_slice %1449 {offsets = [0, 128], sizes = [1, 64], strides = [1, 1]} : vector<1x256xf32> to vector<1x64xf32>
    %1456 = math.tanh %1455 : vector<1x64xf32>
    %1457 = vector.extract_strided_slice %1454 {offsets = [0, 64], sizes = [1, 64], strides = [1, 1]} : vector<1x256xf32> to vector<1x64xf32>
    %1458 = arith.mulf %1457, %1440 : vector<1x64xf32>
    %1459 = vector.extract_strided_slice %1454 {offsets = [0, 0], sizes = [1, 64], strides = [1, 1]} : vector<1x256xf32> to vector<1x64xf32>
    %1460 = arith.mulf %1459, %1456 : vector<1x64xf32>
    %1461 = arith.addf %1458, %1460 : vector<1x64xf32>
    %1462 = vector.extract_strided_slice %1454 {offsets = [0, 192], sizes = [1, 64], strides = [1, 1]} : vector<1x256xf32> to vector<1x64xf32>
    %1463 = math.tanh %1461 : vector<1x64xf32>
    %1464 = arith.mulf %1462, %1463 : vector<1x64xf32>
    %1465 = vector.extract_strided_slice %1209 {offsets = [12, 0], sizes = [1, 256], strides = [1, 1]} : vector<16x256xf32> to vector<1x256xf32>
    %1466 = vector.extract_strided_slice %1209 {offsets = [3, 0], sizes = [1, 256], strides = [1, 1]} : vector<16x256xf32> to vector<1x256xf32>
    %1467 = arith.select %819, %1465, %1466 : vector<1x256xi1>, vector<1x256xf32>
    %1468 = arith.truncf %1464 : vector<1x64xf32> to vector<1x64xbf16>
    %cst_330 = arith.constant dense<0.000000e+00> : vector<1x256xf32>
    %1469 = tpu.matmul %1468, %1210, %cst_330 {dimension_numbers = #tpu.dot_dimension_numbers<[1], [0], [0], [1], [0, 0, 1, 1], [], []>} : vector<1x64xbf16>, vector<64x256xbf16>, vector<1x256xf32> -> vector<1x256xf32>
    %1470 = arith.addf %1467, %1469 : vector<1x256xf32>
    %1471 = arith.negf %1470 : vector<1x256xf32>
    %1472 = math.exp %1471 : vector<1x256xf32>
    %cst_331 = arith.constant 1.000000e+00 : f32
    %1473 = vector.broadcast %cst_331 : f32 to vector<1x256xf32>
    %1474 = arith.addf %1473, %1472 : vector<1x256xf32>
    %1475 = arith.divf %1473, %1474 : vector<1x256xf32>
    %1476 = vector.extract_strided_slice %1470 {offsets = [0, 128], sizes = [1, 64], strides = [1, 1]} : vector<1x256xf32> to vector<1x64xf32>
    %1477 = math.tanh %1476 : vector<1x64xf32>
    %1478 = vector.extract_strided_slice %1475 {offsets = [0, 64], sizes = [1, 64], strides = [1, 1]} : vector<1x256xf32> to vector<1x64xf32>
    %1479 = arith.mulf %1478, %1461 : vector<1x64xf32>
    %1480 = vector.extract_strided_slice %1475 {offsets = [0, 0], sizes = [1, 64], strides = [1, 1]} : vector<1x256xf32> to vector<1x64xf32>
    %1481 = arith.mulf %1480, %1477 : vector<1x64xf32>
    %1482 = arith.addf %1479, %1481 : vector<1x64xf32>
    %1483 = vector.extract_strided_slice %1475 {offsets = [0, 192], sizes = [1, 64], strides = [1, 1]} : vector<1x256xf32> to vector<1x64xf32>
    %1484 = math.tanh %1482 : vector<1x64xf32>
    %1485 = arith.mulf %1483, %1484 : vector<1x64xf32>
    %1486 = vector.extract_strided_slice %1209 {offsets = [13, 0], sizes = [1, 256], strides = [1, 1]} : vector<16x256xf32> to vector<1x256xf32>
    %1487 = vector.extract_strided_slice %1209 {offsets = [2, 0], sizes = [1, 256], strides = [1, 1]} : vector<16x256xf32> to vector<1x256xf32>
    %1488 = arith.select %819, %1486, %1487 : vector<1x256xi1>, vector<1x256xf32>
    %1489 = arith.truncf %1485 : vector<1x64xf32> to vector<1x64xbf16>
    %cst_332 = arith.constant dense<0.000000e+00> : vector<1x256xf32>
    %1490 = tpu.matmul %1489, %1210, %cst_332 {dimension_numbers = #tpu.dot_dimension_numbers<[1], [0], [0], [1], [0, 0, 1, 1], [], []>} : vector<1x64xbf16>, vector<64x256xbf16>, vector<1x256xf32> -> vector<1x256xf32>
    %1491 = arith.addf %1488, %1490 : vector<1x256xf32>
    %1492 = arith.negf %1491 : vector<1x256xf32>
    %1493 = math.exp %1492 : vector<1x256xf32>
    %cst_333 = arith.constant 1.000000e+00 : f32
    %1494 = vector.broadcast %cst_333 : f32 to vector<1x256xf32>
    %1495 = arith.addf %1494, %1493 : vector<1x256xf32>
    %1496 = arith.divf %1494, %1495 : vector<1x256xf32>
    %1497 = vector.extract_strided_slice %1491 {offsets = [0, 128], sizes = [1, 64], strides = [1, 1]} : vector<1x256xf32> to vector<1x64xf32>
    %1498 = math.tanh %1497 : vector<1x64xf32>
    %1499 = vector.extract_strided_slice %1496 {offsets = [0, 64], sizes = [1, 64], strides = [1, 1]} : vector<1x256xf32> to vector<1x64xf32>
    %1500 = arith.mulf %1499, %1482 : vector<1x64xf32>
    %1501 = vector.extract_strided_slice %1496 {offsets = [0, 0], sizes = [1, 64], strides = [1, 1]} : vector<1x256xf32> to vector<1x64xf32>
    %1502 = arith.mulf %1501, %1498 : vector<1x64xf32>
    %1503 = arith.addf %1500, %1502 : vector<1x64xf32>
    %1504 = vector.extract_strided_slice %1496 {offsets = [0, 192], sizes = [1, 64], strides = [1, 1]} : vector<1x256xf32> to vector<1x64xf32>
    %1505 = math.tanh %1503 : vector<1x64xf32>
    %1506 = arith.mulf %1504, %1505 : vector<1x64xf32>
    %1507 = vector.extract_strided_slice %1209 {offsets = [14, 0], sizes = [1, 256], strides = [1, 1]} : vector<16x256xf32> to vector<1x256xf32>
    %1508 = vector.extract_strided_slice %1209 {offsets = [1, 0], sizes = [1, 256], strides = [1, 1]} : vector<16x256xf32> to vector<1x256xf32>
    %1509 = arith.select %819, %1507, %1508 : vector<1x256xi1>, vector<1x256xf32>
    %1510 = arith.truncf %1506 : vector<1x64xf32> to vector<1x64xbf16>
    %cst_334 = arith.constant dense<0.000000e+00> : vector<1x256xf32>
    %1511 = tpu.matmul %1510, %1210, %cst_334 {dimension_numbers = #tpu.dot_dimension_numbers<[1], [0], [0], [1], [0, 0, 1, 1], [], []>} : vector<1x64xbf16>, vector<64x256xbf16>, vector<1x256xf32> -> vector<1x256xf32>
    %1512 = arith.addf %1509, %1511 : vector<1x256xf32>
    %1513 = arith.negf %1512 : vector<1x256xf32>
    %1514 = math.exp %1513 : vector<1x256xf32>
    %cst_335 = arith.constant 1.000000e+00 : f32
    %1515 = vector.broadcast %cst_335 : f32 to vector<1x256xf32>
    %1516 = arith.addf %1515, %1514 : vector<1x256xf32>
    %1517 = arith.divf %1515, %1516 : vector<1x256xf32>
    %1518 = vector.extract_strided_slice %1512 {offsets = [0, 128], sizes = [1, 64], strides = [1, 1]} : vector<1x256xf32> to vector<1x64xf32>
    %1519 = math.tanh %1518 : vector<1x64xf32>
    %1520 = vector.extract_strided_slice %1517 {offsets = [0, 64], sizes = [1, 64], strides = [1, 1]} : vector<1x256xf32> to vector<1x64xf32>
    %1521 = arith.mulf %1520, %1503 : vector<1x64xf32>
    %1522 = vector.extract_strided_slice %1517 {offsets = [0, 0], sizes = [1, 64], strides = [1, 1]} : vector<1x256xf32> to vector<1x64xf32>
    %1523 = arith.mulf %1522, %1519 : vector<1x64xf32>
    %1524 = arith.addf %1521, %1523 : vector<1x64xf32>
    %1525 = vector.extract_strided_slice %1517 {offsets = [0, 192], sizes = [1, 64], strides = [1, 1]} : vector<1x256xf32> to vector<1x64xf32>
    %1526 = math.tanh %1524 : vector<1x64xf32>
    %1527 = arith.mulf %1525, %1526 : vector<1x64xf32>
    %1528 = vector.extract_strided_slice %1209 {offsets = [15, 0], sizes = [1, 256], strides = [1, 1]} : vector<16x256xf32> to vector<1x256xf32>
    %1529 = vector.extract_strided_slice %1209 {offsets = [0, 0], sizes = [1, 256], strides = [1, 1]} : vector<16x256xf32> to vector<1x256xf32>
    %1530 = arith.select %819, %1528, %1529 : vector<1x256xi1>, vector<1x256xf32>
    %1531 = arith.truncf %1527 : vector<1x64xf32> to vector<1x64xbf16>
    %cst_336 = arith.constant dense<0.000000e+00> : vector<1x256xf32>
    %1532 = tpu.matmul %1531, %1210, %cst_336 {dimension_numbers = #tpu.dot_dimension_numbers<[1], [0], [0], [1], [0, 0, 1, 1], [], []>} : vector<1x64xbf16>, vector<64x256xbf16>, vector<1x256xf32> -> vector<1x256xf32>
    %1533 = arith.addf %1530, %1532 : vector<1x256xf32>
    %1534 = arith.negf %1533 : vector<1x256xf32>
    %1535 = math.exp %1534 : vector<1x256xf32>
    %cst_337 = arith.constant 1.000000e+00 : f32
    %1536 = vector.broadcast %cst_337 : f32 to vector<1x256xf32>
    %1537 = arith.addf %1536, %1535 : vector<1x256xf32>
    %1538 = arith.divf %1536, %1537 : vector<1x256xf32>
    %1539 = vector.extract_strided_slice %1533 {offsets = [0, 128], sizes = [1, 64], strides = [1, 1]} : vector<1x256xf32> to vector<1x64xf32>
    %1540 = math.tanh %1539 : vector<1x64xf32>
    %1541 = vector.extract_strided_slice %1538 {offsets = [0, 64], sizes = [1, 64], strides = [1, 1]} : vector<1x256xf32> to vector<1x64xf32>
    %1542 = arith.mulf %1541, %1524 : vector<1x64xf32>
    %1543 = vector.extract_strided_slice %1538 {offsets = [0, 0], sizes = [1, 64], strides = [1, 1]} : vector<1x256xf32> to vector<1x64xf32>
    %1544 = arith.mulf %1543, %1540 : vector<1x64xf32>
    %1545 = arith.addf %1542, %1544 : vector<1x64xf32>
    %1546 = vector.extract_strided_slice %1538 {offsets = [0, 192], sizes = [1, 64], strides = [1, 1]} : vector<1x256xf32> to vector<1x64xf32>
    %1547 = math.tanh %1545 : vector<1x64xf32>
    %1548 = arith.mulf %1546, %1547 : vector<1x64xf32>
    %1549 = arith.select %838, %1233, %1548 : vector<1x64xi1>, vector<1x64xf32>
    %1550 = arith.select %838, %1254, %1527 : vector<1x64xi1>, vector<1x64xf32>
    %1551 = arith.select %838, %1275, %1506 : vector<1x64xi1>, vector<1x64xf32>
    %1552 = arith.select %838, %1296, %1485 : vector<1x64xi1>, vector<1x64xf32>
    %1553 = arith.select %838, %1317, %1464 : vector<1x64xi1>, vector<1x64xf32>
    %1554 = arith.select %838, %1338, %1443 : vector<1x64xi1>, vector<1x64xf32>
    %1555 = arith.select %838, %1359, %1422 : vector<1x64xi1>, vector<1x64xf32>
    %1556 = arith.select %838, %1380, %1401 : vector<1x64xi1>, vector<1x64xf32>
    %1557 = arith.select %838, %1401, %1380 : vector<1x64xi1>, vector<1x64xf32>
    %1558 = arith.select %838, %1422, %1359 : vector<1x64xi1>, vector<1x64xf32>
    %1559 = arith.select %838, %1443, %1338 : vector<1x64xi1>, vector<1x64xf32>
    %1560 = arith.select %838, %1464, %1317 : vector<1x64xi1>, vector<1x64xf32>
    %1561 = arith.select %838, %1485, %1296 : vector<1x64xi1>, vector<1x64xf32>
    %1562 = arith.select %838, %1506, %1275 : vector<1x64xi1>, vector<1x64xf32>
    %1563 = arith.select %838, %1527, %1254 : vector<1x64xi1>, vector<1x64xf32>
    %1564 = arith.select %838, %1548, %1233 : vector<1x64xi1>, vector<1x64xf32>
    %1565 = tpu.concatenate %1549, %1550, %1551, %1552, %1553, %1554, %1555, %1556, %1557, %1558, %1559, %1560, %1561, %1562, %1563, %1564 in 0 : vector<1x64xf32>, vector<1x64xf32>, vector<1x64xf32>, vector<1x64xf32>, vector<1x64xf32>, vector<1x64xf32>, vector<1x64xf32>, vector<1x64xf32>, vector<1x64xf32>, vector<1x64xf32>, vector<1x64xf32>, vector<1x64xf32>, vector<1x64xf32>, vector<1x64xf32>, vector<1x64xf32>, vector<1x64xf32> -> vector<16x64xf32>
    %1566 = arith.truncf %1565 : vector<16x64xf32> to vector<16x64xbf16>
    %c673 = arith.constant 673 : index
    %c0_338 = arith.constant 0 : index
    %1567 = vector.load %arg4[%c673, %c0_338] : memref<808x256xbf16, #tpu.memory_space<vmem>>, vector<64x32xbf16>
    %cst_339 = arith.constant dense<0.000000e+00> : vector<16x32xf32>
    %1568 = tpu.matmul %1566, %1567, %cst_339 {dimension_numbers = #tpu.dot_dimension_numbers<[1], [0], [0], [1], [0, 0, 1, 1], [], []>} : vector<16x64xbf16>, vector<64x32xbf16>, vector<16x32xf32> -> vector<16x32xf32>
    %c5_340 = arith.constant 5 : index
    %c0_341 = arith.constant 0 : index
    %1569 = vector.load %arg3[%c5_340, %c0_341] : memref<32x256xf32, #tpu.memory_space<vmem>>, vector<1x32xf32>
    %1570 = vector.broadcast %1569 : vector<1x32xf32> to vector<16x32xf32>
    %1571 = arith.addf %1568, %1570 : vector<16x32xf32>
    %1572 = math.tanh %1571 : vector<16x32xf32>
    %1573 = arith.truncf %1572 : vector<16x32xf32> to vector<16x32xbf16>
    %c737 = arith.constant 737 : index
    %c0_342 = arith.constant 0 : index
    %1574 = vector.load %arg4[%c737, %c0_342] : memref<808x256xbf16, #tpu.memory_space<vmem>>, vector<32x2xbf16>
    %cst_343 = arith.constant dense<0.000000e+00> : vector<16x2xf32>
    %1575 = tpu.matmul %1573, %1574, %cst_343 {dimension_numbers = #tpu.dot_dimension_numbers<[1], [0], [0], [1], [0, 0, 1, 1], [], []>} : vector<16x32xbf16>, vector<32x2xbf16>, vector<16x2xf32> -> vector<16x2xf32>
    %cst_344 = arith.constant dense<0xFF800000> : vector<2xf32>
    %1576 = vector.multi_reduction <maximumf>, %1575, %cst_344 [0] : vector<16x2xf32> to vector<2xf32>
    %1577 = vector.shape_cast %1576 : vector<2xf32> to vector<1x2xf32>
    %1578 = vector.broadcast %1577 : vector<1x2xf32> to vector<16x2xf32>
    %1579 = arith.subf %1575, %1578 : vector<16x2xf32>
    %1580 = math.exp %1579 : vector<16x2xf32>
    %cst_345 = arith.constant dense<0.000000e+00> : vector<2xf32>
    %1581 = vector.multi_reduction <add>, %1580, %cst_345 [0] : vector<16x2xf32> to vector<2xf32>
    %1582 = vector.shape_cast %1581 : vector<2xf32> to vector<1x2xf32>
    %1583 = tpu.reciprocal %1582 {approx = true} : vector<1x2xf32> -> vector<1x2xf32>
    %1584 = vector.broadcast %1583 : vector<1x2xf32> to vector<16x2xf32>
    %1585 = arith.mulf %1580, %1584 : vector<16x2xf32>
    %c769 = arith.constant 769 : index
    %c0_346 = arith.constant 0 : index
    %1586 = vector.load %arg4[%c769, %c0_346] : memref<808x256xbf16, #tpu.memory_space<vmem>>, vector<32x1xbf16>
    %c6_347 = arith.constant 6 : index
    %c0_348 = arith.constant 0 : index
    %1587 = vector.load %arg3[%c6_347, %c0_348] : memref<32x256xf32, #tpu.memory_space<vmem>>, vector<1x1xf32>
    %1588 = vector.extract_strided_slice %1585 {offsets = [0, 0], sizes = [16, 1], strides = [1, 1]} : vector<16x2xf32> to vector<16x1xf32>
    %1589 = vector.extract_strided_slice %1565 {offsets = [0, 0], sizes = [16, 32], strides = [1, 1]} : vector<16x64xf32> to vector<16x32xf32>
    %1590 = vector.broadcast %1588 : vector<16x1xf32> to vector<16x32xf32>
    %1591 = arith.mulf %1590, %1589 : vector<16x32xf32>
    %cst_349 = arith.constant dense<0.000000e+00> : vector<32xf32>
    %1592 = vector.multi_reduction <add>, %1591, %cst_349 [0] : vector<16x32xf32> to vector<32xf32>
    %1593 = vector.shape_cast %1592 : vector<32xf32> to vector<1x32xf32>
    %1594 = arith.truncf %1593 : vector<1x32xf32> to vector<1x32xbf16>
    %cst_350 = arith.constant dense<0.000000e+00> : vector<1x1xf32>
    %1595 = tpu.matmul %1594, %1586, %cst_350 {dimension_numbers = #tpu.dot_dimension_numbers<[1], [0], [0], [1], [0, 0, 1, 1], [], []>} : vector<1x32xbf16>, vector<32x1xbf16>, vector<1x1xf32> -> vector<1x1xf32>
    %1596 = arith.addf %1595, %1587 : vector<1x1xf32>
    %1597 = vector.extract_strided_slice %1585 {offsets = [0, 1], sizes = [16, 1], strides = [1, 1]} : vector<16x2xf32> to vector<16x1xf32>
    %1598 = vector.extract_strided_slice %1565 {offsets = [0, 32], sizes = [16, 32], strides = [1, 1]} : vector<16x64xf32> to vector<16x32xf32>
    %1599 = vector.broadcast %1597 : vector<16x1xf32> to vector<16x32xf32>
    %1600 = arith.mulf %1599, %1598 : vector<16x32xf32>
    %cst_351 = arith.constant dense<0.000000e+00> : vector<32xf32>
    %1601 = vector.multi_reduction <add>, %1600, %cst_351 [0] : vector<16x32xf32> to vector<32xf32>
    %1602 = vector.shape_cast %1601 : vector<32xf32> to vector<1x32xf32>
    %1603 = arith.truncf %1602 : vector<1x32xf32> to vector<1x32xbf16>
    %cst_352 = arith.constant dense<0.000000e+00> : vector<1x1xf32>
    %1604 = tpu.matmul %1603, %1586, %cst_352 {dimension_numbers = #tpu.dot_dimension_numbers<[1], [0], [0], [1], [0, 0, 1, 1], [], []>} : vector<1x32xbf16>, vector<32x1xbf16>, vector<1x1xf32> -> vector<1x1xf32>
    %1605 = arith.addf %1604, %1587 : vector<1x1xf32>
    %1606 = tpu.concatenate %1596, %1605 in 0 : vector<1x1xf32>, vector<1x1xf32> -> vector<2x1xf32>
    %c0_353 = arith.constant 0 : index
    %c0_354 = arith.constant 0 : index
    %1607 = vector.load %arg5[%c0_353, %c0_354] : memref<2x1xf32, #tpu.memory_space<vmem>>, vector<2x1xf32>
    tpu.vector_store %arg5[%c0_353, %c0_354], %1606 {strides = array<i32>} : memref<2x1xf32, #tpu.memory_space<vmem>>, vector<2x1xf32>,
    return
  }
}

</mosaic_0001>

<llo_original>
// kernel: mos_predictor_forward.1
$region0: #{mos_predictor_forward.1}
  #allocation0 [shape = 'u32[]', space=smem, size = 0x4, offset = 0x4, fixed_abs, tag = 'smem constant byte address 0x4 - core index']
  #allocation1 [shape = 'u32[144,128]{1,0:T(1,128)}', space=vmem, size = 0x12000, scoped, tag = 'internal scratch']
  %s0 = inlined_call_operand.vmem [shape: f32[2,170], index: 0, kind: input, shape index: {}]
  %s1 = inlined_call_operand.hbm [shape: bf16[170,330], index: 1, kind: input, shape index: {}]
  %s2 = inlined_call_operand.hbm [shape: f32[16,16], index: 2, kind: input, shape index: {}]
  %s3 = inlined_call_operand.hbm [shape: f32[32,256], index: 3, kind: input, shape index: {}]
  %s4 = inlined_call_operand.hbm [shape: bf16[808,256], index: 4, kind: input, shape index: {}]
  %s5 = inlined_call_operand.vmem [shape: f32[2,1], index: 5, kind: output, shape index: {}]
  %s6 = sld [smem:[#allocation0]]
  $region46: #{mos_predictor_forward.1} parent=0
    _
  %s8 = ssub.s32 1, %s6
  %s9 = scalar_select 0, %s8, %s6
  $region1: #{mos_predictor_forward.1} parent=0
    #allocation2 [shape = 'u8[135168]{0}', space=vmem, size = 0x21000, scoped, tag = 'input window, operand 1, single buffered']
    #allocation3 [shape = 's32[1]{0}', space=sflag, size = 0x4, scoped, tag = 'scoped memory for mos_predictor_forward.1']
    #allocation4 [shape = 'u8[8192]{0}', space=vmem, size = 0x2000, scoped, tag = 'input window, operand 2, single buffered']
    #allocation5 [shape = 's32[1]{0}', space=sflag, size = 0x4, scoped, tag = 'scoped memory for mos_predictor_forward.1']
    #allocation6 [shape = 'u8[32768]{0}', space=vmem, size = 0x8000, scoped, tag = 'input window, operand 3, single buffered']
    #allocation7 [shape = 'u8[413696]{0}', space=vmem, size = 0x65000, scoped, tag = 'input window, operand 4, single buffered']
    #allocation8 [shape = 's32[1]{0}', space=sflag, size = 0x4, scoped, tag = 'scoped memory for mos_predictor_forward.1']
    %10 = vsyncpa [#allocation3], 0
    %11 = vsyncpa [#allocation5], 0
    %12 = vsyncpa [#allocation8], 0
    // Predicated region
    $region2: #{mos_predictor_forward.1} parent=1 // pred_check
      _
    $region3: #{mos_predictor_forward.1} parent=1 // pred_check_branch
      %14 = sbr.rel (0) target = $region5
    $region4: #{mos_predictor_forward.1} parent=1 // pred_region
      _
    $region5: #{mos_predictor_forward.1} parent=1 // pred_fallthru
      _
    // Predicated region
    $region6: #{mos_predictor_forward.1} parent=1 // pred_check
      _
    $region7: #{mos_predictor_forward.1} parent=1 // pred_check_branch
      %16 = sbr.rel (0) target = $region9
    $region8: #{mos_predictor_forward.1} parent=1 // pred_region
      %s18 = ssub.s32 4224, 4224
      %19 = vsyncadd [#allocation3], %s18
      %s20 = sshll.u32 [#allocation2], 4
      %s21 = int_to_ptr.vmem [resolvable:$true] %s20
      %26 = dma.hbm_to_vmem [thread:$0]  %s1, 4224, %s21, [#allocation3], 192, 192, 12
    $region9: #{mos_predictor_forward.1} parent=1 // pred_fallthru
      _
    // Predicated region
    $region10: #{mos_predictor_forward.1} parent=1 // pred_check
      _
    $region11: #{mos_predictor_forward.1} parent=1 // pred_check_branch
      %28 = sbr.rel (0) target = $region13
    $region12: #{mos_predictor_forward.1} parent=1 // pred_region
      %s30 = ssub.s32 256, 256
      %31 = vsyncadd [#allocation5], %s30
      %s32 = sshll.u32 [#allocation4], 4
      %s33 = int_to_ptr.vmem [resolvable:$true] %s32
      %38 = dma.hbm_to_vmem [thread:$0]  %s2, 256, %s33, [#allocation5], 128, 128, 8
    $region13: #{mos_predictor_forward.1} parent=1 // pred_fallthru
      _
    // Predicated region
    $region14: #{mos_predictor_forward.1} parent=1 // pred_check
      _
    $region15: #{mos_predictor_forward.1} parent=1 // pred_check_branch
      %40 = sbr.rel (0) target = $region17
    $region16: #{mos_predictor_forward.1} parent=1 // pred_region
      %s42 = ssub.s32 1024, 1024
      %43 = vsyncadd [#allocation5], %s42
      %s44 = sshll.u32 [#allocation6], 4
      %s45 = int_to_ptr.vmem [resolvable:$true] %s44
      %50 = dma.hbm_to_vmem [thread:$0]  %s3, 1024, %s45, [#allocation5], 256, 256, 16
    $region17: #{mos_predictor_forward.1} parent=1 // pred_fallthru
      _
    // Predicated region
    $region18: #{mos_predictor_forward.1} parent=1 // pred_check
      _
    $region19: #{mos_predictor_forward.1} parent=1 // pred_check_branch
      %52 = sbr.rel (0) target = $region21
    $region20: #{mos_predictor_forward.1} parent=1 // pred_region
      %s54 = ssub.s32 12928, 12928
      %55 = vsyncadd [#allocation8], %s54
      %s56 = sshll.u32 [#allocation7], 4
      %s57 = int_to_ptr.vmem [resolvable:$true] %s56
      %62 = dma.hbm_to_vmem [thread:$0]  %s4, 12928, %s57, [#allocation8], 128, 128, 8
    $region21: #{mos_predictor_forward.1} parent=1 // pred_fallthru
      _
    // Predicated region
    $region22: #{mos_predictor_forward.1} parent=1 // pred_check
      _
    $region23: #{mos_predictor_forward.1} parent=1 // pred_check_branch
      %64 = sbr.rel (0) target = $region25
    $region24: #{mos_predictor_forward.1} parent=1 // pred_region
      %65 = dma.done [#allocation3], 4224
    $region25: #{mos_predictor_forward.1} parent=1 // pred_fallthru
      _
    // Predicated region
    $region26: #{mos_predictor_forward.1} parent=1 // pred_check
      _
    $region27: #{mos_predictor_forward.1} parent=1 // pred_check_branch
      %67 = sbr.rel (0) target = $region29
    $region28: #{mos_predictor_forward.1} parent=1 // pred_region
      %68 = dma.done [#allocation5], 256
    $region29: #{mos_predictor_forward.1} parent=1 // pred_fallthru
      _
    // Predicated region
    $region30: #{mos_predictor_forward.1} parent=1 // pred_check
      _
    $region31: #{mos_predictor_forward.1} parent=1 // pred_check_branch
      %70 = sbr.rel (0) target = $region33
    $region32: #{mos_predictor_forward.1} parent=1 // pred_region
      %71 = dma.done [#allocation5], 1024
    $region33: #{mos_predictor_forward.1} parent=1 // pred_fallthru
      _
    // Predicated region
    $region34: #{mos_predictor_forward.1} parent=1 // pred_check
      _
    $region35: #{mos_predictor_forward.1} parent=1 // pred_check_branch
      %73 = sbr.rel (0) target = $region37
    $region36: #{mos_predictor_forward.1} parent=1 // pred_region
      %74 = dma.done [#allocation8], 12928
    $region37: #{mos_predictor_forward.1} parent=1 // pred_fallthru
      _
    %v76 = vld [vmem:[%s0] sm:$0xf]
    %v79 = vunpack.c.l.s4 1983009808
    %v80 = vunpack.c.0.s8 %v79
    %v81 = vlaneseq
    %v82 = vshrl.u32 %v81, 7
    %v83 = vsub.s32 %v80, %v82
    %v84 = vrot.slane %v76, %v83
    %v85 = vcombine.high %v84, %v84
    %v88 = vpack.c.bf16 %v84, %v84
    %v89 = vpack.c.bf16 %v85, %v85
    %v90 = vld [vmem:[#allocation2] sm:$0xff]
    %v91 = vld [vmem:[#allocation2 + $0x8] sm:$0xf]
    %v92 = vld [vmem:[#allocation2 + $0xc] sm:$0xff]
    %v93 = vld [vmem:[#allocation2 + $0x14] sm:$0xf]
    %v94 = vld [vmem:[#allocation2 + $0x18] sm:$0xff]
    %v95 = vld [vmem:[#allocation2 + $0x20] sm:$0xf]
    %v96 = vld [vmem:[#allocation2 + $0x24] sm:$0xff]
    %v97 = vld [vmem:[#allocation2 + $0x2c] sm:$0xf]
    %v98 = vld [vmem:[#allocation2 + $0x30] sm:$0xff]
    %v99 = vld [vmem:[#allocation2 + $0x38] sm:$0xf]
    %v100 = vld [vmem:[#allocation2 + $0x3c] sm:$0xff]
    %v101 = vld [vmem:[#allocation2 + $0x44] sm:$0xf]
    %v102 = vld [vmem:[#allocation2 + $0x48] sm:$0xff]
    %v103 = vld [vmem:[#allocation2 + $0x50] sm:$0xf]
    %v104 = vld [vmem:[#allocation2 + $0x54] sm:$0xff]
    %v105 = vld [vmem:[#allocation2 + $0x5c] sm:$0xf]
    %v106 = vld [vmem:[#allocation2 + $0x60] sm:$0xff]
    %v107 = vld [vmem:[#allocation2 + $0x68] sm:$0xf]
    %v108 = vld [vmem:[#allocation2 + $0x6c] sm:$0xff]
    %v109 = vld [vmem:[#allocation2 + $0x74] sm:$0xf]
    %v110 = vld [vmem:[#allocation2 + $0x78] sm:$0xff]
    %v111 = vld [vmem:[#allocation2 + $0x80] sm:$0xf]
    %v112 = vld [vmem:[#allocation2 + $0x84] sm:$0xff]
    %v113 = vld [vmem:[#allocation2 + $0x8c] sm:$0xf]
    %v114 = vld [vmem:[#allocation2 + $0x90] sm:$0xff]
    %v115 = vld [vmem:[#allocation2 + $0x98] sm:$0xf]
    %v116 = vld [vmem:[#allocation2 + $0x9c] sm:$0xff]
    %v117 = vld [vmem:[#allocation2 + $0xa4] sm:$0xf]
    %v118 = vld [vmem:[#allocation2 + $0xa8] sm:$0xff]
    %v119 = vld [vmem:[#allocation2 + $0xb0] sm:$0xf]
    %v120 = vld [vmem:[#allocation2 + $0xb4] sm:$0xff]
    %v121 = vld [vmem:[#allocation2 + $0xbc] sm:$0xf]
    %v122 = vld [vmem:[#allocation2 + $0xc0] sm:$0xff]
    %v123 = vld [vmem:[#allocation2 + $0xc8] sm:$0xf]
    %v124 = vld [vmem:[#allocation2 + $0xcc] sm:$0xff]
    %v125 = vld [vmem:[#allocation2 + $0xd4] sm:$0xf]
    %v126 = vld [vmem:[#allocation2 + $0xd8] sm:$0xff]
    %v127 = vld [vmem:[#allocation2 + $0xe0] sm:$0xf]
    %v128 = vld [vmem:[#allocation2 + $0xe4] sm:$0xff]
    %v129 = vld [vmem:[#allocation2 + $0xec] sm:$0xf]
    %v130 = vld [vmem:[#allocation2 + $0xf0] sm:$0xff]
    %v131 = vld [vmem:[#allocation2 + $0xf8] sm:$0xf]
    %v132 = vld [vmem:[#allocation2 + $0xfc] sm:$0x11]
    %v133 = vld [vmem:[#allocation2 + $0x104] sm:$0x1]
    %v178 = vunpack.c.l.b16 %v90
    %v179 = vunpack.c.h.b16 %v90
    %v180 = vunpack.c.l.b16 %v91
    %v181 = vunpack.c.l.b16 %v92
    %v182 = vunpack.c.h.b16 %v92
    %v183 = vunpack.c.l.b16 %v93
    %v184 = vunpack.c.l.b16 %v94
    %v185 = vunpack.c.h.b16 %v94
    %v186 = vunpack.c.l.b16 %v95
    %v187 = vunpack.c.l.b16 %v96
    %v188 = vunpack.c.h.b16 %v96
    %v189 = vunpack.c.l.b16 %v97
    %v190 = vunpack.c.l.b16 %v98
    %v191 = vunpack.c.h.b16 %v98
    %v192 = vunpack.c.l.b16 %v99
    %v193 = vunpack.c.l.b16 %v100
    %v194 = vunpack.c.h.b16 %v100
    %v195 = vunpack.c.l.b16 %v101
    %v196 = vunpack.c.l.b16 %v102
    %v197 = vunpack.c.h.b16 %v102
    %v198 = vunpack.c.l.b16 %v103
    %v199 = vunpack.c.l.b16 %v104
    %v200 = vunpack.c.h.b16 %v104
    %v201 = vunpack.c.l.b16 %v105
    %v202 = vunpack.c.l.b16 %v106
    %v203 = vunpack.c.h.b16 %v106
    %v204 = vunpack.c.l.b16 %v107
    %v205 = vunpack.c.l.b16 %v108
    %v206 = vunpack.c.h.b16 %v108
    %v207 = vunpack.c.l.b16 %v109
    %v208 = vunpack.c.l.b16 %v110
    %v209 = vunpack.c.h.b16 %v110
    %v210 = vunpack.c.l.b16 %v111
    %v211 = vunpack.c.l.b16 %v112
    %v212 = vunpack.c.h.b16 %v112
    %v213 = vunpack.c.l.b16 %v113
    %v214 = vunpack.c.l.b16 %v114
    %v215 = vunpack.c.h.b16 %v114
    %v216 = vunpack.c.l.b16 %v115
    %v217 = vunpack.c.l.b16 %v116
    %v218 = vunpack.c.h.b16 %v116
    %v219 = vunpack.c.l.b16 %v117
    %v220 = vunpack.c.l.b16 %v118
    %v221 = vunpack.c.h.b16 %v118
    %v222 = vunpack.c.l.b16 %v119
    %v223 = vunpack.c.l.b16 %v120
    %v224 = vunpack.c.h.b16 %v120
    %v225 = vunpack.c.l.b16 %v121
    %v226 = vunpack.c.l.b16 %v122
    %v227 = vunpack.c.h.b16 %v122
    %v228 = vunpack.c.l.b16 %v123
    %v229 = vunpack.c.l.b16 %v124
    %v230 = vunpack.c.h.b16 %v124
    %v231 = vunpack.c.l.b16 %v125
    %v232 = vunpack.c.l.b16 %v126
    %v233 = vunpack.c.h.b16 %v126
    %v234 = vunpack.c.l.b16 %v127
    %v235 = vunpack.c.l.b16 %v128
    %v236 = vunpack.c.h.b16 %v128
    %v237 = vunpack.c.l.b16 %v129
    %v238 = vunpack.c.l.b16 %v130
    %v239 = vunpack.c.h.b16 %v130
    %v240 = vunpack.c.l.b16 %v131
    %v241 = vunpack.c.l.b16 %v132
    %v242 = vunpack.c.h.b16 %v132
    %v243 = vunpack.c.l.b16 %v133
    %v244 = vpack.c.b16 %v181, %v178
    %v245 = vpack.c.b16 %v182, %v179
    %v246 = vpack.c.b16 %v183, %v180
    %v247 = vpack.c.b16 %v187, %v184
    %v248 = vpack.c.b16 %v188, %v185
    %v249 = vpack.c.b16 %v189, %v186
    %v250 = vpack.c.b16 %v193, %v190
    %v251 = vpack.c.b16 %v194, %v191
    %v252 = vpack.c.b16 %v195, %v192
    %v253 = vpack.c.b16 %v199, %v196
    %v254 = vpack.c.b16 %v200, %v197
    %v255 = vpack.c.b16 %v201, %v198
    %v256 = vpack.c.b16 %v205, %v202
    %v257 = vpack.c.b16 %v206, %v203
    %v258 = vpack.c.b16 %v207, %v204
    %v259 = vpack.c.b16 %v211, %v208
    %v260 = vpack.c.b16 %v212, %v209
    %v261 = vpack.c.b16 %v213, %v210
    %v262 = vpack.c.b16 %v217, %v214
    %v263 = vpack.c.b16 %v218, %v215
    %v264 = vpack.c.b16 %v219, %v216
    %v265 = vpack.c.b16 %v223, %v220
    %v266 = vpack.c.b16 %v224, %v221
    %v267 = vpack.c.b16 %v225, %v222
    %v268 = vpack.c.b16 %v229, %v226
    %v269 = vpack.c.b16 %v230, %v227
    %v270 = vpack.c.b16 %v231, %v228
    %v271 = vpack.c.b16 %v235, %v232
    %v272 = vpack.c.b16 %v236, %v233
    %v273 = vpack.c.b16 %v237, %v234
    %v274 = vpack.c.b16 %v241, %v238
    %v275 = vpack.c.b16 %v242, %v239
    %v276 = vpack.c.b16 %v243, %v240
    %vm307 = vcmask 343040
    %v309 = vsel %vm307, %v89, 0
    %vm311 = vcmask 1044480
    %v313 = vsel %vm311, %v274, 0
    %v316 = vsel %vm311, %v275, 0
    %v319 = vsel %vm311, %v276, 0
    %321 = vmatprep.subr.bf16.mxu0 %v245
    %322 = vmatpush1.bf16.msra.mxu0 %v244
    %323 = vmatprep.subr.bf16.mxu0 %v248
    %324 = vmatpush1.bf16.msra.mxu0 %v247
    %325 = vmatprep.subr.bf16.mxu0 %v251
    %326 = vmatpush1.bf16.msra.mxu0 %v250
    %327 = vmatprep.subr.bf16.mxu0 %v254
    %328 = vmatpush1.bf16.msra.mxu0 %v253
    %329 = vmatprep.subr.bf16.mxu0 %v257
    %330 = vmatpush1.bf16.msra.mxu0 %v256
    %331 = vmatprep.subr.bf16.mxu0 %v260
    %332 = vmatpush1.bf16.msra.mxu0 %v259
    %333 = vmatprep.subr.bf16.mxu0 %v263
    %334 = vmatpush1.bf16.msra.mxu0 %v262
    %335 = vmatprep.subr.bf16.mxu0 %v266
    %336 = vmatpush1.bf16.msra.mxu0 %v265
    %337 = vmatprep.subr.bf16.mxu0 %v269
    %338 = vmatpush1.bf16.msra.mxu0 %v268
    %339 = vmatprep.subr.bf16.mxu0 %v272
    %340 = vmatpush1.bf16.msra.mxu0 %v271
    %341 = vmatprep.subr.bf16.mxu0 %v316
    %342 = vmatpush1.bf16.msra.mxu0 %v313
    %343 = vmatprep.subr.bf16.mxu0 0
    %344 = vmatpush1.bf16.msra.mxu0 0
    %345 = vmatprep.subr.bf16.mxu0 0
    %346 = vmatpush1.bf16.msra.mxu0 0
    %347 = vmatprep.subr.bf16.mxu0 0
    %348 = vmatpush1.bf16.msra.mxu0 0
    %349 = vmatprep.subr.bf16.mxu0 0
    %350 = vmatpush1.bf16.msra.mxu0 0
    %351 = vmatprep.subr.bf16.mxu0 0
    %352 = vmatpush1.bf16.msra.mxu0 0
    %353 = vmatprep.mubr.bf16.mxu0 %v309
    %354 = vmatmul.mubr.bf16.gmra.mrb[0].mxu0 %v88
    %v355 = vpop.f32.mrb[0].mxu0
    %v356 = vadd.f32 0.0, %v355
    %v357 = vpop.f32.mrb[0].mxu0
    %v358 = vadd.f32 0.0, %v357
    %v359 = vpop.f32.mrb[0].mxu0
    %v360 = vpop.f32.mrb[0].mxu0
    %361 = vdwg.mxu0
    %362 = vmatprep.subr.bf16.mxu0 0
    %363 = vmatpush1.bf16.msra.mxu0 %v246
    %364 = vmatprep.subr.bf16.mxu0 0
    %365 = vmatpush1.bf16.msra.mxu0 %v249
    %366 = vmatprep.subr.bf16.mxu0 0
    %367 = vmatpush1.bf16.msra.mxu0 %v252
    %368 = vmatprep.subr.bf16.mxu0 0
    %369 = vmatpush1.bf16.msra.mxu0 %v255
    %370 = vmatprep.subr.bf16.mxu0 0
    %371 = vmatpush1.bf16.msra.mxu0 %v258
    %372 = vmatprep.subr.bf16.mxu0 0
    %373 = vmatpush1.bf16.msra.mxu0 %v261
    %374 = vmatprep.subr.bf16.mxu0 0
    %375 = vmatpush1.bf16.msra.mxu0 %v264
    %376 = vmatprep.subr.bf16.mxu0 0
    %377 = vmatpush1.bf16.msra.mxu0 %v267
    %378 = vmatprep.subr.bf16.mxu0 0
    %379 = vmatpush1.bf16.msra.mxu0 %v270
    %380 = vmatprep.subr.bf16.mxu0 0
    %381 = vmatpush1.bf16.msra.mxu0 %v273
    %382 = vmatprep.subr.bf16.mxu0 0
    %383 = vmatpush1.bf16.msra.mxu0 %v319
    %384 = vmatprep.subr.bf16.mxu0 0
    %385 = vmatpush1.bf16.msra.mxu0 0
    %386 = vmatprep.subr.bf16.mxu0 0
    %387 = vmatpush1.bf16.msra.mxu0 0
    %388 = vmatprep.subr.bf16.mxu0 0
    %389 = vmatpush1.bf16.msra.mxu0 0
    %390 = vmatprep.subr.bf16.mxu0 0
    %391 = vmatpush1.bf16.msra.mxu0 0
    %392 = vmatprep.subr.bf16.mxu0 0
    %393 = vmatpush1.bf16.msra.mxu0 0
    %394 = vmatprep.mubr.bf16.mxu0 %v309
    %395 = vmatmul.mubr.bf16.gmra.mrb[0].mxu0 %v88
    %v396 = vpop.f32.mrb[0].mxu0
    %v397 = vadd.f32 0.0, %v396
    %v398 = vpop.f32.mrb[0].mxu0
    %v399 = vpop.f32.mrb[0].mxu0
    %v400 = vpop.f32.mrb[0].mxu0
    %401 = vdwg.mxu0
    %v402 = vld [vmem:[#allocation4] sm:$0xff]
    %v403 = vld [vmem:[#allocation4 + $0x8] sm:$0xff]
    %v404 = vld [vmem:[#allocation7] sm:$0xf]
    %v405 = vld [vmem:[#allocation7 + $0x8] sm:$0xf]
    %v406 = vld [vmem:[#allocation7 + $0x10] sm:$0xf]
    %v407 = vld [vmem:[#allocation7 + $0x18] sm:$0xf]
    %v408 = vld [vmem:[#allocation7 + $0x20] sm:$0x1]
    %410 = vset.pattern.permute.xlu0 2
    %411 = vperm.xlu0 %410, %v402
    %v412 = vpop.permute.xlu0 %411
    %415 = vset.pattern.permute.xlu0 2
    %416 = vperm.xlu0 %415, %v403
    %v417 = vpop.permute.xlu0 %416
    %v419 = vlaneseq
    %v420 = vshrl.u32 %v419, 7
    %v421 = vsub.s32 0, %v420
    %v422 = vrot.slane %v356, %v421
    %v423 = vmul.f32 %v412, %v422
    %v424 = vmul.f32 %v417, %v422
    %v425 = vadd.f32 %v423, 0.0
    %v426 = vadd.f32 %v424, 0.0
    %427 = vset.pattern.permute.xlu0 3
    %428 = vperm.xlu0 %427, %v402
    %v429 = vpop.permute.xlu0 %428
    %431 = vset.pattern.permute.xlu0 3
    %432 = vperm.xlu0 %431, %v403
    %v433 = vpop.permute.xlu0 %432
    %v435 = vmul.f32 %v429, %v422
    %v436 = vmul.f32 %v433, %v422
    %439 = vrot.lane.b32.xlu0 %v435, 95
    %v440 = vpop.permute.xlu0 %439
    %441 = vrot.lane.b32.xlu0 %v436, 95
    %v442 = vpop.permute.xlu0 %441
    %v445 = vadd.f32 %v425, %v440
    %v446 = vadd.f32 %v426, %v442
    %447 = vset.pattern.permute.xlu0 4
    %448 = vperm.xlu0 %447, %v402
    %v449 = vpop.permute.xlu0 %448
    %451 = vset.pattern.permute.xlu0 4
    %452 = vperm.xlu0 %451, %v403
    %v453 = vpop.permute.xlu0 %452
    %v455 = vmul.f32 %v449, %v422
    %v456 = vmul.f32 %v453, %v422
    %459 = vrot.lane.b32.xlu0 %v455, 62
    %v460 = vpop.permute.xlu0 %459
    %461 = vrot.lane.b32.xlu0 %v456, 62
    %v462 = vpop.permute.xlu0 %461
    %v465 = vadd.f32 %v445, %v460
    %v466 = vadd.f32 %v446, %v462
    %467 = vset.pattern.permute.xlu0 5
    %468 = vperm.xlu0 %467, %v402
    %v469 = vpop.permute.xlu0 %468
    %471 = vset.pattern.permute.xlu0 5
    %472 = vperm.xlu0 %471, %v403
    %v473 = vpop.permute.xlu0 %472
    %v475 = vlaneseq
    %v476 = vshrl.u32 %v475, 7
    %v477 = vsub.s32 0, %v476
    %v478 = vrot.slane %v358, %v477
    %v479 = vmul.f32 %v469, %v422
    %v480 = vmul.f32 %v469, %v478
    %v481 = vmul.f32 %v473, %v422
    %v482 = vmul.f32 %v473, %v478
    %487 = vrot.lane.b32.xlu0 %v479, 29
    %v488 = vpop.permute.xlu0 %487
    %489 = vrot.lane.b32.xlu0 %v480, 29
    %v490 = vpop.permute.xlu0 %489
    %491 = vrot.lane.b32.xlu0 %v481, 29
    %v492 = vpop.permute.xlu0 %491
    %493 = vrot.lane.b32.xlu0 %v482, 29
    %v494 = vpop.permute.xlu0 %493
    %vm495 = vcmask 236544
    %v496 = vsel %vm495, %v488, %v490
    %v497 = vsel %vm495, %v492, %v494
    %v500 = vadd.f32 %v465, %v496
    %v501 = vadd.f32 %v466, %v497
    %502 = vset.pattern.permute.xlu0 6
    %503 = vperm.xlu0 %502, %v402
    %v504 = vpop.permute.xlu0 %503
    %506 = vset.pattern.permute.xlu0 6
    %507 = vperm.xlu0 %506, %v403
    %v508 = vpop.permute.xlu0 %507
    %v510 = vmul.f32 %v504, %v478
    %v511 = vmul.f32 %v508, %v478
    %514 = vrot.lane.b32.xlu0 %v510, 124
    %v515 = vpop.permute.xlu0 %514
    %516 = vrot.lane.b32.xlu0 %v511, 124
    %v517 = vpop.permute.xlu0 %516
    %v520 = vadd.f32 %v500, %v515
    %v521 = vadd.f32 %v501, %v517
    %522 = vset.pattern.permute.xlu0 7
    %523 = vperm.xlu0 %522, %v402
    %v524 = vpop.permute.xlu0 %523
    %526 = vset.pattern.permute.xlu0 7
    %527 = vperm.xlu0 %526, %v403
    %v528 = vpop.permute.xlu0 %527
    %v530 = vmul.f32 %v524, %v478
    %v531 = vmul.f32 %v528, %v478
    %534 = vrot.lane.b32.xlu0 %v530, 91
    %v535 = vpop.permute.xlu0 %534
    %536 = vrot.lane.b32.xlu0 %v531, 91
    %v537 = vpop.permute.xlu0 %536
    %v540 = vadd.f32 %v520, %v535
    %v541 = vadd.f32 %v521, %v537
    %542 = vset.pattern.permute.xlu0 8
    %543 = vperm.xlu0 %542, %v402
    %v544 = vpop.permute.xlu0 %543
    %546 = vset.pattern.permute.xlu0 8
    %547 = vperm.xlu0 %546, %v403
    %v548 = vpop.permute.xlu0 %547
    %v550 = vmul.f32 %v544, %v478
    %v551 = vmul.f32 %v548, %v478
    %554 = vrot.lane.b32.xlu0 %v550, 58
    %v555 = vpop.permute.xlu0 %554
    %556 = vrot.lane.b32.xlu0 %v551, 58
    %v557 = vpop.permute.xlu0 %556
    %v560 = vadd.f32 %v540, %v555
    %v561 = vadd.f32 %v541, %v557
    %562 = vset.pattern.permute.xlu0 9
    %563 = vperm.xlu0 %562, %v402
    %v564 = vpop.permute.xlu0 %563
    %566 = vset.pattern.permute.xlu0 9
    %567 = vperm.xlu0 %566, %v403
    %v568 = vpop.permute.xlu0 %567
    %v570 = vlaneseq
    %v571 = vshrl.u32 %v570, 7
    %v572 = vsub.s32 0, %v571
    %v573 = vrot.slane %v397, %v572
    %v574 = vmul.f32 %v564, %v478
    %v575 = vmul.f32 %v564, %v573
    %v576 = vmul.f32 %v568, %v478
    %v577 = vmul.f32 %v568, %v573
    %582 = vrot.lane.b32.xlu0 %v574, 25
    %v583 = vpop.permute.xlu0 %582
    %584 = vrot.lane.b32.xlu0 %v575, 25
    %v585 = vpop.permute.xlu0 %584
    %586 = vrot.lane.b32.xlu0 %v576, 25
    %v587 = vpop.permute.xlu0 %586
    %588 = vrot.lane.b32.xlu0 %v577, 25
    %v589 = vpop.permute.xlu0 %588
    %vm590 = vcmask 203776
    %v591 = vsel %vm590, %v583, %v585
    %v592 = vsel %vm590, %v587, %v589
    %v595 = vadd.f32 %v560, %v591
    %v596 = vadd.f32 %v561, %v592
    %597 = vset.pattern.permute.xlu0 10
    %598 = vperm.xlu0 %597, %v402
    %v599 = vpop.permute.xlu0 %598
    %601 = vset.pattern.permute.xlu0 10
    %602 = vperm.xlu0 %601, %v403
    %v603 = vpop.permute.xlu0 %602
    %v605 = vmul.f32 %v599, %v573
    %v606 = vmul.f32 %v603, %v573
    %609 = vrot.lane.b32.xlu0 %v605, 120
    %v610 = vpop.permute.xlu0 %609
    %611 = vrot.lane.b32.xlu0 %v606, 120
    %v612 = vpop.permute.xlu0 %611
    %v615 = vadd.f32 %v595, %v610
    %v616 = vadd.f32 %v596, %v612
    %617 = vset.pattern.permute.xlu0 11
    %618 = vperm.xlu0 %617, %v402
    %v619 = vpop.permute.xlu0 %618
    %621 = vset.pattern.permute.xlu0 11
    %622 = vperm.xlu0 %621, %v403
    %v623 = vpop.permute.xlu0 %622
    %v625 = vmul.f32 %v619, %v573
    %v626 = vmul.f32 %v623, %v573
    %629 = vrot.lane.b32.xlu0 %v625, 87
    %v630 = vpop.permute.xlu0 %629
    %631 = vrot.lane.b32.xlu0 %v626, 87
    %v632 = vpop.permute.xlu0 %631
    %v635 = vadd.f32 %v615, %v630
    %v636 = vadd.f32 %v616, %v632
    %vm637 = vcmask 269312
    %v638 = vsel %vm637, %v635, 0.0
    %639 = vadd.xlane.f32.xlu0 %v638
    %v640 = vpop.xlane.xlu0 %639
    %v641 = vsel %vm637, %v636, 0.0
    %642 = vadd.xlane.f32.xlu0 %v641
    %v643 = vpop.xlane.xlu0 %642
    %v644 = vrcp.pop 33.0
    %v645 = vmul.f32 %v640, %v644
    %v646 = vmul.f32 %v643, %v644
    %v647 = vsub.f32 %v635, %v645
    %v648 = vsub.f32 %v636, %v646
    %v649 = vmul.f32 %v647, %v647
    %v650 = vmul.f32 %v648, %v648
    %v651 = vsel %vm637, %v649, 0.0
    %652 = vadd.xlane.f32.xlu0 %v651
    %v653 = vpop.xlane.xlu0 %652
    %v654 = vsel %vm637, %v650, 0.0
    %655 = vadd.xlane.f32.xlu0 %v654
    %v656 = vpop.xlane.xlu0 %655
    %v657 = vmul.f32 %v653, %v644
    %v658 = vmul.f32 %v656, %v644
    %v659 = vadd.f32 %v657, 1e-05
    %v660 = vadd.f32 %v658, 1e-05
    %v661 = vrsqrt.pop %v659
    %v662 = vrsqrt.pop %v660
    %v663 = vmul.f32 %v647, %v661
    %v664 = vmul.f32 %v648, %v662
    %665 = vset.pattern.permute.xlu0 0
    %666 = vperm.xlu0 %665, %v402
    %v667 = vpop.permute.xlu0 %666
    %669 = vset.pattern.permute.xlu0 0
    %670 = vperm.xlu0 %669, %v403
    %v671 = vpop.permute.xlu0 %670
    %v673 = vmul.f32 %v663, %v667
    %v674 = vmul.f32 %v664, %v671
    %675 = vset.pattern.permute.xlu0 1
    %676 = vperm.xlu0 %675, %v402
    %v677 = vpop.permute.xlu0 %676
    %679 = vset.pattern.permute.xlu0 1
    %680 = vperm.xlu0 %679, %v403
    %v681 = vpop.permute.xlu0 %680
    %v683 = vadd.f32 %v673, %v677
    %v684 = vadd.f32 %v674, %v681
    %v685 = vmul.f32 %v683, %v683
    %v686 = vmul.f32 %v684, %v684
    %v687 = vmul.f32 %v683, %v685
    %v688 = vmul.f32 %v684, %v686
    %v689 = vmul.f32 %v687, 0.044715
    %v690 = vmul.f32 %v688, 0.044715
    %v691 = vadd.f32 %v683, %v689
    %v692 = vadd.f32 %v684, %v690
    %v693 = vmul.f32 %v691, 0.7978846
    %v694 = vmul.f32 %v692, 0.7978846
    %v695 = vtanh.pop %v693
    %v696 = vtanh.pop %v694
    %v697 = vadd.f32 %v695, 1.0
    %v698 = vadd.f32 %v696, 1.0
    %v699 = vmul.f32 %v697, 0.5
    %v700 = vmul.f32 %v698, 0.5
    %v701 = vmul.f32 %v683, %v699
    %v702 = vmul.f32 %v684, %v700
    %v703 = vpack.c.bf16 %v702, %v701
    %v709 = vunpack.c.l.b16 %v404
    %v710 = vunpack.c.l.b16 %v405
    %v711 = vunpack.c.l.b16 %v406
    %v712 = vunpack.c.l.b16 %v407
    %v713 = vunpack.c.l.b16 %v408
    %v714 = vpack.c.b16 %v710, %v709
    %v715 = vpack.c.b16 %v712, %v711
    %v716 = vpack.c.b16 %v713, %v713
    %v720 = vsel %vm637, %v703, 0
    %vm722 = vcmask 1040384
    %v723 = vsel 0, 4294967295, 65535
    %v724 = vsel %vm722, %v723, 0
    %v726 = vand.u32 %v716, %v724
    %728 = vmatprep.subr.bf16.mxu0 0
    %729 = vmatpush1.bf16.msra.mxu0 %v714
    %730 = vmatprep.subr.bf16.mxu0 0
    %731 = vmatpush1.bf16.msra.mxu0 %v715
    %732 = vmatprep.subr.bf16.mxu0 0
    %733 = vmatpush1.bf16.msra.mxu0 %v726
    %734 = vmatprep.subr.bf16.mxu0 0
    %735 = vmatpush1.bf16.msra.mxu0 0
    %736 = vmatprep.subr.bf16.mxu0 0
    %737 = vmatpush1.bf16.msra.mxu0 0
    %738 = vmatprep.subr.bf16.mxu0 0
    %739 = vmatpush1.bf16.msra.mxu0 0
    %740 = vmatprep.subr.bf16.mxu0 0
    %741 = vmatpush1.bf16.msra.mxu0 0
    %742 = vmatprep.subr.bf16.mxu0 0
    %743 = vmatpush1.bf16.msra.mxu0 0
    %744 = vmatprep.subr.bf16.mxu0 0
    %745 = vmatpush1.bf16.msra.mxu0 0
    %746 = vmatprep.subr.bf16.mxu0 0
    %747 = vmatpush1.bf16.msra.mxu0 0
    %748 = vmatprep.subr.bf16.mxu0 0
    %749 = vmatpush1.bf16.msra.mxu0 0
    %750 = vmatprep.subr.bf16.mxu0 0
    %751 = vmatpush1.bf16.msra.mxu0 0
    %752 = vmatprep.subr.bf16.mxu0 0
    %753 = vmatpush1.bf16.msra.mxu0 0
    %754 = vmatprep.subr.bf16.mxu0 0
    %755 = vmatpush1.bf16.msra.mxu0 0
    %756 = vmatprep.subr.bf16.mxu0 0
    %757 = vmatpush1.bf16.msra.mxu0 0
    %758 = vmatprep.subr.bf16.mxu0 0
    %759 = vmatpush1.bf16.msra.mxu0 0
    %760 = vmatprep.mubr.bf16.mxu0 0
    %761 = vmatmul.mubr.bf16.gmra.mrb[0].mxu0 %v720
    %v762 = vpop.f32.mrb[0].mxu0
    %v763 = vadd.f32 0.0, %v762
    %v764 = vpop.f32.mrb[0].mxu0
    %v765 = vpop.f32.mrb[0].mxu0
    %v766 = vadd.f32 0.0, %v765
    %v767 = vpop.f32.mrb[0].mxu0
    %768 = vdwg.mxu0
    %v769 = vld [vmem:[#allocation7 + $0x20] sm:$0xf]
    %v770 = vld [vmem:[#allocation7 + $0x28] sm:$0xf]
    %v771 = vld [vmem:[#allocation7 + $0x30] sm:$0x1]
    %v772 = vpack.c.bf16 %v766, %v763
    %v773 = vld [vmem:[#allocation7 + $0x30] sm:$0xf]
    %v774 = vld [vmem:[#allocation7 + $0x38] sm:$0xf]
    %v775 = vld [vmem:[#allocation7 + $0x40] sm:$0x1]
    %v779 = vunpack.c.l.b16 %v773
    %v780 = vunpack.c.l.b16 %v774
    %v781 = vunpack.c.l.b16 %v775
    %v782 = vpack.c.b16 %v780, %v779
    %v783 = vpack.c.b16 %v781, %v781
    %vm784 = vsmask.f32 7424
    %v786 = vshrl.u32 %v782, 16
    %v788 = vshll.u32 %v782, 16
    %v790 = vrot.slane %v788, 1
    %v791 = vor.u32 %v786, %v790
    %v793 = vshll.u32 %v783, 16
    %v795 = vrot.slane %v793, 1
    %v796 = vsel %vm784, %v791, %v795
    %798 = vrot.lane.b32.xlu0 %v772, 112
    %v799 = vpop.permute.xlu0 %798
    %vm801 = vcmask 130048
    %v803 = vsel %vm801, %v796, 0
    %805 = vmatprep.subr.bf16.mxu0 0
    %806 = vmatpush1.bf16.msra.mxu0 %v799
    %807 = vmatprep.subr.bf16.mxu0 0
    %808 = vmatpush1.bf16.msra.mxu0 0
    %809 = vmatprep.subr.bf16.mxu0 0
    %810 = vmatpush1.bf16.msra.mxu0 0
    %811 = vmatprep.subr.bf16.mxu0 0
    %812 = vmatpush1.bf16.msra.mxu0 0
    %813 = vmatprep.subr.bf16.mxu0 0
    %814 = vmatpush1.bf16.msra.mxu0 0
    %815 = vmatprep.subr.bf16.mxu0 0
    %816 = vmatpush1.bf16.msra.mxu0 0
    %817 = vmatprep.subr.bf16.mxu0 0
    %818 = vmatpush1.bf16.msra.mxu0 0
    %819 = vmatprep.subr.bf16.mxu0 0
    %820 = vmatpush1.bf16.msra.mxu0 0
    %821 = vmatprep.subr.bf16.mxu0 0
    %822 = vmatpush1.bf16.msra.mxu0 0
    %823 = vmatprep.subr.bf16.mxu0 0
    %824 = vmatpush1.bf16.msra.mxu0 0
    %825 = vmatprep.subr.bf16.mxu0 0
    %826 = vmatpush1.bf16.msra.mxu0 0
    %827 = vmatprep.subr.bf16.mxu0 0
    %828 = vmatpush1.bf16.msra.mxu0 0
    %829 = vmatprep.subr.bf16.mxu0 0
    %830 = vmatpush1.bf16.msra.mxu0 0
    %831 = vmatprep.subr.bf16.mxu0 0
    %832 = vmatpush1.bf16.msra.mxu0 0
    %833 = vmatprep.subr.bf16.mxu0 0
    %834 = vmatpush1.bf16.msra.mxu0 0
    %835 = vmatprep.subr.bf16.mxu0 0
    %836 = vmatpush1.bf16.msra.mxu0 0
    %837 = vmatprep.mubr.bf16.mxu0 0
    %838 = vmatmul.mubr.bf16.gmra.mrb[0].mxu0 %v803
    %v839 = vpop.f32.mrb[0].mxu0
    %v840 = vadd.f32 0.0, %v839
    %v841 = vpop.f32.mrb[0].mxu0
    %v842 = vpop.f32.mrb[0].mxu0
    %v843 = vadd.f32 0.0, %v842
    %v844 = vpop.f32.mrb[0].mxu0
    %845 = vdwg.mxu0
    %v849 = vunpack.c.l.b16 %v769
    %v850 = vunpack.c.l.b16 %v770
    %v851 = vunpack.c.l.b16 %v771
    %v852 = vpack.c.b16 %v850, %v849
    %v853 = vpack.c.b16 %v851, %v851
    %v855 = vshrl.u32 %v852, 16
    %v857 = vshll.u32 %v852, 16
    %v859 = vrot.slane %v857, 1
    %v860 = vor.u32 %v855, %v859
    %v862 = vshll.u32 %v853, 16
    %v864 = vrot.slane %v862, 1
    %v865 = vsel %vm784, %v860, %v864
    %v867 = vsel %vm801, %v865, 0
    %869 = vmatprep.subr.bf16.mxu0 0
    %870 = vmatpush1.bf16.msra.mxu0 %v772
    %871 = vmatprep.subr.bf16.mxu0 0
    %872 = vmatpush1.bf16.msra.mxu0 0
    %873 = vmatprep.subr.bf16.mxu0 0
    %874 = vmatpush1.bf16.msra.mxu0 0
    %875 = vmatprep.subr.bf16.mxu0 0
    %876 = vmatpush1.bf16.msra.mxu0 0
    %877 = vmatprep.subr.bf16.mxu0 0
    %878 = vmatpush1.bf16.msra.mxu0 0
    %879 = vmatprep.subr.bf16.mxu0 0
    %880 = vmatpush1.bf16.msra.mxu0 0
    %881 = vmatprep.subr.bf16.mxu0 0
    %882 = vmatpush1.bf16.msra.mxu0 0
    %883 = vmatprep.subr.bf16.mxu0 0
    %884 = vmatpush1.bf16.msra.mxu0 0
    %885 = vmatprep.subr.bf16.mxu0 0
    %886 = vmatpush1.bf16.msra.mxu0 0
    %887 = vmatprep.subr.bf16.mxu0 0
    %888 = vmatpush1.bf16.msra.mxu0 0
    %889 = vmatprep.subr.bf16.mxu0 0
    %890 = vmatpush1.bf16.msra.mxu0 0
    %891 = vmatprep.subr.bf16.mxu0 0
    %892 = vmatpush1.bf16.msra.mxu0 0
    %893 = vmatprep.subr.bf16.mxu0 0
    %894 = vmatpush1.bf16.msra.mxu0 0
    %895 = vmatprep.subr.bf16.mxu0 0
    %896 = vmatpush1.bf16.msra.mxu0 0
    %897 = vmatprep.subr.bf16.mxu0 0
    %898 = vmatpush1.bf16.msra.mxu0 0
    %899 = vmatprep.subr.bf16.mxu0 0
    %900 = vmatpush1.bf16.msra.mxu0 0
    %901 = vmatprep.mubr.bf16.mxu0 0
    %902 = vmatmul.mubr.bf16.gmra.mrb[0].mxu0 %v867
    %v903 = vpop.f32.mrb[0].mxu0
    %v904 = vadd.f32 %v840, %v903
    %v905 = vpop.f32.mrb[0].mxu0
    %v906 = vpop.f32.mrb[0].mxu0
    %v907 = vadd.f32 %v843, %v906
    %v908 = vpop.f32.mrb[0].mxu0
    %909 = vdwg.mxu0
    %v910 = vld [vmem:[#allocation7 + $0x40] sm:$0xf]
    %v911 = vld [vmem:[#allocation7 + $0x48] sm:$0xf]
    %v912 = vld [vmem:[#allocation7 + $0x50] sm:$0x1]
    %v916 = vunpack.c.l.b16 %v910
    %v917 = vunpack.c.l.b16 %v911
    %v918 = vunpack.c.l.b16 %v912
    %v919 = vpack.c.b16 %v917, %v916
    %v920 = vpack.c.b16 %v918, %v918
    %v922 = vshrl.u32 %v919, 16
    %v924 = vshll.u32 %v919, 16
    %v926 = vrot.slane %v924, 1
    %v927 = vor.u32 %v922, %v926
    %v929 = vshll.u32 %v920, 16
    %v931 = vrot.slane %v929, 1
    %v932 = vsel %vm784, %v927, %v931
    %933 = vrot.lane.b32.xlu0 %v772, 96
    %v934 = vpop.permute.xlu0 %933
    %v937 = vsel %vm801, %v932, 0
    %939 = vmatprep.subr.bf16.mxu0 0
    %940 = vmatpush1.bf16.msra.mxu0 %v934
    %941 = vmatprep.subr.bf16.mxu0 0
    %942 = vmatpush1.bf16.msra.mxu0 0
    %943 = vmatprep.subr.bf16.mxu0 0
    %944 = vmatpush1.bf16.msra.mxu0 0
    %945 = vmatprep.subr.bf16.mxu0 0
    %946 = vmatpush1.bf16.msra.mxu0 0
    %947 = vmatprep.subr.bf16.mxu0 0
    %948 = vmatpush1.bf16.msra.mxu0 0
    %949 = vmatprep.subr.bf16.mxu0 0
    %950 = vmatpush1.bf16.msra.mxu0 0
    %951 = vmatprep.subr.bf16.mxu0 0
    %952 = vmatpush1.bf16.msra.mxu0 0
    %953 = vmatprep.subr.bf16.mxu0 0
    %954 = vmatpush1.bf16.msra.mxu0 0
    %955 = vmatprep.subr.bf16.mxu0 0
    %956 = vmatpush1.bf16.msra.mxu0 0
    %957 = vmatprep.subr.bf16.mxu0 0
    %958 = vmatpush1.bf16.msra.mxu0 0
    %959 = vmatprep.subr.bf16.mxu0 0
    %960 = vmatpush1.bf16.msra.mxu0 0
    %961 = vmatprep.subr.bf16.mxu0 0
    %962 = vmatpush1.bf16.msra.mxu0 0
    %963 = vmatprep.subr.bf16.mxu0 0
    %964 = vmatpush1.bf16.msra.mxu0 0
    %965 = vmatprep.subr.bf16.mxu0 0
    %966 = vmatpush1.bf16.msra.mxu0 0
    %967 = vmatprep.subr.bf16.mxu0 0
    %968 = vmatpush1.bf16.msra.mxu0 0
    %969 = vmatprep.subr.bf16.mxu0 0
    %970 = vmatpush1.bf16.msra.mxu0 0
    %971 = vmatprep.mubr.bf16.mxu0 0
    %972 = vmatmul.mubr.bf16.gmra.mrb[0].mxu0 %v937
    %v973 = vpop.f32.mrb[0].mxu0
    %v974 = vadd.f32 0.0, %v973
    %v975 = vpop.f32.mrb[0].mxu0
    %v976 = vpop.f32.mrb[0].mxu0
    %v977 = vadd.f32 0.0, %v976
    %v978 = vpop.f32.mrb[0].mxu0
    %979 = vdwg.mxu0
    %v980 = vadd.f32 %v904, %v974
    %v981 = vadd.f32 %v907, %v977
    %v982 = vmul.f32 %v980, %v980
    %v983 = vmul.f32 %v981, %v981
    %v984 = vmul.f32 %v980, %v982
    %v985 = vmul.f32 %v981, %v983
    %v986 = vmul.f32 %v984, 0.044715
    %v987 = vmul.f32 %v985, 0.044715
    %v988 = vadd.f32 %v980, %v986
    %v989 = vadd.f32 %v981, %v987
    %v990 = vmul.f32 %v988, 0.7978846
    %v991 = vmul.f32 %v989, 0.7978846
    %v992 = vtanh.pop %v990
    %v993 = vtanh.pop %v991
    %v994 = vadd.f32 %v992, 1.0
    %v995 = vadd.f32 %v993, 1.0
    %v996 = vmul.f32 %v994, 0.5
    %v997 = vmul.f32 %v995, 0.5
    %v998 = vmul.f32 %v980, %v996
    %v999 = vmul.f32 %v981, %v997
    %v1000 = vlaneseq
    %v1001 = vshrl.u32 %v1000, 7
    %v1002 = vsub.s32 1, %v1001
    %v1003 = vrot.slane %v356, %v1002
    %v1004 = vmul.f32 %v412, %v1003
    %v1005 = vmul.f32 %v417, %v1003
    %v1006 = vadd.f32 %v1004, 0.0
    %v1007 = vadd.f32 %v1005, 0.0
    %v1008 = vmul.f32 %v429, %v1003
    %v1009 = vmul.f32 %v433, %v1003
    %1012 = vrot.lane.b32.xlu0 %v1008, 95
    %v1013 = vpop.permute.xlu0 %1012
    %1014 = vrot.lane.b32.xlu0 %v1009, 95
    %v1015 = vpop.permute.xlu0 %1014
    %v1018 = vadd.f32 %v1006, %v1013
    %v1019 = vadd.f32 %v1007, %v1015
    %v1020 = vmul.f32 %v449, %v1003
    %v1021 = vmul.f32 %v453, %v1003
    %1024 = vrot.lane.b32.xlu0 %v1020, 62
    %v1025 = vpop.permute.xlu0 %1024
    %1026 = vrot.lane.b32.xlu0 %v1021, 62
    %v1027 = vpop.permute.xlu0 %1026
    %v1030 = vadd.f32 %v1018, %v1025
    %v1031 = vadd.f32 %v1019, %v1027
    %v1032 = vlaneseq
    %v1033 = vshrl.u32 %v1032, 7
    %v1034 = vsub.s32 1, %v1033
    %v1035 = vrot.slane %v358, %v1034
    %v1036 = vmul.f32 %v469, %v1003
    %v1037 = vmul.f32 %v469, %v1035
    %v1038 = vmul.f32 %v473, %v1003
    %v1039 = vmul.f32 %v473, %v1035
    %1044 = vrot.lane.b32.xlu0 %v1036, 29
    %v1045 = vpop.permute.xlu0 %1044
    %1046 = vrot.lane.b32.xlu0 %v1037, 29
    %v1047 = vpop.permute.xlu0 %1046
    %1048 = vrot.lane.b32.xlu0 %v1038, 29
    %v1049 = vpop.permute.xlu0 %1048
    %1050 = vrot.lane.b32.xlu0 %v1039, 29
    %v1051 = vpop.permute.xlu0 %1050
    %v1052 = vsel %vm495, %v1045, %v1047
    %v1053 = vsel %vm495, %v1049, %v1051
    %v1056 = vadd.f32 %v1030, %v1052
    %v1057 = vadd.f32 %v1031, %v1053
    %v1058 = vmul.f32 %v504, %v1035
    %v1059 = vmul.f32 %v508, %v1035
    %1062 = vrot.lane.b32.xlu0 %v1058, 124
    %v1063 = vpop.permute.xlu0 %1062
    %1064 = vrot.lane.b32.xlu0 %v1059, 124
    %v1065 = vpop.permute.xlu0 %1064
    %v1068 = vadd.f32 %v1056, %v1063
    %v1069 = vadd.f32 %v1057, %v1065
    %v1070 = vmul.f32 %v524, %v1035
    %v1071 = vmul.f32 %v528, %v1035
    %1074 = vrot.lane.b32.xlu0 %v1070, 91
    %v1075 = vpop.permute.xlu0 %1074
    %1076 = vrot.lane.b32.xlu0 %v1071, 91
    %v1077 = vpop.permute.xlu0 %1076
    %v1080 = vadd.f32 %v1068, %v1075
    %v1081 = vadd.f32 %v1069, %v1077
    %v1082 = vmul.f32 %v544, %v1035
    %v1083 = vmul.f32 %v548, %v1035
    %1086 = vrot.lane.b32.xlu0 %v1082, 58
    %v1087 = vpop.permute.xlu0 %1086
    %1088 = vrot.lane.b32.xlu0 %v1083, 58
    %v1089 = vpop.permute.xlu0 %1088
    %v1092 = vadd.f32 %v1080, %v1087
    %v1093 = vadd.f32 %v1081, %v1089
    %v1094 = vlaneseq
    %v1095 = vshrl.u32 %v1094, 7
    %v1096 = vsub.s32 1, %v1095
    %v1097 = vrot.slane %v397, %v1096
    %v1098 = vmul.f32 %v564, %v1035
    %v1099 = vmul.f32 %v564, %v1097
    %v1100 = vmul.f32 %v568, %v1035
    %v1101 = vmul.f32 %v568, %v1097
    %1106 = vrot.lane.b32.xlu0 %v1098, 25
    %v1107 = vpop.permute.xlu0 %1106
    %1108 = vrot.lane.b32.xlu0 %v1099, 25
    %v1109 = vpop.permute.xlu0 %1108
    %1110 = vrot.lane.b32.xlu0 %v1100, 25
    %v1111 = vpop.permute.xlu0 %1110
    %1112 = vrot.lane.b32.xlu0 %v1101, 25
    %v1113 = vpop.permute.xlu0 %1112
    %v1114 = vsel %vm590, %v1107, %v1109
    %v1115 = vsel %vm590, %v1111, %v1113
    %v1118 = vadd.f32 %v1092, %v1114
    %v1119 = vadd.f32 %v1093, %v1115
    %v1120 = vmul.f32 %v599, %v1097
    %v1121 = vmul.f32 %v603, %v1097
    %1124 = vrot.lane.b32.xlu0 %v1120, 120
    %v1125 = vpop.permute.xlu0 %1124
    %1126 = vrot.lane.b32.xlu0 %v1121, 120
    %v1127 = vpop.permute.xlu0 %1126
    %v1130 = vadd.f32 %v1118, %v1125
    %v1131 = vadd.f32 %v1119, %v1127
    %v1132 = vmul.f32 %v619, %v1097
    %v1133 = vmul.f32 %v623, %v1097
    %1136 = vrot.lane.b32.xlu0 %v1132, 87
    %v1137 = vpop.permute.xlu0 %1136
    %1138 = vrot.lane.b32.xlu0 %v1133, 87
    %v1139 = vpop.permute.xlu0 %1138
    %v1142 = vadd.f32 %v1130, %v1137
    %v1143 = vadd.f32 %v1131, %v1139
    %v1144 = vsel %vm637, %v1142, 0.0
    %1145 = vadd.xlane.f32.xlu0 %v1144
    %v1146 = vpop.xlane.xlu0 %1145
    %v1147 = vsel %vm637, %v1143, 0.0
    %1148 = vadd.xlane.f32.xlu0 %v1147
    %v1149 = vpop.xlane.xlu0 %1148
    %v1150 = vmul.f32 %v1146, %v644
    %v1151 = vmul.f32 %v1149, %v644
    %v1152 = vsub.f32 %v1142, %v1150
    %v1153 = vsub.f32 %v1143, %v1151
    %v1154 = vmul.f32 %v1152, %v1152
    %v1155 = vmul.f32 %v1153, %v1153
    %v1156 = vsel %vm637, %v1154, 0.0
    %1157 = vadd.xlane.f32.xlu0 %v1156
    %v1158 = vpop.xlane.xlu0 %1157
    %v1159 = vsel %vm637, %v1155, 0.0
    %1160 = vadd.xlane.f32.xlu0 %v1159
    %v1161 = vpop.xlane.xlu0 %1160
    %v1162 = vmul.f32 %v1158, %v644
    %v1163 = vmul.f32 %v1161, %v644
    %v1164 = vadd.f32 %v1162, 1e-05
    %v1165 = vadd.f32 %v1163, 1e-05
    %v1166 = vrsqrt.pop %v1164
    %v1167 = vrsqrt.pop %v1165
    %v1168 = vmul.f32 %v1152, %v1166
    %v1169 = vmul.f32 %v1153, %v1167
    %v1170 = vmul.f32 %v1168, %v667
    %v1171 = vmul.f32 %v1169, %v671
    %v1172 = vadd.f32 %v1170, %v677
    %v1173 = vadd.f32 %v1171, %v681
    %v1174 = vmul.f32 %v1172, %v1172
    %v1175 = vmul.f32 %v1173, %v1173
    %v1176 = vmul.f32 %v1172, %v1174
    %v1177 = vmul.f32 %v1173, %v1175
    %v1178 = vmul.f32 %v1176, 0.044715
    %v1179 = vmul.f32 %v1177, 0.044715
    %v1180 = vadd.f32 %v1172, %v1178
    %v1181 = vadd.f32 %v1173, %v1179
    %v1182 = vmul.f32 %v1180, 0.7978846
    %v1183 = vmul.f32 %v1181, 0.7978846
    %v1184 = vtanh.pop %v1182
    %v1185 = vtanh.pop %v1183
    %v1186 = vadd.f32 %v1184, 1.0
    %v1187 = vadd.f32 %v1185, 1.0
    %v1188 = vmul.f32 %v1186, 0.5
    %v1189 = vmul.f32 %v1187, 0.5
    %v1190 = vmul.f32 %v1172, %v1188
    %v1191 = vmul.f32 %v1173, %v1189
    %v1192 = vpack.c.bf16 %v1191, %v1190
    %v1194 = vsel %vm637, %v1192, 0
    %1196 = vmatprep.subr.bf16.mxu0 0
    %1197 = vmatpush1.bf16.msra.mxu0 %v714
    %1198 = vmatprep.subr.bf16.mxu0 0
    %1199 = vmatpush1.bf16.msra.mxu0 %v715
    %1200 = vmatprep.subr.bf16.mxu0 0
    %1201 = vmatpush1.bf16.msra.mxu0 %v726
    %1202 = vmatprep.subr.bf16.mxu0 0
    %1203 = vmatpush1.bf16.msra.mxu0 0
    %1204 = vmatprep.subr.bf16.mxu0 0
    %1205 = vmatpush1.bf16.msra.mxu0 0
    %1206 = vmatprep.subr.bf16.mxu0 0
    %1207 = vmatpush1.bf16.msra.mxu0 0
    %1208 = vmatprep.subr.bf16.mxu0 0
    %1209 = vmatpush1.bf16.msra.mxu0 0
    %1210 = vmatprep.subr.bf16.mxu0 0
    %1211 = vmatpush1.bf16.msra.mxu0 0
    %1212 = vmatprep.subr.bf16.mxu0 0
    %1213 = vmatpush1.bf16.msra.mxu0 0
    %1214 = vmatprep.subr.bf16.mxu0 0
    %1215 = vmatpush1.bf16.msra.mxu0 0
    %1216 = vmatprep.subr.bf16.mxu0 0
    %1217 = vmatpush1.bf16.msra.mxu0 0
    %1218 = vmatprep.subr.bf16.mxu0 0
    %1219 = vmatpush1.bf16.msra.mxu0 0
    %1220 = vmatprep.subr.bf16.mxu0 0
    %1221 = vmatpush1.bf16.msra.mxu0 0
    %1222 = vmatprep.subr.bf16.mxu0 0
    %1223 = vmatpush1.bf16.msra.mxu0 0
    %1224 = vmatprep.subr.bf16.mxu0 0
    %1225 = vmatpush1.bf16.msra.mxu0 0
    %1226 = vmatprep.subr.bf16.mxu0 0
    %1227 = vmatpush1.bf16.msra.mxu0 0
    %1228 = vmatprep.mubr.bf16.mxu0 0
    %1229 = vmatmul.mubr.bf16.gmra.mrb[0].mxu0 %v1194
    %v1230 = vpop.f32.mrb[0].mxu0
    %v1231 = vadd.f32 0.0, %v1230
    %v1232 = vpop.f32.mrb[0].mxu0
    %v1233 = vpop.f32.mrb[0].mxu0
    %v1234 = vadd.f32 0.0, %v1233
    %v1235 = vpop.f32.mrb[0].mxu0
    %1236 = vdwg.mxu0
    %v1237 = vpack.c.bf16 %v1234, %v1231
    %1239 = vrot.lane.b32.xlu0 %v1237, 112
    %v1240 = vpop.permute.xlu0 %1239
    %1242 = vmatprep.subr.bf16.mxu0 0
    %1243 = vmatpush1.bf16.msra.mxu0 %v1240
    %1244 = vmatprep.subr.bf16.mxu0 0
    %1245 = vmatpush1.bf16.msra.mxu0 0
    %1246 = vmatprep.subr.bf16.mxu0 0
    %1247 = vmatpush1.bf16.msra.mxu0 0
    %1248 = vmatprep.subr.bf16.mxu0 0
    %1249 = vmatpush1.bf16.msra.mxu0 0
    %1250 = vmatprep.subr.bf16.mxu0 0
    %1251 = vmatpush1.bf16.msra.mxu0 0
    %1252 = vmatprep.subr.bf16.mxu0 0
    %1253 = vmatpush1.bf16.msra.mxu0 0
    %1254 = vmatprep.subr.bf16.mxu0 0
    %1255 = vmatpush1.bf16.msra.mxu0 0
    %1256 = vmatprep.subr.bf16.mxu0 0
    %1257 = vmatpush1.bf16.msra.mxu0 0
    %1258 = vmatprep.subr.bf16.mxu0 0
    %1259 = vmatpush1.bf16.msra.mxu0 0
    %1260 = vmatprep.subr.bf16.mxu0 0
    %1261 = vmatpush1.bf16.msra.mxu0 0
    %1262 = vmatprep.subr.bf16.mxu0 0
    %1263 = vmatpush1.bf16.msra.mxu0 0
    %1264 = vmatprep.subr.bf16.mxu0 0
    %1265 = vmatpush1.bf16.msra.mxu0 0
    %1266 = vmatprep.subr.bf16.mxu0 0
    %1267 = vmatpush1.bf16.msra.mxu0 0
    %1268 = vmatprep.subr.bf16.mxu0 0
    %1269 = vmatpush1.bf16.msra.mxu0 0
    %1270 = vmatprep.subr.bf16.mxu0 0
    %1271 = vmatpush1.bf16.msra.mxu0 0
    %1272 = vmatprep.subr.bf16.mxu0 0
    %1273 = vmatpush1.bf16.msra.mxu0 0
    %1274 = vmatprep.mubr.bf16.mxu0 0
    %1275 = vmatmul.mubr.bf16.gmra.mrb[0].mxu0 %v803
    %v1276 = vpop.f32.mrb[0].mxu0
    %v1277 = vadd.f32 0.0, %v1276
    %v1278 = vpop.f32.mrb[0].mxu0
    %v1279 = vpop.f32.mrb[0].mxu0
    %v1280 = vadd.f32 0.0, %v1279
    %v1281 = vpop.f32.mrb[0].mxu0
    %1282 = vdwg.mxu0
    %1283 = vmatprep.subr.bf16.mxu0 0
    %1284 = vmatpush1.bf16.msra.mxu0 %v1237
    %1285 = vmatprep.subr.bf16.mxu0 0
    %1286 = vmatpush1.bf16.msra.mxu0 0
    %1287 = vmatprep.subr.bf16.mxu0 0
    %1288 = vmatpush1.bf16.msra.mxu0 0
    %1289 = vmatprep.subr.bf16.mxu0 0
    %1290 = vmatpush1.bf16.msra.mxu0 0
    %1291 = vmatprep.subr.bf16.mxu0 0
    %1292 = vmatpush1.bf16.msra.mxu0 0
    %1293 = vmatprep.subr.bf16.mxu0 0
    %1294 = vmatpush1.bf16.msra.mxu0 0
    %1295 = vmatprep.subr.bf16.mxu0 0
    %1296 = vmatpush1.bf16.msra.mxu0 0
    %1297 = vmatprep.subr.bf16.mxu0 0
    %1298 = vmatpush1.bf16.msra.mxu0 0
    %1299 = vmatprep.subr.bf16.mxu0 0
    %1300 = vmatpush1.bf16.msra.mxu0 0
    %1301 = vmatprep.subr.bf16.mxu0 0
    %1302 = vmatpush1.bf16.msra.mxu0 0
    %1303 = vmatprep.subr.bf16.mxu0 0
    %1304 = vmatpush1.bf16.msra.mxu0 0
    %1305 = vmatprep.subr.bf16.mxu0 0
    %1306 = vmatpush1.bf16.msra.mxu0 0
    %1307 = vmatprep.subr.bf16.mxu0 0
    %1308 = vmatpush1.bf16.msra.mxu0 0
    %1309 = vmatprep.subr.bf16.mxu0 0
    %1310 = vmatpush1.bf16.msra.mxu0 0
    %1311 = vmatprep.subr.bf16.mxu0 0
    %1312 = vmatpush1.bf16.msra.mxu0 0
    %1313 = vmatprep.subr.bf16.mxu0 0
    %1314 = vmatpush1.bf16.msra.mxu0 0
    %1315 = vmatprep.mubr.bf16.mxu0 0
    %1316 = vmatmul.mubr.bf16.gmra.mrb[0].mxu0 %v867
    %v1317 = vpop.f32.mrb[0].mxu0
    %v1318 = vadd.f32 %v1277, %v1317
    %v1319 = vpop.f32.mrb[0].mxu0
    %v1320 = vpop.f32.mrb[0].mxu0
    %v1321 = vadd.f32 %v1280, %v1320
    %v1322 = vpop.f32.mrb[0].mxu0
    %1323 = vdwg.mxu0
    %1324 = vrot.lane.b32.xlu0 %v1237, 96
    %v1325 = vpop.permute.xlu0 %1324
    %1327 = vmatprep.subr.bf16.mxu0 0
    %1328 = vmatpush1.bf16.msra.mxu0 %v1325
    %1329 = vmatprep.subr.bf16.mxu0 0
    %1330 = vmatpush1.bf16.msra.mxu0 0
    %1331 = vmatprep.subr.bf16.mxu0 0
    %1332 = vmatpush1.bf16.msra.mxu0 0
    %1333 = vmatprep.subr.bf16.mxu0 0
    %1334 = vmatpush1.bf16.msra.mxu0 0
    %1335 = vmatprep.subr.bf16.mxu0 0
    %1336 = vmatpush1.bf16.msra.mxu0 0
    %1337 = vmatprep.subr.bf16.mxu0 0
    %1338 = vmatpush1.bf16.msra.mxu0 0
    %1339 = vmatprep.subr.bf16.mxu0 0
    %1340 = vmatpush1.bf16.msra.mxu0 0
    %1341 = vmatprep.subr.bf16.mxu0 0
    %1342 = vmatpush1.bf16.msra.mxu0 0
    %1343 = vmatprep.subr.bf16.mxu0 0
    %1344 = vmatpush1.bf16.msra.mxu0 0
    %1345 = vmatprep.subr.bf16.mxu0 0
    %1346 = vmatpush1.bf16.msra.mxu0 0
    %1347 = vmatprep.subr.bf16.mxu0 0
    %1348 = vmatpush1.bf16.msra.mxu0 0
    %1349 = vmatprep.subr.bf16.mxu0 0
    %1350 = vmatpush1.bf16.msra.mxu0 0
    %1351 = vmatprep.subr.bf16.mxu0 0
    %1352 = vmatpush1.bf16.msra.mxu0 0
    %1353 = vmatprep.subr.bf16.mxu0 0
    %1354 = vmatpush1.bf16.msra.mxu0 0
    %1355 = vmatprep.subr.bf16.mxu0 0
    %1356 = vmatpush1.bf16.msra.mxu0 0
    %1357 = vmatprep.subr.bf16.mxu0 0
    %1358 = vmatpush1.bf16.msra.mxu0 0
    %1359 = vmatprep.mubr.bf16.mxu0 0
    %1360 = vmatmul.mubr.bf16.gmra.mrb[0].mxu0 %v937
    %v1361 = vpop.f32.mrb[0].mxu0
    %v1362 = vadd.f32 0.0, %v1361
    %v1363 = vpop.f32.mrb[0].mxu0
    %v1364 = vpop.f32.mrb[0].mxu0
    %v1365 = vadd.f32 0.0, %v1364
    %v1366 = vpop.f32.mrb[0].mxu0
    %1367 = vdwg.mxu0
    %v1368 = vadd.f32 %v1318, %v1362
    %v1369 = vadd.f32 %v1321, %v1365
    %v1370 = vmul.f32 %v1368, %v1368
    %v1371 = vmul.f32 %v1369, %v1369
    %v1372 = vmul.f32 %v1368, %v1370
    %v1373 = vmul.f32 %v1369, %v1371
    %v1374 = vmul.f32 %v1372, 0.044715
    %v1375 = vmul.f32 %v1373, 0.044715
    %v1376 = vadd.f32 %v1368, %v1374
    %v1377 = vadd.f32 %v1369, %v1375
    %v1378 = vmul.f32 %v1376, 0.7978846
    %v1379 = vmul.f32 %v1377, 0.7978846
    %v1380 = vtanh.pop %v1378
    %v1381 = vtanh.pop %v1379
    %v1382 = vadd.f32 %v1380, 1.0
    %v1383 = vadd.f32 %v1381, 1.0
    %v1384 = vmul.f32 %v1382, 0.5
    %v1385 = vmul.f32 %v1383, 0.5
    %v1386 = vmul.f32 %v1368, %v1384
    %v1387 = vmul.f32 %v1369, %v1385
    %1390 = vrot.lane.b32.xlu0 %v1386, 16
    %v1391 = vpop.permute.xlu0 %1390
    %1392 = vrot.lane.b32.xlu0 %v1387, 16
    %v1393 = vpop.permute.xlu0 %1392
    %v1396 = vsel %vm801, %v998, %v1391
    %v1397 = vsel %vm801, %v999, %v1393
    %1398 = vxpose.xlu0.b32.start [1/16] %v1396, 128
    %1399 = vxpose.xlu0.b32.cont [2/16] %v1397, 128
    %1400 = vxpose.xlu0.b32.cont [3/16] 0.0, 128
    %1401 = vxpose.xlu0.b32.cont [4/16] 0.0, 128
    %1402 = vxpose.xlu0.b32.cont [5/16] 0.0, 128
    %1403 = vxpose.xlu0.b32.cont [6/16] 0.0, 128
    %1404 = vxpose.xlu0.b32.cont [7/16] 0.0, 128
    %1405 = vxpose.xlu0.b32.cont [8/16] 0.0, 128
    %1406 = vxpose.xlu0.b32.cont [9/16] 0.0, 128
    %1407 = vxpose.xlu0.b32.cont [10/16] 0.0, 128
    %1408 = vxpose.xlu0.b32.cont [11/16] 0.0, 128
    %1409 = vxpose.xlu0.b32.cont [12/16] 0.0, 128
    %1410 = vxpose.xlu0.b32.cont [13/16] 0.0, 128
    %1411 = vxpose.xlu0.b32.cont [14/16] 0.0, 128
    %1412 = vxpose.xlu0.b32.cont [15/16] 0.0, 128
    %1413 = vxpose.xlu0.b32.end [16/16] 0.0, 128
    %v1414 = vpop.trf.xlu0
    %v1415 = vpop.trf.xlu0
    %v1416 = vpop.trf.xlu0
    %v1417 = vpop.trf.xlu0
    %v1418 = vpop.trf.xlu0
    %v1419 = vpop.trf.xlu0
    %v1420 = vpop.trf.xlu0
    %v1421 = vpop.trf.xlu0
    %v1422 = vpop.trf.xlu0
    %v1423 = vpop.trf.xlu0
    %v1424 = vpop.trf.xlu0
    %v1425 = vpop.trf.xlu0
    %v1426 = vpop.trf.xlu0
    %v1427 = vpop.trf.xlu0
    %v1428 = vpop.trf.xlu0
    %v1429 = vpop.trf.xlu0
    %v1430 = vld [vmem:[#allocation6] ss:$0 sm:$0xff]
    %v1431 = vld [vmem:[#allocation6 + $0x1] ss:$0 sm:$0xff]
    %v1432 = vsel %vm801, %v1414, 0.0
    %1433 = vadd.xlane.f32.xlu0 %v1432
    %v1434 = vpop.xlane.xlu0 %1433
    %v1435 = vsel %vm801, %v1415, 0.0
    %1436 = vadd.xlane.f32.xlu0 %v1435
    %v1437 = vpop.xlane.xlu0 %1436
    %v1438 = vsel %vm801, %v1416, 0.0
    %1439 = vadd.xlane.f32.xlu0 %v1438
    %v1440 = vpop.xlane.xlu0 %1439
    %v1441 = vsel %vm801, %v1417, 0.0
    %1442 = vadd.xlane.f32.xlu0 %v1441
    %v1443 = vpop.xlane.xlu0 %1442
    %v1444 = vrcp.pop 16.0
    %v1445 = vmul.f32 %v1434, %v1444
    %v1446 = vmul.f32 %v1437, %v1444
    %v1447 = vmul.f32 %v1440, %v1444
    %v1448 = vmul.f32 %v1443, %v1444
    %v1449 = vsub.f32 %v1414, %v1445
    %v1450 = vsub.f32 %v1415, %v1446
    %v1451 = vsub.f32 %v1416, %v1447
    %v1452 = vsub.f32 %v1417, %v1448
    %v1453 = vmul.f32 %v1449, %v1449
    %v1454 = vmul.f32 %v1450, %v1450
    %v1455 = vmul.f32 %v1451, %v1451
    %v1456 = vmul.f32 %v1452, %v1452
    %v1457 = vsel %vm801, %v1453, 0.0
    %1458 = vadd.xlane.f32.xlu0 %v1457
    %v1459 = vpop.xlane.xlu0 %1458
    %v1460 = vsel %vm801, %v1454, 0.0
    %1461 = vadd.xlane.f32.xlu0 %v1460
    %v1462 = vpop.xlane.xlu0 %1461
    %v1463 = vsel %vm801, %v1455, 0.0
    %1464 = vadd.xlane.f32.xlu0 %v1463
    %v1465 = vpop.xlane.xlu0 %1464
    %v1466 = vsel %vm801, %v1456, 0.0
    %1467 = vadd.xlane.f32.xlu0 %v1466
    %v1468 = vpop.xlane.xlu0 %1467
    %v1469 = vmul.f32 %v1459, %v1444
    %v1470 = vmul.f32 %v1462, %v1444
    %v1471 = vmul.f32 %v1465, %v1444
    %v1472 = vmul.f32 %v1468, %v1444
    %v1473 = vadd.f32 %v1469, 1e-05
    %v1474 = vadd.f32 %v1470, 1e-05
    %v1475 = vadd.f32 %v1471, 1e-05
    %v1476 = vadd.f32 %v1472, 1e-05
    %v1477 = vrsqrt.pop %v1473
    %v1478 = vrsqrt.pop %v1474
    %v1479 = vrsqrt.pop %v1475
    %v1480 = vrsqrt.pop %v1476
    %v1481 = vmul.f32 %v1449, %v1477
    %v1482 = vmul.f32 %v1450, %v1478
    %v1483 = vmul.f32 %v1451, %v1479
    %v1484 = vmul.f32 %v1452, %v1480
    %v1485 = vmul.f32 %v1481, %v1430
    %v1486 = vmul.f32 %v1482, %v1430
    %v1487 = vmul.f32 %v1483, %v1430
    %v1488 = vmul.f32 %v1484, %v1430
    %v1489 = vadd.f32 %v1485, %v1431
    %v1490 = vadd.f32 %v1486, %v1431
    %v1491 = vadd.f32 %v1487, %v1431
    %v1492 = vadd.f32 %v1488, %v1431
    %v1493 = vpack.c.bf16 %v1490, %v1489
    %v1494 = vpack.c.bf16 %v1492, %v1491
    %v1495 = vld [vmem:[#allocation7 + $0x50] sm:$0xf]
    %v1496 = vld [vmem:[#allocation7 + $0x58] sm:$0xf]
    %v1497 = vld [vmem:[#allocation7 + $0x60] sm:$0x1]
    %v1498 = vld [vmem:[#allocation6 + $0x2] ss:$0 sm:$0xff]
    %v1502 = vunpack.c.l.b16 %v1495
    %v1503 = vunpack.c.l.b16 %v1496
    %v1504 = vunpack.c.l.b16 %v1497
    %v1505 = vpack.c.b16 %v1503, %v1502
    %v1506 = vpack.c.b16 %v1504, %v1504
    %v1508 = vshrl.u32 %v1505, 16
    %v1510 = vshll.u32 %v1505, 16
    %v1512 = vrot.slane %v1510, 1
    %v1513 = vor.u32 %v1508, %v1512
    %v1515 = vshll.u32 %v1506, 16
    %v1517 = vrot.slane %v1515, 1
    %v1518 = vsel %vm784, %v1513, %v1517
    %v1521 = vsel %vm801, %v1493, 0
    %v1524 = vsel %vm801, %v1494, 0
    %1526 = vmatprep.subr.bf16.mxu0 0
    %1527 = vmatpush1.bf16.msra.mxu0 %v1518
    %1528 = vmatprep.subr.bf16.mxu0 0
    %1529 = vmatpush1.bf16.msra.mxu0 0
    %1530 = vmatprep.subr.bf16.mxu0 0
    %1531 = vmatpush1.bf16.msra.mxu0 0
    %1532 = vmatprep.subr.bf16.mxu0 0
    %1533 = vmatpush1.bf16.msra.mxu0 0
    %1534 = vmatprep.subr.bf16.mxu0 0
    %1535 = vmatpush1.bf16.msra.mxu0 0
    %1536 = vmatprep.subr.bf16.mxu0 0
    %1537 = vmatpush1.bf16.msra.mxu0 0
    %1538 = vmatprep.subr.bf16.mxu0 0
    %1539 = vmatpush1.bf16.msra.mxu0 0
    %1540 = vmatprep.subr.bf16.mxu0 0
    %1541 = vmatpush1.bf16.msra.mxu0 0
    %1542 = vmatprep.subr.bf16.mxu0 0
    %1543 = vmatpush1.bf16.msra.mxu0 0
    %1544 = vmatprep.subr.bf16.mxu0 0
    %1545 = vmatpush1.bf16.msra.mxu0 0
    %1546 = vmatprep.subr.bf16.mxu0 0
    %1547 = vmatpush1.bf16.msra.mxu0 0
    %1548 = vmatprep.subr.bf16.mxu0 0
    %1549 = vmatpush1.bf16.msra.mxu0 0
    %1550 = vmatprep.subr.bf16.mxu0 0
    %1551 = vmatpush1.bf16.msra.mxu0 0
    %1552 = vmatprep.subr.bf16.mxu0 0
    %1553 = vmatpush1.bf16.msra.mxu0 0
    %1554 = vmatprep.subr.bf16.mxu0 0
    %1555 = vmatpush1.bf16.msra.mxu0 0
    %1556 = vmatprep.subr.bf16.mxu0 0
    %1557 = vmatpush1.bf16.msra.mxu0 0
    %1558 = vmatprep.mubr.bf16.mxu0 0
    %1559 = vmatmul.mubr.bf16.gmra.mrb[0].mxu0 %v1521
    %v1560 = vpop.f32.mrb[0].mxu0
    %v1561 = vadd.f32 %v1498, %v1560
    %v1562 = vpop.f32.mrb[0].mxu0
    %v1563 = vpop.f32.mrb[0].mxu0
    %v1564 = vadd.f32 %v1498, %v1563
    %v1565 = vpop.f32.mrb[0].mxu0
    %1566 = vmatprep.mubr.bf16.mxu0 0
    %1567 = vmatmul.mubr.bf16.gmra.mrb[0].mxu0 %v1524
    %v1568 = vpop.f32.mrb[0].mxu0
    %v1569 = vadd.f32 %v1498, %v1568
    %v1570 = vpop.f32.mrb[0].mxu0
    %v1571 = vpop.f32.mrb[0].mxu0
    %v1572 = vadd.f32 %v1498, %v1571
    %v1573 = vpop.f32.mrb[0].mxu0
    %1574 = vdwg.mxu0
    %v1575 = vld [vmem:[#allocation6 + $0x3] ss:$0 sm:$0xff]
    %v1576 = vld [vmem:[#allocation6 + $0x4] ss:$0 sm:$0xff]
    %vm1577 = vcmask 261120
    %v1578 = vsel %vm1577, %v1561, 0.0
    %1579 = vadd.xlane.f32.xlu0 %v1578
    %v1580 = vpop.xlane.xlu0 %1579
    %v1581 = vsel %vm1577, %v1564, 0.0
    %1582 = vadd.xlane.f32.xlu0 %v1581
    %v1583 = vpop.xlane.xlu0 %1582
    %v1584 = vsel %vm1577, %v1569, 0.0
    %1585 = vadd.xlane.f32.xlu0 %v1584
    %v1586 = vpop.xlane.xlu0 %1585
    %v1587 = vsel %vm1577, %v1572, 0.0
    %1588 = vadd.xlane.f32.xlu0 %v1587
    %v1589 = vpop.xlane.xlu0 %1588
    %v1590 = vrcp.pop 32.0
    %v1591 = vmul.f32 %v1580, %v1590
    %v1592 = vmul.f32 %v1583, %v1590
    %v1593 = vmul.f32 %v1586, %v1590
    %v1594 = vmul.f32 %v1589, %v1590
    %v1595 = vsub.f32 %v1561, %v1591
    %v1596 = vsub.f32 %v1564, %v1592
    %v1597 = vsub.f32 %v1569, %v1593
    %v1598 = vsub.f32 %v1572, %v1594
    %v1599 = vmul.f32 %v1595, %v1595
    %v1600 = vmul.f32 %v1596, %v1596
    %v1601 = vmul.f32 %v1597, %v1597
    %v1602 = vmul.f32 %v1598, %v1598
    %v1603 = vsel %vm1577, %v1599, 0.0
    %1604 = vadd.xlane.f32.xlu0 %v1603
    %v1605 = vpop.xlane.xlu0 %1604
    %v1606 = vsel %vm1577, %v1600, 0.0
    %1607 = vadd.xlane.f32.xlu0 %v1606
    %v1608 = vpop.xlane.xlu0 %1607
    %v1609 = vsel %vm1577, %v1601, 0.0
    %1610 = vadd.xlane.f32.xlu0 %v1609
    %v1611 = vpop.xlane.xlu0 %1610
    %v1612 = vsel %vm1577, %v1602, 0.0
    %1613 = vadd.xlane.f32.xlu0 %v1612
    %v1614 = vpop.xlane.xlu0 %1613
    %v1615 = vmul.f32 %v1605, %v1590
    %v1616 = vmul.f32 %v1608, %v1590
    %v1617 = vmul.f32 %v1611, %v1590
    %v1618 = vmul.f32 %v1614, %v1590
    %v1619 = vadd.f32 %v1615, 1e-05
    %v1620 = vadd.f32 %v1616, 1e-05
    %v1621 = vadd.f32 %v1617, 1e-05
    %v1622 = vadd.f32 %v1618, 1e-05
    %v1623 = vrsqrt.pop %v1619
    %v1624 = vrsqrt.pop %v1620
    %v1625 = vrsqrt.pop %v1621
    %v1626 = vrsqrt.pop %v1622
    %v1627 = vmul.f32 %v1595, %v1623
    %v1628 = vmul.f32 %v1596, %v1624
    %v1629 = vmul.f32 %v1597, %v1625
    %v1630 = vmul.f32 %v1598, %v1626
    %v1631 = vmul.f32 %v1627, %v1575
    %v1632 = vmul.f32 %v1628, %v1575
    %v1633 = vmul.f32 %v1629, %v1575
    %v1634 = vmul.f32 %v1630, %v1575
    %v1635 = vadd.f32 %v1631, %v1576
    %v1636 = vadd.f32 %v1632, %v1576
    %v1637 = vadd.f32 %v1633, %v1576
    %v1638 = vadd.f32 %v1634, %v1576
    %v1639 = vpack.c.bf16 %v1636, %v1635
    %v1640 = vpack.c.bf16 %v1638, %v1637
    %v1641 = vld [vmem:[#allocation7 + $0x60] sm:$0xf]
    %v1642 = vld [vmem:[#allocation7 + $0x68] sm:$0xf]
    %v1643 = vld [vmem:[#allocation7 + $0x70] sm:$0xf]
    %v1644 = vld [vmem:[#allocation7 + $0x78] sm:$0xf]
    %v1645 = vld [vmem:[#allocation7 + $0x80] sm:$0x1]
    %v1646 = vld [vmem:[#allocation6 + $0x7] ss:$0 sm:$0xff]
    %v1652 = vunpack.c.l.b16 %v1641
    %v1653 = vunpack.c.l.b16 %v1642
    %v1654 = vunpack.c.l.b16 %v1643
    %v1655 = vunpack.c.l.b16 %v1644
    %v1656 = vunpack.c.l.b16 %v1645
    %v1657 = vpack.c.b16 %v1653, %v1652
    %v1658 = vpack.c.b16 %v1655, %v1654
    %v1659 = vpack.c.b16 %v1656, %v1656
    %v1661 = vshrl.u32 %v1657, 16
    %v1663 = vshll.u32 %v1657, 16
    %v1665 = vrot.slane %v1663, 1
    %v1666 = vor.u32 %v1661, %v1665
    %v1668 = vshll.u32 %v1658, 16
    %v1670 = vrot.slane %v1668, 1
    %v1671 = vsel %vm784, %v1666, %v1670
    %v1672 = vshrl.u32 %v1658, 16
    %v1674 = vor.u32 %v1672, %v1670
    %v1676 = vshll.u32 %v1659, 16
    %v1678 = vrot.slane %v1676, 1
    %v1679 = vsel %vm784, %v1674, %v1678
    %v1683 = vsel %vm1577, %v1639, 0
    %v1686 = vsel %vm1577, %v1640, 0
    %1688 = vmatprep.subr.bf16.mxu0 0
    %1689 = vmatpush1.bf16.msra.mxu0 %v1671
    %1690 = vmatprep.subr.bf16.mxu0 0
    %1691 = vmatpush1.bf16.msra.mxu0 %v1679
    %1692 = vmatprep.subr.bf16.mxu0 0
    %1693 = vmatpush1.bf16.msra.mxu0 0
    %1694 = vmatprep.subr.bf16.mxu0 0
    %1695 = vmatpush1.bf16.msra.mxu0 0
    %1696 = vmatprep.subr.bf16.mxu0 0
    %1697 = vmatpush1.bf16.msra.mxu0 0
    %1698 = vmatprep.subr.bf16.mxu0 0
    %1699 = vmatpush1.bf16.msra.mxu0 0
    %1700 = vmatprep.subr.bf16.mxu0 0
    %1701 = vmatpush1.bf16.msra.mxu0 0
    %1702 = vmatprep.subr.bf16.mxu0 0
    %1703 = vmatpush1.bf16.msra.mxu0 0
    %1704 = vmatprep.subr.bf16.mxu0 0
    %1705 = vmatpush1.bf16.msra.mxu0 0
    %1706 = vmatprep.subr.bf16.mxu0 0
    %1707 = vmatpush1.bf16.msra.mxu0 0
    %1708 = vmatprep.subr.bf16.mxu0 0
    %1709 = vmatpush1.bf16.msra.mxu0 0
    %1710 = vmatprep.subr.bf16.mxu0 0
    %1711 = vmatpush1.bf16.msra.mxu0 0
    %1712 = vmatprep.subr.bf16.mxu0 0
    %1713 = vmatpush1.bf16.msra.mxu0 0
    %1714 = vmatprep.subr.bf16.mxu0 0
    %1715 = vmatpush1.bf16.msra.mxu0 0
    %1716 = vmatprep.subr.bf16.mxu0 0
    %1717 = vmatpush1.bf16.msra.mxu0 0
    %1718 = vmatprep.subr.bf16.mxu0 0
    %1719 = vmatpush1.bf16.msra.mxu0 0
    %1720 = vmatprep.mubr.bf16.mxu0 0
    %1721 = vmatmul.mubr.bf16.gmra.mrb[0].mxu0 %v1683
    %v1722 = vpop.f32.mrb[0].mxu0
    %v1723 = vadd.f32 %v1646, %v1722
    %v1724 = vpop.f32.mrb[0].mxu0
    %v1725 = vpop.f32.mrb[0].mxu0
    %v1726 = vadd.f32 %v1646, %v1725
    %v1727 = vpop.f32.mrb[0].mxu0
    %1728 = vmatprep.mubr.bf16.mxu0 0
    %1729 = vmatmul.mubr.bf16.gmra.mrb[0].mxu0 %v1686
    %v1730 = vpop.f32.mrb[0].mxu0
    %v1731 = vadd.f32 %v1646, %v1730
    %v1732 = vpop.f32.mrb[0].mxu0
    %v1733 = vpop.f32.mrb[0].mxu0
    %v1734 = vadd.f32 %v1646, %v1733
    %v1735 = vpop.f32.mrb[0].mxu0
    %1736 = vdwg.mxu0
    %v1737 = vpack.c.bf16 %v1726, %v1723
    %v1738 = vpack.c.bf16 %v1734, %v1731
    %1740 = vrot.lane.b32.xlu0 %v1737, 96
    %v1741 = vpop.permute.xlu0 %1740
    %vm1742 = vcmask 64512
    %v1744 = vsel %vm1742, %v1737, 0
    %v1747 = vsel %vm1742, %v1741, 0
    %1749 = vmatprep.subr.bf16.mxu0 0
    %1750 = vmatpush1.bf16.xpose.msra.mxu0 %v1747
    %1751 = vmatprep.subr.bf16.mxu0 0
    %1752 = vmatpush1.bf16.xpose.msra.mxu0 0
    %1753 = vmatprep.subr.bf16.mxu0 0
    %1754 = vmatpush1.bf16.xpose.msra.mxu0 0
    %1755 = vmatprep.subr.bf16.mxu0 0
    %1756 = vmatpush1.bf16.xpose.msra.mxu0 0
    %1757 = vmatprep.subr.bf16.mxu0 0
    %1758 = vmatpush1.bf16.xpose.msra.mxu0 0
    %1759 = vmatprep.subr.bf16.mxu0 0
    %1760 = vmatpush1.bf16.xpose.msra.mxu0 0
    %1761 = vmatprep.subr.bf16.mxu0 0
    %1762 = vmatpush1.bf16.xpose.msra.mxu0 0
    %1763 = vmatprep.subr.bf16.mxu0 0
    %1764 = vmatpush1.bf16.xpose.msra.mxu0 0
    %1765 = vmatprep.subr.bf16.mxu0 0
    %1766 = vmatpush1.bf16.xpose.msra.mxu0 0
    %1767 = vmatprep.subr.bf16.mxu0 0
    %1768 = vmatpush1.bf16.xpose.msra.mxu0 0
    %1769 = vmatprep.subr.bf16.mxu0 0
    %1770 = vmatpush1.bf16.xpose.msra.mxu0 0
    %1771 = vmatprep.subr.bf16.mxu0 0
    %1772 = vmatpush1.bf16.xpose.msra.mxu0 0
    %1773 = vmatprep.subr.bf16.mxu0 0
    %1774 = vmatpush1.bf16.xpose.msra.mxu0 0
    %1775 = vmatprep.subr.bf16.mxu0 0
    %1776 = vmatpush1.bf16.xpose.msra.mxu0 0
    %1777 = vmatprep.subr.bf16.mxu0 0
    %1778 = vmatpush1.bf16.xpose.msra.mxu0 0
    %1779 = vmatprep.subr.bf16.mxu0 0
    %1780 = vmatpush1.bf16.xpose.msra.mxu0 0
    %1781 = vmatprep.mubr.bf16.mxu0 0
    %1782 = vmatmul.mubr.bf16.gmra.mrb[0].mxu0 %v1744
    %v1783 = vpop.f32.mrb[0].mxu0
    %v1784 = vadd.f32 0.0, %v1783
    %v1785 = vpop.f32.mrb[0].mxu0
    %v1786 = vpop.f32.mrb[0].mxu0
    %v1787 = vadd.f32 0.0, %v1786
    %v1788 = vpop.f32.mrb[0].mxu0
    %1789 = vdwg.mxu0
    %v1790 = vmul.f32 %v1784, 0.35355338
    %v1791 = vmul.f32 %v1787, 0.35355338
    %v1792 = vsel %vm801, %v1790, -inf
    %1793 = vmax.xlane.f32.xlu0 %v1792
    %v1794 = vpop.xlane.xlu0 %1793
    %v1795 = vsel %vm801, %v1791, -inf
    %1796 = vmax.xlane.f32.xlu0 %v1795
    %v1797 = vpop.xlane.xlu0 %1796
    %v1798 = vsub.f32 %v1790, %v1794
    %v1799 = vsub.f32 %v1791, %v1797
    %v1800 = vmul.f32 %v1798, 1.442695
    %v1801 = vpow.pop %v1800
    %v1802 = vmul.f32 %v1799, 1.442695
    %v1803 = vpow.pop %v1802
    %v1804 = vsel %vm801, %v1801, 0.0
    %1805 = vadd.xlane.f32.xlu0 %v1804
    %v1806 = vpop.xlane.xlu0 %1805
    %v1807 = vsel %vm801, %v1803, 0.0
    %1808 = vadd.xlane.f32.xlu0 %v1807
    %v1809 = vpop.xlane.xlu0 %1808
    %v1810 = vrcp.pop %v1806
    %v1811 = vrcp.pop %v1809
    %v1812 = vmul.f32 %v1801, %v1810
    %v1813 = vmul.f32 %v1803, %v1811
    %v1814 = vpack.c.bf16 %v1813, %v1812
    %1815 = vrot.lane.b32.xlu0 %v1737, 64
    %v1816 = vpop.permute.xlu0 %1815
    %v1819 = vsel %vm801, %v1814, 0
    %1821 = vmatprep.subr.bf16.mxu0 0
    %1822 = vmatpush1.bf16.msra.mxu0 %v1816
    %1823 = vmatprep.subr.bf16.mxu0 0
    %1824 = vmatpush1.bf16.msra.mxu0 0
    %1825 = vmatprep.subr.bf16.mxu0 0
    %1826 = vmatpush1.bf16.msra.mxu0 0
    %1827 = vmatprep.subr.bf16.mxu0 0
    %1828 = vmatpush1.bf16.msra.mxu0 0
    %1829 = vmatprep.subr.bf16.mxu0 0
    %1830 = vmatpush1.bf16.msra.mxu0 0
    %1831 = vmatprep.subr.bf16.mxu0 0
    %1832 = vmatpush1.bf16.msra.mxu0 0
    %1833 = vmatprep.subr.bf16.mxu0 0
    %1834 = vmatpush1.bf16.msra.mxu0 0
    %1835 = vmatprep.subr.bf16.mxu0 0
    %1836 = vmatpush1.bf16.msra.mxu0 0
    %1837 = vmatprep.subr.bf16.mxu0 0
    %1838 = vmatpush1.bf16.msra.mxu0 0
    %1839 = vmatprep.subr.bf16.mxu0 0
    %1840 = vmatpush1.bf16.msra.mxu0 0
    %1841 = vmatprep.subr.bf16.mxu0 0
    %1842 = vmatpush1.bf16.msra.mxu0 0
    %1843 = vmatprep.subr.bf16.mxu0 0
    %1844 = vmatpush1.bf16.msra.mxu0 0
    %1845 = vmatprep.subr.bf16.mxu0 0
    %1846 = vmatpush1.bf16.msra.mxu0 0
    %1847 = vmatprep.subr.bf16.mxu0 0
    %1848 = vmatpush1.bf16.msra.mxu0 0
    %1849 = vmatprep.subr.bf16.mxu0 0
    %1850 = vmatpush1.bf16.msra.mxu0 0
    %1851 = vmatprep.subr.bf16.mxu0 0
    %1852 = vmatpush1.bf16.msra.mxu0 0
    %1853 = vmatprep.mubr.bf16.mxu0 0
    %1854 = vmatmul.mubr.bf16.gmra.mrb[0].mxu0 %v1819
    %v1855 = vpop.f32.mrb[0].mxu0
    %v1856 = vadd.f32 0.0, %v1855
    %v1857 = vpop.f32.mrb[0].mxu0
    %v1858 = vpop.f32.mrb[0].mxu0
    %v1859 = vadd.f32 0.0, %v1858
    %v1860 = vpop.f32.mrb[0].mxu0
    %1861 = vdwg.mxu0
    %1862 = vrot.lane.b32.xlu0 %v1737, 120
    %v1863 = vpop.permute.xlu0 %1862
    %1864 = vrot.lane.b32.xlu0 %v1737, 88
    %v1865 = vpop.permute.xlu0 %1864
    %v1867 = vsel %vm1742, %v1863, 0
    %v1870 = vsel %vm1742, %v1865, 0
    %1872 = vmatprep.subr.bf16.mxu0 0
    %1873 = vmatpush1.bf16.xpose.msra.mxu0 %v1870
    %1874 = vmatprep.subr.bf16.mxu0 0
    %1875 = vmatpush1.bf16.xpose.msra.mxu0 0
    %1876 = vmatprep.subr.bf16.mxu0 0
    %1877 = vmatpush1.bf16.xpose.msra.mxu0 0
    %1878 = vmatprep.subr.bf16.mxu0 0
    %1879 = vmatpush1.bf16.xpose.msra.mxu0 0
    %1880 = vmatprep.subr.bf16.mxu0 0
    %1881 = vmatpush1.bf16.xpose.msra.mxu0 0
    %1882 = vmatprep.subr.bf16.mxu0 0
    %1883 = vmatpush1.bf16.xpose.msra.mxu0 0
    %1884 = vmatprep.subr.bf16.mxu0 0
    %1885 = vmatpush1.bf16.xpose.msra.mxu0 0
    %1886 = vmatprep.subr.bf16.mxu0 0
    %1887 = vmatpush1.bf16.xpose.msra.mxu0 0
    %1888 = vmatprep.subr.bf16.mxu0 0
    %1889 = vmatpush1.bf16.xpose.msra.mxu0 0
    %1890 = vmatprep.subr.bf16.mxu0 0
    %1891 = vmatpush1.bf16.xpose.msra.mxu0 0
    %1892 = vmatprep.subr.bf16.mxu0 0
    %1893 = vmatpush1.bf16.xpose.msra.mxu0 0
    %1894 = vmatprep.subr.bf16.mxu0 0
    %1895 = vmatpush1.bf16.xpose.msra.mxu0 0
    %1896 = vmatprep.subr.bf16.mxu0 0
    %1897 = vmatpush1.bf16.xpose.msra.mxu0 0
    %1898 = vmatprep.subr.bf16.mxu0 0
    %1899 = vmatpush1.bf16.xpose.msra.mxu0 0
    %1900 = vmatprep.subr.bf16.mxu0 0
    %1901 = vmatpush1.bf16.xpose.msra.mxu0 0
    %1902 = vmatprep.subr.bf16.mxu0 0
    %1903 = vmatpush1.bf16.xpose.msra.mxu0 0
    %1904 = vmatprep.mubr.bf16.mxu0 0
    %1905 = vmatmul.mubr.bf16.gmra.mrb[0].mxu0 %v1867
    %v1906 = vpop.f32.mrb[0].mxu0
    %v1907 = vadd.f32 0.0, %v1906
    %v1908 = vpop.f32.mrb[0].mxu0
    %v1909 = vpop.f32.mrb[0].mxu0
    %v1910 = vadd.f32 0.0, %v1909
    %v1911 = vpop.f32.mrb[0].mxu0
    %1912 = vdwg.mxu0
    %v1913 = vmul.f32 %v1907, 0.35355338
    %v1914 = vmul.f32 %v1910, 0.35355338
    %v1915 = vsel %vm801, %v1913, -inf
    %1916 = vmax.xlane.f32.xlu0 %v1915
    %v1917 = vpop.xlane.xlu0 %1916
    %v1918 = vsel %vm801, %v1914, -inf
    %1919 = vmax.xlane.f32.xlu0 %v1918
    %v1920 = vpop.xlane.xlu0 %1919
    %v1921 = vsub.f32 %v1913, %v1917
    %v1922 = vsub.f32 %v1914, %v1920
    %v1923 = vmul.f32 %v1921, 1.442695
    %v1924 = vpow.pop %v1923
    %v1925 = vmul.f32 %v1922, 1.442695
    %v1926 = vpow.pop %v1925
    %v1927 = vsel %vm801, %v1924, 0.0
    %1928 = vadd.xlane.f32.xlu0 %v1927
    %v1929 = vpop.xlane.xlu0 %1928
    %v1930 = vsel %vm801, %v1926, 0.0
    %1931 = vadd.xlane.f32.xlu0 %v1930
    %v1932 = vpop.xlane.xlu0 %1931
    %v1933 = vrcp.pop %v1929
    %v1934 = vrcp.pop %v1932
    %v1935 = vmul.f32 %v1924, %v1933
    %v1936 = vmul.f32 %v1926, %v1934
    %v1937 = vpack.c.bf16 %v1936, %v1935
    %1938 = vrot.lane.b32.xlu0 %v1737, 56
    %v1939 = vpop.permute.xlu0 %1938
    %v1942 = vsel %vm801, %v1937, 0
    %1944 = vmatprep.subr.bf16.mxu0 0
    %1945 = vmatpush1.bf16.msra.mxu0 %v1939
    %1946 = vmatprep.subr.bf16.mxu0 0
    %1947 = vmatpush1.bf16.msra.mxu0 0
    %1948 = vmatprep.subr.bf16.mxu0 0
    %1949 = vmatpush1.bf16.msra.mxu0 0
    %1950 = vmatprep.subr.bf16.mxu0 0
    %1951 = vmatpush1.bf16.msra.mxu0 0
    %1952 = vmatprep.subr.bf16.mxu0 0
    %1953 = vmatpush1.bf16.msra.mxu0 0
    %1954 = vmatprep.subr.bf16.mxu0 0
    %1955 = vmatpush1.bf16.msra.mxu0 0
    %1956 = vmatprep.subr.bf16.mxu0 0
    %1957 = vmatpush1.bf16.msra.mxu0 0
    %1958 = vmatprep.subr.bf16.mxu0 0
    %1959 = vmatpush1.bf16.msra.mxu0 0
    %1960 = vmatprep.subr.bf16.mxu0 0
    %1961 = vmatpush1.bf16.msra.mxu0 0
    %1962 = vmatprep.subr.bf16.mxu0 0
    %1963 = vmatpush1.bf16.msra.mxu0 0
    %1964 = vmatprep.subr.bf16.mxu0 0
    %1965 = vmatpush1.bf16.msra.mxu0 0
    %1966 = vmatprep.subr.bf16.mxu0 0
    %1967 = vmatpush1.bf16.msra.mxu0 0
    %1968 = vmatprep.subr.bf16.mxu0 0
    %1969 = vmatpush1.bf16.msra.mxu0 0
    %1970 = vmatprep.subr.bf16.mxu0 0
    %1971 = vmatpush1.bf16.msra.mxu0 0
    %1972 = vmatprep.subr.bf16.mxu0 0
    %1973 = vmatpush1.bf16.msra.mxu0 0
    %1974 = vmatprep.subr.bf16.mxu0 0
    %1975 = vmatpush1.bf16.msra.mxu0 0
    %1976 = vmatprep.mubr.bf16.mxu0 0
    %1977 = vmatmul.mubr.bf16.gmra.mrb[0].mxu0 %v1942
    %v1978 = vpop.f32.mrb[0].mxu0
    %v1979 = vadd.f32 0.0, %v1978
    %v1980 = vpop.f32.mrb[0].mxu0
    %v1981 = vpop.f32.mrb[0].mxu0
    %v1982 = vadd.f32 0.0, %v1981
    %v1983 = vpop.f32.mrb[0].mxu0
    %1984 = vdwg.mxu0
    %1985 = vrot.lane.b32.xlu0 %v1737, 112
    %v1986 = vpop.permute.xlu0 %1985
    %1987 = vrot.lane.b32.xlu0 %v1737, 80
    %v1988 = vpop.permute.xlu0 %1987
    %v1990 = vsel %vm1742, %v1986, 0
    %v1993 = vsel %vm1742, %v1988, 0
    %1995 = vmatprep.subr.bf16.mxu0 0
    %1996 = vmatpush1.bf16.xpose.msra.mxu0 %v1993
    %1997 = vmatprep.subr.bf16.mxu0 0
    %1998 = vmatpush1.bf16.xpose.msra.mxu0 0
    %1999 = vmatprep.subr.bf16.mxu0 0
    %2000 = vmatpush1.bf16.xpose.msra.mxu0 0
    %2001 = vmatprep.subr.bf16.mxu0 0
    %2002 = vmatpush1.bf16.xpose.msra.mxu0 0
    %2003 = vmatprep.subr.bf16.mxu0 0
    %2004 = vmatpush1.bf16.xpose.msra.mxu0 0
    %2005 = vmatprep.subr.bf16.mxu0 0
    %2006 = vmatpush1.bf16.xpose.msra.mxu0 0
    %2007 = vmatprep.subr.bf16.mxu0 0
    %2008 = vmatpush1.bf16.xpose.msra.mxu0 0
    %2009 = vmatprep.subr.bf16.mxu0 0
    %2010 = vmatpush1.bf16.xpose.msra.mxu0 0
    %2011 = vmatprep.subr.bf16.mxu0 0
    %2012 = vmatpush1.bf16.xpose.msra.mxu0 0
    %2013 = vmatprep.subr.bf16.mxu0 0
    %2014 = vmatpush1.bf16.xpose.msra.mxu0 0
    %2015 = vmatprep.subr.bf16.mxu0 0
    %2016 = vmatpush1.bf16.xpose.msra.mxu0 0
    %2017 = vmatprep.subr.bf16.mxu0 0
    %2018 = vmatpush1.bf16.xpose.msra.mxu0 0
    %2019 = vmatprep.subr.bf16.mxu0 0
    %2020 = vmatpush1.bf16.xpose.msra.mxu0 0
    %2021 = vmatprep.subr.bf16.mxu0 0
    %2022 = vmatpush1.bf16.xpose.msra.mxu0 0
    %2023 = vmatprep.subr.bf16.mxu0 0
    %2024 = vmatpush1.bf16.xpose.msra.mxu0 0
    %2025 = vmatprep.subr.bf16.mxu0 0
    %2026 = vmatpush1.bf16.xpose.msra.mxu0 0
    %2027 = vmatprep.mubr.bf16.mxu0 0
    %2028 = vmatmul.mubr.bf16.gmra.mrb[0].mxu0 %v1990
    %v2029 = vpop.f32.mrb[0].mxu0
    %v2030 = vadd.f32 0.0, %v2029
    %v2031 = vpop.f32.mrb[0].mxu0
    %v2032 = vpop.f32.mrb[0].mxu0
    %v2033 = vadd.f32 0.0, %v2032
    %v2034 = vpop.f32.mrb[0].mxu0
    %2035 = vdwg.mxu0
    %v2036 = vmul.f32 %v2030, 0.35355338
    %v2037 = vmul.f32 %v2033, 0.35355338
    %v2038 = vsel %vm801, %v2036, -inf
    %2039 = vmax.xlane.f32.xlu0 %v2038
    %v2040 = vpop.xlane.xlu0 %2039
    %v2041 = vsel %vm801, %v2037, -inf
    %2042 = vmax.xlane.f32.xlu0 %v2041
    %v2043 = vpop.xlane.xlu0 %2042
    %v2044 = vsub.f32 %v2036, %v2040
    %v2045 = vsub.f32 %v2037, %v2043
    %v2046 = vmul.f32 %v2044, 1.442695
    %v2047 = vpow.pop %v2046
    %v2048 = vmul.f32 %v2045, 1.442695
    %v2049 = vpow.pop %v2048
    %v2050 = vsel %vm801, %v2047, 0.0
    %2051 = vadd.xlane.f32.xlu0 %v2050
    %v2052 = vpop.xlane.xlu0 %2051
    %v2053 = vsel %vm801, %v2049, 0.0
    %2054 = vadd.xlane.f32.xlu0 %v2053
    %v2055 = vpop.xlane.xlu0 %2054
    %v2056 = vrcp.pop %v2052
    %v2057 = vrcp.pop %v2055
    %v2058 = vmul.f32 %v2047, %v2056
    %v2059 = vmul.f32 %v2049, %v2057
    %v2060 = vpack.c.bf16 %v2059, %v2058
    %2061 = vrot.lane.b32.xlu0 %v1737, 48
    %v2062 = vpop.permute.xlu0 %2061
    %v2065 = vsel %vm801, %v2060, 0
    %2067 = vmatprep.subr.bf16.mxu0 0
    %2068 = vmatpush1.bf16.msra.mxu0 %v2062
    %2069 = vmatprep.subr.bf16.mxu0 0
    %2070 = vmatpush1.bf16.msra.mxu0 0
    %2071 = vmatprep.subr.bf16.mxu0 0
    %2072 = vmatpush1.bf16.msra.mxu0 0
    %2073 = vmatprep.subr.bf16.mxu0 0
    %2074 = vmatpush1.bf16.msra.mxu0 0
    %2075 = vmatprep.subr.bf16.mxu0 0
    %2076 = vmatpush1.bf16.msra.mxu0 0
    %2077 = vmatprep.subr.bf16.mxu0 0
    %2078 = vmatpush1.bf16.msra.mxu0 0
    %2079 = vmatprep.subr.bf16.mxu0 0
    %2080 = vmatpush1.bf16.msra.mxu0 0
    %2081 = vmatprep.subr.bf16.mxu0 0
    %2082 = vmatpush1.bf16.msra.mxu0 0
    %2083 = vmatprep.subr.bf16.mxu0 0
    %2084 = vmatpush1.bf16.msra.mxu0 0
    %2085 = vmatprep.subr.bf16.mxu0 0
    %2086 = vmatpush1.bf16.msra.mxu0 0
    %2087 = vmatprep.subr.bf16.mxu0 0
    %2088 = vmatpush1.bf16.msra.mxu0 0
    %2089 = vmatprep.subr.bf16.mxu0 0
    %2090 = vmatpush1.bf16.msra.mxu0 0
    %2091 = vmatprep.subr.bf16.mxu0 0
    %2092 = vmatpush1.bf16.msra.mxu0 0
    %2093 = vmatprep.subr.bf16.mxu0 0
    %2094 = vmatpush1.bf16.msra.mxu0 0
    %2095 = vmatprep.subr.bf16.mxu0 0
    %2096 = vmatpush1.bf16.msra.mxu0 0
    %2097 = vmatprep.subr.bf16.mxu0 0
    %2098 = vmatpush1.bf16.msra.mxu0 0
    %2099 = vmatprep.mubr.bf16.mxu0 0
    %2100 = vmatmul.mubr.bf16.gmra.mrb[0].mxu0 %v2065
    %v2101 = vpop.f32.mrb[0].mxu0
    %v2102 = vadd.f32 0.0, %v2101
    %v2103 = vpop.f32.mrb[0].mxu0
    %v2104 = vpop.f32.mrb[0].mxu0
    %v2105 = vadd.f32 0.0, %v2104
    %v2106 = vpop.f32.mrb[0].mxu0
    %2107 = vdwg.mxu0
    %2108 = vrot.lane.b32.xlu0 %v1737, 104
    %v2109 = vpop.permute.xlu0 %2108
    %2110 = vrot.lane.b32.xlu0 %v1737, 72
    %v2111 = vpop.permute.xlu0 %2110
    %v2113 = vsel %vm1742, %v2109, 0
    %v2116 = vsel %vm1742, %v2111, 0
    %2118 = vmatprep.subr.bf16.mxu0 0
    %2119 = vmatpush1.bf16.xpose.msra.mxu0 %v2116
    %2120 = vmatprep.subr.bf16.mxu0 0
    %2121 = vmatpush1.bf16.xpose.msra.mxu0 0
    %2122 = vmatprep.subr.bf16.mxu0 0
    %2123 = vmatpush1.bf16.xpose.msra.mxu0 0
    %2124 = vmatprep.subr.bf16.mxu0 0
    %2125 = vmatpush1.bf16.xpose.msra.mxu0 0
    %2126 = vmatprep.subr.bf16.mxu0 0
    %2127 = vmatpush1.bf16.xpose.msra.mxu0 0
    %2128 = vmatprep.subr.bf16.mxu0 0
    %2129 = vmatpush1.bf16.xpose.msra.mxu0 0
    %2130 = vmatprep.subr.bf16.mxu0 0
    %2131 = vmatpush1.bf16.xpose.msra.mxu0 0
    %2132 = vmatprep.subr.bf16.mxu0 0
    %2133 = vmatpush1.bf16.xpose.msra.mxu0 0
    %2134 = vmatprep.subr.bf16.mxu0 0
    %2135 = vmatpush1.bf16.xpose.msra.mxu0 0
    %2136 = vmatprep.subr.bf16.mxu0 0
    %2137 = vmatpush1.bf16.xpose.msra.mxu0 0
    %2138 = vmatprep.subr.bf16.mxu0 0
    %2139 = vmatpush1.bf16.xpose.msra.mxu0 0
    %2140 = vmatprep.subr.bf16.mxu0 0
    %2141 = vmatpush1.bf16.xpose.msra.mxu0 0
    %2142 = vmatprep.subr.bf16.mxu0 0
    %2143 = vmatpush1.bf16.xpose.msra.mxu0 0
    %2144 = vmatprep.subr.bf16.mxu0 0
    %2145 = vmatpush1.bf16.xpose.msra.mxu0 0
    %2146 = vmatprep.subr.bf16.mxu0 0
    %2147 = vmatpush1.bf16.xpose.msra.mxu0 0
    %2148 = vmatprep.subr.bf16.mxu0 0
    %2149 = vmatpush1.bf16.xpose.msra.mxu0 0
    %2150 = vmatprep.mubr.bf16.mxu0 0
    %2151 = vmatmul.mubr.bf16.gmra.mrb[0].mxu0 %v2113
    %v2152 = vpop.f32.mrb[0].mxu0
    %v2153 = vadd.f32 0.0, %v2152
    %v2154 = vpop.f32.mrb[0].mxu0
    %v2155 = vpop.f32.mrb[0].mxu0
    %v2156 = vadd.f32 0.0, %v2155
    %v2157 = vpop.f32.mrb[0].mxu0
    %2158 = vdwg.mxu0
    %v2159 = vmul.f32 %v2153, 0.35355338
    %v2160 = vmul.f32 %v2156, 0.35355338
    %v2161 = vsel %vm801, %v2159, -inf
    %2162 = vmax.xlane.f32.xlu0 %v2161
    %v2163 = vpop.xlane.xlu0 %2162
    %v2164 = vsel %vm801, %v2160, -inf
    %2165 = vmax.xlane.f32.xlu0 %v2164
    %v2166 = vpop.xlane.xlu0 %2165
    %v2167 = vsub.f32 %v2159, %v2163
    %v2168 = vsub.f32 %v2160, %v2166
    %v2169 = vmul.f32 %v2167, 1.442695
    %v2170 = vpow.pop %v2169
    %v2171 = vmul.f32 %v2168, 1.442695
    %v2172 = vpow.pop %v2171
    %v2173 = vsel %vm801, %v2170, 0.0
    %2174 = vadd.xlane.f32.xlu0 %v2173
    %v2175 = vpop.xlane.xlu0 %2174
    %v2176 = vsel %vm801, %v2172, 0.0
    %2177 = vadd.xlane.f32.xlu0 %v2176
    %v2178 = vpop.xlane.xlu0 %2177
    %v2179 = vrcp.pop %v2175
    %v2180 = vrcp.pop %v2178
    %v2181 = vmul.f32 %v2170, %v2179
    %v2182 = vmul.f32 %v2172, %v2180
    %v2183 = vpack.c.bf16 %v2182, %v2181
    %2184 = vrot.lane.b32.xlu0 %v1737, 40
    %v2185 = vpop.permute.xlu0 %2184
    %v2188 = vsel %vm801, %v2183, 0
    %2190 = vmatprep.subr.bf16.mxu0 0
    %2191 = vmatpush1.bf16.msra.mxu0 %v2185
    %2192 = vmatprep.subr.bf16.mxu0 0
    %2193 = vmatpush1.bf16.msra.mxu0 0
    %2194 = vmatprep.subr.bf16.mxu0 0
    %2195 = vmatpush1.bf16.msra.mxu0 0
    %2196 = vmatprep.subr.bf16.mxu0 0
    %2197 = vmatpush1.bf16.msra.mxu0 0
    %2198 = vmatprep.subr.bf16.mxu0 0
    %2199 = vmatpush1.bf16.msra.mxu0 0
    %2200 = vmatprep.subr.bf16.mxu0 0
    %2201 = vmatpush1.bf16.msra.mxu0 0
    %2202 = vmatprep.subr.bf16.mxu0 0
    %2203 = vmatpush1.bf16.msra.mxu0 0
    %2204 = vmatprep.subr.bf16.mxu0 0
    %2205 = vmatpush1.bf16.msra.mxu0 0
    %2206 = vmatprep.subr.bf16.mxu0 0
    %2207 = vmatpush1.bf16.msra.mxu0 0
    %2208 = vmatprep.subr.bf16.mxu0 0
    %2209 = vmatpush1.bf16.msra.mxu0 0
    %2210 = vmatprep.subr.bf16.mxu0 0
    %2211 = vmatpush1.bf16.msra.mxu0 0
    %2212 = vmatprep.subr.bf16.mxu0 0
    %2213 = vmatpush1.bf16.msra.mxu0 0
    %2214 = vmatprep.subr.bf16.mxu0 0
    %2215 = vmatpush1.bf16.msra.mxu0 0
    %2216 = vmatprep.subr.bf16.mxu0 0
    %2217 = vmatpush1.bf16.msra.mxu0 0
    %2218 = vmatprep.subr.bf16.mxu0 0
    %2219 = vmatpush1.bf16.msra.mxu0 0
    %2220 = vmatprep.subr.bf16.mxu0 0
    %2221 = vmatpush1.bf16.msra.mxu0 0
    %2222 = vmatprep.mubr.bf16.mxu0 0
    %2223 = vmatmul.mubr.bf16.gmra.mrb[0].mxu0 %v2188
    %v2224 = vpop.f32.mrb[0].mxu0
    %v2225 = vadd.f32 0.0, %v2224
    %v2226 = vpop.f32.mrb[0].mxu0
    %v2227 = vpop.f32.mrb[0].mxu0
    %v2228 = vadd.f32 0.0, %v2227
    %v2229 = vpop.f32.mrb[0].mxu0
    %2230 = vdwg.mxu0
    %2233 = vrot.lane.b32.xlu0 %v1979, 8
    %v2234 = vpop.permute.xlu0 %2233
    %2235 = vrot.lane.b32.xlu0 %v1982, 8
    %v2236 = vpop.permute.xlu0 %2235
    %2241 = vrot.lane.b32.xlu0 %v2102, 16
    %v2242 = vpop.permute.xlu0 %2241
    %2243 = vrot.lane.b32.xlu0 %v2105, 16
    %v2244 = vpop.permute.xlu0 %2243
    %2249 = vrot.lane.b32.xlu0 %v2225, 24
    %v2250 = vpop.permute.xlu0 %2249
    %2251 = vrot.lane.b32.xlu0 %v2228, 24
    %v2252 = vpop.permute.xlu0 %2251
    %v2255 = vsel %vm1742, %v1856, %v2234
    %v2256 = vsel %vm1742, %v1859, %v2236
    %v2257 = vsel %vm801, %v2255, %v2242
    %v2258 = vsel %vm801, %v2256, %v2244
    %vm2259 = vcmask 195584
    %v2260 = vsel %vm2259, %v2257, %v2250
    %v2261 = vsel %vm2259, %v2258, %v2252
    %2263 = vrot.lane.b32.xlu0 %v1738, 96
    %v2264 = vpop.permute.xlu0 %2263
    %v2266 = vsel %vm1742, %v1738, 0
    %v2269 = vsel %vm1742, %v2264, 0
    %2271 = vmatprep.subr.bf16.mxu0 0
    %2272 = vmatpush1.bf16.xpose.msra.mxu0 %v2269
    %2273 = vmatprep.subr.bf16.mxu0 0
    %2274 = vmatpush1.bf16.xpose.msra.mxu0 0
    %2275 = vmatprep.subr.bf16.mxu0 0
    %2276 = vmatpush1.bf16.xpose.msra.mxu0 0
    %2277 = vmatprep.subr.bf16.mxu0 0
    %2278 = vmatpush1.bf16.xpose.msra.mxu0 0
    %2279 = vmatprep.subr.bf16.mxu0 0
    %2280 = vmatpush1.bf16.xpose.msra.mxu0 0
    %2281 = vmatprep.subr.bf16.mxu0 0
    %2282 = vmatpush1.bf16.xpose.msra.mxu0 0
    %2283 = vmatprep.subr.bf16.mxu0 0
    %2284 = vmatpush1.bf16.xpose.msra.mxu0 0
    %2285 = vmatprep.subr.bf16.mxu0 0
    %2286 = vmatpush1.bf16.xpose.msra.mxu0 0
    %2287 = vmatprep.subr.bf16.mxu0 0
    %2288 = vmatpush1.bf16.xpose.msra.mxu0 0
    %2289 = vmatprep.subr.bf16.mxu0 0
    %2290 = vmatpush1.bf16.xpose.msra.mxu0 0
    %2291 = vmatprep.subr.bf16.mxu0 0
    %2292 = vmatpush1.bf16.xpose.msra.mxu0 0
    %2293 = vmatprep.subr.bf16.mxu0 0
    %2294 = vmatpush1.bf16.xpose.msra.mxu0 0
    %2295 = vmatprep.subr.bf16.mxu0 0
    %2296 = vmatpush1.bf16.xpose.msra.mxu0 0
    %2297 = vmatprep.subr.bf16.mxu0 0
    %2298 = vmatpush1.bf16.xpose.msra.mxu0 0
    %2299 = vmatprep.subr.bf16.mxu0 0
    %2300 = vmatpush1.bf16.xpose.msra.mxu0 0
    %2301 = vmatprep.subr.bf16.mxu0 0
    %2302 = vmatpush1.bf16.xpose.msra.mxu0 0
    %2303 = vmatprep.mubr.bf16.mxu0 0
    %2304 = vmatmul.mubr.bf16.gmra.mrb[0].mxu0 %v2266
    %v2305 = vpop.f32.mrb[0].mxu0
    %v2306 = vadd.f32 0.0, %v2305
    %v2307 = vpop.f32.mrb[0].mxu0
    %v2308 = vpop.f32.mrb[0].mxu0
    %v2309 = vadd.f32 0.0, %v2308
    %v2310 = vpop.f32.mrb[0].mxu0
    %2311 = vdwg.mxu0
    %v2312 = vmul.f32 %v2306, 0.35355338
    %v2313 = vmul.f32 %v2309, 0.35355338
    %v2314 = vsel %vm801, %v2312, -inf
    %2315 = vmax.xlane.f32.xlu0 %v2314
    %v2316 = vpop.xlane.xlu0 %2315
    %v2317 = vsel %vm801, %v2313, -inf
    %2318 = vmax.xlane.f32.xlu0 %v2317
    %v2319 = vpop.xlane.xlu0 %2318
    %v2320 = vsub.f32 %v2312, %v2316
    %v2321 = vsub.f32 %v2313, %v2319
    %v2322 = vmul.f32 %v2320, 1.442695
    %v2323 = vpow.pop %v2322
    %v2324 = vmul.f32 %v2321, 1.442695
    %v2325 = vpow.pop %v2324
    %v2326 = vsel %vm801, %v2323, 0.0
    %2327 = vadd.xlane.f32.xlu0 %v2326
    %v2328 = vpop.xlane.xlu0 %2327
    %v2329 = vsel %vm801, %v2325, 0.0
    %2330 = vadd.xlane.f32.xlu0 %v2329
    %v2331 = vpop.xlane.xlu0 %2330
    %v2332 = vrcp.pop %v2328
    %v2333 = vrcp.pop %v2331
    %v2334 = vmul.f32 %v2323, %v2332
    %v2335 = vmul.f32 %v2325, %v2333
    %v2336 = vpack.c.bf16 %v2335, %v2334
    %2337 = vrot.lane.b32.xlu0 %v1738, 64
    %v2338 = vpop.permute.xlu0 %2337
    %v2341 = vsel %vm801, %v2336, 0
    %2343 = vmatprep.subr.bf16.mxu0 0
    %2344 = vmatpush1.bf16.msra.mxu0 %v2338
    %2345 = vmatprep.subr.bf16.mxu0 0
    %2346 = vmatpush1.bf16.msra.mxu0 0
    %2347 = vmatprep.subr.bf16.mxu0 0
    %2348 = vmatpush1.bf16.msra.mxu0 0
    %2349 = vmatprep.subr.bf16.mxu0 0
    %2350 = vmatpush1.bf16.msra.mxu0 0
    %2351 = vmatprep.subr.bf16.mxu0 0
    %2352 = vmatpush1.bf16.msra.mxu0 0
    %2353 = vmatprep.subr.bf16.mxu0 0
    %2354 = vmatpush1.bf16.msra.mxu0 0
    %2355 = vmatprep.subr.bf16.mxu0 0
    %2356 = vmatpush1.bf16.msra.mxu0 0
    %2357 = vmatprep.subr.bf16.mxu0 0
    %2358 = vmatpush1.bf16.msra.mxu0 0
    %2359 = vmatprep.subr.bf16.mxu0 0
    %2360 = vmatpush1.bf16.msra.mxu0 0
    %2361 = vmatprep.subr.bf16.mxu0 0
    %2362 = vmatpush1.bf16.msra.mxu0 0
    %2363 = vmatprep.subr.bf16.mxu0 0
    %2364 = vmatpush1.bf16.msra.mxu0 0
    %2365 = vmatprep.subr.bf16.mxu0 0
    %2366 = vmatpush1.bf16.msra.mxu0 0
    %2367 = vmatprep.subr.bf16.mxu0 0
    %2368 = vmatpush1.bf16.msra.mxu0 0
    %2369 = vmatprep.subr.bf16.mxu0 0
    %2370 = vmatpush1.bf16.msra.mxu0 0
    %2371 = vmatprep.subr.bf16.mxu0 0
    %2372 = vmatpush1.bf16.msra.mxu0 0
    %2373 = vmatprep.subr.bf16.mxu0 0
    %2374 = vmatpush1.bf16.msra.mxu0 0
    %2375 = vmatprep.mubr.bf16.mxu0 0
    %2376 = vmatmul.mubr.bf16.gmra.mrb[0].mxu0 %v2341
    %v2377 = vpop.f32.mrb[0].mxu0
    %v2378 = vadd.f32 0.0, %v2377
    %v2379 = vpop.f32.mrb[0].mxu0
    %v2380 = vpop.f32.mrb[0].mxu0
    %v2381 = vadd.f32 0.0, %v2380
    %v2382 = vpop.f32.mrb[0].mxu0
    %2383 = vdwg.mxu0
    %2384 = vrot.lane.b32.xlu0 %v1738, 120
    %v2385 = vpop.permute.xlu0 %2384
    %2386 = vrot.lane.b32.xlu0 %v1738, 88
    %v2387 = vpop.permute.xlu0 %2386
    %v2389 = vsel %vm1742, %v2385, 0
    %v2392 = vsel %vm1742, %v2387, 0
    %2394 = vmatprep.subr.bf16.mxu0 0
    %2395 = vmatpush1.bf16.xpose.msra.mxu0 %v2392
    %2396 = vmatprep.subr.bf16.mxu0 0
    %2397 = vmatpush1.bf16.xpose.msra.mxu0 0
    %2398 = vmatprep.subr.bf16.mxu0 0
    %2399 = vmatpush1.bf16.xpose.msra.mxu0 0
    %2400 = vmatprep.subr.bf16.mxu0 0
    %2401 = vmatpush1.bf16.xpose.msra.mxu0 0
    %2402 = vmatprep.subr.bf16.mxu0 0
    %2403 = vmatpush1.bf16.xpose.msra.mxu0 0
    %2404 = vmatprep.subr.bf16.mxu0 0
    %2405 = vmatpush1.bf16.xpose.msra.mxu0 0
    %2406 = vmatprep.subr.bf16.mxu0 0
    %2407 = vmatpush1.bf16.xpose.msra.mxu0 0
    %2408 = vmatprep.subr.bf16.mxu0 0
    %2409 = vmatpush1.bf16.xpose.msra.mxu0 0
    %2410 = vmatprep.subr.bf16.mxu0 0
    %2411 = vmatpush1.bf16.xpose.msra.mxu0 0
    %2412 = vmatprep.subr.bf16.mxu0 0
    %2413 = vmatpush1.bf16.xpose.msra.mxu0 0
    %2414 = vmatprep.subr.bf16.mxu0 0
    %2415 = vmatpush1.bf16.xpose.msra.mxu0 0
    %2416 = vmatprep.subr.bf16.mxu0 0
    %2417 = vmatpush1.bf16.xpose.msra.mxu0 0
    %2418 = vmatprep.subr.bf16.mxu0 0
    %2419 = vmatpush1.bf16.xpose.msra.mxu0 0
    %2420 = vmatprep.subr.bf16.mxu0 0
    %2421 = vmatpush1.bf16.xpose.msra.mxu0 0
    %2422 = vmatprep.subr.bf16.mxu0 0
    %2423 = vmatpush1.bf16.xpose.msra.mxu0 0
    %2424 = vmatprep.subr.bf16.mxu0 0
    %2425 = vmatpush1.bf16.xpose.msra.mxu0 0
    %2426 = vmatprep.mubr.bf16.mxu0 0
    %2427 = vmatmul.mubr.bf16.gmra.mrb[0].mxu0 %v2389
    %v2428 = vpop.f32.mrb[0].mxu0
    %v2429 = vadd.f32 0.0, %v2428
    %v2430 = vpop.f32.mrb[0].mxu0
    %v2431 = vpop.f32.mrb[0].mxu0
    %v2432 = vadd.f32 0.0, %v2431
    %v2433 = vpop.f32.mrb[0].mxu0
    %2434 = vdwg.mxu0
    %v2435 = vmul.f32 %v2429, 0.35355338
    %v2436 = vmul.f32 %v2432, 0.35355338
    %v2437 = vsel %vm801, %v2435, -inf
    %2438 = vmax.xlane.f32.xlu0 %v2437
    %v2439 = vpop.xlane.xlu0 %2438
    %v2440 = vsel %vm801, %v2436, -inf
    %2441 = vmax.xlane.f32.xlu0 %v2440
    %v2442 = vpop.xlane.xlu0 %2441
    %v2443 = vsub.f32 %v2435, %v2439
    %v2444 = vsub.f32 %v2436, %v2442
    %v2445 = vmul.f32 %v2443, 1.442695
    %v2446 = vpow.pop %v2445
    %v2447 = vmul.f32 %v2444, 1.442695
    %v2448 = vpow.pop %v2447
    %v2449 = vsel %vm801, %v2446, 0.0
    %2450 = vadd.xlane.f32.xlu0 %v2449
    %v2451 = vpop.xlane.xlu0 %2450
    %v2452 = vsel %vm801, %v2448, 0.0
    %2453 = vadd.xlane.f32.xlu0 %v2452
    %v2454 = vpop.xlane.xlu0 %2453
    %v2455 = vrcp.pop %v2451
    %v2456 = vrcp.pop %v2454
    %v2457 = vmul.f32 %v2446, %v2455
    %v2458 = vmul.f32 %v2448, %v2456
    %v2459 = vpack.c.bf16 %v2458, %v2457
    %2460 = vrot.lane.b32.xlu0 %v1738, 56
    %v2461 = vpop.permute.xlu0 %2460
    %v2464 = vsel %vm801, %v2459, 0
    %2466 = vmatprep.subr.bf16.mxu0 0
    %2467 = vmatpush1.bf16.msra.mxu0 %v2461
    %2468 = vmatprep.subr.bf16.mxu0 0
    %2469 = vmatpush1.bf16.msra.mxu0 0
    %2470 = vmatprep.subr.bf16.mxu0 0
    %2471 = vmatpush1.bf16.msra.mxu0 0
    %2472 = vmatprep.subr.bf16.mxu0 0
    %2473 = vmatpush1.bf16.msra.mxu0 0
    %2474 = vmatprep.subr.bf16.mxu0 0
    %2475 = vmatpush1.bf16.msra.mxu0 0
    %2476 = vmatprep.subr.bf16.mxu0 0
    %2477 = vmatpush1.bf16.msra.mxu0 0
    %2478 = vmatprep.subr.bf16.mxu0 0
    %2479 = vmatpush1.bf16.msra.mxu0 0
    %2480 = vmatprep.subr.bf16.mxu0 0
    %2481 = vmatpush1.bf16.msra.mxu0 0
    %2482 = vmatprep.subr.bf16.mxu0 0
    %2483 = vmatpush1.bf16.msra.mxu0 0
    %2484 = vmatprep.subr.bf16.mxu0 0
    %2485 = vmatpush1.bf16.msra.mxu0 0
    %2486 = vmatprep.subr.bf16.mxu0 0
    %2487 = vmatpush1.bf16.msra.mxu0 0
    %2488 = vmatprep.subr.bf16.mxu0 0
    %2489 = vmatpush1.bf16.msra.mxu0 0
    %2490 = vmatprep.subr.bf16.mxu0 0
    %2491 = vmatpush1.bf16.msra.mxu0 0
    %2492 = vmatprep.subr.bf16.mxu0 0
    %2493 = vmatpush1.bf16.msra.mxu0 0
    %2494 = vmatprep.subr.bf16.mxu0 0
    %2495 = vmatpush1.bf16.msra.mxu0 0
    %2496 = vmatprep.subr.bf16.mxu0 0
    %2497 = vmatpush1.bf16.msra.mxu0 0
    %2498 = vmatprep.mubr.bf16.mxu0 0
    %2499 = vmatmul.mubr.bf16.gmra.mrb[0].mxu0 %v2464
    %v2500 = vpop.f32.mrb[0].mxu0
    %v2501 = vadd.f32 0.0, %v2500
    %v2502 = vpop.f32.mrb[0].mxu0
    %v2503 = vpop.f32.mrb[0].mxu0
    %v2504 = vadd.f32 0.0, %v2503
    %v2505 = vpop.f32.mrb[0].mxu0
    %2506 = vdwg.mxu0
    %2507 = vrot.lane.b32.xlu0 %v1738, 112
    %v2508 = vpop.permute.xlu0 %2507
    %2509 = vrot.lane.b32.xlu0 %v1738, 80
    %v2510 = vpop.permute.xlu0 %2509
    %v2512 = vsel %vm1742, %v2508, 0
    %v2515 = vsel %vm1742, %v2510, 0
    %2517 = vmatprep.subr.bf16.mxu0 0
    %2518 = vmatpush1.bf16.xpose.msra.mxu0 %v2515
    %2519 = vmatprep.subr.bf16.mxu0 0
    %2520 = vmatpush1.bf16.xpose.msra.mxu0 0
    %2521 = vmatprep.subr.bf16.mxu0 0
    %2522 = vmatpush1.bf16.xpose.msra.mxu0 0
    %2523 = vmatprep.subr.bf16.mxu0 0
    %2524 = vmatpush1.bf16.xpose.msra.mxu0 0
    %2525 = vmatprep.subr.bf16.mxu0 0
    %2526 = vmatpush1.bf16.xpose.msra.mxu0 0
    %2527 = vmatprep.subr.bf16.mxu0 0
    %2528 = vmatpush1.bf16.xpose.msra.mxu0 0
    %2529 = vmatprep.subr.bf16.mxu0 0
    %2530 = vmatpush1.bf16.xpose.msra.mxu0 0
    %2531 = vmatprep.subr.bf16.mxu0 0
    %2532 = vmatpush1.bf16.xpose.msra.mxu0 0
    %2533 = vmatprep.subr.bf16.mxu0 0
    %2534 = vmatpush1.bf16.xpose.msra.mxu0 0
    %2535 = vmatprep.subr.bf16.mxu0 0
    %2536 = vmatpush1.bf16.xpose.msra.mxu0 0
    %2537 = vmatprep.subr.bf16.mxu0 0
    %2538 = vmatpush1.bf16.xpose.msra.mxu0 0
    %2539 = vmatprep.subr.bf16.mxu0 0
    %2540 = vmatpush1.bf16.xpose.msra.mxu0 0
    %2541 = vmatprep.subr.bf16.mxu0 0
    %2542 = vmatpush1.bf16.xpose.msra.mxu0 0
    %2543 = vmatprep.subr.bf16.mxu0 0
    %2544 = vmatpush1.bf16.xpose.msra.mxu0 0
    %2545 = vmatprep.subr.bf16.mxu0 0
    %2546 = vmatpush1.bf16.xpose.msra.mxu0 0
    %2547 = vmatprep.subr.bf16.mxu0 0
    %2548 = vmatpush1.bf16.xpose.msra.mxu0 0
    %2549 = vmatprep.mubr.bf16.mxu0 0
    %2550 = vmatmul.mubr.bf16.gmra.mrb[0].mxu0 %v2512
    %v2551 = vpop.f32.mrb[0].mxu0
    %v2552 = vadd.f32 0.0, %v2551
    %v2553 = vpop.f32.mrb[0].mxu0
    %v2554 = vpop.f32.mrb[0].mxu0
    %v2555 = vadd.f32 0.0, %v2554
    %v2556 = vpop.f32.mrb[0].mxu0
    %2557 = vdwg.mxu0
    %v2558 = vmul.f32 %v2552, 0.35355338
    %v2559 = vmul.f32 %v2555, 0.35355338
    %v2560 = vsel %vm801, %v2558, -inf
    %2561 = vmax.xlane.f32.xlu0 %v2560
    %v2562 = vpop.xlane.xlu0 %2561
    %v2563 = vsel %vm801, %v2559, -inf
    %2564 = vmax.xlane.f32.xlu0 %v2563
    %v2565 = vpop.xlane.xlu0 %2564
    %v2566 = vsub.f32 %v2558, %v2562
    %v2567 = vsub.f32 %v2559, %v2565
    %v2568 = vmul.f32 %v2566, 1.442695
    %v2569 = vpow.pop %v2568
    %v2570 = vmul.f32 %v2567, 1.442695
    %v2571 = vpow.pop %v2570
    %v2572 = vsel %vm801, %v2569, 0.0
    %2573 = vadd.xlane.f32.xlu0 %v2572
    %v2574 = vpop.xlane.xlu0 %2573
    %v2575 = vsel %vm801, %v2571, 0.0
    %2576 = vadd.xlane.f32.xlu0 %v2575
    %v2577 = vpop.xlane.xlu0 %2576
    %v2578 = vrcp.pop %v2574
    %v2579 = vrcp.pop %v2577
    %v2580 = vmul.f32 %v2569, %v2578
    %v2581 = vmul.f32 %v2571, %v2579
    %v2582 = vpack.c.bf16 %v2581, %v2580
    %2583 = vrot.lane.b32.xlu0 %v1738, 48
    %v2584 = vpop.permute.xlu0 %2583
    %v2587 = vsel %vm801, %v2582, 0
    %2589 = vmatprep.subr.bf16.mxu0 0
    %2590 = vmatpush1.bf16.msra.mxu0 %v2584
    %2591 = vmatprep.subr.bf16.mxu0 0
    %2592 = vmatpush1.bf16.msra.mxu0 0
    %2593 = vmatprep.subr.bf16.mxu0 0
    %2594 = vmatpush1.bf16.msra.mxu0 0
    %2595 = vmatprep.subr.bf16.mxu0 0
    %2596 = vmatpush1.bf16.msra.mxu0 0
    %2597 = vmatprep.subr.bf16.mxu0 0
    %2598 = vmatpush1.bf16.msra.mxu0 0
    %2599 = vmatprep.subr.bf16.mxu0 0
    %2600 = vmatpush1.bf16.msra.mxu0 0
    %2601 = vmatprep.subr.bf16.mxu0 0
    %2602 = vmatpush1.bf16.msra.mxu0 0
    %2603 = vmatprep.subr.bf16.mxu0 0
    %2604 = vmatpush1.bf16.msra.mxu0 0
    %2605 = vmatprep.subr.bf16.mxu0 0
    %2606 = vmatpush1.bf16.msra.mxu0 0
    %2607 = vmatprep.subr.bf16.mxu0 0
    %2608 = vmatpush1.bf16.msra.mxu0 0
    %2609 = vmatprep.subr.bf16.mxu0 0
    %2610 = vmatpush1.bf16.msra.mxu0 0
    %2611 = vmatprep.subr.bf16.mxu0 0
    %2612 = vmatpush1.bf16.msra.mxu0 0
    %2613 = vmatprep.subr.bf16.mxu0 0
    %2614 = vmatpush1.bf16.msra.mxu0 0
    %2615 = vmatprep.subr.bf16.mxu0 0
    %2616 = vmatpush1.bf16.msra.mxu0 0
    %2617 = vmatprep.subr.bf16.mxu0 0
    %2618 = vmatpush1.bf16.msra.mxu0 0
    %2619 = vmatprep.subr.bf16.mxu0 0
    %2620 = vmatpush1.bf16.msra.mxu0 0
    %2621 = vmatprep.mubr.bf16.mxu0 0
    %2622 = vmatmul.mubr.bf16.gmra.mrb[0].mxu0 %v2587
    %v2623 = vpop.f32.mrb[0].mxu0
    %v2624 = vadd.f32 0.0, %v2623
    %v2625 = vpop.f32.mrb[0].mxu0
    %v2626 = vpop.f32.mrb[0].mxu0
    %v2627 = vadd.f32 0.0, %v2626
    %v2628 = vpop.f32.mrb[0].mxu0
    %2629 = vdwg.mxu0
    %2630 = vrot.lane.b32.xlu0 %v1738, 104
    %v2631 = vpop.permute.xlu0 %2630
    %2632 = vrot.lane.b32.xlu0 %v1738, 72
    %v2633 = vpop.permute.xlu0 %2632
    %v2635 = vsel %vm1742, %v2631, 0
    %v2638 = vsel %vm1742, %v2633, 0
    %2640 = vmatprep.subr.bf16.mxu0 0
    %2641 = vmatpush1.bf16.xpose.msra.mxu0 %v2638
    %2642 = vmatprep.subr.bf16.mxu0 0
    %2643 = vmatpush1.bf16.xpose.msra.mxu0 0
    %2644 = vmatprep.subr.bf16.mxu0 0
    %2645 = vmatpush1.bf16.xpose.msra.mxu0 0
    %2646 = vmatprep.subr.bf16.mxu0 0
    %2647 = vmatpush1.bf16.xpose.msra.mxu0 0
    %2648 = vmatprep.subr.bf16.mxu0 0
    %2649 = vmatpush1.bf16.xpose.msra.mxu0 0
    %2650 = vmatprep.subr.bf16.mxu0 0
    %2651 = vmatpush1.bf16.xpose.msra.mxu0 0
    %2652 = vmatprep.subr.bf16.mxu0 0
    %2653 = vmatpush1.bf16.xpose.msra.mxu0 0
    %2654 = vmatprep.subr.bf16.mxu0 0
    %2655 = vmatpush1.bf16.xpose.msra.mxu0 0
    %2656 = vmatprep.subr.bf16.mxu0 0
    %2657 = vmatpush1.bf16.xpose.msra.mxu0 0
    %2658 = vmatprep.subr.bf16.mxu0 0
    %2659 = vmatpush1.bf16.xpose.msra.mxu0 0
    %2660 = vmatprep.subr.bf16.mxu0 0
    %2661 = vmatpush1.bf16.xpose.msra.mxu0 0
    %2662 = vmatprep.subr.bf16.mxu0 0
    %2663 = vmatpush1.bf16.xpose.msra.mxu0 0
    %2664 = vmatprep.subr.bf16.mxu0 0
    %2665 = vmatpush1.bf16.xpose.msra.mxu0 0
    %2666 = vmatprep.subr.bf16.mxu0 0
    %2667 = vmatpush1.bf16.xpose.msra.mxu0 0
    %2668 = vmatprep.subr.bf16.mxu0 0
    %2669 = vmatpush1.bf16.xpose.msra.mxu0 0
    %2670 = vmatprep.subr.bf16.mxu0 0
    %2671 = vmatpush1.bf16.xpose.msra.mxu0 0
    %2672 = vmatprep.mubr.bf16.mxu0 0
    %2673 = vmatmul.mubr.bf16.gmra.mrb[0].mxu0 %v2635
    %v2674 = vpop.f32.mrb[0].mxu0
    %v2675 = vadd.f32 0.0, %v2674
    %v2676 = vpop.f32.mrb[0].mxu0
    %v2677 = vpop.f32.mrb[0].mxu0
    %v2678 = vadd.f32 0.0, %v2677
    %v2679 = vpop.f32.mrb[0].mxu0
    %2680 = vdwg.mxu0
    %v2681 = vmul.f32 %v2675, 0.35355338
    %v2682 = vmul.f32 %v2678, 0.35355338
    %v2683 = vsel %vm801, %v2681, -inf
    %2684 = vmax.xlane.f32.xlu0 %v2683
    %v2685 = vpop.xlane.xlu0 %2684
    %v2686 = vsel %vm801, %v2682, -inf
    %2687 = vmax.xlane.f32.xlu0 %v2686
    %v2688 = vpop.xlane.xlu0 %2687
    %v2689 = vsub.f32 %v2681, %v2685
    %v2690 = vsub.f32 %v2682, %v2688
    %v2691 = vmul.f32 %v2689, 1.442695
    %v2692 = vpow.pop %v2691
    %v2693 = vmul.f32 %v2690, 1.442695
    %v2694 = vpow.pop %v2693
    %v2695 = vsel %vm801, %v2692, 0.0
    %2696 = vadd.xlane.f32.xlu0 %v2695
    %v2697 = vpop.xlane.xlu0 %2696
    %v2698 = vsel %vm801, %v2694, 0.0
    %2699 = vadd.xlane.f32.xlu0 %v2698
    %v2700 = vpop.xlane.xlu0 %2699
    %v2701 = vrcp.pop %v2697
    %v2702 = vrcp.pop %v2700
    %v2703 = vmul.f32 %v2692, %v2701
    %v2704 = vmul.f32 %v2694, %v2702
    %v2705 = vpack.c.bf16 %v2704, %v2703
    %2706 = vrot.lane.b32.xlu0 %v1738, 40
    %v2707 = vpop.permute.xlu0 %2706
    %v2710 = vsel %vm801, %v2705, 0
    %2712 = vmatprep.subr.bf16.mxu0 0
    %2713 = vmatpush1.bf16.msra.mxu0 %v2707
    %2714 = vmatprep.subr.bf16.mxu0 0
    %2715 = vmatpush1.bf16.msra.mxu0 0
    %2716 = vmatprep.subr.bf16.mxu0 0
    %2717 = vmatpush1.bf16.msra.mxu0 0
    %2718 = vmatprep.subr.bf16.mxu0 0
    %2719 = vmatpush1.bf16.msra.mxu0 0
    %2720 = vmatprep.subr.bf16.mxu0 0
    %2721 = vmatpush1.bf16.msra.mxu0 0
    %2722 = vmatprep.subr.bf16.mxu0 0
    %2723 = vmatpush1.bf16.msra.mxu0 0
    %2724 = vmatprep.subr.bf16.mxu0 0
    %2725 = vmatpush1.bf16.msra.mxu0 0
    %2726 = vmatprep.subr.bf16.mxu0 0
    %2727 = vmatpush1.bf16.msra.mxu0 0
    %2728 = vmatprep.subr.bf16.mxu0 0
    %2729 = vmatpush1.bf16.msra.mxu0 0
    %2730 = vmatprep.subr.bf16.mxu0 0
    %2731 = vmatpush1.bf16.msra.mxu0 0
    %2732 = vmatprep.subr.bf16.mxu0 0
    %2733 = vmatpush1.bf16.msra.mxu0 0
    %2734 = vmatprep.subr.bf16.mxu0 0
    %2735 = vmatpush1.bf16.msra.mxu0 0
    %2736 = vmatprep.subr.bf16.mxu0 0
    %2737 = vmatpush1.bf16.msra.mxu0 0
    %2738 = vmatprep.subr.bf16.mxu0 0
    %2739 = vmatpush1.bf16.msra.mxu0 0
    %2740 = vmatprep.subr.bf16.mxu0 0
    %2741 = vmatpush1.bf16.msra.mxu0 0
    %2742 = vmatprep.subr.bf16.mxu0 0
    %2743 = vmatpush1.bf16.msra.mxu0 0
    %2744 = vmatprep.mubr.bf16.mxu0 0
    %2745 = vmatmul.mubr.bf16.gmra.mrb[0].mxu0 %v2710
    %v2746 = vpop.f32.mrb[0].mxu0
    %v2747 = vadd.f32 0.0, %v2746
    %v2748 = vpop.f32.mrb[0].mxu0
    %v2749 = vpop.f32.mrb[0].mxu0
    %v2750 = vadd.f32 0.0, %v2749
    %v2751 = vpop.f32.mrb[0].mxu0
    %2752 = vdwg.mxu0
    %2755 = vrot.lane.b32.xlu0 %v2501, 8
    %v2756 = vpop.permute.xlu0 %2755
    %2757 = vrot.lane.b32.xlu0 %v2504, 8
    %v2758 = vpop.permute.xlu0 %2757
    %2763 = vrot.lane.b32.xlu0 %v2624, 16
    %v2764 = vpop.permute.xlu0 %2763
    %2765 = vrot.lane.b32.xlu0 %v2627, 16
    %v2766 = vpop.permute.xlu0 %2765
    %2771 = vrot.lane.b32.xlu0 %v2747, 24
    %v2772 = vpop.permute.xlu0 %2771
    %2773 = vrot.lane.b32.xlu0 %v2750, 24
    %v2774 = vpop.permute.xlu0 %2773
    %v2777 = vsel %vm1742, %v2378, %v2756
    %v2778 = vsel %vm1742, %v2381, %v2758
    %v2779 = vsel %vm801, %v2777, %v2764
    %v2780 = vsel %vm801, %v2778, %v2766
    %v2781 = vsel %vm2259, %v2779, %v2772
    %v2782 = vsel %vm2259, %v2780, %v2774
    %v2783 = vpack.c.bf16 %v2261, %v2260
    %v2784 = vpack.c.bf16 %v2782, %v2781
    %v2785 = vld [vmem:[#allocation7 + $0x80] sm:$0xf]
    %v2786 = vld [vmem:[#allocation7 + $0x88] sm:$0xf]
    %v2787 = vld [vmem:[#allocation7 + $0x90] sm:$0xf]
    %v2788 = vld [vmem:[#allocation7 + $0x98] sm:$0xf]
    %v2789 = vld [vmem:[#allocation7 + $0xa0] sm:$0x1]
    %v2790 = vld [vmem:[#allocation6 + $0x10] ss:$0 sm:$0xff]
    %v2796 = vunpack.c.l.b16 %v2785
    %v2797 = vunpack.c.l.b16 %v2786
    %v2798 = vunpack.c.l.b16 %v2787
    %v2799 = vunpack.c.l.b16 %v2788
    %v2800 = vunpack.c.l.b16 %v2789
    %v2801 = vpack.c.b16 %v2797, %v2796
    %v2802 = vpack.c.b16 %v2799, %v2798
    %v2803 = vpack.c.b16 %v2800, %v2800
    %v2805 = vshrl.u32 %v2801, 16
    %v2807 = vshll.u32 %v2801, 16
    %v2809 = vrot.slane %v2807, 1
    %v2810 = vor.u32 %v2805, %v2809
    %v2812 = vshll.u32 %v2802, 16
    %v2814 = vrot.slane %v2812, 1
    %v2815 = vsel %vm784, %v2810, %v2814
    %v2816 = vshrl.u32 %v2802, 16
    %v2818 = vor.u32 %v2816, %v2814
    %v2820 = vshll.u32 %v2803, 16
    %v2822 = vrot.slane %v2820, 1
    %v2823 = vsel %vm784, %v2818, %v2822
    %v2827 = vsel %vm1577, %v2783, 0
    %v2830 = vsel %vm1577, %v2784, 0
    %2832 = vmatprep.subr.bf16.mxu0 0
    %2833 = vmatpush1.bf16.msra.mxu0 %v2815
    %2834 = vmatprep.subr.bf16.mxu0 0
    %2835 = vmatpush1.bf16.msra.mxu0 %v2823
    %2836 = vmatprep.subr.bf16.mxu0 0
    %2837 = vmatpush1.bf16.msra.mxu0 0
    %2838 = vmatprep.subr.bf16.mxu0 0
    %2839 = vmatpush1.bf16.msra.mxu0 0
    %2840 = vmatprep.subr.bf16.mxu0 0
    %2841 = vmatpush1.bf16.msra.mxu0 0
    %2842 = vmatprep.subr.bf16.mxu0 0
    %2843 = vmatpush1.bf16.msra.mxu0 0
    %2844 = vmatprep.subr.bf16.mxu0 0
    %2845 = vmatpush1.bf16.msra.mxu0 0
    %2846 = vmatprep.subr.bf16.mxu0 0
    %2847 = vmatpush1.bf16.msra.mxu0 0
    %2848 = vmatprep.subr.bf16.mxu0 0
    %2849 = vmatpush1.bf16.msra.mxu0 0
    %2850 = vmatprep.subr.bf16.mxu0 0
    %2851 = vmatpush1.bf16.msra.mxu0 0
    %2852 = vmatprep.subr.bf16.mxu0 0
    %2853 = vmatpush1.bf16.msra.mxu0 0
    %2854 = vmatprep.subr.bf16.mxu0 0
    %2855 = vmatpush1.bf16.msra.mxu0 0
    %2856 = vmatprep.subr.bf16.mxu0 0
    %2857 = vmatpush1.bf16.msra.mxu0 0
    %2858 = vmatprep.subr.bf16.mxu0 0
    %2859 = vmatpush1.bf16.msra.mxu0 0
    %2860 = vmatprep.subr.bf16.mxu0 0
    %2861 = vmatpush1.bf16.msra.mxu0 0
    %2862 = vmatprep.subr.bf16.mxu0 0
    %2863 = vmatpush1.bf16.msra.mxu0 0
    %2864 = vmatprep.mubr.bf16.mxu0 0
    %2865 = vmatmul.mubr.bf16.gmra.mrb[0].mxu0 %v2827
    %v2866 = vpop.f32.mrb[0].mxu0
    %v2867 = vadd.f32 %v2790, %v2866
    %v2868 = vpop.f32.mrb[0].mxu0
    %v2869 = vpop.f32.mrb[0].mxu0
    %v2870 = vadd.f32 %v2790, %v2869
    %v2871 = vpop.f32.mrb[0].mxu0
    %2872 = vmatprep.mubr.bf16.mxu0 0
    %2873 = vmatmul.mubr.bf16.gmra.mrb[0].mxu0 %v2830
    %v2874 = vpop.f32.mrb[0].mxu0
    %v2875 = vadd.f32 %v2790, %v2874
    %v2876 = vpop.f32.mrb[0].mxu0
    %v2877 = vpop.f32.mrb[0].mxu0
    %v2878 = vadd.f32 %v2790, %v2877
    %v2879 = vpop.f32.mrb[0].mxu0
    %2880 = vdwg.mxu0
    %v2881 = vadd.f32 %v1635, %v2867
    %v2882 = vadd.f32 %v1636, %v2870
    %v2883 = vadd.f32 %v1637, %v2875
    %v2884 = vadd.f32 %v1638, %v2878
    %v2885 = vld [vmem:[#allocation6 + $0x11] ss:$0 sm:$0xff]
    %v2886 = vld [vmem:[#allocation6 + $0x12] ss:$0 sm:$0xff]
    %v2887 = vsel %vm1577, %v2881, 0.0
    %2888 = vadd.xlane.f32.xlu0 %v2887
    %v2889 = vpop.xlane.xlu0 %2888
    %v2890 = vsel %vm1577, %v2882, 0.0
    %2891 = vadd.xlane.f32.xlu0 %v2890
    %v2892 = vpop.xlane.xlu0 %2891
    %v2893 = vsel %vm1577, %v2883, 0.0
    %2894 = vadd.xlane.f32.xlu0 %v2893
    %v2895 = vpop.xlane.xlu0 %2894
    %v2896 = vsel %vm1577, %v2884, 0.0
    %2897 = vadd.xlane.f32.xlu0 %v2896
    %v2898 = vpop.xlane.xlu0 %2897
    %v2899 = vmul.f32 %v2889, %v1590
    %v2900 = vmul.f32 %v2892, %v1590
    %v2901 = vmul.f32 %v2895, %v1590
    %v2902 = vmul.f32 %v2898, %v1590
    %v2903 = vsub.f32 %v2881, %v2899
    %v2904 = vsub.f32 %v2882, %v2900
    %v2905 = vsub.f32 %v2883, %v2901
    %v2906 = vsub.f32 %v2884, %v2902
    %v2907 = vmul.f32 %v2903, %v2903
    %v2908 = vmul.f32 %v2904, %v2904
    %v2909 = vmul.f32 %v2905, %v2905
    %v2910 = vmul.f32 %v2906, %v2906
    %v2911 = vsel %vm1577, %v2907, 0.0
    %2912 = vadd.xlane.f32.xlu0 %v2911
    %v2913 = vpop.xlane.xlu0 %2912
    %v2914 = vsel %vm1577, %v2908, 0.0
    %2915 = vadd.xlane.f32.xlu0 %v2914
    %v2916 = vpop.xlane.xlu0 %2915
    %v2917 = vsel %vm1577, %v2909, 0.0
    %2918 = vadd.xlane.f32.xlu0 %v2917
    %v2919 = vpop.xlane.xlu0 %2918
    %v2920 = vsel %vm1577, %v2910, 0.0
    %2921 = vadd.xlane.f32.xlu0 %v2920
    %v2922 = vpop.xlane.xlu0 %2921
    %v2923 = vmul.f32 %v2913, %v1590
    %v2924 = vmul.f32 %v2916, %v1590
    %v2925 = vmul.f32 %v2919, %v1590
    %v2926 = vmul.f32 %v2922, %v1590
    %v2927 = vadd.f32 %v2923, 1e-05
    %v2928 = vadd.f32 %v2924, 1e-05
    %v2929 = vadd.f32 %v2925, 1e-05
    %v2930 = vadd.f32 %v2926, 1e-05
    %v2931 = vrsqrt.pop %v2927
    %v2932 = vrsqrt.pop %v2928
    %v2933 = vrsqrt.pop %v2929
    %v2934 = vrsqrt.pop %v2930
    %v2935 = vmul.f32 %v2903, %v2931
    %v2936 = vmul.f32 %v2904, %v2932
    %v2937 = vmul.f32 %v2905, %v2933
    %v2938 = vmul.f32 %v2906, %v2934
    %v2939 = vmul.f32 %v2935, %v2885
    %v2940 = vmul.f32 %v2936, %v2885
    %v2941 = vmul.f32 %v2937, %v2885
    %v2942 = vmul.f32 %v2938, %v2885
    %v2943 = vadd.f32 %v2939, %v2886
    %v2944 = vadd.f32 %v2940, %v2886
    %v2945 = vadd.f32 %v2941, %v2886
    %v2946 = vadd.f32 %v2942, %v2886
    %v2947 = vpack.c.bf16 %v2944, %v2943
    %v2948 = vpack.c.bf16 %v2946, %v2945
    %v2949 = vld [vmem:[#allocation7 + $0xa0] sm:$0xf]
    %v2950 = vld [vmem:[#allocation7 + $0xa8] sm:$0xf]
    %v2951 = vld [vmem:[#allocation7 + $0xb0] sm:$0xf]
    %v2952 = vld [vmem:[#allocation7 + $0xb8] sm:$0xf]
    %v2953 = vld [vmem:[#allocation7 + $0xc0] sm:$0x1]
    %v2954 = vld [vmem:[#allocation6 + $0x13] ss:$0 sm:$0xff]
    %v2960 = vunpack.c.l.b16 %v2949
    %v2961 = vunpack.c.l.b16 %v2950
    %v2962 = vunpack.c.l.b16 %v2951
    %v2963 = vunpack.c.l.b16 %v2952
    %v2964 = vunpack.c.l.b16 %v2953
    %v2965 = vpack.c.b16 %v2961, %v2960
    %v2966 = vpack.c.b16 %v2963, %v2962
    %v2967 = vpack.c.b16 %v2964, %v2964
    %v2969 = vshrl.u32 %v2965, 16
    %v2971 = vshll.u32 %v2965, 16
    %v2973 = vrot.slane %v2971, 1
    %v2974 = vor.u32 %v2969, %v2973
    %v2976 = vshll.u32 %v2966, 16
    %v2978 = vrot.slane %v2976, 1
    %v2979 = vsel %vm784, %v2974, %v2978
    %v2980 = vshrl.u32 %v2966, 16
    %v2982 = vor.u32 %v2980, %v2978
    %v2984 = vshll.u32 %v2967, 16
    %v2986 = vrot.slane %v2984, 1
    %v2987 = vsel %vm784, %v2982, %v2986
    %v2991 = vsel %vm1577, %v2947, 0
    %v2994 = vsel %vm1577, %v2948, 0
    %2996 = vmatprep.subr.bf16.mxu0 0
    %2997 = vmatpush1.bf16.msra.mxu0 %v2979
    %2998 = vmatprep.subr.bf16.mxu0 0
    %2999 = vmatpush1.bf16.msra.mxu0 %v2987
    %3000 = vmatprep.subr.bf16.mxu0 0
    %3001 = vmatpush1.bf16.msra.mxu0 0
    %3002 = vmatprep.subr.bf16.mxu0 0
    %3003 = vmatpush1.bf16.msra.mxu0 0
    %3004 = vmatprep.subr.bf16.mxu0 0
    %3005 = vmatpush1.bf16.msra.mxu0 0
    %3006 = vmatprep.subr.bf16.mxu0 0
    %3007 = vmatpush1.bf16.msra.mxu0 0
    %3008 = vmatprep.subr.bf16.mxu0 0
    %3009 = vmatpush1.bf16.msra.mxu0 0
    %3010 = vmatprep.subr.bf16.mxu0 0
    %3011 = vmatpush1.bf16.msra.mxu0 0
    %3012 = vmatprep.subr.bf16.mxu0 0
    %3013 = vmatpush1.bf16.msra.mxu0 0
    %3014 = vmatprep.subr.bf16.mxu0 0
    %3015 = vmatpush1.bf16.msra.mxu0 0
    %3016 = vmatprep.subr.bf16.mxu0 0
    %3017 = vmatpush1.bf16.msra.mxu0 0
    %3018 = vmatprep.subr.bf16.mxu0 0
    %3019 = vmatpush1.bf16.msra.mxu0 0
    %3020 = vmatprep.subr.bf16.mxu0 0
    %3021 = vmatpush1.bf16.msra.mxu0 0
    %3022 = vmatprep.subr.bf16.mxu0 0
    %3023 = vmatpush1.bf16.msra.mxu0 0
    %3024 = vmatprep.subr.bf16.mxu0 0
    %3025 = vmatpush1.bf16.msra.mxu0 0
    %3026 = vmatprep.subr.bf16.mxu0 0
    %3027 = vmatpush1.bf16.msra.mxu0 0
    %3028 = vmatprep.mubr.bf16.mxu0 0
    %3029 = vmatmul.mubr.bf16.gmra.mrb[0].mxu0 %v2991
    %v3030 = vpop.f32.mrb[0].mxu0
    %v3031 = vadd.f32 %v2954, %v3030
    %v3032 = vpop.f32.mrb[0].mxu0
    %v3033 = vpop.f32.mrb[0].mxu0
    %v3034 = vadd.f32 %v2954, %v3033
    %v3035 = vpop.f32.mrb[0].mxu0
    %3036 = vmatprep.mubr.bf16.mxu0 0
    %3037 = vmatmul.mubr.bf16.gmra.mrb[0].mxu0 %v2994
    %v3038 = vpop.f32.mrb[0].mxu0
    %v3039 = vadd.f32 %v2954, %v3038
    %v3040 = vpop.f32.mrb[0].mxu0
    %v3041 = vpop.f32.mrb[0].mxu0
    %v3042 = vadd.f32 %v2954, %v3041
    %v3043 = vpop.f32.mrb[0].mxu0
    %3044 = vdwg.mxu0
    %v3045 = vmul.f32 %v3031, %v3031
    %v3046 = vmul.f32 %v3034, %v3034
    %v3047 = vmul.f32 %v3039, %v3039
    %v3048 = vmul.f32 %v3042, %v3042
    %v3049 = vmul.f32 %v3031, %v3045
    %v3050 = vmul.f32 %v3034, %v3046
    %v3051 = vmul.f32 %v3039, %v3047
    %v3052 = vmul.f32 %v3042, %v3048
    %v3053 = vmul.f32 %v3049, 0.044715
    %v3054 = vmul.f32 %v3050, 0.044715
    %v3055 = vmul.f32 %v3051, 0.044715
    %v3056 = vmul.f32 %v3052, 0.044715
    %v3057 = vadd.f32 %v3031, %v3053
    %v3058 = vadd.f32 %v3034, %v3054
    %v3059 = vadd.f32 %v3039, %v3055
    %v3060 = vadd.f32 %v3042, %v3056
    %v3061 = vmul.f32 %v3057, 0.7978846
    %v3062 = vmul.f32 %v3058, 0.7978846
    %v3063 = vmul.f32 %v3059, 0.7978846
    %v3064 = vmul.f32 %v3060, 0.7978846
    %v3065 = vtanh.pop %v3061
    %v3066 = vtanh.pop %v3062
    %v3067 = vtanh.pop %v3063
    %v3068 = vtanh.pop %v3064
    %v3069 = vadd.f32 %v3065, 1.0
    %v3070 = vadd.f32 %v3066, 1.0
    %v3071 = vadd.f32 %v3067, 1.0
    %v3072 = vadd.f32 %v3068, 1.0
    %v3073 = vmul.f32 %v3069, 0.5
    %v3074 = vmul.f32 %v3070, 0.5
    %v3075 = vmul.f32 %v3071, 0.5
    %v3076 = vmul.f32 %v3072, 0.5
    %v3077 = vmul.f32 %v3031, %v3073
    %v3078 = vmul.f32 %v3034, %v3074
    %v3079 = vmul.f32 %v3039, %v3075
    %v3080 = vmul.f32 %v3042, %v3076
    %v3081 = vpack.c.bf16 %v3078, %v3077
    %v3082 = vpack.c.bf16 %v3080, %v3079
    %v3083 = vld [vmem:[#allocation7 + $0xc0] sm:$0xf]
    %v3084 = vld [vmem:[#allocation7 + $0xc8] sm:$0xf]
    %v3085 = vld [vmem:[#allocation7 + $0xd0] sm:$0xf]
    %v3086 = vld [vmem:[#allocation7 + $0xd8] sm:$0xf]
    %v3087 = vld [vmem:[#allocation7 + $0xe0] sm:$0xf]
    %v3088 = vld [vmem:[#allocation7 + $0xe8] sm:$0xf]
    %v3089 = vld [vmem:[#allocation7 + $0xf0] sm:$0xf]
    %v3090 = vld [vmem:[#allocation7 + $0xf8] sm:$0xf]
    %v3091 = vld [vmem:[#allocation7 + $0x100] sm:$0x1]
    %v3092 = vld [vmem:[#allocation6 + $0x14] ss:$0 sm:$0xff]
    %v3102 = vunpack.c.l.b16 %v3083
    %v3103 = vunpack.c.l.b16 %v3084
    %v3104 = vunpack.c.l.b16 %v3085
    %v3105 = vunpack.c.l.b16 %v3086
    %v3106 = vunpack.c.l.b16 %v3087
    %v3107 = vunpack.c.l.b16 %v3088
    %v3108 = vunpack.c.l.b16 %v3089
    %v3109 = vunpack.c.l.b16 %v3090
    %v3110 = vunpack.c.l.b16 %v3091
    %v3111 = vpack.c.b16 %v3103, %v3102
    %v3112 = vpack.c.b16 %v3105, %v3104
    %v3113 = vpack.c.b16 %v3107, %v3106
    %v3114 = vpack.c.b16 %v3109, %v3108
    %v3115 = vpack.c.b16 %v3110, %v3110
    %v3117 = vshrl.u32 %v3111, 16
    %v3119 = vshll.u32 %v3111, 16
    %v3121 = vrot.slane %v3119, 1
    %v3122 = vor.u32 %v3117, %v3121
    %v3124 = vshll.u32 %v3112, 16
    %v3126 = vrot.slane %v3124, 1
    %v3127 = vsel %vm784, %v3122, %v3126
    %v3128 = vshrl.u32 %v3112, 16
    %v3130 = vor.u32 %v3128, %v3126
    %v3132 = vshll.u32 %v3113, 16
    %v3134 = vrot.slane %v3132, 1
    %v3135 = vsel %vm784, %v3130, %v3134
    %v3136 = vshrl.u32 %v3113, 16
    %v3138 = vor.u32 %v3136, %v3134
    %v3140 = vshll.u32 %v3114, 16
    %v3142 = vrot.slane %v3140, 1
    %v3143 = vsel %vm784, %v3138, %v3142
    %v3144 = vshrl.u32 %v3114, 16
    %v3146 = vor.u32 %v3144, %v3142
    %v3148 = vshll.u32 %v3115, 16
    %v3150 = vrot.slane %v3148, 1
    %v3151 = vsel %vm784, %v3146, %v3150
    %vm3156 = vcmask 523264
    %v3158 = vsel %vm3156, %v3081, 0
    %v3161 = vsel %vm3156, %v3082, 0
    %3163 = vmatprep.subr.bf16.mxu0 0
    %3164 = vmatpush1.bf16.msra.mxu0 %v3127
    %3165 = vmatprep.subr.bf16.mxu0 0
    %3166 = vmatpush1.bf16.msra.mxu0 %v3135
    %3167 = vmatprep.subr.bf16.mxu0 0
    %3168 = vmatpush1.bf16.msra.mxu0 %v3143
    %3169 = vmatprep.subr.bf16.mxu0 0
    %3170 = vmatpush1.bf16.msra.mxu0 %v3151
    %3171 = vmatprep.subr.bf16.mxu0 0
    %3172 = vmatpush1.bf16.msra.mxu0 0
    %3173 = vmatprep.subr.bf16.mxu0 0
    %3174 = vmatpush1.bf16.msra.mxu0 0
    %3175 = vmatprep.subr.bf16.mxu0 0
    %3176 = vmatpush1.bf16.msra.mxu0 0
    %3177 = vmatprep.subr.bf16.mxu0 0
    %3178 = vmatpush1.bf16.msra.mxu0 0
    %3179 = vmatprep.subr.bf16.mxu0 0
    %3180 = vmatpush1.bf16.msra.mxu0 0
    %3181 = vmatprep.subr.bf16.mxu0 0
    %3182 = vmatpush1.bf16.msra.mxu0 0
    %3183 = vmatprep.subr.bf16.mxu0 0
    %3184 = vmatpush1.bf16.msra.mxu0 0
    %3185 = vmatprep.subr.bf16.mxu0 0
    %3186 = vmatpush1.bf16.msra.mxu0 0
    %3187 = vmatprep.subr.bf16.mxu0 0
    %3188 = vmatpush1.bf16.msra.mxu0 0
    %3189 = vmatprep.subr.bf16.mxu0 0
    %3190 = vmatpush1.bf16.msra.mxu0 0
    %3191 = vmatprep.subr.bf16.mxu0 0
    %3192 = vmatpush1.bf16.msra.mxu0 0
    %3193 = vmatprep.subr.bf16.mxu0 0
    %3194 = vmatpush1.bf16.msra.mxu0 0
    %3195 = vmatprep.mubr.bf16.mxu0 0
    %3196 = vmatmul.mubr.bf16.gmra.mrb[0].mxu0 %v3158
    %v3197 = vpop.f32.mrb[0].mxu0
    %v3198 = vadd.f32 %v3092, %v3197
    %v3199 = vpop.f32.mrb[0].mxu0
    %v3200 = vpop.f32.mrb[0].mxu0
    %v3201 = vadd.f32 %v3092, %v3200
    %v3202 = vpop.f32.mrb[0].mxu0
    %3203 = vmatprep.mubr.bf16.mxu0 0
    %3204 = vmatmul.mubr.bf16.gmra.mrb[0].mxu0 %v3161
    %v3205 = vpop.f32.mrb[0].mxu0
    %v3206 = vadd.f32 %v3092, %v3205
    %v3207 = vpop.f32.mrb[0].mxu0
    %v3208 = vpop.f32.mrb[0].mxu0
    %v3209 = vadd.f32 %v3092, %v3208
    %v3210 = vpop.f32.mrb[0].mxu0
    %3211 = vdwg.mxu0
    %v3212 = vadd.f32 %v2943, %v3198
    %v3213 = vadd.f32 %v2944, %v3201
    %v3214 = vadd.f32 %v2945, %v3206
    %v3215 = vadd.f32 %v2946, %v3209
    %v3216 = vld [vmem:[#allocation6 + $0x15] ss:$0 sm:$0xff]
    %v3217 = vld [vmem:[#allocation6 + $0x16] ss:$0 sm:$0xff]
    %v3218 = vsel %vm1577, %v3212, 0.0
    %3219 = vadd.xlane.f32.xlu0 %v3218
    %v3220 = vpop.xlane.xlu0 %3219
    %v3221 = vsel %vm1577, %v3213, 0.0
    %3222 = vadd.xlane.f32.xlu0 %v3221
    %v3223 = vpop.xlane.xlu0 %3222
    %v3224 = vsel %vm1577, %v3214, 0.0
    %3225 = vadd.xlane.f32.xlu0 %v3224
    %v3226 = vpop.xlane.xlu0 %3225
    %v3227 = vsel %vm1577, %v3215, 0.0
    %3228 = vadd.xlane.f32.xlu0 %v3227
    %v3229 = vpop.xlane.xlu0 %3228
    %v3230 = vmul.f32 %v3220, %v1590
    %v3231 = vmul.f32 %v3223, %v1590
    %v3232 = vmul.f32 %v3226, %v1590
    %v3233 = vmul.f32 %v3229, %v1590
    %v3234 = vsub.f32 %v3212, %v3230
    %v3235 = vsub.f32 %v3213, %v3231
    %v3236 = vsub.f32 %v3214, %v3232
    %v3237 = vsub.f32 %v3215, %v3233
    %v3238 = vmul.f32 %v3234, %v3234
    %v3239 = vmul.f32 %v3235, %v3235
    %v3240 = vmul.f32 %v3236, %v3236
    %v3241 = vmul.f32 %v3237, %v3237
    %v3242 = vsel %vm1577, %v3238, 0.0
    %3243 = vadd.xlane.f32.xlu0 %v3242
    %v3244 = vpop.xlane.xlu0 %3243
    %v3245 = vsel %vm1577, %v3239, 0.0
    %3246 = vadd.xlane.f32.xlu0 %v3245
    %v3247 = vpop.xlane.xlu0 %3246
    %v3248 = vsel %vm1577, %v3240, 0.0
    %3249 = vadd.xlane.f32.xlu0 %v3248
    %v3250 = vpop.xlane.xlu0 %3249
    %v3251 = vsel %vm1577, %v3241, 0.0
    %3252 = vadd.xlane.f32.xlu0 %v3251
    %v3253 = vpop.xlane.xlu0 %3252
    %v3254 = vmul.f32 %v3244, %v1590
    %v3255 = vmul.f32 %v3247, %v1590
    %v3256 = vmul.f32 %v3250, %v1590
    %v3257 = vmul.f32 %v3253, %v1590
    %v3258 = vadd.f32 %v3254, 1e-05
    %v3259 = vadd.f32 %v3255, 1e-05
    %v3260 = vadd.f32 %v3256, 1e-05
    %v3261 = vadd.f32 %v3257, 1e-05
    %v3262 = vrsqrt.pop %v3258
    %v3263 = vrsqrt.pop %v3259
    %v3264 = vrsqrt.pop %v3260
    %v3265 = vrsqrt.pop %v3261
    %v3266 = vmul.f32 %v3234, %v3262
    %v3267 = vmul.f32 %v3235, %v3263
    %v3268 = vmul.f32 %v3236, %v3264
    %v3269 = vmul.f32 %v3237, %v3265
    %v3270 = vmul.f32 %v3266, %v3216
    %v3271 = vmul.f32 %v3267, %v3216
    %v3272 = vmul.f32 %v3268, %v3216
    %v3273 = vmul.f32 %v3269, %v3216
    %v3274 = vadd.f32 %v3270, %v3217
    %v3275 = vadd.f32 %v3271, %v3217
    %v3276 = vadd.f32 %v3272, %v3217
    %v3277 = vadd.f32 %v3273, %v3217
    %v3278 = vpack.c.bf16 %v3275, %v3274
    %v3279 = vpack.c.bf16 %v3277, %v3276
    %v3280 = vld [vmem:[#allocation7 + $0x100] sm:$0xf]
    %v3281 = vld [vmem:[#allocation7 + $0x108] sm:$0xf]
    %v3282 = vld [vmem:[#allocation7 + $0x110] sm:$0xf]
    %v3283 = vld [vmem:[#allocation7 + $0x118] sm:$0xf]
    %v3284 = vld [vmem:[#allocation7 + $0x120] sm:$0x1]
    %v3285 = vld [vmem:[#allocation6 + $0x17] ss:$0 sm:$0xff]
    %v3291 = vunpack.c.l.b16 %v3280
    %v3292 = vunpack.c.l.b16 %v3281
    %v3293 = vunpack.c.l.b16 %v3282
    %v3294 = vunpack.c.l.b16 %v3283
    %v3295 = vunpack.c.l.b16 %v3284
    %v3296 = vpack.c.b16 %v3292, %v3291
    %v3297 = vpack.c.b16 %v3294, %v3293
    %v3298 = vpack.c.b16 %v3295, %v3295
    %v3300 = vshrl.u32 %v3296, 16
    %v3302 = vshll.u32 %v3296, 16
    %v3304 = vrot.slane %v3302, 1
    %v3305 = vor.u32 %v3300, %v3304
    %v3307 = vshll.u32 %v3297, 16
    %v3309 = vrot.slane %v3307, 1
    %v3310 = vsel %vm784, %v3305, %v3309
    %v3311 = vshrl.u32 %v3297, 16
    %v3313 = vor.u32 %v3311, %v3309
    %v3315 = vshll.u32 %v3298, 16
    %v3317 = vrot.slane %v3315, 1
    %v3318 = vsel %vm784, %v3313, %v3317
    %v3322 = vsel %vm1577, %v3278, 0
    %v3325 = vsel %vm1577, %v3279, 0
    %3327 = vmatprep.subr.bf16.mxu0 0
    %3328 = vmatpush1.bf16.msra.mxu0 %v3310
    %3329 = vmatprep.subr.bf16.mxu0 0
    %3330 = vmatpush1.bf16.msra.mxu0 %v3318
    %3331 = vmatprep.subr.bf16.mxu0 0
    %3332 = vmatpush1.bf16.msra.mxu0 0
    %3333 = vmatprep.subr.bf16.mxu0 0
    %3334 = vmatpush1.bf16.msra.mxu0 0
    %3335 = vmatprep.subr.bf16.mxu0 0
    %3336 = vmatpush1.bf16.msra.mxu0 0
    %3337 = vmatprep.subr.bf16.mxu0 0
    %3338 = vmatpush1.bf16.msra.mxu0 0
    %3339 = vmatprep.subr.bf16.mxu0 0
    %3340 = vmatpush1.bf16.msra.mxu0 0
    %3341 = vmatprep.subr.bf16.mxu0 0
    %3342 = vmatpush1.bf16.msra.mxu0 0
    %3343 = vmatprep.subr.bf16.mxu0 0
    %3344 = vmatpush1.bf16.msra.mxu0 0
    %3345 = vmatprep.subr.bf16.mxu0 0
    %3346 = vmatpush1.bf16.msra.mxu0 0
    %3347 = vmatprep.subr.bf16.mxu0 0
    %3348 = vmatpush1.bf16.msra.mxu0 0
    %3349 = vmatprep.subr.bf16.mxu0 0
    %3350 = vmatpush1.bf16.msra.mxu0 0
    %3351 = vmatprep.subr.bf16.mxu0 0
    %3352 = vmatpush1.bf16.msra.mxu0 0
    %3353 = vmatprep.subr.bf16.mxu0 0
    %3354 = vmatpush1.bf16.msra.mxu0 0
    %3355 = vmatprep.subr.bf16.mxu0 0
    %3356 = vmatpush1.bf16.msra.mxu0 0
    %3357 = vmatprep.subr.bf16.mxu0 0
    %3358 = vmatpush1.bf16.msra.mxu0 0
    %3359 = vmatprep.mubr.bf16.mxu0 0
    %3360 = vmatmul.mubr.bf16.gmra.mrb[0].mxu0 %v3322
    %v3361 = vpop.f32.mrb[0].mxu0
    %v3362 = vadd.f32 %v3285, %v3361
    %v3363 = vpop.f32.mrb[0].mxu0
    %v3364 = vpop.f32.mrb[0].mxu0
    %v3365 = vadd.f32 %v3285, %v3364
    %v3366 = vpop.f32.mrb[0].mxu0
    %3367 = vmatprep.mubr.bf16.mxu0 0
    %3368 = vmatmul.mubr.bf16.gmra.mrb[0].mxu0 %v3325
    %v3369 = vpop.f32.mrb[0].mxu0
    %v3370 = vadd.f32 %v3285, %v3369
    %v3371 = vpop.f32.mrb[0].mxu0
    %v3372 = vpop.f32.mrb[0].mxu0
    %v3373 = vadd.f32 %v3285, %v3372
    %v3374 = vpop.f32.mrb[0].mxu0
    %3375 = vdwg.mxu0
    %v3376 = vpack.c.bf16 %v3365, %v3362
    %v3377 = vpack.c.bf16 %v3373, %v3370
    %3379 = vrot.lane.b32.xlu0 %v3376, 96
    %v3380 = vpop.permute.xlu0 %3379
    %v3382 = vsel %vm1742, %v3376, 0
    %v3385 = vsel %vm1742, %v3380, 0
    %3387 = vmatprep.subr.bf16.mxu0 0
    %3388 = vmatpush1.bf16.xpose.msra.mxu0 %v3385
    %3389 = vmatprep.subr.bf16.mxu0 0
    %3390 = vmatpush1.bf16.xpose.msra.mxu0 0
    %3391 = vmatprep.subr.bf16.mxu0 0
    %3392 = vmatpush1.bf16.xpose.msra.mxu0 0
    %3393 = vmatprep.subr.bf16.mxu0 0
    %3394 = vmatpush1.bf16.xpose.msra.mxu0 0
    %3395 = vmatprep.subr.bf16.mxu0 0
    %3396 = vmatpush1.bf16.xpose.msra.mxu0 0
    %3397 = vmatprep.subr.bf16.mxu0 0
    %3398 = vmatpush1.bf16.xpose.msra.mxu0 0
    %3399 = vmatprep.subr.bf16.mxu0 0
    %3400 = vmatpush1.bf16.xpose.msra.mxu0 0
    %3401 = vmatprep.subr.bf16.mxu0 0
    %3402 = vmatpush1.bf16.xpose.msra.mxu0 0
    %3403 = vmatprep.subr.bf16.mxu0 0
    %3404 = vmatpush1.bf16.xpose.msra.mxu0 0
    %3405 = vmatprep.subr.bf16.mxu0 0
    %3406 = vmatpush1.bf16.xpose.msra.mxu0 0
    %3407 = vmatprep.subr.bf16.mxu0 0
    %3408 = vmatpush1.bf16.xpose.msra.mxu0 0
    %3409 = vmatprep.subr.bf16.mxu0 0
    %3410 = vmatpush1.bf16.xpose.msra.mxu0 0
    %3411 = vmatprep.subr.bf16.mxu0 0
    %3412 = vmatpush1.bf16.xpose.msra.mxu0 0
    %3413 = vmatprep.subr.bf16.mxu0 0
    %3414 = vmatpush1.bf16.xpose.msra.mxu0 0
    %3415 = vmatprep.subr.bf16.mxu0 0
    %3416 = vmatpush1.bf16.xpose.msra.mxu0 0
    %3417 = vmatprep.subr.bf16.mxu0 0
    %3418 = vmatpush1.bf16.xpose.msra.mxu0 0
    %3419 = vmatprep.mubr.bf16.mxu0 0
    %3420 = vmatmul.mubr.bf16.gmra.mrb[0].mxu0 %v3382
    %v3421 = vpop.f32.mrb[0].mxu0
    %v3422 = vadd.f32 0.0, %v3421
    %v3423 = vpop.f32.mrb[0].mxu0
    %v3424 = vpop.f32.mrb[0].mxu0
    %v3425 = vadd.f32 0.0, %v3424
    %v3426 = vpop.f32.mrb[0].mxu0
    %3427 = vdwg.mxu0
    %v3428 = vmul.f32 %v3422, 0.35355338
    %v3429 = vmul.f32 %v3425, 0.35355338
    %v3430 = vsel %vm801, %v3428, -inf
    %3431 = vmax.xlane.f32.xlu0 %v3430
    %v3432 = vpop.xlane.xlu0 %3431
    %v3433 = vsel %vm801, %v3429, -inf
    %3434 = vmax.xlane.f32.xlu0 %v3433
    %v3435 = vpop.xlane.xlu0 %3434
    %v3436 = vsub.f32 %v3428, %v3432
    %v3437 = vsub.f32 %v3429, %v3435
    %v3438 = vmul.f32 %v3436, 1.442695
    %v3439 = vpow.pop %v3438
    %v3440 = vmul.f32 %v3437, 1.442695
    %v3441 = vpow.pop %v3440
    %v3442 = vsel %vm801, %v3439, 0.0
    %3443 = vadd.xlane.f32.xlu0 %v3442
    %v3444 = vpop.xlane.xlu0 %3443
    %v3445 = vsel %vm801, %v3441, 0.0
    %3446 = vadd.xlane.f32.xlu0 %v3445
    %v3447 = vpop.xlane.xlu0 %3446
    %v3448 = vrcp.pop %v3444
    %v3449 = vrcp.pop %v3447
    %v3450 = vmul.f32 %v3439, %v3448
    %v3451 = vmul.f32 %v3441, %v3449
    %v3452 = vpack.c.bf16 %v3451, %v3450
    %3453 = vrot.lane.b32.xlu0 %v3376, 64
    %v3454 = vpop.permute.xlu0 %3453
    %v3457 = vsel %vm801, %v3452, 0
    %3459 = vmatprep.subr.bf16.mxu0 0
    %3460 = vmatpush1.bf16.msra.mxu0 %v3454
    %3461 = vmatprep.subr.bf16.mxu0 0
    %3462 = vmatpush1.bf16.msra.mxu0 0
    %3463 = vmatprep.subr.bf16.mxu0 0
    %3464 = vmatpush1.bf16.msra.mxu0 0
    %3465 = vmatprep.subr.bf16.mxu0 0
    %3466 = vmatpush1.bf16.msra.mxu0 0
    %3467 = vmatprep.subr.bf16.mxu0 0
    %3468 = vmatpush1.bf16.msra.mxu0 0
    %3469 = vmatprep.subr.bf16.mxu0 0
    %3470 = vmatpush1.bf16.msra.mxu0 0
    %3471 = vmatprep.subr.bf16.mxu0 0
    %3472 = vmatpush1.bf16.msra.mxu0 0
    %3473 = vmatprep.subr.bf16.mxu0 0
    %3474 = vmatpush1.bf16.msra.mxu0 0
    %3475 = vmatprep.subr.bf16.mxu0 0
    %3476 = vmatpush1.bf16.msra.mxu0 0
    %3477 = vmatprep.subr.bf16.mxu0 0
    %3478 = vmatpush1.bf16.msra.mxu0 0
    %3479 = vmatprep.subr.bf16.mxu0 0
    %3480 = vmatpush1.bf16.msra.mxu0 0
    %3481 = vmatprep.subr.bf16.mxu0 0
    %3482 = vmatpush1.bf16.msra.mxu0 0
    %3483 = vmatprep.subr.bf16.mxu0 0
    %3484 = vmatpush1.bf16.msra.mxu0 0
    %3485 = vmatprep.subr.bf16.mxu0 0
    %3486 = vmatpush1.bf16.msra.mxu0 0
    %3487 = vmatprep.subr.bf16.mxu0 0
    %3488 = vmatpush1.bf16.msra.mxu0 0
    %3489 = vmatprep.subr.bf16.mxu0 0
    %3490 = vmatpush1.bf16.msra.mxu0 0
    %3491 = vmatprep.mubr.bf16.mxu0 0
    %3492 = vmatmul.mubr.bf16.gmra.mrb[0].mxu0 %v3457
    %v3493 = vpop.f32.mrb[0].mxu0
    %v3494 = vadd.f32 0.0, %v3493
    %v3495 = vpop.f32.mrb[0].mxu0
    %v3496 = vpop.f32.mrb[0].mxu0
    %v3497 = vadd.f32 0.0, %v3496
    %v3498 = vpop.f32.mrb[0].mxu0
    %3499 = vdwg.mxu0
    %3500 = vrot.lane.b32.xlu0 %v3376, 120
    %v3501 = vpop.permute.xlu0 %3500
    %3502 = vrot.lane.b32.xlu0 %v3376, 88
    %v3503 = vpop.permute.xlu0 %3502
    %v3505 = vsel %vm1742, %v3501, 0
    %v3508 = vsel %vm1742, %v3503, 0
    %3510 = vmatprep.subr.bf16.mxu0 0
    %3511 = vmatpush1.bf16.xpose.msra.mxu0 %v3508
    %3512 = vmatprep.subr.bf16.mxu0 0
    %3513 = vmatpush1.bf16.xpose.msra.mxu0 0
    %3514 = vmatprep.subr.bf16.mxu0 0
    %3515 = vmatpush1.bf16.xpose.msra.mxu0 0
    %3516 = vmatprep.subr.bf16.mxu0 0
    %3517 = vmatpush1.bf16.xpose.msra.mxu0 0
    %3518 = vmatprep.subr.bf16.mxu0 0
    %3519 = vmatpush1.bf16.xpose.msra.mxu0 0
    %3520 = vmatprep.subr.bf16.mxu0 0
    %3521 = vmatpush1.bf16.xpose.msra.mxu0 0
    %3522 = vmatprep.subr.bf16.mxu0 0
    %3523 = vmatpush1.bf16.xpose.msra.mxu0 0
    %3524 = vmatprep.subr.bf16.mxu0 0
    %3525 = vmatpush1.bf16.xpose.msra.mxu0 0
    %3526 = vmatprep.subr.bf16.mxu0 0
    %3527 = vmatpush1.bf16.xpose.msra.mxu0 0
    %3528 = vmatprep.subr.bf16.mxu0 0
    %3529 = vmatpush1.bf16.xpose.msra.mxu0 0
    %3530 = vmatprep.subr.bf16.mxu0 0
    %3531 = vmatpush1.bf16.xpose.msra.mxu0 0
    %3532 = vmatprep.subr.bf16.mxu0 0
    %3533 = vmatpush1.bf16.xpose.msra.mxu0 0
    %3534 = vmatprep.subr.bf16.mxu0 0
    %3535 = vmatpush1.bf16.xpose.msra.mxu0 0
    %3536 = vmatprep.subr.bf16.mxu0 0
    %3537 = vmatpush1.bf16.xpose.msra.mxu0 0
    %3538 = vmatprep.subr.bf16.mxu0 0
    %3539 = vmatpush1.bf16.xpose.msra.mxu0 0
    %3540 = vmatprep.subr.bf16.mxu0 0
    %3541 = vmatpush1.bf16.xpose.msra.mxu0 0
    %3542 = vmatprep.mubr.bf16.mxu0 0
    %3543 = vmatmul.mubr.bf16.gmra.mrb[0].mxu0 %v3505
    %v3544 = vpop.f32.mrb[0].mxu0
    %v3545 = vadd.f32 0.0, %v3544
    %v3546 = vpop.f32.mrb[0].mxu0
    %v3547 = vpop.f32.mrb[0].mxu0
    %v3548 = vadd.f32 0.0, %v3547
    %v3549 = vpop.f32.mrb[0].mxu0
    %3550 = vdwg.mxu0
    %v3551 = vmul.f32 %v3545, 0.35355338
    %v3552 = vmul.f32 %v3548, 0.35355338
    %v3553 = vsel %vm801, %v3551, -inf
    %3554 = vmax.xlane.f32.xlu0 %v3553
    %v3555 = vpop.xlane.xlu0 %3554
    %v3556 = vsel %vm801, %v3552, -inf
    %3557 = vmax.xlane.f32.xlu0 %v3556
    %v3558 = vpop.xlane.xlu0 %3557
    %v3559 = vsub.f32 %v3551, %v3555
    %v3560 = vsub.f32 %v3552, %v3558
    %v3561 = vmul.f32 %v3559, 1.442695
    %v3562 = vpow.pop %v3561
    %v3563 = vmul.f32 %v3560, 1.442695
    %v3564 = vpow.pop %v3563
    %v3565 = vsel %vm801, %v3562, 0.0
    %3566 = vadd.xlane.f32.xlu0 %v3565
    %v3567 = vpop.xlane.xlu0 %3566
    %v3568 = vsel %vm801, %v3564, 0.0
    %3569 = vadd.xlane.f32.xlu0 %v3568
    %v3570 = vpop.xlane.xlu0 %3569
    %v3571 = vrcp.pop %v3567
    %v3572 = vrcp.pop %v3570
    %v3573 = vmul.f32 %v3562, %v3571
    %v3574 = vmul.f32 %v3564, %v3572
    %v3575 = vpack.c.bf16 %v3574, %v3573
    %3576 = vrot.lane.b32.xlu0 %v3376, 56
    %v3577 = vpop.permute.xlu0 %3576
    %v3580 = vsel %vm801, %v3575, 0
    %3582 = vmatprep.subr.bf16.mxu0 0
    %3583 = vmatpush1.bf16.msra.mxu0 %v3577
    %3584 = vmatprep.subr.bf16.mxu0 0
    %3585 = vmatpush1.bf16.msra.mxu0 0
    %3586 = vmatprep.subr.bf16.mxu0 0
    %3587 = vmatpush1.bf16.msra.mxu0 0
    %3588 = vmatprep.subr.bf16.mxu0 0
    %3589 = vmatpush1.bf16.msra.mxu0 0
    %3590 = vmatprep.subr.bf16.mxu0 0
    %3591 = vmatpush1.bf16.msra.mxu0 0
    %3592 = vmatprep.subr.bf16.mxu0 0
    %3593 = vmatpush1.bf16.msra.mxu0 0
    %3594 = vmatprep.subr.bf16.mxu0 0
    %3595 = vmatpush1.bf16.msra.mxu0 0
    %3596 = vmatprep.subr.bf16.mxu0 0
    %3597 = vmatpush1.bf16.msra.mxu0 0
    %3598 = vmatprep.subr.bf16.mxu0 0
    %3599 = vmatpush1.bf16.msra.mxu0 0
    %3600 = vmatprep.subr.bf16.mxu0 0
    %3601 = vmatpush1.bf16.msra.mxu0 0
    %3602 = vmatprep.subr.bf16.mxu0 0
    %3603 = vmatpush1.bf16.msra.mxu0 0
    %3604 = vmatprep.subr.bf16.mxu0 0
    %3605 = vmatpush1.bf16.msra.mxu0 0
    %3606 = vmatprep.subr.bf16.mxu0 0
    %3607 = vmatpush1.bf16.msra.mxu0 0
    %3608 = vmatprep.subr.bf16.mxu0 0
    %3609 = vmatpush1.bf16.msra.mxu0 0
    %3610 = vmatprep.subr.bf16.mxu0 0
    %3611 = vmatpush1.bf16.msra.mxu0 0
    %3612 = vmatprep.subr.bf16.mxu0 0
    %3613 = vmatpush1.bf16.msra.mxu0 0
    %3614 = vmatprep.mubr.bf16.mxu0 0
    %3615 = vmatmul.mubr.bf16.gmra.mrb[0].mxu0 %v3580
    %v3616 = vpop.f32.mrb[0].mxu0
    %v3617 = vadd.f32 0.0, %v3616
    %v3618 = vpop.f32.mrb[0].mxu0
    %v3619 = vpop.f32.mrb[0].mxu0
    %v3620 = vadd.f32 0.0, %v3619
    %v3621 = vpop.f32.mrb[0].mxu0
    %3622 = vdwg.mxu0
    %3623 = vrot.lane.b32.xlu0 %v3376, 112
    %v3624 = vpop.permute.xlu0 %3623
    %3625 = vrot.lane.b32.xlu0 %v3376, 80
    %v3626 = vpop.permute.xlu0 %3625
    %v3628 = vsel %vm1742, %v3624, 0
    %v3631 = vsel %vm1742, %v3626, 0
    %3633 = vmatprep.subr.bf16.mxu0 0
    %3634 = vmatpush1.bf16.xpose.msra.mxu0 %v3631
    %3635 = vmatprep.subr.bf16.mxu0 0
    %3636 = vmatpush1.bf16.xpose.msra.mxu0 0
    %3637 = vmatprep.subr.bf16.mxu0 0
    %3638 = vmatpush1.bf16.xpose.msra.mxu0 0
    %3639 = vmatprep.subr.bf16.mxu0 0
    %3640 = vmatpush1.bf16.xpose.msra.mxu0 0
    %3641 = vmatprep.subr.bf16.mxu0 0
    %3642 = vmatpush1.bf16.xpose.msra.mxu0 0
    %3643 = vmatprep.subr.bf16.mxu0 0
    %3644 = vmatpush1.bf16.xpose.msra.mxu0 0
    %3645 = vmatprep.subr.bf16.mxu0 0
    %3646 = vmatpush1.bf16.xpose.msra.mxu0 0
    %3647 = vmatprep.subr.bf16.mxu0 0
    %3648 = vmatpush1.bf16.xpose.msra.mxu0 0
    %3649 = vmatprep.subr.bf16.mxu0 0
    %3650 = vmatpush1.bf16.xpose.msra.mxu0 0
    %3651 = vmatprep.subr.bf16.mxu0 0
    %3652 = vmatpush1.bf16.xpose.msra.mxu0 0
    %3653 = vmatprep.subr.bf16.mxu0 0
    %3654 = vmatpush1.bf16.xpose.msra.mxu0 0
    %3655 = vmatprep.subr.bf16.mxu0 0
    %3656 = vmatpush1.bf16.xpose.msra.mxu0 0
    %3657 = vmatprep.subr.bf16.mxu0 0
    %3658 = vmatpush1.bf16.xpose.msra.mxu0 0
    %3659 = vmatprep.subr.bf16.mxu0 0
    %3660 = vmatpush1.bf16.xpose.msra.mxu0 0
    %3661 = vmatprep.subr.bf16.mxu0 0
    %3662 = vmatpush1.bf16.xpose.msra.mxu0 0
    %3663 = vmatprep.subr.bf16.mxu0 0
    %3664 = vmatpush1.bf16.xpose.msra.mxu0 0
    %3665 = vmatprep.mubr.bf16.mxu0 0
    %3666 = vmatmul.mubr.bf16.gmra.mrb[0].mxu0 %v3628
    %v3667 = vpop.f32.mrb[0].mxu0
    %v3668 = vadd.f32 0.0, %v3667
    %v3669 = vpop.f32.mrb[0].mxu0
    %v3670 = vpop.f32.mrb[0].mxu0
    %v3671 = vadd.f32 0.0, %v3670
    %v3672 = vpop.f32.mrb[0].mxu0
    %3673 = vdwg.mxu0
    %v3674 = vmul.f32 %v3668, 0.35355338
    %v3675 = vmul.f32 %v3671, 0.35355338
    %v3676 = vsel %vm801, %v3674, -inf
    %3677 = vmax.xlane.f32.xlu0 %v3676
    %v3678 = vpop.xlane.xlu0 %3677
    %v3679 = vsel %vm801, %v3675, -inf
    %3680 = vmax.xlane.f32.xlu0 %v3679
    %v3681 = vpop.xlane.xlu0 %3680
    %v3682 = vsub.f32 %v3674, %v3678
    %v3683 = vsub.f32 %v3675, %v3681
    %v3684 = vmul.f32 %v3682, 1.442695
    %v3685 = vpow.pop %v3684
    %v3686 = vmul.f32 %v3683, 1.442695
    %v3687 = vpow.pop %v3686
    %v3688 = vsel %vm801, %v3685, 0.0
    %3689 = vadd.xlane.f32.xlu0 %v3688
    %v3690 = vpop.xlane.xlu0 %3689
    %v3691 = vsel %vm801, %v3687, 0.0
    %3692 = vadd.xlane.f32.xlu0 %v3691
    %v3693 = vpop.xlane.xlu0 %3692
    %v3694 = vrcp.pop %v3690
    %v3695 = vrcp.pop %v3693
    %v3696 = vmul.f32 %v3685, %v3694
    %v3697 = vmul.f32 %v3687, %v3695
    %v3698 = vpack.c.bf16 %v3697, %v3696
    %3699 = vrot.lane.b32.xlu0 %v3376, 48
    %v3700 = vpop.permute.xlu0 %3699
    %v3703 = vsel %vm801, %v3698, 0
    %3705 = vmatprep.subr.bf16.mxu0 0
    %3706 = vmatpush1.bf16.msra.mxu0 %v3700
    %3707 = vmatprep.subr.bf16.mxu0 0
    %3708 = vmatpush1.bf16.msra.mxu0 0
    %3709 = vmatprep.subr.bf16.mxu0 0
    %3710 = vmatpush1.bf16.msra.mxu0 0
    %3711 = vmatprep.subr.bf16.mxu0 0
    %3712 = vmatpush1.bf16.msra.mxu0 0
    %3713 = vmatprep.subr.bf16.mxu0 0
    %3714 = vmatpush1.bf16.msra.mxu0 0
    %3715 = vmatprep.subr.bf16.mxu0 0
    %3716 = vmatpush1.bf16.msra.mxu0 0
    %3717 = vmatprep.subr.bf16.mxu0 0
    %3718 = vmatpush1.bf16.msra.mxu0 0
    %3719 = vmatprep.subr.bf16.mxu0 0
    %3720 = vmatpush1.bf16.msra.mxu0 0
    %3721 = vmatprep.subr.bf16.mxu0 0
    %3722 = vmatpush1.bf16.msra.mxu0 0
    %3723 = vmatprep.subr.bf16.mxu0 0
    %3724 = vmatpush1.bf16.msra.mxu0 0
    %3725 = vmatprep.subr.bf16.mxu0 0
    %3726 = vmatpush1.bf16.msra.mxu0 0
    %3727 = vmatprep.subr.bf16.mxu0 0
    %3728 = vmatpush1.bf16.msra.mxu0 0
    %3729 = vmatprep.subr.bf16.mxu0 0
    %3730 = vmatpush1.bf16.msra.mxu0 0
    %3731 = vmatprep.subr.bf16.mxu0 0
    %3732 = vmatpush1.bf16.msra.mxu0 0
    %3733 = vmatprep.subr.bf16.mxu0 0
    %3734 = vmatpush1.bf16.msra.mxu0 0
    %3735 = vmatprep.subr.bf16.mxu0 0
    %3736 = vmatpush1.bf16.msra.mxu0 0
    %3737 = vmatprep.mubr.bf16.mxu0 0
    %3738 = vmatmul.mubr.bf16.gmra.mrb[0].mxu0 %v3703
    %v3739 = vpop.f32.mrb[0].mxu0
    %v3740 = vadd.f32 0.0, %v3739
    %v3741 = vpop.f32.mrb[0].mxu0
    %v3742 = vpop.f32.mrb[0].mxu0
    %v3743 = vadd.f32 0.0, %v3742
    %v3744 = vpop.f32.mrb[0].mxu0
    %3745 = vdwg.mxu0
    %3746 = vrot.lane.b32.xlu0 %v3376, 104
    %v3747 = vpop.permute.xlu0 %3746
    %3748 = vrot.lane.b32.xlu0 %v3376, 72
    %v3749 = vpop.permute.xlu0 %3748
    %v3751 = vsel %vm1742, %v3747, 0
    %v3754 = vsel %vm1742, %v3749, 0
    %3756 = vmatprep.subr.bf16.mxu0 0
    %3757 = vmatpush1.bf16.xpose.msra.mxu0 %v3754
    %3758 = vmatprep.subr.bf16.mxu0 0
    %3759 = vmatpush1.bf16.xpose.msra.mxu0 0
    %3760 = vmatprep.subr.bf16.mxu0 0
    %3761 = vmatpush1.bf16.xpose.msra.mxu0 0
    %3762 = vmatprep.subr.bf16.mxu0 0
    %3763 = vmatpush1.bf16.xpose.msra.mxu0 0
    %3764 = vmatprep.subr.bf16.mxu0 0
    %3765 = vmatpush1.bf16.xpose.msra.mxu0 0
    %3766 = vmatprep.subr.bf16.mxu0 0
    %3767 = vmatpush1.bf16.xpose.msra.mxu0 0
    %3768 = vmatprep.subr.bf16.mxu0 0
    %3769 = vmatpush1.bf16.xpose.msra.mxu0 0
    %3770 = vmatprep.subr.bf16.mxu0 0
    %3771 = vmatpush1.bf16.xpose.msra.mxu0 0
    %3772 = vmatprep.subr.bf16.mxu0 0
    %3773 = vmatpush1.bf16.xpose.msra.mxu0 0
    %3774 = vmatprep.subr.bf16.mxu0 0
    %3775 = vmatpush1.bf16.xpose.msra.mxu0 0
    %3776 = vmatprep.subr.bf16.mxu0 0
    %3777 = vmatpush1.bf16.xpose.msra.mxu0 0
    %3778 = vmatprep.subr.bf16.mxu0 0
    %3779 = vmatpush1.bf16.xpose.msra.mxu0 0
    %3780 = vmatprep.subr.bf16.mxu0 0
    %3781 = vmatpush1.bf16.xpose.msra.mxu0 0
    %3782 = vmatprep.subr.bf16.mxu0 0
    %3783 = vmatpush1.bf16.xpose.msra.mxu0 0
    %3784 = vmatprep.subr.bf16.mxu0 0
    %3785 = vmatpush1.bf16.xpose.msra.mxu0 0
    %3786 = vmatprep.subr.bf16.mxu0 0
    %3787 = vmatpush1.bf16.xpose.msra.mxu0 0
    %3788 = vmatprep.mubr.bf16.mxu0 0
    %3789 = vmatmul.mubr.bf16.gmra.mrb[0].mxu0 %v3751
    %v3790 = vpop.f32.mrb[0].mxu0
    %v3791 = vadd.f32 0.0, %v3790
    %v3792 = vpop.f32.mrb[0].mxu0
    %v3793 = vpop.f32.mrb[0].mxu0
    %v3794 = vadd.f32 0.0, %v3793
    %v3795 = vpop.f32.mrb[0].mxu0
    %3796 = vdwg.mxu0
    %v3797 = vmul.f32 %v3791, 0.35355338
    %v3798 = vmul.f32 %v3794, 0.35355338
    %v3799 = vsel %vm801, %v3797, -inf
    %3800 = vmax.xlane.f32.xlu0 %v3799
    %v3801 = vpop.xlane.xlu0 %3800
    %v3802 = vsel %vm801, %v3798, -inf
    %3803 = vmax.xlane.f32.xlu0 %v3802
    %v3804 = vpop.xlane.xlu0 %3803
    %v3805 = vsub.f32 %v3797, %v3801
    %v3806 = vsub.f32 %v3798, %v3804
    %v3807 = vmul.f32 %v3805, 1.442695
    %v3808 = vpow.pop %v3807
    %v3809 = vmul.f32 %v3806, 1.442695
    %v3810 = vpow.pop %v3809
    %v3811 = vsel %vm801, %v3808, 0.0
    %3812 = vadd.xlane.f32.xlu0 %v3811
    %v3813 = vpop.xlane.xlu0 %3812
    %v3814 = vsel %vm801, %v3810, 0.0
    %3815 = vadd.xlane.f32.xlu0 %v3814
    %v3816 = vpop.xlane.xlu0 %3815
    %v3817 = vrcp.pop %v3813
    %v3818 = vrcp.pop %v3816
    %v3819 = vmul.f32 %v3808, %v3817
    %v3820 = vmul.f32 %v3810, %v3818
    %v3821 = vpack.c.bf16 %v3820, %v3819
    %3822 = vrot.lane.b32.xlu0 %v3376, 40
    %v3823 = vpop.permute.xlu0 %3822
    %v3826 = vsel %vm801, %v3821, 0
    %3828 = vmatprep.subr.bf16.mxu0 0
    %3829 = vmatpush1.bf16.msra.mxu0 %v3823
    %3830 = vmatprep.subr.bf16.mxu0 0
    %3831 = vmatpush1.bf16.msra.mxu0 0
    %3832 = vmatprep.subr.bf16.mxu0 0
    %3833 = vmatpush1.bf16.msra.mxu0 0
    %3834 = vmatprep.subr.bf16.mxu0 0
    %3835 = vmatpush1.bf16.msra.mxu0 0
    %3836 = vmatprep.subr.bf16.mxu0 0
    %3837 = vmatpush1.bf16.msra.mxu0 0
    %3838 = vmatprep.subr.bf16.mxu0 0
    %3839 = vmatpush1.bf16.msra.mxu0 0
    %3840 = vmatprep.subr.bf16.mxu0 0
    %3841 = vmatpush1.bf16.msra.mxu0 0
    %3842 = vmatprep.subr.bf16.mxu0 0
    %3843 = vmatpush1.bf16.msra.mxu0 0
    %3844 = vmatprep.subr.bf16.mxu0 0
    %3845 = vmatpush1.bf16.msra.mxu0 0
    %3846 = vmatprep.subr.bf16.mxu0 0
    %3847 = vmatpush1.bf16.msra.mxu0 0
    %3848 = vmatprep.subr.bf16.mxu0 0
    %3849 = vmatpush1.bf16.msra.mxu0 0
    %3850 = vmatprep.subr.bf16.mxu0 0
    %3851 = vmatpush1.bf16.msra.mxu0 0
    %3852 = vmatprep.subr.bf16.mxu0 0
    %3853 = vmatpush1.bf16.msra.mxu0 0
    %3854 = vmatprep.subr.bf16.mxu0 0
    %3855 = vmatpush1.bf16.msra.mxu0 0
    %3856 = vmatprep.subr.bf16.mxu0 0
    %3857 = vmatpush1.bf16.msra.mxu0 0
    %3858 = vmatprep.subr.bf16.mxu0 0
    %3859 = vmatpush1.bf16.msra.mxu0 0
    %3860 = vmatprep.mubr.bf16.mxu0 0
    %3861 = vmatmul.mubr.bf16.gmra.mrb[0].mxu0 %v3826
    %v3862 = vpop.f32.mrb[0].mxu0
    %v3863 = vadd.f32 0.0, %v3862
    %v3864 = vpop.f32.mrb[0].mxu0
    %v3865 = vpop.f32.mrb[0].mxu0
    %v3866 = vadd.f32 0.0, %v3865
    %v3867 = vpop.f32.mrb[0].mxu0
    %3868 = vdwg.mxu0
    %3871 = vrot.lane.b32.xlu0 %v3617, 8
    %v3872 = vpop.permute.xlu0 %3871
    %3873 = vrot.lane.b32.xlu0 %v3620, 8
    %v3874 = vpop.permute.xlu0 %3873
    %3879 = vrot.lane.b32.xlu0 %v3740, 16
    %v3880 = vpop.permute.xlu0 %3879
    %3881 = vrot.lane.b32.xlu0 %v3743, 16
    %v3882 = vpop.permute.xlu0 %3881
    %3887 = vrot.lane.b32.xlu0 %v3863, 24
    %v3888 = vpop.permute.xlu0 %3887
    %3889 = vrot.lane.b32.xlu0 %v3866, 24
    %v3890 = vpop.permute.xlu0 %3889
    %v3893 = vsel %vm1742, %v3494, %v3872
    %v3894 = vsel %vm1742, %v3497, %v3874
    %v3895 = vsel %vm801, %v3893, %v3880
    %v3896 = vsel %vm801, %v3894, %v3882
    %v3897 = vsel %vm2259, %v3895, %v3888
    %v3898 = vsel %vm2259, %v3896, %v3890
    %3900 = vrot.lane.b32.xlu0 %v3377, 96
    %v3901 = vpop.permute.xlu0 %3900
    %v3903 = vsel %vm1742, %v3377, 0
    %v3906 = vsel %vm1742, %v3901, 0
    %3908 = vmatprep.subr.bf16.mxu0 0
    %3909 = vmatpush1.bf16.xpose.msra.mxu0 %v3906
    %3910 = vmatprep.subr.bf16.mxu0 0
    %3911 = vmatpush1.bf16.xpose.msra.mxu0 0
    %3912 = vmatprep.subr.bf16.mxu0 0
    %3913 = vmatpush1.bf16.xpose.msra.mxu0 0
    %3914 = vmatprep.subr.bf16.mxu0 0
    %3915 = vmatpush1.bf16.xpose.msra.mxu0 0
    %3916 = vmatprep.subr.bf16.mxu0 0
    %3917 = vmatpush1.bf16.xpose.msra.mxu0 0
    %3918 = vmatprep.subr.bf16.mxu0 0
    %3919 = vmatpush1.bf16.xpose.msra.mxu0 0
    %3920 = vmatprep.subr.bf16.mxu0 0
    %3921 = vmatpush1.bf16.xpose.msra.mxu0 0
    %3922 = vmatprep.subr.bf16.mxu0 0
    %3923 = vmatpush1.bf16.xpose.msra.mxu0 0
    %3924 = vmatprep.subr.bf16.mxu0 0
    %3925 = vmatpush1.bf16.xpose.msra.mxu0 0
    %3926 = vmatprep.subr.bf16.mxu0 0
    %3927 = vmatpush1.bf16.xpose.msra.mxu0 0
    %3928 = vmatprep.subr.bf16.mxu0 0
    %3929 = vmatpush1.bf16.xpose.msra.mxu0 0
    %3930 = vmatprep.subr.bf16.mxu0 0
    %3931 = vmatpush1.bf16.xpose.msra.mxu0 0
    %3932 = vmatprep.subr.bf16.mxu0 0
    %3933 = vmatpush1.bf16.xpose.msra.mxu0 0
    %3934 = vmatprep.subr.bf16.mxu0 0
    %3935 = vmatpush1.bf16.xpose.msra.mxu0 0
    %3936 = vmatprep.subr.bf16.mxu0 0
    %3937 = vmatpush1.bf16.xpose.msra.mxu0 0
    %3938 = vmatprep.subr.bf16.mxu0 0
    %3939 = vmatpush1.bf16.xpose.msra.mxu0 0
    %3940 = vmatprep.mubr.bf16.mxu0 0
    %3941 = vmatmul.mubr.bf16.gmra.mrb[0].mxu0 %v3903
    %v3942 = vpop.f32.mrb[0].mxu0
    %v3943 = vadd.f32 0.0, %v3942
    %v3944 = vpop.f32.mrb[0].mxu0
    %v3945 = vpop.f32.mrb[0].mxu0
    %v3946 = vadd.f32 0.0, %v3945
    %v3947 = vpop.f32.mrb[0].mxu0
    %3948 = vdwg.mxu0
    %v3949 = vmul.f32 %v3943, 0.35355338
    %v3950 = vmul.f32 %v3946, 0.35355338
    %v3951 = vsel %vm801, %v3949, -inf
    %3952 = vmax.xlane.f32.xlu0 %v3951
    %v3953 = vpop.xlane.xlu0 %3952
    %v3954 = vsel %vm801, %v3950, -inf
    %3955 = vmax.xlane.f32.xlu0 %v3954
    %v3956 = vpop.xlane.xlu0 %3955
    %v3957 = vsub.f32 %v3949, %v3953
    %v3958 = vsub.f32 %v3950, %v3956
    %v3959 = vmul.f32 %v3957, 1.442695
    %v3960 = vpow.pop %v3959
    %v3961 = vmul.f32 %v3958, 1.442695
    %v3962 = vpow.pop %v3961
    %v3963 = vsel %vm801, %v3960, 0.0
    %3964 = vadd.xlane.f32.xlu0 %v3963
    %v3965 = vpop.xlane.xlu0 %3964
    %v3966 = vsel %vm801, %v3962, 0.0
    %3967 = vadd.xlane.f32.xlu0 %v3966
    %v3968 = vpop.xlane.xlu0 %3967
    %v3969 = vrcp.pop %v3965
    %v3970 = vrcp.pop %v3968
    %v3971 = vmul.f32 %v3960, %v3969
    %v3972 = vmul.f32 %v3962, %v3970
    %v3973 = vpack.c.bf16 %v3972, %v3971
    %3974 = vrot.lane.b32.xlu0 %v3377, 64
    %v3975 = vpop.permute.xlu0 %3974
    %v3978 = vsel %vm801, %v3973, 0
    %3980 = vmatprep.subr.bf16.mxu0 0
    %3981 = vmatpush1.bf16.msra.mxu0 %v3975
    %3982 = vmatprep.subr.bf16.mxu0 0
    %3983 = vmatpush1.bf16.msra.mxu0 0
    %3984 = vmatprep.subr.bf16.mxu0 0
    %3985 = vmatpush1.bf16.msra.mxu0 0
    %3986 = vmatprep.subr.bf16.mxu0 0
    %3987 = vmatpush1.bf16.msra.mxu0 0
    %3988 = vmatprep.subr.bf16.mxu0 0
    %3989 = vmatpush1.bf16.msra.mxu0 0
    %3990 = vmatprep.subr.bf16.mxu0 0
    %3991 = vmatpush1.bf16.msra.mxu0 0
    %3992 = vmatprep.subr.bf16.mxu0 0
    %3993 = vmatpush1.bf16.msra.mxu0 0
    %3994 = vmatprep.subr.bf16.mxu0 0
    %3995 = vmatpush1.bf16.msra.mxu0 0
    %3996 = vmatprep.subr.bf16.mxu0 0
    %3997 = vmatpush1.bf16.msra.mxu0 0
    %3998 = vmatprep.subr.bf16.mxu0 0
    %3999 = vmatpush1.bf16.msra.mxu0 0
    %4000 = vmatprep.subr.bf16.mxu0 0
    %4001 = vmatpush1.bf16.msra.mxu0 0
    %4002 = vmatprep.subr.bf16.mxu0 0
    %4003 = vmatpush1.bf16.msra.mxu0 0
    %4004 = vmatprep.subr.bf16.mxu0 0
    %4005 = vmatpush1.bf16.msra.mxu0 0
    %4006 = vmatprep.subr.bf16.mxu0 0
    %4007 = vmatpush1.bf16.msra.mxu0 0
    %4008 = vmatprep.subr.bf16.mxu0 0
    %4009 = vmatpush1.bf16.msra.mxu0 0
    %4010 = vmatprep.subr.bf16.mxu0 0
    %4011 = vmatpush1.bf16.msra.mxu0 0
    %4012 = vmatprep.mubr.bf16.mxu0 0
    %4013 = vmatmul.mubr.bf16.gmra.mrb[0].mxu0 %v3978
    %v4014 = vpop.f32.mrb[0].mxu0
    %v4015 = vadd.f32 0.0, %v4014
    %v4016 = vpop.f32.mrb[0].mxu0
    %v4017 = vpop.f32.mrb[0].mxu0
    %v4018 = vadd.f32 0.0, %v4017
    %v4019 = vpop.f32.mrb[0].mxu0
    %4020 = vdwg.mxu0
    %4021 = vrot.lane.b32.xlu0 %v3377, 120
    %v4022 = vpop.permute.xlu0 %4021
    %4023 = vrot.lane.b32.xlu0 %v3377, 88
    %v4024 = vpop.permute.xlu0 %4023
    %v4026 = vsel %vm1742, %v4022, 0
    %v4029 = vsel %vm1742, %v4024, 0
    %4031 = vmatprep.subr.bf16.mxu0 0
    %4032 = vmatpush1.bf16.xpose.msra.mxu0 %v4029
    %4033 = vmatprep.subr.bf16.mxu0 0
    %4034 = vmatpush1.bf16.xpose.msra.mxu0 0
    %4035 = vmatprep.subr.bf16.mxu0 0
    %4036 = vmatpush1.bf16.xpose.msra.mxu0 0
    %4037 = vmatprep.subr.bf16.mxu0 0
    %4038 = vmatpush1.bf16.xpose.msra.mxu0 0
    %4039 = vmatprep.subr.bf16.mxu0 0
    %4040 = vmatpush1.bf16.xpose.msra.mxu0 0
    %4041 = vmatprep.subr.bf16.mxu0 0
    %4042 = vmatpush1.bf16.xpose.msra.mxu0 0
    %4043 = vmatprep.subr.bf16.mxu0 0
    %4044 = vmatpush1.bf16.xpose.msra.mxu0 0
    %4045 = vmatprep.subr.bf16.mxu0 0
    %4046 = vmatpush1.bf16.xpose.msra.mxu0 0
    %4047 = vmatprep.subr.bf16.mxu0 0
    %4048 = vmatpush1.bf16.xpose.msra.mxu0 0
    %4049 = vmatprep.subr.bf16.mxu0 0
    %4050 = vmatpush1.bf16.xpose.msra.mxu0 0
    %4051 = vmatprep.subr.bf16.mxu0 0
    %4052 = vmatpush1.bf16.xpose.msra.mxu0 0
    %4053 = vmatprep.subr.bf16.mxu0 0
    %4054 = vmatpush1.bf16.xpose.msra.mxu0 0
    %4055 = vmatprep.subr.bf16.mxu0 0
    %4056 = vmatpush1.bf16.xpose.msra.mxu0 0
    %4057 = vmatprep.subr.bf16.mxu0 0
    %4058 = vmatpush1.bf16.xpose.msra.mxu0 0
    %4059 = vmatprep.subr.bf16.mxu0 0
    %4060 = vmatpush1.bf16.xpose.msra.mxu0 0
    %4061 = vmatprep.subr.bf16.mxu0 0
    %4062 = vmatpush1.bf16.xpose.msra.mxu0 0
    %4063 = vmatprep.mubr.bf16.mxu0 0
    %4064 = vmatmul.mubr.bf16.gmra.mrb[0].mxu0 %v4026
    %v4065 = vpop.f32.mrb[0].mxu0
    %v4066 = vadd.f32 0.0, %v4065
    %v4067 = vpop.f32.mrb[0].mxu0
    %v4068 = vpop.f32.mrb[0].mxu0
    %v4069 = vadd.f32 0.0, %v4068
    %v4070 = vpop.f32.mrb[0].mxu0
    %4071 = vdwg.mxu0
    %v4072 = vmul.f32 %v4066, 0.35355338
    %v4073 = vmul.f32 %v4069, 0.35355338
    %v4074 = vsel %vm801, %v4072, -inf
    %4075 = vmax.xlane.f32.xlu0 %v4074
    %v4076 = vpop.xlane.xlu0 %4075
    %v4077 = vsel %vm801, %v4073, -inf
    %4078 = vmax.xlane.f32.xlu0 %v4077
    %v4079 = vpop.xlane.xlu0 %4078
    %v4080 = vsub.f32 %v4072, %v4076
    %v4081 = vsub.f32 %v4073, %v4079
    %v4082 = vmul.f32 %v4080, 1.442695
    %v4083 = vpow.pop %v4082
    %v4084 = vmul.f32 %v4081, 1.442695
    %v4085 = vpow.pop %v4084
    %v4086 = vsel %vm801, %v4083, 0.0
    %4087 = vadd.xlane.f32.xlu0 %v4086
    %v4088 = vpop.xlane.xlu0 %4087
    %v4089 = vsel %vm801, %v4085, 0.0
    %4090 = vadd.xlane.f32.xlu0 %v4089
    %v4091 = vpop.xlane.xlu0 %4090
    %v4092 = vrcp.pop %v4088
    %v4093 = vrcp.pop %v4091
    %v4094 = vmul.f32 %v4083, %v4092
    %v4095 = vmul.f32 %v4085, %v4093
    %v4096 = vpack.c.bf16 %v4095, %v4094
    %4097 = vrot.lane.b32.xlu0 %v3377, 56
    %v4098 = vpop.permute.xlu0 %4097
    %v4101 = vsel %vm801, %v4096, 0
    %4103 = vmatprep.subr.bf16.mxu0 0
    %4104 = vmatpush1.bf16.msra.mxu0 %v4098
    %4105 = vmatprep.subr.bf16.mxu0 0
    %4106 = vmatpush1.bf16.msra.mxu0 0
    %4107 = vmatprep.subr.bf16.mxu0 0
    %4108 = vmatpush1.bf16.msra.mxu0 0
    %4109 = vmatprep.subr.bf16.mxu0 0
    %4110 = vmatpush1.bf16.msra.mxu0 0
    %4111 = vmatprep.subr.bf16.mxu0 0
    %4112 = vmatpush1.bf16.msra.mxu0 0
    %4113 = vmatprep.subr.bf16.mxu0 0
    %4114 = vmatpush1.bf16.msra.mxu0 0
    %4115 = vmatprep.subr.bf16.mxu0 0
    %4116 = vmatpush1.bf16.msra.mxu0 0
    %4117 = vmatprep.subr.bf16.mxu0 0
    %4118 = vmatpush1.bf16.msra.mxu0 0
    %4119 = vmatprep.subr.bf16.mxu0 0
    %4120 = vmatpush1.bf16.msra.mxu0 0
    %4121 = vmatprep.subr.bf16.mxu0 0
    %4122 = vmatpush1.bf16.msra.mxu0 0
    %4123 = vmatprep.subr.bf16.mxu0 0
    %4124 = vmatpush1.bf16.msra.mxu0 0
    %4125 = vmatprep.subr.bf16.mxu0 0
    %4126 = vmatpush1.bf16.msra.mxu0 0
    %4127 = vmatprep.subr.bf16.mxu0 0
    %4128 = vmatpush1.bf16.msra.mxu0 0
    %4129 = vmatprep.subr.bf16.mxu0 0
    %4130 = vmatpush1.bf16.msra.mxu0 0
    %4131 = vmatprep.subr.bf16.mxu0 0
    %4132 = vmatpush1.bf16.msra.mxu0 0
    %4133 = vmatprep.subr.bf16.mxu0 0
    %4134 = vmatpush1.bf16.msra.mxu0 0
    %4135 = vmatprep.mubr.bf16.mxu0 0
    %4136 = vmatmul.mubr.bf16.gmra.mrb[0].mxu0 %v4101
    %v4137 = vpop.f32.mrb[0].mxu0
    %v4138 = vadd.f32 0.0, %v4137
    %v4139 = vpop.f32.mrb[0].mxu0
    %v4140 = vpop.f32.mrb[0].mxu0
    %v4141 = vadd.f32 0.0, %v4140
    %v4142 = vpop.f32.mrb[0].mxu0
    %4143 = vdwg.mxu0
    %4144 = vrot.lane.b32.xlu0 %v3377, 112
    %v4145 = vpop.permute.xlu0 %4144
    %4146 = vrot.lane.b32.xlu0 %v3377, 80
    %v4147 = vpop.permute.xlu0 %4146
    %v4149 = vsel %vm1742, %v4145, 0
    %v4152 = vsel %vm1742, %v4147, 0
    %4154 = vmatprep.subr.bf16.mxu0 0
    %4155 = vmatpush1.bf16.xpose.msra.mxu0 %v4152
    %4156 = vmatprep.subr.bf16.mxu0 0
    %4157 = vmatpush1.bf16.xpose.msra.mxu0 0
    %4158 = vmatprep.subr.bf16.mxu0 0
    %4159 = vmatpush1.bf16.xpose.msra.mxu0 0
    %4160 = vmatprep.subr.bf16.mxu0 0
    %4161 = vmatpush1.bf16.xpose.msra.mxu0 0
    %4162 = vmatprep.subr.bf16.mxu0 0
    %4163 = vmatpush1.bf16.xpose.msra.mxu0 0
    %4164 = vmatprep.subr.bf16.mxu0 0
    %4165 = vmatpush1.bf16.xpose.msra.mxu0 0
    %4166 = vmatprep.subr.bf16.mxu0 0
    %4167 = vmatpush1.bf16.xpose.msra.mxu0 0
    %4168 = vmatprep.subr.bf16.mxu0 0
    %4169 = vmatpush1.bf16.xpose.msra.mxu0 0
    %4170 = vmatprep.subr.bf16.mxu0 0
    %4171 = vmatpush1.bf16.xpose.msra.mxu0 0
    %4172 = vmatprep.subr.bf16.mxu0 0
    %4173 = vmatpush1.bf16.xpose.msra.mxu0 0
    %4174 = vmatprep.subr.bf16.mxu0 0
    %4175 = vmatpush1.bf16.xpose.msra.mxu0 0
    %4176 = vmatprep.subr.bf16.mxu0 0
    %4177 = vmatpush1.bf16.xpose.msra.mxu0 0
    %4178 = vmatprep.subr.bf16.mxu0 0
    %4179 = vmatpush1.bf16.xpose.msra.mxu0 0
    %4180 = vmatprep.subr.bf16.mxu0 0
    %4181 = vmatpush1.bf16.xpose.msra.mxu0 0
    %4182 = vmatprep.subr.bf16.mxu0 0
    %4183 = vmatpush1.bf16.xpose.msra.mxu0 0
    %4184 = vmatprep.subr.bf16.mxu0 0
    %4185 = vmatpush1.bf16.xpose.msra.mxu0 0
    %4186 = vmatprep.mubr.bf16.mxu0 0
    %4187 = vmatmul.mubr.bf16.gmra.mrb[0].mxu0 %v4149
    %v4188 = vpop.f32.mrb[0].mxu0
    %v4189 = vadd.f32 0.0, %v4188
    %v4190 = vpop.f32.mrb[0].mxu0
    %v4191 = vpop.f32.mrb[0].mxu0
    %v4192 = vadd.f32 0.0, %v4191
    %v4193 = vpop.f32.mrb[0].mxu0
    %4194 = vdwg.mxu0
    %v4195 = vmul.f32 %v4189, 0.35355338
    %v4196 = vmul.f32 %v4192, 0.35355338
    %v4197 = vsel %vm801, %v4195, -inf
    %4198 = vmax.xlane.f32.xlu0 %v4197
    %v4199 = vpop.xlane.xlu0 %4198
    %v4200 = vsel %vm801, %v4196, -inf
    %4201 = vmax.xlane.f32.xlu0 %v4200
    %v4202 = vpop.xlane.xlu0 %4201
    %v4203 = vsub.f32 %v4195, %v4199
    %v4204 = vsub.f32 %v4196, %v4202
    %v4205 = vmul.f32 %v4203, 1.442695
    %v4206 = vpow.pop %v4205
    %v4207 = vmul.f32 %v4204, 1.442695
    %v4208 = vpow.pop %v4207
    %v4209 = vsel %vm801, %v4206, 0.0
    %4210 = vadd.xlane.f32.xlu0 %v4209
    %v4211 = vpop.xlane.xlu0 %4210
    %v4212 = vsel %vm801, %v4208, 0.0
    %4213 = vadd.xlane.f32.xlu0 %v4212
    %v4214 = vpop.xlane.xlu0 %4213
    %v4215 = vrcp.pop %v4211
    %v4216 = vrcp.pop %v4214
    %v4217 = vmul.f32 %v4206, %v4215
    %v4218 = vmul.f32 %v4208, %v4216
    %v4219 = vpack.c.bf16 %v4218, %v4217
    %4220 = vrot.lane.b32.xlu0 %v3377, 48
    %v4221 = vpop.permute.xlu0 %4220
    %v4224 = vsel %vm801, %v4219, 0
    %4226 = vmatprep.subr.bf16.mxu0 0
    %4227 = vmatpush1.bf16.msra.mxu0 %v4221
    %4228 = vmatprep.subr.bf16.mxu0 0
    %4229 = vmatpush1.bf16.msra.mxu0 0
    %4230 = vmatprep.subr.bf16.mxu0 0
    %4231 = vmatpush1.bf16.msra.mxu0 0
    %4232 = vmatprep.subr.bf16.mxu0 0
    %4233 = vmatpush1.bf16.msra.mxu0 0
    %4234 = vmatprep.subr.bf16.mxu0 0
    %4235 = vmatpush1.bf16.msra.mxu0 0
    %4236 = vmatprep.subr.bf16.mxu0 0
    %4237 = vmatpush1.bf16.msra.mxu0 0
    %4238 = vmatprep.subr.bf16.mxu0 0
    %4239 = vmatpush1.bf16.msra.mxu0 0
    %4240 = vmatprep.subr.bf16.mxu0 0
    %4241 = vmatpush1.bf16.msra.mxu0 0
    %4242 = vmatprep.subr.bf16.mxu0 0
    %4243 = vmatpush1.bf16.msra.mxu0 0
    %4244 = vmatprep.subr.bf16.mxu0 0
    %4245 = vmatpush1.bf16.msra.mxu0 0
    %4246 = vmatprep.subr.bf16.mxu0 0
    %4247 = vmatpush1.bf16.msra.mxu0 0
    %4248 = vmatprep.subr.bf16.mxu0 0
    %4249 = vmatpush1.bf16.msra.mxu0 0
    %4250 = vmatprep.subr.bf16.mxu0 0
    %4251 = vmatpush1.bf16.msra.mxu0 0
    %4252 = vmatprep.subr.bf16.mxu0 0
    %4253 = vmatpush1.bf16.msra.mxu0 0
    %4254 = vmatprep.subr.bf16.mxu0 0
    %4255 = vmatpush1.bf16.msra.mxu0 0
    %4256 = vmatprep.subr.bf16.mxu0 0
    %4257 = vmatpush1.bf16.msra.mxu0 0
    %4258 = vmatprep.mubr.bf16.mxu0 0
    %4259 = vmatmul.mubr.bf16.gmra.mrb[0].mxu0 %v4224
    %v4260 = vpop.f32.mrb[0].mxu0
    %v4261 = vadd.f32 0.0, %v4260
    %v4262 = vpop.f32.mrb[0].mxu0
    %v4263 = vpop.f32.mrb[0].mxu0
    %v4264 = vadd.f32 0.0, %v4263
    %v4265 = vpop.f32.mrb[0].mxu0
    %4266 = vdwg.mxu0
    %4267 = vrot.lane.b32.xlu0 %v3377, 104
    %v4268 = vpop.permute.xlu0 %4267
    %4269 = vrot.lane.b32.xlu0 %v3377, 72
    %v4270 = vpop.permute.xlu0 %4269
    %v4272 = vsel %vm1742, %v4268, 0
    %v4275 = vsel %vm1742, %v4270, 0
    %4277 = vmatprep.subr.bf16.mxu0 0
    %4278 = vmatpush1.bf16.xpose.msra.mxu0 %v4275
    %4279 = vmatprep.subr.bf16.mxu0 0
    %4280 = vmatpush1.bf16.xpose.msra.mxu0 0
    %4281 = vmatprep.subr.bf16.mxu0 0
    %4282 = vmatpush1.bf16.xpose.msra.mxu0 0
    %4283 = vmatprep.subr.bf16.mxu0 0
    %4284 = vmatpush1.bf16.xpose.msra.mxu0 0
    %4285 = vmatprep.subr.bf16.mxu0 0
    %4286 = vmatpush1.bf16.xpose.msra.mxu0 0
    %4287 = vmatprep.subr.bf16.mxu0 0
    %4288 = vmatpush1.bf16.xpose.msra.mxu0 0
    %4289 = vmatprep.subr.bf16.mxu0 0
    %4290 = vmatpush1.bf16.xpose.msra.mxu0 0
    %4291 = vmatprep.subr.bf16.mxu0 0
    %4292 = vmatpush1.bf16.xpose.msra.mxu0 0
    %4293 = vmatprep.subr.bf16.mxu0 0
    %4294 = vmatpush1.bf16.xpose.msra.mxu0 0
    %4295 = vmatprep.subr.bf16.mxu0 0
    %4296 = vmatpush1.bf16.xpose.msra.mxu0 0
    %4297 = vmatprep.subr.bf16.mxu0 0
    %4298 = vmatpush1.bf16.xpose.msra.mxu0 0
    %4299 = vmatprep.subr.bf16.mxu0 0
    %4300 = vmatpush1.bf16.xpose.msra.mxu0 0
    %4301 = vmatprep.subr.bf16.mxu0 0
    %4302 = vmatpush1.bf16.xpose.msra.mxu0 0
    %4303 = vmatprep.subr.bf16.mxu0 0
    %4304 = vmatpush1.bf16.xpose.msra.mxu0 0
    %4305 = vmatprep.subr.bf16.mxu0 0
    %4306 = vmatpush1.bf16.xpose.msra.mxu0 0
    %4307 = vmatprep.subr.bf16.mxu0 0
    %4308 = vmatpush1.bf16.xpose.msra.mxu0 0
    %4309 = vmatprep.mubr.bf16.mxu0 0
    %4310 = vmatmul.mubr.bf16.gmra.mrb[0].mxu0 %v4272
    %v4311 = vpop.f32.mrb[0].mxu0
    %v4312 = vadd.f32 0.0, %v4311
    %v4313 = vpop.f32.mrb[0].mxu0
    %v4314 = vpop.f32.mrb[0].mxu0
    %v4315 = vadd.f32 0.0, %v4314
    %v4316 = vpop.f32.mrb[0].mxu0
    %4317 = vdwg.mxu0
    %v4318 = vmul.f32 %v4312, 0.35355338
    %v4319 = vmul.f32 %v4315, 0.35355338
    %v4320 = vsel %vm801, %v4318, -inf
    %4321 = vmax.xlane.f32.xlu0 %v4320
    %v4322 = vpop.xlane.xlu0 %4321
    %v4323 = vsel %vm801, %v4319, -inf
    %4324 = vmax.xlane.f32.xlu0 %v4323
    %v4325 = vpop.xlane.xlu0 %4324
    %v4326 = vsub.f32 %v4318, %v4322
    %v4327 = vsub.f32 %v4319, %v4325
    %v4328 = vmul.f32 %v4326, 1.442695
    %v4329 = vpow.pop %v4328
    %v4330 = vmul.f32 %v4327, 1.442695
    %v4331 = vpow.pop %v4330
    %v4332 = vsel %vm801, %v4329, 0.0
    %4333 = vadd.xlane.f32.xlu0 %v4332
    %v4334 = vpop.xlane.xlu0 %4333
    %v4335 = vsel %vm801, %v4331, 0.0
    %4336 = vadd.xlane.f32.xlu0 %v4335
    %v4337 = vpop.xlane.xlu0 %4336
    %v4338 = vrcp.pop %v4334
    %v4339 = vrcp.pop %v4337
    %v4340 = vmul.f32 %v4329, %v4338
    %v4341 = vmul.f32 %v4331, %v4339
    %v4342 = vpack.c.bf16 %v4341, %v4340
    %4343 = vrot.lane.b32.xlu0 %v3377, 40
    %v4344 = vpop.permute.xlu0 %4343
    %v4347 = vsel %vm801, %v4342, 0
    %4349 = vmatprep.subr.bf16.mxu0 0
    %4350 = vmatpush1.bf16.msra.mxu0 %v4344
    %4351 = vmatprep.subr.bf16.mxu0 0
    %4352 = vmatpush1.bf16.msra.mxu0 0
    %4353 = vmatprep.subr.bf16.mxu0 0
    %4354 = vmatpush1.bf16.msra.mxu0 0
    %4355 = vmatprep.subr.bf16.mxu0 0
    %4356 = vmatpush1.bf16.msra.mxu0 0
    %4357 = vmatprep.subr.bf16.mxu0 0
    %4358 = vmatpush1.bf16.msra.mxu0 0
    %4359 = vmatprep.subr.bf16.mxu0 0
    %4360 = vmatpush1.bf16.msra.mxu0 0
    %4361 = vmatprep.subr.bf16.mxu0 0
    %4362 = vmatpush1.bf16.msra.mxu0 0
    %4363 = vmatprep.subr.bf16.mxu0 0
    %4364 = vmatpush1.bf16.msra.mxu0 0
    %4365 = vmatprep.subr.bf16.mxu0 0
    %4366 = vmatpush1.bf16.msra.mxu0 0
    %4367 = vmatprep.subr.bf16.mxu0 0
    %4368 = vmatpush1.bf16.msra.mxu0 0
    %4369 = vmatprep.subr.bf16.mxu0 0
    %4370 = vmatpush1.bf16.msra.mxu0 0
    %4371 = vmatprep.subr.bf16.mxu0 0
    %4372 = vmatpush1.bf16.msra.mxu0 0
    %4373 = vmatprep.subr.bf16.mxu0 0
    %4374 = vmatpush1.bf16.msra.mxu0 0
    %4375 = vmatprep.subr.bf16.mxu0 0
    %4376 = vmatpush1.bf16.msra.mxu0 0
    %4377 = vmatprep.subr.bf16.mxu0 0
    %4378 = vmatpush1.bf16.msra.mxu0 0
    %4379 = vmatprep.subr.bf16.mxu0 0
    %4380 = vmatpush1.bf16.msra.mxu0 0
    %4381 = vmatprep.mubr.bf16.mxu0 0
    %4382 = vmatmul.mubr.bf16.gmra.mrb[0].mxu0 %v4347
    %v4383 = vpop.f32.mrb[0].mxu0
    %v4384 = vadd.f32 0.0, %v4383
    %v4385 = vpop.f32.mrb[0].mxu0
    %v4386 = vpop.f32.mrb[0].mxu0
    %v4387 = vadd.f32 0.0, %v4386
    %v4388 = vpop.f32.mrb[0].mxu0
    %4389 = vdwg.mxu0
    %4392 = vrot.lane.b32.xlu0 %v4138, 8
    %v4393 = vpop.permute.xlu0 %4392
    %4394 = vrot.lane.b32.xlu0 %v4141, 8
    %v4395 = vpop.permute.xlu0 %4394
    %4400 = vrot.lane.b32.xlu0 %v4261, 16
    %v4401 = vpop.permute.xlu0 %4400
    %4402 = vrot.lane.b32.xlu0 %v4264, 16
    %v4403 = vpop.permute.xlu0 %4402
    %4408 = vrot.lane.b32.xlu0 %v4384, 24
    %v4409 = vpop.permute.xlu0 %4408
    %4410 = vrot.lane.b32.xlu0 %v4387, 24
    %v4411 = vpop.permute.xlu0 %4410
    %v4414 = vsel %vm1742, %v4015, %v4393
    %v4415 = vsel %vm1742, %v4018, %v4395
    %v4416 = vsel %vm801, %v4414, %v4401
    %v4417 = vsel %vm801, %v4415, %v4403
    %v4418 = vsel %vm2259, %v4416, %v4409
    %v4419 = vsel %vm2259, %v4417, %v4411
    %v4420 = vpack.c.bf16 %v3898, %v3897
    %v4421 = vpack.c.bf16 %v4419, %v4418
    %v4422 = vld [vmem:[#allocation7 + $0x120] sm:$0xf]
    %v4423 = vld [vmem:[#allocation7 + $0x128] sm:$0xf]
    %v4424 = vld [vmem:[#allocation7 + $0x130] sm:$0xf]
    %v4425 = vld [vmem:[#allocation7 + $0x138] sm:$0xf]
    %v4426 = vld [vmem:[#allocation7 + $0x140] sm:$0x1]
    %v4427 = vld [vmem:[#allocation6 + $0x20] ss:$0 sm:$0xff]
    %v4433 = vunpack.c.l.b16 %v4422
    %v4434 = vunpack.c.l.b16 %v4423
    %v4435 = vunpack.c.l.b16 %v4424
    %v4436 = vunpack.c.l.b16 %v4425
    %v4437 = vunpack.c.l.b16 %v4426
    %v4438 = vpack.c.b16 %v4434, %v4433
    %v4439 = vpack.c.b16 %v4436, %v4435
    %v4440 = vpack.c.b16 %v4437, %v4437
    %v4442 = vshrl.u32 %v4438, 16
    %v4444 = vshll.u32 %v4438, 16
    %v4446 = vrot.slane %v4444, 1
    %v4447 = vor.u32 %v4442, %v4446
    %v4449 = vshll.u32 %v4439, 16
    %v4451 = vrot.slane %v4449, 1
    %v4452 = vsel %vm784, %v4447, %v4451
    %v4453 = vshrl.u32 %v4439, 16
    %v4455 = vor.u32 %v4453, %v4451
    %v4457 = vshll.u32 %v4440, 16
    %v4459 = vrot.slane %v4457, 1
    %v4460 = vsel %vm784, %v4455, %v4459
    %v4464 = vsel %vm1577, %v4420, 0
    %v4467 = vsel %vm1577, %v4421, 0
    %4469 = vmatprep.subr.bf16.mxu0 0
    %4470 = vmatpush1.bf16.msra.mxu0 %v4452
    %4471 = vmatprep.subr.bf16.mxu0 0
    %4472 = vmatpush1.bf16.msra.mxu0 %v4460
    %4473 = vmatprep.subr.bf16.mxu0 0
    %4474 = vmatpush1.bf16.msra.mxu0 0
    %4475 = vmatprep.subr.bf16.mxu0 0
    %4476 = vmatpush1.bf16.msra.mxu0 0
    %4477 = vmatprep.subr.bf16.mxu0 0
    %4478 = vmatpush1.bf16.msra.mxu0 0
    %4479 = vmatprep.subr.bf16.mxu0 0
    %4480 = vmatpush1.bf16.msra.mxu0 0
    %4481 = vmatprep.subr.bf16.mxu0 0
    %4482 = vmatpush1.bf16.msra.mxu0 0
    %4483 = vmatprep.subr.bf16.mxu0 0
    %4484 = vmatpush1.bf16.msra.mxu0 0
    %4485 = vmatprep.subr.bf16.mxu0 0
    %4486 = vmatpush1.bf16.msra.mxu0 0
    %4487 = vmatprep.subr.bf16.mxu0 0
    %4488 = vmatpush1.bf16.msra.mxu0 0
    %4489 = vmatprep.subr.bf16.mxu0 0
    %4490 = vmatpush1.bf16.msra.mxu0 0
    %4491 = vmatprep.subr.bf16.mxu0 0
    %4492 = vmatpush1.bf16.msra.mxu0 0
    %4493 = vmatprep.subr.bf16.mxu0 0
    %4494 = vmatpush1.bf16.msra.mxu0 0
    %4495 = vmatprep.subr.bf16.mxu0 0
    %4496 = vmatpush1.bf16.msra.mxu0 0
    %4497 = vmatprep.subr.bf16.mxu0 0
    %4498 = vmatpush1.bf16.msra.mxu0 0
    %4499 = vmatprep.subr.bf16.mxu0 0
    %4500 = vmatpush1.bf16.msra.mxu0 0
    %4501 = vmatprep.mubr.bf16.mxu0 0
    %4502 = vmatmul.mubr.bf16.gmra.mrb[0].mxu0 %v4464
    %v4503 = vpop.f32.mrb[0].mxu0
    %v4504 = vadd.f32 %v4427, %v4503
    %v4505 = vpop.f32.mrb[0].mxu0
    %v4506 = vpop.f32.mrb[0].mxu0
    %v4507 = vadd.f32 %v4427, %v4506
    %v4508 = vpop.f32.mrb[0].mxu0
    %4509 = vmatprep.mubr.bf16.mxu0 0
    %4510 = vmatmul.mubr.bf16.gmra.mrb[0].mxu0 %v4467
    %v4511 = vpop.f32.mrb[0].mxu0
    %v4512 = vadd.f32 %v4427, %v4511
    %v4513 = vpop.f32.mrb[0].mxu0
    %v4514 = vpop.f32.mrb[0].mxu0
    %v4515 = vadd.f32 %v4427, %v4514
    %v4516 = vpop.f32.mrb[0].mxu0
    %4517 = vdwg.mxu0
    %v4518 = vadd.f32 %v3274, %v4504
    %v4519 = vadd.f32 %v3275, %v4507
    %v4520 = vadd.f32 %v3276, %v4512
    %v4521 = vadd.f32 %v3277, %v4515
    %v4522 = vld [vmem:[#allocation6 + $0x21] ss:$0 sm:$0xff]
    %v4523 = vld [vmem:[#allocation6 + $0x22] ss:$0 sm:$0xff]
    %v4524 = vsel %vm1577, %v4518, 0.0
    %4525 = vadd.xlane.f32.xlu0 %v4524
    %v4526 = vpop.xlane.xlu0 %4525
    %v4527 = vsel %vm1577, %v4519, 0.0
    %4528 = vadd.xlane.f32.xlu0 %v4527
    %v4529 = vpop.xlane.xlu0 %4528
    %v4530 = vsel %vm1577, %v4520, 0.0
    %4531 = vadd.xlane.f32.xlu0 %v4530
    %v4532 = vpop.xlane.xlu0 %4531
    %v4533 = vsel %vm1577, %v4521, 0.0
    %4534 = vadd.xlane.f32.xlu0 %v4533
    %v4535 = vpop.xlane.xlu0 %4534
    %v4536 = vmul.f32 %v4526, %v1590
    %v4537 = vmul.f32 %v4529, %v1590
    %v4538 = vmul.f32 %v4532, %v1590
    %v4539 = vmul.f32 %v4535, %v1590
    %v4540 = vsub.f32 %v4518, %v4536
    %v4541 = vsub.f32 %v4519, %v4537
    %v4542 = vsub.f32 %v4520, %v4538
    %v4543 = vsub.f32 %v4521, %v4539
    %v4544 = vmul.f32 %v4540, %v4540
    %v4545 = vmul.f32 %v4541, %v4541
    %v4546 = vmul.f32 %v4542, %v4542
    %v4547 = vmul.f32 %v4543, %v4543
    %v4548 = vsel %vm1577, %v4544, 0.0
    %4549 = vadd.xlane.f32.xlu0 %v4548
    %v4550 = vpop.xlane.xlu0 %4549
    %v4551 = vsel %vm1577, %v4545, 0.0
    %4552 = vadd.xlane.f32.xlu0 %v4551
    %v4553 = vpop.xlane.xlu0 %4552
    %v4554 = vsel %vm1577, %v4546, 0.0
    %4555 = vadd.xlane.f32.xlu0 %v4554
    %v4556 = vpop.xlane.xlu0 %4555
    %v4557 = vsel %vm1577, %v4547, 0.0
    %4558 = vadd.xlane.f32.xlu0 %v4557
    %v4559 = vpop.xlane.xlu0 %4558
    %v4560 = vmul.f32 %v4550, %v1590
    %v4561 = vmul.f32 %v4553, %v1590
    %v4562 = vmul.f32 %v4556, %v1590
    %v4563 = vmul.f32 %v4559, %v1590
    %v4564 = vadd.f32 %v4560, 1e-05
    %v4565 = vadd.f32 %v4561, 1e-05
    %v4566 = vadd.f32 %v4562, 1e-05
    %v4567 = vadd.f32 %v4563, 1e-05
    %v4568 = vrsqrt.pop %v4564
    %v4569 = vrsqrt.pop %v4565
    %v4570 = vrsqrt.pop %v4566
    %v4571 = vrsqrt.pop %v4567
    %v4572 = vmul.f32 %v4540, %v4568
    %v4573 = vmul.f32 %v4541, %v4569
    %v4574 = vmul.f32 %v4542, %v4570
    %v4575 = vmul.f32 %v4543, %v4571
    %v4576 = vmul.f32 %v4572, %v4522
    %v4577 = vmul.f32 %v4573, %v4522
    %v4578 = vmul.f32 %v4574, %v4522
    %v4579 = vmul.f32 %v4575, %v4522
    %v4580 = vadd.f32 %v4576, %v4523
    %v4581 = vadd.f32 %v4577, %v4523
    %v4582 = vadd.f32 %v4578, %v4523
    %v4583 = vadd.f32 %v4579, %v4523
    %v4584 = vpack.c.bf16 %v4581, %v4580
    %v4585 = vpack.c.bf16 %v4583, %v4582
    %v4586 = vld [vmem:[#allocation7 + $0x140] sm:$0xf]
    %v4587 = vld [vmem:[#allocation7 + $0x148] sm:$0xf]
    %v4588 = vld [vmem:[#allocation7 + $0x150] sm:$0xf]
    %v4589 = vld [vmem:[#allocation7 + $0x158] sm:$0xf]
    %v4590 = vld [vmem:[#allocation7 + $0x160] sm:$0x1]
    %v4591 = vld [vmem:[#allocation6 + $0x23] ss:$0 sm:$0xff]
    %v4597 = vunpack.c.l.b16 %v4586
    %v4598 = vunpack.c.l.b16 %v4587
    %v4599 = vunpack.c.l.b16 %v4588
    %v4600 = vunpack.c.l.b16 %v4589
    %v4601 = vunpack.c.l.b16 %v4590
    %v4602 = vpack.c.b16 %v4598, %v4597
    %v4603 = vpack.c.b16 %v4600, %v4599
    %v4604 = vpack.c.b16 %v4601, %v4601
    %v4606 = vshrl.u32 %v4602, 16
    %v4608 = vshll.u32 %v4602, 16
    %v4610 = vrot.slane %v4608, 1
    %v4611 = vor.u32 %v4606, %v4610
    %v4613 = vshll.u32 %v4603, 16
    %v4615 = vrot.slane %v4613, 1
    %v4616 = vsel %vm784, %v4611, %v4615
    %v4617 = vshrl.u32 %v4603, 16
    %v4619 = vor.u32 %v4617, %v4615
    %v4621 = vshll.u32 %v4604, 16
    %v4623 = vrot.slane %v4621, 1
    %v4624 = vsel %vm784, %v4619, %v4623
    %v4628 = vsel %vm1577, %v4584, 0
    %v4631 = vsel %vm1577, %v4585, 0
    %4633 = vmatprep.subr.bf16.mxu0 0
    %4634 = vmatpush1.bf16.msra.mxu0 %v4616
    %4635 = vmatprep.subr.bf16.mxu0 0
    %4636 = vmatpush1.bf16.msra.mxu0 %v4624
    %4637 = vmatprep.subr.bf16.mxu0 0
    %4638 = vmatpush1.bf16.msra.mxu0 0
    %4639 = vmatprep.subr.bf16.mxu0 0
    %4640 = vmatpush1.bf16.msra.mxu0 0
    %4641 = vmatprep.subr.bf16.mxu0 0
    %4642 = vmatpush1.bf16.msra.mxu0 0
    %4643 = vmatprep.subr.bf16.mxu0 0
    %4644 = vmatpush1.bf16.msra.mxu0 0
    %4645 = vmatprep.subr.bf16.mxu0 0
    %4646 = vmatpush1.bf16.msra.mxu0 0
    %4647 = vmatprep.subr.bf16.mxu0 0
    %4648 = vmatpush1.bf16.msra.mxu0 0
    %4649 = vmatprep.subr.bf16.mxu0 0
    %4650 = vmatpush1.bf16.msra.mxu0 0
    %4651 = vmatprep.subr.bf16.mxu0 0
    %4652 = vmatpush1.bf16.msra.mxu0 0
    %4653 = vmatprep.subr.bf16.mxu0 0
    %4654 = vmatpush1.bf16.msra.mxu0 0
    %4655 = vmatprep.subr.bf16.mxu0 0
    %4656 = vmatpush1.bf16.msra.mxu0 0
    %4657 = vmatprep.subr.bf16.mxu0 0
    %4658 = vmatpush1.bf16.msra.mxu0 0
    %4659 = vmatprep.subr.bf16.mxu0 0
    %4660 = vmatpush1.bf16.msra.mxu0 0
    %4661 = vmatprep.subr.bf16.mxu0 0
    %4662 = vmatpush1.bf16.msra.mxu0 0
    %4663 = vmatprep.subr.bf16.mxu0 0
    %4664 = vmatpush1.bf16.msra.mxu0 0
    %4665 = vmatprep.mubr.bf16.mxu0 0
    %4666 = vmatmul.mubr.bf16.gmra.mrb[0].mxu0 %v4628
    %v4667 = vpop.f32.mrb[0].mxu0
    %v4668 = vadd.f32 %v4591, %v4667
    %v4669 = vpop.f32.mrb[0].mxu0
    %v4670 = vpop.f32.mrb[0].mxu0
    %v4671 = vadd.f32 %v4591, %v4670
    %v4672 = vpop.f32.mrb[0].mxu0
    %4673 = vmatprep.mubr.bf16.mxu0 0
    %4674 = vmatmul.mubr.bf16.gmra.mrb[0].mxu0 %v4631
    %v4675 = vpop.f32.mrb[0].mxu0
    %v4676 = vadd.f32 %v4591, %v4675
    %v4677 = vpop.f32.mrb[0].mxu0
    %v4678 = vpop.f32.mrb[0].mxu0
    %v4679 = vadd.f32 %v4591, %v4678
    %v4680 = vpop.f32.mrb[0].mxu0
    %4681 = vdwg.mxu0
    %v4682 = vmul.f32 %v4668, %v4668
    %v4683 = vmul.f32 %v4671, %v4671
    %v4684 = vmul.f32 %v4676, %v4676
    %v4685 = vmul.f32 %v4679, %v4679
    %v4686 = vmul.f32 %v4668, %v4682
    %v4687 = vmul.f32 %v4671, %v4683
    %v4688 = vmul.f32 %v4676, %v4684
    %v4689 = vmul.f32 %v4679, %v4685
    %v4690 = vmul.f32 %v4686, 0.044715
    %v4691 = vmul.f32 %v4687, 0.044715
    %v4692 = vmul.f32 %v4688, 0.044715
    %v4693 = vmul.f32 %v4689, 0.044715
    %v4694 = vadd.f32 %v4668, %v4690
    %v4695 = vadd.f32 %v4671, %v4691
    %v4696 = vadd.f32 %v4676, %v4692
    %v4697 = vadd.f32 %v4679, %v4693
    %v4698 = vmul.f32 %v4694, 0.7978846
    %v4699 = vmul.f32 %v4695, 0.7978846
    %v4700 = vmul.f32 %v4696, 0.7978846
    %v4701 = vmul.f32 %v4697, 0.7978846
    %v4702 = vtanh.pop %v4698
    %v4703 = vtanh.pop %v4699
    %v4704 = vtanh.pop %v4700
    %v4705 = vtanh.pop %v4701
    %v4706 = vadd.f32 %v4702, 1.0
    %v4707 = vadd.f32 %v4703, 1.0
    %v4708 = vadd.f32 %v4704, 1.0
    %v4709 = vadd.f32 %v4705, 1.0
    %v4710 = vmul.f32 %v4706, 0.5
    %v4711 = vmul.f32 %v4707, 0.5
    %v4712 = vmul.f32 %v4708, 0.5
    %v4713 = vmul.f32 %v4709, 0.5
    %v4714 = vmul.f32 %v4668, %v4710
    %v4715 = vmul.f32 %v4671, %v4711
    %v4716 = vmul.f32 %v4676, %v4712
    %v4717 = vmul.f32 %v4679, %v4713
    %v4718 = vpack.c.bf16 %v4715, %v4714
    %v4719 = vpack.c.bf16 %v4717, %v4716
    %v4720 = vld [vmem:[#allocation7 + $0x160] sm:$0xf]
    %v4721 = vld [vmem:[#allocation7 + $0x168] sm:$0xf]
    %v4722 = vld [vmem:[#allocation7 + $0x170] sm:$0xf]
    %v4723 = vld [vmem:[#allocation7 + $0x178] sm:$0xf]
    %v4724 = vld [vmem:[#allocation7 + $0x180] sm:$0xf]
    %v4725 = vld [vmem:[#allocation7 + $0x188] sm:$0xf]
    %v4726 = vld [vmem:[#allocation7 + $0x190] sm:$0xf]
    %v4727 = vld [vmem:[#allocation7 + $0x198] sm:$0xf]
    %v4728 = vld [vmem:[#allocation7 + $0x1a0] sm:$0x1]
    %v4729 = vld [vmem:[#allocation6 + $0x24] ss:$0 sm:$0xff]
    %v4739 = vunpack.c.l.b16 %v4720
    %v4740 = vunpack.c.l.b16 %v4721
    %v4741 = vunpack.c.l.b16 %v4722
    %v4742 = vunpack.c.l.b16 %v4723
    %v4743 = vunpack.c.l.b16 %v4724
    %v4744 = vunpack.c.l.b16 %v4725
    %v4745 = vunpack.c.l.b16 %v4726
    %v4746 = vunpack.c.l.b16 %v4727
    %v4747 = vunpack.c.l.b16 %v4728
    %v4748 = vpack.c.b16 %v4740, %v4739
    %v4749 = vpack.c.b16 %v4742, %v4741
    %v4750 = vpack.c.b16 %v4744, %v4743
    %v4751 = vpack.c.b16 %v4746, %v4745
    %v4752 = vpack.c.b16 %v4747, %v4747
    %v4754 = vshrl.u32 %v4748, 16
    %v4756 = vshll.u32 %v4748, 16
    %v4758 = vrot.slane %v4756, 1
    %v4759 = vor.u32 %v4754, %v4758
    %v4761 = vshll.u32 %v4749, 16
    %v4763 = vrot.slane %v4761, 1
    %v4764 = vsel %vm784, %v4759, %v4763
    %v4765 = vshrl.u32 %v4749, 16
    %v4767 = vor.u32 %v4765, %v4763
    %v4769 = vshll.u32 %v4750, 16
    %v4771 = vrot.slane %v4769, 1
    %v4772 = vsel %vm784, %v4767, %v4771
    %v4773 = vshrl.u32 %v4750, 16
    %v4775 = vor.u32 %v4773, %v4771
    %v4777 = vshll.u32 %v4751, 16
    %v4779 = vrot.slane %v4777, 1
    %v4780 = vsel %vm784, %v4775, %v4779
    %v4781 = vshrl.u32 %v4751, 16
    %v4783 = vor.u32 %v4781, %v4779
    %v4785 = vshll.u32 %v4752, 16
    %v4787 = vrot.slane %v4785, 1
    %v4788 = vsel %vm784, %v4783, %v4787
    %v4794 = vsel %vm3156, %v4718, 0
    %v4797 = vsel %vm3156, %v4719, 0
    %4799 = vmatprep.subr.bf16.mxu0 0
    %4800 = vmatpush1.bf16.msra.mxu0 %v4764
    %4801 = vmatprep.subr.bf16.mxu0 0
    %4802 = vmatpush1.bf16.msra.mxu0 %v4772
    %4803 = vmatprep.subr.bf16.mxu0 0
    %4804 = vmatpush1.bf16.msra.mxu0 %v4780
    %4805 = vmatprep.subr.bf16.mxu0 0
    %4806 = vmatpush1.bf16.msra.mxu0 %v4788
    %4807 = vmatprep.subr.bf16.mxu0 0
    %4808 = vmatpush1.bf16.msra.mxu0 0
    %4809 = vmatprep.subr.bf16.mxu0 0
    %4810 = vmatpush1.bf16.msra.mxu0 0
    %4811 = vmatprep.subr.bf16.mxu0 0
    %4812 = vmatpush1.bf16.msra.mxu0 0
    %4813 = vmatprep.subr.bf16.mxu0 0
    %4814 = vmatpush1.bf16.msra.mxu0 0
    %4815 = vmatprep.subr.bf16.mxu0 0
    %4816 = vmatpush1.bf16.msra.mxu0 0
    %4817 = vmatprep.subr.bf16.mxu0 0
    %4818 = vmatpush1.bf16.msra.mxu0 0
    %4819 = vmatprep.subr.bf16.mxu0 0
    %4820 = vmatpush1.bf16.msra.mxu0 0
    %4821 = vmatprep.subr.bf16.mxu0 0
    %4822 = vmatpush1.bf16.msra.mxu0 0
    %4823 = vmatprep.subr.bf16.mxu0 0
    %4824 = vmatpush1.bf16.msra.mxu0 0
    %4825 = vmatprep.subr.bf16.mxu0 0
    %4826 = vmatpush1.bf16.msra.mxu0 0
    %4827 = vmatprep.subr.bf16.mxu0 0
    %4828 = vmatpush1.bf16.msra.mxu0 0
    %4829 = vmatprep.subr.bf16.mxu0 0
    %4830 = vmatpush1.bf16.msra.mxu0 0
    %4831 = vmatprep.mubr.bf16.mxu0 0
    %4832 = vmatmul.mubr.bf16.gmra.mrb[0].mxu0 %v4794
    %v4833 = vpop.f32.mrb[0].mxu0
    %v4834 = vadd.f32 %v4729, %v4833
    %v4835 = vpop.f32.mrb[0].mxu0
    %v4836 = vpop.f32.mrb[0].mxu0
    %v4837 = vadd.f32 %v4729, %v4836
    %v4838 = vpop.f32.mrb[0].mxu0
    %4839 = vmatprep.mubr.bf16.mxu0 0
    %4840 = vmatmul.mubr.bf16.gmra.mrb[0].mxu0 %v4797
    %v4841 = vpop.f32.mrb[0].mxu0
    %v4842 = vadd.f32 %v4729, %v4841
    %v4843 = vpop.f32.mrb[0].mxu0
    %v4844 = vpop.f32.mrb[0].mxu0
    %v4845 = vadd.f32 %v4729, %v4844
    %v4846 = vpop.f32.mrb[0].mxu0
    %4847 = vdwg.mxu0
    %v4848 = vadd.f32 %v4580, %v4834
    %v4849 = vadd.f32 %v4581, %v4837
    %v4850 = vadd.f32 %v4582, %v4842
    %v4851 = vadd.f32 %v4583, %v4845
    %v4852 = vld [vmem:[#allocation6 + $0x25] ss:$0 sm:$0xff]
    %v4853 = vld [vmem:[#allocation6 + $0x26] ss:$0 sm:$0xff]
    %v4854 = vsel %vm1577, %v4848, 0.0
    %4855 = vadd.xlane.f32.xlu0 %v4854
    %v4856 = vpop.xlane.xlu0 %4855
    %v4857 = vsel %vm1577, %v4849, 0.0
    %4858 = vadd.xlane.f32.xlu0 %v4857
    %v4859 = vpop.xlane.xlu0 %4858
    %v4860 = vsel %vm1577, %v4850, 0.0
    %4861 = vadd.xlane.f32.xlu0 %v4860
    %v4862 = vpop.xlane.xlu0 %4861
    %v4863 = vsel %vm1577, %v4851, 0.0
    %4864 = vadd.xlane.f32.xlu0 %v4863
    %v4865 = vpop.xlane.xlu0 %4864
    %v4866 = vmul.f32 %v4856, %v1590
    %v4867 = vmul.f32 %v4859, %v1590
    %v4868 = vmul.f32 %v4862, %v1590
    %v4869 = vmul.f32 %v4865, %v1590
    %v4870 = vsub.f32 %v4848, %v4866
    %v4871 = vsub.f32 %v4849, %v4867
    %v4872 = vsub.f32 %v4850, %v4868
    %v4873 = vsub.f32 %v4851, %v4869
    %v4874 = vmul.f32 %v4870, %v4870
    %v4875 = vmul.f32 %v4871, %v4871
    %v4876 = vmul.f32 %v4872, %v4872
    %v4877 = vmul.f32 %v4873, %v4873
    %v4878 = vsel %vm1577, %v4874, 0.0
    %4879 = vadd.xlane.f32.xlu0 %v4878
    %v4880 = vpop.xlane.xlu0 %4879
    %v4881 = vsel %vm1577, %v4875, 0.0
    %4882 = vadd.xlane.f32.xlu0 %v4881
    %v4883 = vpop.xlane.xlu0 %4882
    %v4884 = vsel %vm1577, %v4876, 0.0
    %4885 = vadd.xlane.f32.xlu0 %v4884
    %v4886 = vpop.xlane.xlu0 %4885
    %v4887 = vsel %vm1577, %v4877, 0.0
    %4888 = vadd.xlane.f32.xlu0 %v4887
    %v4889 = vpop.xlane.xlu0 %4888
    %v4890 = vmul.f32 %v4880, %v1590
    %v4891 = vmul.f32 %v4883, %v1590
    %v4892 = vmul.f32 %v4886, %v1590
    %v4893 = vmul.f32 %v4889, %v1590
    %v4894 = vadd.f32 %v4890, 1e-05
    %v4895 = vadd.f32 %v4891, 1e-05
    %v4896 = vadd.f32 %v4892, 1e-05
    %v4897 = vadd.f32 %v4893, 1e-05
    %v4898 = vrsqrt.pop %v4894
    %v4899 = vrsqrt.pop %v4895
    %v4900 = vrsqrt.pop %v4896
    %v4901 = vrsqrt.pop %v4897
    %v4902 = vmul.f32 %v4870, %v4898
    %v4903 = vmul.f32 %v4871, %v4899
    %v4904 = vmul.f32 %v4872, %v4900
    %v4905 = vmul.f32 %v4873, %v4901
    %v4906 = vmul.f32 %v4902, %v4852
    %v4907 = vmul.f32 %v4903, %v4852
    %v4908 = vmul.f32 %v4904, %v4852
    %v4909 = vmul.f32 %v4905, %v4852
    %v4910 = vadd.f32 %v4906, %v4853
    %v4911 = vadd.f32 %v4907, %v4853
    %v4912 = vadd.f32 %v4908, %v4853
    %v4913 = vadd.f32 %v4909, %v4853
    %v4914 = vlaneseq
    %v4915 = vand.u32 %v4914, 127
    %v4916 = vadd.s32 %v4915, 128
    %vm4917 = vcmp.lt.s32.totalorder %v4915, 0
    %v4918 = vsub.s32 0, %v4915
    %v4919 = vsel %vm4917, %v4918, %v4915
    %v4920 = vshrl.u32 %v4919, 5
    %v4921 = vand.u32 %v4919, 31
    %v4922 = vsub.s32 0, %v4921
    %v4923 = vsel %vm4917, %v4922, %v4921
    %vm4924 = vcmp.lt.s32.totalorder %v4916, 0
    %v4925 = vsub.s32 0, %v4916
    %v4926 = vsel %vm4924, %v4925, %v4916
    %v4927 = vshrl.u32 %v4926, 5
    %v4928 = vand.u32 %v4926, 31
    %v4929 = vsub.s32 0, %v4928
    %v4930 = vsel %vm4924, %v4929, %v4928
    %vm4931 = vcmp.ne.s32.totalorder %v4923, 0
    %vm4932 = vcmp.ne.s32.totalorder %v4930, 0
    %vm4933 = vcmp.lt.s32.totalorder %v4923, 0
    %vm4934 = vcmp.lt.s32.totalorder %v4930, 0
    %vm4935 = vmand %vm4933, %vm4931
    %vm4936 = vmand %vm4934, %vm4932
    %v4937 = vadd.s32 %v4923, 32
    %v4938 = vadd.s32 %v4930, 32
    %v4939 = vsel %vm4935, %v4937, %v4923
    %v4940 = vsel %vm4936, %v4938, %v4930
    %vm4941 = vcmp.lt.s32.totalorder %v4939, 16
    %vm4942 = vcmp.lt.s32.totalorder %v4940, 16
    %4945 = vrot.lane.b32.xlu0 %v4912, 32
    %v4946 = vpop.permute.xlu0 %4945
    %4947 = vrot.lane.b32.xlu0 %v4913, 32
    %v4948 = vpop.permute.xlu0 %4947
    %v4951 = vsel %vm1577, %v4910, %v4946
    %v4952 = vsel %vm1577, %v4911, %v4948
    %v4953 = vpack.c.bf16 %v4952, %v4951
    %v4954 = vld [vmem:[#allocation7 + $0x1a0] sm:$0xff]
    %v4955 = vld [vmem:[#allocation7 + $0x1a8] sm:$0xff]
    %v4956 = vld [vmem:[#allocation7 + $0x1b0] sm:$0xff]
    %v4957 = vld [vmem:[#allocation7 + $0x1b8] sm:$0xff]
    %v4958 = vld [vmem:[#allocation7 + $0x1c0] sm:$0xff]
    %v4959 = vld [vmem:[#allocation7 + $0x1c8] sm:$0xff]
    %v4960 = vld [vmem:[#allocation7 + $0x1d0] sm:$0xff]
    %v4961 = vld [vmem:[#allocation7 + $0x1d8] sm:$0xff]
    %v4962 = vld [vmem:[#allocation7 + $0x1e0] sm:$0x11]
    %s4963 = scalar_lea.vmem [#allocation6], 39
    %v4964 = vld [vmem:[%s4963] ss:$8 sm:$0x3]
    %v4966 = vlaneseq
    %v4967 = vshrl.u32 %v4966, 7
    %v4968 = vsub.s32 0, %v4967
    %v4969 = vrot.slane %v4964, %v4968
    %v4970 = vlaneseq
    %v4971 = vshrl.u32 %v4970, 7
    %v4972 = vsub.s32 1, %v4971
    %v4973 = vrot.slane %v4964, %v4972
    %v4985 = vunpack.c.l.b16 %v4954
    %v4986 = vunpack.c.h.b16 %v4954
    %v4987 = vunpack.c.l.b16 %v4955
    %v4988 = vunpack.c.h.b16 %v4955
    %v4989 = vunpack.c.l.b16 %v4956
    %v4990 = vunpack.c.h.b16 %v4956
    %v4991 = vunpack.c.l.b16 %v4957
    %v4992 = vunpack.c.h.b16 %v4957
    %v4993 = vunpack.c.l.b16 %v4958
    %v4994 = vunpack.c.h.b16 %v4958
    %v4995 = vunpack.c.l.b16 %v4959
    %v4996 = vunpack.c.h.b16 %v4959
    %v4997 = vunpack.c.l.b16 %v4960
    %v4998 = vunpack.c.h.b16 %v4960
    %v4999 = vunpack.c.l.b16 %v4961
    %v5000 = vunpack.c.h.b16 %v4961
    %v5001 = vunpack.c.l.b16 %v4962
    %v5002 = vunpack.c.h.b16 %v4962
    %v5003 = vpack.c.b16 %v4987, %v4985
    %v5004 = vpack.c.b16 %v4988, %v4986
    %v5005 = vpack.c.b16 %v4991, %v4989
    %v5006 = vpack.c.b16 %v4992, %v4990
    %v5007 = vpack.c.b16 %v4995, %v4993
    %v5008 = vpack.c.b16 %v4996, %v4994
    %v5009 = vpack.c.b16 %v4999, %v4997
    %v5010 = vpack.c.b16 %v5000, %v4998
    %v5011 = vpack.c.b16 %v5001, %v5001
    %v5012 = vpack.c.b16 %v5002, %v5002
    %v5014 = vshrl.u32 %v5003, 16
    %v5016 = vshll.u32 %v5003, 16
    %v5018 = vrot.slane %v5016, 1
    %v5019 = vor.u32 %v5014, %v5018
    %v5021 = vshll.u32 %v5005, 16
    %v5023 = vrot.slane %v5021, 1
    %v5024 = vsel %vm784, %v5019, %v5023
    %v5026 = vshrl.u32 %v5004, 16
    %v5028 = vshll.u32 %v5004, 16
    %v5030 = vrot.slane %v5028, 1
    %v5031 = vor.u32 %v5026, %v5030
    %v5033 = vshll.u32 %v5006, 16
    %v5035 = vrot.slane %v5033, 1
    %v5036 = vsel %vm784, %v5031, %v5035
    %v5037 = vshrl.u32 %v5005, 16
    %v5039 = vor.u32 %v5037, %v5023
    %v5041 = vshll.u32 %v5007, 16
    %v5043 = vrot.slane %v5041, 1
    %v5044 = vsel %vm784, %v5039, %v5043
    %v5045 = vshrl.u32 %v5006, 16
    %v5047 = vor.u32 %v5045, %v5035
    %v5049 = vshll.u32 %v5008, 16
    %v5051 = vrot.slane %v5049, 1
    %v5052 = vsel %vm784, %v5047, %v5051
    %v5053 = vshrl.u32 %v5007, 16
    %v5055 = vor.u32 %v5053, %v5043
    %v5057 = vshll.u32 %v5009, 16
    %v5059 = vrot.slane %v5057, 1
    %v5060 = vsel %vm784, %v5055, %v5059
    %v5061 = vshrl.u32 %v5008, 16
    %v5063 = vor.u32 %v5061, %v5051
    %v5065 = vshll.u32 %v5010, 16
    %v5067 = vrot.slane %v5065, 1
    %v5068 = vsel %vm784, %v5063, %v5067
    %v5069 = vshrl.u32 %v5009, 16
    %v5071 = vor.u32 %v5069, %v5059
    %v5073 = vshll.u32 %v5011, 16
    %v5075 = vrot.slane %v5073, 1
    %v5076 = vsel %vm784, %v5071, %v5075
    %v5077 = vshrl.u32 %v5010, 16
    %v5079 = vor.u32 %v5077, %v5067
    %v5081 = vshll.u32 %v5012, 16
    %v5083 = vrot.slane %v5081, 1
    %v5084 = vsel %vm784, %v5079, %v5083
    %v5094 = vsel %vm3156, %v4953, 0
    %5096 = vmatprep.subr.bf16.mxu0 %v5036
    %5097 = vmatpush1.bf16.msra.mxu0 %v5024
    %5098 = vmatprep.subr.bf16.mxu0 %v5052
    %5099 = vmatpush1.bf16.msra.mxu0 %v5044
    %5100 = vmatprep.subr.bf16.mxu0 %v5068
    %5101 = vmatpush1.bf16.msra.mxu0 %v5060
    %5102 = vmatprep.subr.bf16.mxu0 %v5084
    %5103 = vmatpush1.bf16.msra.mxu0 %v5076
    %5104 = vmatprep.subr.bf16.mxu0 0
    %5105 = vmatpush1.bf16.msra.mxu0 0
    %5106 = vmatprep.subr.bf16.mxu0 0
    %5107 = vmatpush1.bf16.msra.mxu0 0
    %5108 = vmatprep.subr.bf16.mxu0 0
    %5109 = vmatpush1.bf16.msra.mxu0 0
    %5110 = vmatprep.subr.bf16.mxu0 0
    %5111 = vmatpush1.bf16.msra.mxu0 0
    %5112 = vmatprep.subr.bf16.mxu0 0
    %5113 = vmatpush1.bf16.msra.mxu0 0
    %5114 = vmatprep.subr.bf16.mxu0 0
    %5115 = vmatpush1.bf16.msra.mxu0 0
    %5116 = vmatprep.subr.bf16.mxu0 0
    %5117 = vmatpush1.bf16.msra.mxu0 0
    %5118 = vmatprep.subr.bf16.mxu0 0
    %5119 = vmatpush1.bf16.msra.mxu0 0
    %5120 = vmatprep.subr.bf16.mxu0 0
    %5121 = vmatpush1.bf16.msra.mxu0 0
    %5122 = vmatprep.subr.bf16.mxu0 0
    %5123 = vmatpush1.bf16.msra.mxu0 0
    %5124 = vmatprep.subr.bf16.mxu0 0
    %5125 = vmatpush1.bf16.msra.mxu0 0
    %5126 = vmatprep.subr.bf16.mxu0 0
    %5127 = vmatpush1.bf16.msra.mxu0 0
    %5128 = vmatprep.mubr.bf16.mxu0 0
    %5129 = vmatmul.mubr.bf16.gmra.mrb[0].mxu0 %v5094
    %v5130 = vpop.f32.mrb[0].mxu0
    %v5131 = vadd.f32 %v4969, %v5130
    %v5132 = vpop.f32.mrb[0].mxu0
    %v5133 = vadd.f32 %v4973, %v5132
    %v5134 = vpop.f32.mrb[0].mxu0
    %v5135 = vadd.f32 %v4969, %v5134
    %v5136 = vpop.f32.mrb[0].mxu0
    %v5137 = vadd.f32 %v4973, %v5136
    %5138 = vdwg.mxu0
    %v5139 = vld [vmem:[#allocation7 + $0x1e0] sm:$0xff]
    %v5140 = vld [vmem:[#allocation7 + $0x1e8] sm:$0xff]
    %v5141 = vld [vmem:[#allocation7 + $0x1f0] sm:$0xff]
    %v5142 = vld [vmem:[#allocation7 + $0x1f8] sm:$0xff]
    %v5143 = vld [vmem:[#allocation7 + $0x200] sm:$0xff]
    %v5144 = vld [vmem:[#allocation7 + $0x208] sm:$0xff]
    %v5145 = vld [vmem:[#allocation7 + $0x210] sm:$0xff]
    %v5146 = vld [vmem:[#allocation7 + $0x218] sm:$0xff]
    %v5147 = vld [vmem:[#allocation7 + $0x220] sm:$0x11]
    %v5150 = vrot.slane %v5135, 7
    %v5151 = vrot.slane %v5137, 7
    %v5154 = vsel %vm4941, %v5131, %v5150
    %v5155 = vsel %vm4942, %v5133, %v5151
    %v5165 = vunpack.c.l.b16 %v5139
    %v5166 = vunpack.c.h.b16 %v5139
    %v5167 = vunpack.c.l.b16 %v5140
    %v5168 = vunpack.c.h.b16 %v5140
    %v5169 = vunpack.c.l.b16 %v5141
    %v5170 = vunpack.c.h.b16 %v5141
    %v5171 = vunpack.c.l.b16 %v5142
    %v5172 = vunpack.c.h.b16 %v5142
    %v5173 = vunpack.c.l.b16 %v5143
    %v5174 = vunpack.c.h.b16 %v5143
    %v5175 = vunpack.c.l.b16 %v5144
    %v5176 = vunpack.c.h.b16 %v5144
    %v5177 = vunpack.c.l.b16 %v5145
    %v5178 = vunpack.c.h.b16 %v5145
    %v5179 = vunpack.c.l.b16 %v5146
    %v5180 = vunpack.c.h.b16 %v5146
    %v5181 = vunpack.c.l.b16 %v5147
    %v5182 = vunpack.c.h.b16 %v5147
    %v5183 = vpack.c.b16 %v5167, %v5165
    %v5184 = vpack.c.b16 %v5168, %v5166
    %v5185 = vpack.c.b16 %v5171, %v5169
    %v5186 = vpack.c.b16 %v5172, %v5170
    %v5187 = vpack.c.b16 %v5175, %v5173
    %v5188 = vpack.c.b16 %v5176, %v5174
    %v5189 = vpack.c.b16 %v5179, %v5177
    %v5190 = vpack.c.b16 %v5180, %v5178
    %v5191 = vpack.c.b16 %v5181, %v5181
    %v5192 = vpack.c.b16 %v5182, %v5182
    %v5194 = vshrl.u32 %v5183, 16
    %v5196 = vshll.u32 %v5183, 16
    %v5198 = vrot.slane %v5196, 1
    %v5199 = vor.u32 %v5194, %v5198
    %v5201 = vshll.u32 %v5185, 16
    %v5203 = vrot.slane %v5201, 1
    %v5204 = vsel %vm784, %v5199, %v5203
    %v5206 = vshrl.u32 %v5184, 16
    %v5208 = vshll.u32 %v5184, 16
    %v5210 = vrot.slane %v5208, 1
    %v5211 = vor.u32 %v5206, %v5210
    %v5213 = vshll.u32 %v5186, 16
    %v5215 = vrot.slane %v5213, 1
    %v5216 = vsel %vm784, %v5211, %v5215
    %v5217 = vshrl.u32 %v5185, 16
    %v5219 = vor.u32 %v5217, %v5203
    %v5221 = vshll.u32 %v5187, 16
    %v5223 = vrot.slane %v5221, 1
    %v5224 = vsel %vm784, %v5219, %v5223
    %v5225 = vshrl.u32 %v5186, 16
    %v5227 = vor.u32 %v5225, %v5215
    %v5229 = vshll.u32 %v5188, 16
    %v5231 = vrot.slane %v5229, 1
    %v5232 = vsel %vm784, %v5227, %v5231
    %v5233 = vshrl.u32 %v5187, 16
    %v5235 = vor.u32 %v5233, %v5223
    %v5237 = vshll.u32 %v5189, 16
    %v5239 = vrot.slane %v5237, 1
    %v5240 = vsel %vm784, %v5235, %v5239
    %v5241 = vshrl.u32 %v5188, 16
    %v5243 = vor.u32 %v5241, %v5231
    %v5245 = vshll.u32 %v5190, 16
    %v5247 = vrot.slane %v5245, 1
    %v5248 = vsel %vm784, %v5243, %v5247
    %v5249 = vshrl.u32 %v5189, 16
    %v5251 = vor.u32 %v5249, %v5239
    %v5253 = vshll.u32 %v5191, 16
    %v5255 = vrot.slane %v5253, 1
    %v5256 = vsel %vm784, %v5251, %v5255
    %v5257 = vshrl.u32 %v5190, 16
    %v5259 = vor.u32 %v5257, %v5247
    %v5261 = vshll.u32 %v5192, 16
    %v5263 = vrot.slane %v5261, 1
    %v5264 = vsel %vm784, %v5259, %v5263
    %v5274 = vsel %vm3156, 0, 0
    %5276 = vmatprep.subr.bf16.mxu0 %v5216
    %5277 = vmatpush1.bf16.msra.mxu0 %v5204
    %5278 = vmatprep.subr.bf16.mxu0 %v5232
    %5279 = vmatpush1.bf16.msra.mxu0 %v5224
    %5280 = vmatprep.subr.bf16.mxu0 %v5248
    %5281 = vmatpush1.bf16.msra.mxu0 %v5240
    %5282 = vmatprep.subr.bf16.mxu0 %v5264
    %5283 = vmatpush1.bf16.msra.mxu0 %v5256
    %5284 = vmatprep.subr.bf16.mxu0 0
    %5285 = vmatpush1.bf16.msra.mxu0 0
    %5286 = vmatprep.subr.bf16.mxu0 0
    %5287 = vmatpush1.bf16.msra.mxu0 0
    %5288 = vmatprep.subr.bf16.mxu0 0
    %5289 = vmatpush1.bf16.msra.mxu0 0
    %5290 = vmatprep.subr.bf16.mxu0 0
    %5291 = vmatpush1.bf16.msra.mxu0 0
    %5292 = vmatprep.subr.bf16.mxu0 0
    %5293 = vmatpush1.bf16.msra.mxu0 0
    %5294 = vmatprep.subr.bf16.mxu0 0
    %5295 = vmatpush1.bf16.msra.mxu0 0
    %5296 = vmatprep.subr.bf16.mxu0 0
    %5297 = vmatpush1.bf16.msra.mxu0 0
    %5298 = vmatprep.subr.bf16.mxu0 0
    %5299 = vmatpush1.bf16.msra.mxu0 0
    %5300 = vmatprep.subr.bf16.mxu0 0
    %5301 = vmatpush1.bf16.msra.mxu0 0
    %5302 = vmatprep.subr.bf16.mxu0 0
    %5303 = vmatpush1.bf16.msra.mxu0 0
    %5304 = vmatprep.subr.bf16.mxu0 0
    %5305 = vmatpush1.bf16.msra.mxu0 0
    %5306 = vmatprep.subr.bf16.mxu0 0
    %5307 = vmatpush1.bf16.msra.mxu0 0
    %5308 = vmatprep.mubr.bf16.mxu0 0
    %5309 = vmatmul.mubr.bf16.gmra.mrb[0].mxu0 %v5274
    %v5310 = vpop.f32.mrb[0].mxu0
    %v5311 = vadd.f32 0.0, %v5310
    %v5312 = vpop.f32.mrb[0].mxu0
    %v5313 = vadd.f32 0.0, %v5312
    %v5314 = vpop.f32.mrb[0].mxu0
    %v5315 = vpop.f32.mrb[0].mxu0
    %5316 = vdwg.mxu0
    %v5317 = vadd.f32 %v5154, %v5311
    %v5318 = vadd.f32 %v5155, %v5313
    %v5319 = vxor.u32 %v5317, 2147483648
    %v5320 = vxor.u32 %v5318, 2147483648
    %v5321 = vmul.f32 %v5319, 1.442695
    %v5322 = vpow.pop %v5321
    %v5323 = vmul.f32 %v5320, 1.442695
    %v5324 = vpow.pop %v5323
    %v5325 = vadd.f32 %v5322, 1.0
    %v5326 = vadd.f32 %v5324, 1.0
    %v5327 = vrcp.pop %v5325
    %v5328 = vmul.f32 1.0, %v5327
    %v5329 = vrcp.pop %v5326
    %v5330 = vmul.f32 1.0, %v5329
    %v5331 = vtanh.pop %v5318
    %v5332 = vmul.f32 %v5328, 0.0
    %v5333 = vmul.f32 %v5328, %v5331
    %5335 = vrot.lane.b32.xlu0 %v5333, 64
    %v5336 = vpop.permute.xlu0 %5335
    %v5338 = vadd.f32 %v5332, %v5336
    %v5339 = vtanh.pop %v5338
    %v5340 = vmul.f32 %v5330, %v5339
    %v5341 = vrot.slane %v5135, 5
    %v5342 = vrot.slane %v5137, 5
    %v5345 = vsel %vm4941, %v5131, %v5341
    %v5346 = vsel %vm4942, %v5133, %v5342
    %v5347 = vpack.c.bf16 %v5340, %v5340
    %5349 = vrot.lane.b32.xlu0 %v5347, 64
    %v5350 = vpop.permute.xlu0 %5349
    %v5352 = vsel %vm3156, %v5350, 0
    %5354 = vmatprep.subr.bf16.mxu0 %v5216
    %5355 = vmatpush1.bf16.msra.mxu0 %v5204
    %5356 = vmatprep.subr.bf16.mxu0 %v5232
    %5357 = vmatpush1.bf16.msra.mxu0 %v5224
    %5358 = vmatprep.subr.bf16.mxu0 %v5248
    %5359 = vmatpush1.bf16.msra.mxu0 %v5240
    %5360 = vmatprep.subr.bf16.mxu0 %v5264
    %5361 = vmatpush1.bf16.msra.mxu0 %v5256
    %5362 = vmatprep.subr.bf16.mxu0 0
    %5363 = vmatpush1.bf16.msra.mxu0 0
    %5364 = vmatprep.subr.bf16.mxu0 0
    %5365 = vmatpush1.bf16.msra.mxu0 0
    %5366 = vmatprep.subr.bf16.mxu0 0
    %5367 = vmatpush1.bf16.msra.mxu0 0
    %5368 = vmatprep.subr.bf16.mxu0 0
    %5369 = vmatpush1.bf16.msra.mxu0 0
    %5370 = vmatprep.subr.bf16.mxu0 0
    %5371 = vmatpush1.bf16.msra.mxu0 0
    %5372 = vmatprep.subr.bf16.mxu0 0
    %5373 = vmatpush1.bf16.msra.mxu0 0
    %5374 = vmatprep.subr.bf16.mxu0 0
    %5375 = vmatpush1.bf16.msra.mxu0 0
    %5376 = vmatprep.subr.bf16.mxu0 0
    %5377 = vmatpush1.bf16.msra.mxu0 0
    %5378 = vmatprep.subr.bf16.mxu0 0
    %5379 = vmatpush1.bf16.msra.mxu0 0
    %5380 = vmatprep.subr.bf16.mxu0 0
    %5381 = vmatpush1.bf16.msra.mxu0 0
    %5382 = vmatprep.subr.bf16.mxu0 0
    %5383 = vmatpush1.bf16.msra.mxu0 0
    %5384 = vmatprep.subr.bf16.mxu0 0
    %5385 = vmatpush1.bf16.msra.mxu0 0
    %5386 = vmatprep.mubr.bf16.mxu0 0
    %5387 = vmatmul.mubr.bf16.gmra.mrb[0].mxu0 %v5352
    %v5388 = vpop.f32.mrb[0].mxu0
    %v5389 = vadd.f32 0.0, %v5388
    %v5390 = vpop.f32.mrb[0].mxu0
    %v5391 = vadd.f32 0.0, %v5390
    %v5392 = vpop.f32.mrb[0].mxu0
    %v5393 = vpop.f32.mrb[0].mxu0
    %5394 = vdwg.mxu0
    %v5397 = vrot.slane %v5389, 7
    %v5398 = vrot.slane %v5391, 7
    %v5401 = vadd.f32 %v5345, %v5397
    %v5402 = vadd.f32 %v5346, %v5398
    %v5403 = vxor.u32 %v5401, 2147483648
    %v5404 = vxor.u32 %v5402, 2147483648
    %v5405 = vmul.f32 %v5403, 1.442695
    %v5406 = vpow.pop %v5405
    %v5407 = vmul.f32 %v5404, 1.442695
    %v5408 = vpow.pop %v5407
    %v5409 = vadd.f32 %v5406, 1.0
    %v5410 = vadd.f32 %v5408, 1.0
    %v5411 = vrcp.pop %v5409
    %v5412 = vmul.f32 1.0, %v5411
    %v5413 = vrcp.pop %v5410
    %v5414 = vmul.f32 1.0, %v5413
    %v5415 = vtanh.pop %v5402
    %v5417 = vrot.slane %v5338, 7
    %v5419 = vmul.f32 %v5412, %v5417
    %v5420 = vmul.f32 %v5412, %v5415
    %5422 = vrot.lane.b32.xlu0 %v5420, 64
    %v5423 = vpop.permute.xlu0 %5422
    %v5425 = vadd.f32 %v5419, %v5423
    %v5426 = vtanh.pop %v5425
    %v5427 = vmul.f32 %v5414, %v5426
    %v5428 = vrot.slane %v5135, 3
    %v5429 = vrot.slane %v5137, 3
    %v5432 = vsel %vm4941, %v5131, %v5428
    %v5433 = vsel %vm4942, %v5133, %v5429
    %v5434 = vpack.c.bf16 %v5427, %v5427
    %v5436 = vshrl.u32 %v5434, 16
    %5438 = vrot.lane.b32.xlu0 %v5436, 64
    %v5439 = vpop.permute.xlu0 %5438
    %v5441 = vsel %vm3156, %v5439, 0
    %5443 = vmatprep.subr.bf16.mxu0 %v5216
    %5444 = vmatpush1.bf16.msra.mxu0 %v5204
    %5445 = vmatprep.subr.bf16.mxu0 %v5232
    %5446 = vmatpush1.bf16.msra.mxu0 %v5224
    %5447 = vmatprep.subr.bf16.mxu0 %v5248
    %5448 = vmatpush1.bf16.msra.mxu0 %v5240
    %5449 = vmatprep.subr.bf16.mxu0 %v5264
    %5450 = vmatpush1.bf16.msra.mxu0 %v5256
    %5451 = vmatprep.subr.bf16.mxu0 0
    %5452 = vmatpush1.bf16.msra.mxu0 0
    %5453 = vmatprep.subr.bf16.mxu0 0
    %5454 = vmatpush1.bf16.msra.mxu0 0
    %5455 = vmatprep.subr.bf16.mxu0 0
    %5456 = vmatpush1.bf16.msra.mxu0 0
    %5457 = vmatprep.subr.bf16.mxu0 0
    %5458 = vmatpush1.bf16.msra.mxu0 0
    %5459 = vmatprep.subr.bf16.mxu0 0
    %5460 = vmatpush1.bf16.msra.mxu0 0
    %5461 = vmatprep.subr.bf16.mxu0 0
    %5462 = vmatpush1.bf16.msra.mxu0 0
    %5463 = vmatprep.subr.bf16.mxu0 0
    %5464 = vmatpush1.bf16.msra.mxu0 0
    %5465 = vmatprep.subr.bf16.mxu0 0
    %5466 = vmatpush1.bf16.msra.mxu0 0
    %5467 = vmatprep.subr.bf16.mxu0 0
    %5468 = vmatpush1.bf16.msra.mxu0 0
    %5469 = vmatprep.subr.bf16.mxu0 0
    %5470 = vmatpush1.bf16.msra.mxu0 0
    %5471 = vmatprep.subr.bf16.mxu0 0
    %5472 = vmatpush1.bf16.msra.mxu0 0
    %5473 = vmatprep.subr.bf16.mxu0 0
    %5474 = vmatpush1.bf16.msra.mxu0 0
    %5475 = vmatprep.mubr.bf16.mxu0 0
    %5476 = vmatmul.mubr.bf16.gmra.mrb[0].mxu0 %v5441
    %v5477 = vpop.f32.mrb[0].mxu0
    %v5478 = vadd.f32 0.0, %v5477
    %v5479 = vpop.f32.mrb[0].mxu0
    %v5480 = vadd.f32 0.0, %v5479
    %v5481 = vpop.f32.mrb[0].mxu0
    %v5482 = vpop.f32.mrb[0].mxu0
    %5483 = vdwg.mxu0
    %v5486 = vrot.slane %v5478, 6
    %v5487 = vrot.slane %v5480, 6
    %v5490 = vadd.f32 %v5432, %v5486
    %v5491 = vadd.f32 %v5433, %v5487
    %v5492 = vxor.u32 %v5490, 2147483648
    %v5493 = vxor.u32 %v5491, 2147483648
    %v5494 = vmul.f32 %v5492, 1.442695
    %v5495 = vpow.pop %v5494
    %v5496 = vmul.f32 %v5493, 1.442695
    %v5497 = vpow.pop %v5496
    %v5498 = vadd.f32 %v5495, 1.0
    %v5499 = vadd.f32 %v5497, 1.0
    %v5500 = vrcp.pop %v5498
    %v5501 = vmul.f32 1.0, %v5500
    %v5502 = vrcp.pop %v5499
    %v5503 = vmul.f32 1.0, %v5502
    %v5504 = vtanh.pop %v5491
    %v5506 = vrot.slane %v5425, 7
    %v5508 = vmul.f32 %v5501, %v5506
    %v5509 = vmul.f32 %v5501, %v5504
    %5511 = vrot.lane.b32.xlu0 %v5509, 64
    %v5512 = vpop.permute.xlu0 %5511
    %v5514 = vadd.f32 %v5508, %v5512
    %v5515 = vtanh.pop %v5514
    %v5516 = vmul.f32 %v5503, %v5515
    %v5517 = vrot.slane %v5135, 1
    %v5518 = vrot.slane %v5137, 1
    %v5521 = vsel %vm4941, %v5131, %v5517
    %v5522 = vsel %vm4942, %v5133, %v5518
    %v5523 = vpack.c.bf16 %v5516, %v5516
    %v5525 = vrot.slane %v5523, 1
    %5526 = vrot.lane.b32.xlu0 %v5525, 64
    %v5527 = vpop.permute.xlu0 %5526
    %v5529 = vsel %vm3156, %v5527, 0
    %5531 = vmatprep.subr.bf16.mxu0 %v5216
    %5532 = vmatpush1.bf16.msra.mxu0 %v5204
    %5533 = vmatprep.subr.bf16.mxu0 %v5232
    %5534 = vmatpush1.bf16.msra.mxu0 %v5224
    %5535 = vmatprep.subr.bf16.mxu0 %v5248
    %5536 = vmatpush1.bf16.msra.mxu0 %v5240
    %5537 = vmatprep.subr.bf16.mxu0 %v5264
    %5538 = vmatpush1.bf16.msra.mxu0 %v5256
    %5539 = vmatprep.subr.bf16.mxu0 0
    %5540 = vmatpush1.bf16.msra.mxu0 0
    %5541 = vmatprep.subr.bf16.mxu0 0
    %5542 = vmatpush1.bf16.msra.mxu0 0
    %5543 = vmatprep.subr.bf16.mxu0 0
    %5544 = vmatpush1.bf16.msra.mxu0 0
    %5545 = vmatprep.subr.bf16.mxu0 0
    %5546 = vmatpush1.bf16.msra.mxu0 0
    %5547 = vmatprep.subr.bf16.mxu0 0
    %5548 = vmatpush1.bf16.msra.mxu0 0
    %5549 = vmatprep.subr.bf16.mxu0 0
    %5550 = vmatpush1.bf16.msra.mxu0 0
    %5551 = vmatprep.subr.bf16.mxu0 0
    %5552 = vmatpush1.bf16.msra.mxu0 0
    %5553 = vmatprep.subr.bf16.mxu0 0
    %5554 = vmatpush1.bf16.msra.mxu0 0
    %5555 = vmatprep.subr.bf16.mxu0 0
    %5556 = vmatpush1.bf16.msra.mxu0 0
    %5557 = vmatprep.subr.bf16.mxu0 0
    %5558 = vmatpush1.bf16.msra.mxu0 0
    %5559 = vmatprep.subr.bf16.mxu0 0
    %5560 = vmatpush1.bf16.msra.mxu0 0
    %5561 = vmatprep.subr.bf16.mxu0 0
    %5562 = vmatpush1.bf16.msra.mxu0 0
    %5563 = vmatprep.mubr.bf16.mxu0 0
    %5564 = vmatmul.mubr.bf16.gmra.mrb[0].mxu0 %v5529
    %v5565 = vpop.f32.mrb[0].mxu0
    %v5566 = vadd.f32 0.0, %v5565
    %v5567 = vpop.f32.mrb[0].mxu0
    %v5568 = vadd.f32 0.0, %v5567
    %v5569 = vpop.f32.mrb[0].mxu0
    %v5570 = vpop.f32.mrb[0].mxu0
    %5571 = vdwg.mxu0
    %v5574 = vrot.slane %v5566, 5
    %v5575 = vrot.slane %v5568, 5
    %v5578 = vadd.f32 %v5521, %v5574
    %v5579 = vadd.f32 %v5522, %v5575
    %v5580 = vxor.u32 %v5578, 2147483648
    %v5581 = vxor.u32 %v5579, 2147483648
    %v5582 = vmul.f32 %v5580, 1.442695
    %v5583 = vpow.pop %v5582
    %v5584 = vmul.f32 %v5581, 1.442695
    %v5585 = vpow.pop %v5584
    %v5586 = vadd.f32 %v5583, 1.0
    %v5587 = vadd.f32 %v5585, 1.0
    %v5588 = vrcp.pop %v5586
    %v5589 = vmul.f32 1.0, %v5588
    %v5590 = vrcp.pop %v5587
    %v5591 = vmul.f32 1.0, %v5590
    %v5592 = vtanh.pop %v5579
    %v5594 = vrot.slane %v5514, 7
    %v5596 = vmul.f32 %v5589, %v5594
    %v5597 = vmul.f32 %v5589, %v5592
    %5599 = vrot.lane.b32.xlu0 %v5597, 64
    %v5600 = vpop.permute.xlu0 %5599
    %v5602 = vadd.f32 %v5596, %v5600
    %v5603 = vtanh.pop %v5602
    %v5604 = vmul.f32 %v5591, %v5603
    %v5605 = vpack.c.bf16 %v5604, %v5604
    %v5607 = vshrl.u32 %v5605, 16
    %v5609 = vrot.slane %v5607, 1
    %5610 = vrot.lane.b32.xlu0 %v5609, 64
    %v5611 = vpop.permute.xlu0 %5610
    %v5613 = vsel %vm3156, %v5611, 0
    %5615 = vmatprep.subr.bf16.mxu0 %v5216
    %5616 = vmatpush1.bf16.msra.mxu0 %v5204
    %5617 = vmatprep.subr.bf16.mxu0 %v5232
    %5618 = vmatpush1.bf16.msra.mxu0 %v5224
    %5619 = vmatprep.subr.bf16.mxu0 %v5248
    %5620 = vmatpush1.bf16.msra.mxu0 %v5240
    %5621 = vmatprep.subr.bf16.mxu0 %v5264
    %5622 = vmatpush1.bf16.msra.mxu0 %v5256
    %5623 = vmatprep.subr.bf16.mxu0 0
    %5624 = vmatpush1.bf16.msra.mxu0 0
    %5625 = vmatprep.subr.bf16.mxu0 0
    %5626 = vmatpush1.bf16.msra.mxu0 0
    %5627 = vmatprep.subr.bf16.mxu0 0
    %5628 = vmatpush1.bf16.msra.mxu0 0
    %5629 = vmatprep.subr.bf16.mxu0 0
    %5630 = vmatpush1.bf16.msra.mxu0 0
    %5631 = vmatprep.subr.bf16.mxu0 0
    %5632 = vmatpush1.bf16.msra.mxu0 0
    %5633 = vmatprep.subr.bf16.mxu0 0
    %5634 = vmatpush1.bf16.msra.mxu0 0
    %5635 = vmatprep.subr.bf16.mxu0 0
    %5636 = vmatpush1.bf16.msra.mxu0 0
    %5637 = vmatprep.subr.bf16.mxu0 0
    %5638 = vmatpush1.bf16.msra.mxu0 0
    %5639 = vmatprep.subr.bf16.mxu0 0
    %5640 = vmatpush1.bf16.msra.mxu0 0
    %5641 = vmatprep.subr.bf16.mxu0 0
    %5642 = vmatpush1.bf16.msra.mxu0 0
    %5643 = vmatprep.subr.bf16.mxu0 0
    %5644 = vmatpush1.bf16.msra.mxu0 0
    %5645 = vmatprep.subr.bf16.mxu0 0
    %5646 = vmatpush1.bf16.msra.mxu0 0
    %5647 = vmatprep.mubr.bf16.mxu0 0
    %5648 = vmatmul.mubr.bf16.gmra.mrb[0].mxu0 %v5613
    %v5649 = vpop.f32.mrb[0].mxu0
    %v5650 = vadd.f32 0.0, %v5649
    %v5651 = vpop.f32.mrb[0].mxu0
    %v5652 = vadd.f32 0.0, %v5651
    %v5653 = vpop.f32.mrb[0].mxu0
    %v5654 = vpop.f32.mrb[0].mxu0
    %5655 = vdwg.mxu0
    %v5658 = vrot.slane %v5650, 4
    %v5659 = vrot.slane %v5652, 4
    %v5662 = vadd.f32 %v5154, %v5658
    %v5663 = vadd.f32 %v5155, %v5659
    %v5664 = vxor.u32 %v5662, 2147483648
    %v5665 = vxor.u32 %v5663, 2147483648
    %v5666 = vmul.f32 %v5664, 1.442695
    %v5667 = vpow.pop %v5666
    %v5668 = vmul.f32 %v5665, 1.442695
    %v5669 = vpow.pop %v5668
    %v5670 = vadd.f32 %v5667, 1.0
    %v5671 = vadd.f32 %v5669, 1.0
    %v5672 = vrcp.pop %v5670
    %v5673 = vmul.f32 1.0, %v5672
    %v5674 = vrcp.pop %v5671
    %v5675 = vmul.f32 1.0, %v5674
    %v5676 = vtanh.pop %v5663
    %v5678 = vrot.slane %v5602, 7
    %v5680 = vmul.f32 %v5673, %v5678
    %v5681 = vmul.f32 %v5673, %v5676
    %5683 = vrot.lane.b32.xlu0 %v5681, 64
    %v5684 = vpop.permute.xlu0 %5683
    %v5686 = vadd.f32 %v5680, %v5684
    %v5687 = vtanh.pop %v5686
    %v5688 = vmul.f32 %v5675, %v5687
    %v5689 = vpack.c.bf16 %v5688, %v5688
    %v5691 = vrot.slane %v5689, 2
    %5692 = vrot.lane.b32.xlu0 %v5691, 64
    %v5693 = vpop.permute.xlu0 %5692
    %v5695 = vsel %vm3156, %v5693, 0
    %5697 = vmatprep.subr.bf16.mxu0 %v5216
    %5698 = vmatpush1.bf16.msra.mxu0 %v5204
    %5699 = vmatprep.subr.bf16.mxu0 %v5232
    %5700 = vmatpush1.bf16.msra.mxu0 %v5224
    %5701 = vmatprep.subr.bf16.mxu0 %v5248
    %5702 = vmatpush1.bf16.msra.mxu0 %v5240
    %5703 = vmatprep.subr.bf16.mxu0 %v5264
    %5704 = vmatpush1.bf16.msra.mxu0 %v5256
    %5705 = vmatprep.subr.bf16.mxu0 0
    %5706 = vmatpush1.bf16.msra.mxu0 0
    %5707 = vmatprep.subr.bf16.mxu0 0
    %5708 = vmatpush1.bf16.msra.mxu0 0
    %5709 = vmatprep.subr.bf16.mxu0 0
    %5710 = vmatpush1.bf16.msra.mxu0 0
    %5711 = vmatprep.subr.bf16.mxu0 0
    %5712 = vmatpush1.bf16.msra.mxu0 0
    %5713 = vmatprep.subr.bf16.mxu0 0
    %5714 = vmatpush1.bf16.msra.mxu0 0
    %5715 = vmatprep.subr.bf16.mxu0 0
    %5716 = vmatpush1.bf16.msra.mxu0 0
    %5717 = vmatprep.subr.bf16.mxu0 0
    %5718 = vmatpush1.bf16.msra.mxu0 0
    %5719 = vmatprep.subr.bf16.mxu0 0
    %5720 = vmatpush1.bf16.msra.mxu0 0
    %5721 = vmatprep.subr.bf16.mxu0 0
    %5722 = vmatpush1.bf16.msra.mxu0 0
    %5723 = vmatprep.subr.bf16.mxu0 0
    %5724 = vmatpush1.bf16.msra.mxu0 0
    %5725 = vmatprep.subr.bf16.mxu0 0
    %5726 = vmatpush1.bf16.msra.mxu0 0
    %5727 = vmatprep.subr.bf16.mxu0 0
    %5728 = vmatpush1.bf16.msra.mxu0 0
    %5729 = vmatprep.mubr.bf16.mxu0 0
    %5730 = vmatmul.mubr.bf16.gmra.mrb[0].mxu0 %v5695
    %v5731 = vpop.f32.mrb[0].mxu0
    %v5732 = vadd.f32 0.0, %v5731
    %v5733 = vpop.f32.mrb[0].mxu0
    %v5734 = vadd.f32 0.0, %v5733
    %v5735 = vpop.f32.mrb[0].mxu0
    %v5736 = vpop.f32.mrb[0].mxu0
    %5737 = vdwg.mxu0
    %v5740 = vrot.slane %v5732, 3
    %v5741 = vrot.slane %v5734, 3
    %v5744 = vadd.f32 %v5345, %v5740
    %v5745 = vadd.f32 %v5346, %v5741
    %v5746 = vxor.u32 %v5744, 2147483648
    %v5747 = vxor.u32 %v5745, 2147483648
    %v5748 = vmul.f32 %v5746, 1.442695
    %v5749 = vpow.pop %v5748
    %v5750 = vmul.f32 %v5747, 1.442695
    %v5751 = vpow.pop %v5750
    %v5752 = vadd.f32 %v5749, 1.0
    %v5753 = vadd.f32 %v5751, 1.0
    %v5754 = vrcp.pop %v5752
    %v5755 = vmul.f32 1.0, %v5754
    %v5756 = vrcp.pop %v5753
    %v5757 = vmul.f32 1.0, %v5756
    %v5758 = vtanh.pop %v5745
    %v5760 = vrot.slane %v5686, 7
    %v5762 = vmul.f32 %v5755, %v5760
    %v5763 = vmul.f32 %v5755, %v5758
    %5765 = vrot.lane.b32.xlu0 %v5763, 64
    %v5766 = vpop.permute.xlu0 %5765
    %v5768 = vadd.f32 %v5762, %v5766
    %v5769 = vtanh.pop %v5768
    %v5770 = vmul.f32 %v5757, %v5769
    %v5771 = vpack.c.bf16 %v5770, %v5770
    %v5773 = vshrl.u32 %v5771, 16
    %v5775 = vrot.slane %v5773, 2
    %5776 = vrot.lane.b32.xlu0 %v5775, 64
    %v5777 = vpop.permute.xlu0 %5776
    %v5779 = vsel %vm3156, %v5777, 0
    %5781 = vmatprep.subr.bf16.mxu0 %v5216
    %5782 = vmatpush1.bf16.msra.mxu0 %v5204
    %5783 = vmatprep.subr.bf16.mxu0 %v5232
    %5784 = vmatpush1.bf16.msra.mxu0 %v5224
    %5785 = vmatprep.subr.bf16.mxu0 %v5248
    %5786 = vmatpush1.bf16.msra.mxu0 %v5240
    %5787 = vmatprep.subr.bf16.mxu0 %v5264
    %5788 = vmatpush1.bf16.msra.mxu0 %v5256
    %5789 = vmatprep.subr.bf16.mxu0 0
    %5790 = vmatpush1.bf16.msra.mxu0 0
    %5791 = vmatprep.subr.bf16.mxu0 0
    %5792 = vmatpush1.bf16.msra.mxu0 0
    %5793 = vmatprep.subr.bf16.mxu0 0
    %5794 = vmatpush1.bf16.msra.mxu0 0
    %5795 = vmatprep.subr.bf16.mxu0 0
    %5796 = vmatpush1.bf16.msra.mxu0 0
    %5797 = vmatprep.subr.bf16.mxu0 0
    %5798 = vmatpush1.bf16.msra.mxu0 0
    %5799 = vmatprep.subr.bf16.mxu0 0
    %5800 = vmatpush1.bf16.msra.mxu0 0
    %5801 = vmatprep.subr.bf16.mxu0 0
    %5802 = vmatpush1.bf16.msra.mxu0 0
    %5803 = vmatprep.subr.bf16.mxu0 0
    %5804 = vmatpush1.bf16.msra.mxu0 0
    %5805 = vmatprep.subr.bf16.mxu0 0
    %5806 = vmatpush1.bf16.msra.mxu0 0
    %5807 = vmatprep.subr.bf16.mxu0 0
    %5808 = vmatpush1.bf16.msra.mxu0 0
    %5809 = vmatprep.subr.bf16.mxu0 0
    %5810 = vmatpush1.bf16.msra.mxu0 0
    %5811 = vmatprep.subr.bf16.mxu0 0
    %5812 = vmatpush1.bf16.msra.mxu0 0
    %5813 = vmatprep.mubr.bf16.mxu0 0
    %5814 = vmatmul.mubr.bf16.gmra.mrb[0].mxu0 %v5779
    %v5815 = vpop.f32.mrb[0].mxu0
    %v5816 = vadd.f32 0.0, %v5815
    %v5817 = vpop.f32.mrb[0].mxu0
    %v5818 = vadd.f32 0.0, %v5817
    %v5819 = vpop.f32.mrb[0].mxu0
    %v5820 = vpop.f32.mrb[0].mxu0
    %5821 = vdwg.mxu0
    %v5824 = vrot.slane %v5816, 2
    %v5825 = vrot.slane %v5818, 2
    %v5828 = vadd.f32 %v5432, %v5824
    %v5829 = vadd.f32 %v5433, %v5825
    %v5830 = vxor.u32 %v5828, 2147483648
    %v5831 = vxor.u32 %v5829, 2147483648
    %v5832 = vmul.f32 %v5830, 1.442695
    %v5833 = vpow.pop %v5832
    %v5834 = vmul.f32 %v5831, 1.442695
    %v5835 = vpow.pop %v5834
    %v5836 = vadd.f32 %v5833, 1.0
    %v5837 = vadd.f32 %v5835, 1.0
    %v5838 = vrcp.pop %v5836
    %v5839 = vmul.f32 1.0, %v5838
    %v5840 = vrcp.pop %v5837
    %v5841 = vmul.f32 1.0, %v5840
    %v5842 = vtanh.pop %v5829
    %v5844 = vrot.slane %v5768, 7
    %v5846 = vmul.f32 %v5839, %v5844
    %v5847 = vmul.f32 %v5839, %v5842
    %5849 = vrot.lane.b32.xlu0 %v5847, 64
    %v5850 = vpop.permute.xlu0 %5849
    %v5852 = vadd.f32 %v5846, %v5850
    %v5853 = vtanh.pop %v5852
    %v5854 = vmul.f32 %v5841, %v5853
    %v5855 = vpack.c.bf16 %v5854, %v5854
    %v5857 = vrot.slane %v5855, 3
    %5858 = vrot.lane.b32.xlu0 %v5857, 64
    %v5859 = vpop.permute.xlu0 %5858
    %v5861 = vsel %vm3156, %v5859, 0
    %5863 = vmatprep.subr.bf16.mxu0 %v5216
    %5864 = vmatpush1.bf16.msra.mxu0 %v5204
    %5865 = vmatprep.subr.bf16.mxu0 %v5232
    %5866 = vmatpush1.bf16.msra.mxu0 %v5224
    %5867 = vmatprep.subr.bf16.mxu0 %v5248
    %5868 = vmatpush1.bf16.msra.mxu0 %v5240
    %5869 = vmatprep.subr.bf16.mxu0 %v5264
    %5870 = vmatpush1.bf16.msra.mxu0 %v5256
    %5871 = vmatprep.subr.bf16.mxu0 0
    %5872 = vmatpush1.bf16.msra.mxu0 0
    %5873 = vmatprep.subr.bf16.mxu0 0
    %5874 = vmatpush1.bf16.msra.mxu0 0
    %5875 = vmatprep.subr.bf16.mxu0 0
    %5876 = vmatpush1.bf16.msra.mxu0 0
    %5877 = vmatprep.subr.bf16.mxu0 0
    %5878 = vmatpush1.bf16.msra.mxu0 0
    %5879 = vmatprep.subr.bf16.mxu0 0
    %5880 = vmatpush1.bf16.msra.mxu0 0
    %5881 = vmatprep.subr.bf16.mxu0 0
    %5882 = vmatpush1.bf16.msra.mxu0 0
    %5883 = vmatprep.subr.bf16.mxu0 0
    %5884 = vmatpush1.bf16.msra.mxu0 0
    %5885 = vmatprep.subr.bf16.mxu0 0
    %5886 = vmatpush1.bf16.msra.mxu0 0
    %5887 = vmatprep.subr.bf16.mxu0 0
    %5888 = vmatpush1.bf16.msra.mxu0 0
    %5889 = vmatprep.subr.bf16.mxu0 0
    %5890 = vmatpush1.bf16.msra.mxu0 0
    %5891 = vmatprep.subr.bf16.mxu0 0
    %5892 = vmatpush1.bf16.msra.mxu0 0
    %5893 = vmatprep.subr.bf16.mxu0 0
    %5894 = vmatpush1.bf16.msra.mxu0 0
    %5895 = vmatprep.mubr.bf16.mxu0 0
    %5896 = vmatmul.mubr.bf16.gmra.mrb[0].mxu0 %v5861
    %v5897 = vpop.f32.mrb[0].mxu0
    %v5898 = vadd.f32 0.0, %v5897
    %v5899 = vpop.f32.mrb[0].mxu0
    %v5900 = vadd.f32 0.0, %v5899
    %v5901 = vpop.f32.mrb[0].mxu0
    %v5902 = vpop.f32.mrb[0].mxu0
    %5903 = vdwg.mxu0
    %v5906 = vrot.slane %v5898, 1
    %v5907 = vrot.slane %v5900, 1
    %v5910 = vadd.f32 %v5521, %v5906
    %v5911 = vadd.f32 %v5522, %v5907
    %v5912 = vxor.u32 %v5910, 2147483648
    %v5913 = vxor.u32 %v5911, 2147483648
    %v5914 = vmul.f32 %v5912, 1.442695
    %v5915 = vpow.pop %v5914
    %v5916 = vmul.f32 %v5913, 1.442695
    %v5917 = vpow.pop %v5916
    %v5918 = vadd.f32 %v5915, 1.0
    %v5919 = vadd.f32 %v5917, 1.0
    %v5920 = vrcp.pop %v5918
    %v5921 = vmul.f32 1.0, %v5920
    %v5922 = vrcp.pop %v5919
    %v5923 = vmul.f32 1.0, %v5922
    %v5924 = vtanh.pop %v5911
    %v5926 = vrot.slane %v5852, 7
    %v5928 = vmul.f32 %v5921, %v5926
    %v5929 = vmul.f32 %v5921, %v5924
    %5931 = vrot.lane.b32.xlu0 %v5929, 64
    %v5932 = vpop.permute.xlu0 %5931
    %v5934 = vadd.f32 %v5928, %v5932
    %v5935 = vtanh.pop %v5934
    %v5936 = vmul.f32 %v5923, %v5935
    %v5939 = vrot.slane %v5131, 7
    %v5940 = vrot.slane %v5133, 7
    %v5943 = vsel %vm4941, %v5135, %v5939
    %v5944 = vsel %vm4942, %v5137, %v5940
    %v5945 = vpack.c.bf16 %v5936, %v5936
    %v5947 = vshrl.u32 %v5945, 16
    %v5949 = vrot.slane %v5947, 3
    %5950 = vrot.lane.b32.xlu0 %v5949, 64
    %v5951 = vpop.permute.xlu0 %5950
    %v5953 = vsel %vm3156, %v5951, 0
    %5955 = vmatprep.subr.bf16.mxu0 %v5216
    %5956 = vmatpush1.bf16.msra.mxu0 %v5204
    %5957 = vmatprep.subr.bf16.mxu0 %v5232
    %5958 = vmatpush1.bf16.msra.mxu0 %v5224
    %5959 = vmatprep.subr.bf16.mxu0 %v5248
    %5960 = vmatpush1.bf16.msra.mxu0 %v5240
    %5961 = vmatprep.subr.bf16.mxu0 %v5264
    %5962 = vmatpush1.bf16.msra.mxu0 %v5256
    %5963 = vmatprep.subr.bf16.mxu0 0
    %5964 = vmatpush1.bf16.msra.mxu0 0
    %5965 = vmatprep.subr.bf16.mxu0 0
    %5966 = vmatpush1.bf16.msra.mxu0 0
    %5967 = vmatprep.subr.bf16.mxu0 0
    %5968 = vmatpush1.bf16.msra.mxu0 0
    %5969 = vmatprep.subr.bf16.mxu0 0
    %5970 = vmatpush1.bf16.msra.mxu0 0
    %5971 = vmatprep.subr.bf16.mxu0 0
    %5972 = vmatpush1.bf16.msra.mxu0 0
    %5973 = vmatprep.subr.bf16.mxu0 0
    %5974 = vmatpush1.bf16.msra.mxu0 0
    %5975 = vmatprep.subr.bf16.mxu0 0
    %5976 = vmatpush1.bf16.msra.mxu0 0
    %5977 = vmatprep.subr.bf16.mxu0 0
    %5978 = vmatpush1.bf16.msra.mxu0 0
    %5979 = vmatprep.subr.bf16.mxu0 0
    %5980 = vmatpush1.bf16.msra.mxu0 0
    %5981 = vmatprep.subr.bf16.mxu0 0
    %5982 = vmatpush1.bf16.msra.mxu0 0
    %5983 = vmatprep.subr.bf16.mxu0 0
    %5984 = vmatpush1.bf16.msra.mxu0 0
    %5985 = vmatprep.subr.bf16.mxu0 0
    %5986 = vmatpush1.bf16.msra.mxu0 0
    %5987 = vmatprep.mubr.bf16.mxu0 0
    %5988 = vmatmul.mubr.bf16.gmra.mrb[0].mxu0 %v5953
    %v5989 = vpop.f32.mrb[0].mxu0
    %v5990 = vadd.f32 0.0, %v5989
    %v5991 = vpop.f32.mrb[0].mxu0
    %v5992 = vadd.f32 0.0, %v5991
    %v5993 = vpop.f32.mrb[0].mxu0
    %v5994 = vpop.f32.mrb[0].mxu0
    %5995 = vdwg.mxu0
    %v5996 = vadd.f32 %v5943, %v5990
    %v5997 = vadd.f32 %v5944, %v5992
    %v5998 = vxor.u32 %v5996, 2147483648
    %v5999 = vxor.u32 %v5997, 2147483648
    %v6000 = vmul.f32 %v5998, 1.442695
    %v6001 = vpow.pop %v6000
    %v6002 = vmul.f32 %v5999, 1.442695
    %v6003 = vpow.pop %v6002
    %v6004 = vadd.f32 %v6001, 1.0
    %v6005 = vadd.f32 %v6003, 1.0
    %v6006 = vrcp.pop %v6004
    %v6007 = vmul.f32 1.0, %v6006
    %v6008 = vrcp.pop %v6005
    %v6009 = vmul.f32 1.0, %v6008
    %v6010 = vtanh.pop %v5997
    %v6012 = vrot.slane %v5934, 7
    %v6014 = vmul.f32 %v6007, %v6012
    %v6015 = vmul.f32 %v6007, %v6010
    %6017 = vrot.lane.b32.xlu0 %v6015, 64
    %v6018 = vpop.permute.xlu0 %6017
    %v6020 = vadd.f32 %v6014, %v6018
    %v6021 = vtanh.pop %v6020
    %v6022 = vmul.f32 %v6009, %v6021
    %v6023 = vrot.slane %v5131, 5
    %v6024 = vrot.slane %v5133, 5
    %v6027 = vsel %vm4941, %v5135, %v6023
    %v6028 = vsel %vm4942, %v5137, %v6024
    %v6029 = vpack.c.bf16 %v6022, %v6022
    %6031 = vrot.lane.b32.xlu0 %v6029, 64
    %v6032 = vpop.permute.xlu0 %6031
    %v6034 = vsel %vm3156, %v6032, 0
    %6036 = vmatprep.subr.bf16.mxu0 %v5216
    %6037 = vmatpush1.bf16.msra.mxu0 %v5204
    %6038 = vmatprep.subr.bf16.mxu0 %v5232
    %6039 = vmatpush1.bf16.msra.mxu0 %v5224
    %6040 = vmatprep.subr.bf16.mxu0 %v5248
    %6041 = vmatpush1.bf16.msra.mxu0 %v5240
    %6042 = vmatprep.subr.bf16.mxu0 %v5264
    %6043 = vmatpush1.bf16.msra.mxu0 %v5256
    %6044 = vmatprep.subr.bf16.mxu0 0
    %6045 = vmatpush1.bf16.msra.mxu0 0
    %6046 = vmatprep.subr.bf16.mxu0 0
    %6047 = vmatpush1.bf16.msra.mxu0 0
    %6048 = vmatprep.subr.bf16.mxu0 0
    %6049 = vmatpush1.bf16.msra.mxu0 0
    %6050 = vmatprep.subr.bf16.mxu0 0
    %6051 = vmatpush1.bf16.msra.mxu0 0
    %6052 = vmatprep.subr.bf16.mxu0 0
    %6053 = vmatpush1.bf16.msra.mxu0 0
    %6054 = vmatprep.subr.bf16.mxu0 0
    %6055 = vmatpush1.bf16.msra.mxu0 0
    %6056 = vmatprep.subr.bf16.mxu0 0
    %6057 = vmatpush1.bf16.msra.mxu0 0
    %6058 = vmatprep.subr.bf16.mxu0 0
    %6059 = vmatpush1.bf16.msra.mxu0 0
    %6060 = vmatprep.subr.bf16.mxu0 0
    %6061 = vmatpush1.bf16.msra.mxu0 0
    %6062 = vmatprep.subr.bf16.mxu0 0
    %6063 = vmatpush1.bf16.msra.mxu0 0
    %6064 = vmatprep.subr.bf16.mxu0 0
    %6065 = vmatpush1.bf16.msra.mxu0 0
    %6066 = vmatprep.subr.bf16.mxu0 0
    %6067 = vmatpush1.bf16.msra.mxu0 0
    %6068 = vmatprep.mubr.bf16.mxu0 0
    %6069 = vmatmul.mubr.bf16.gmra.mrb[0].mxu0 %v6034
    %v6070 = vpop.f32.mrb[0].mxu0
    %v6071 = vadd.f32 0.0, %v6070
    %v6072 = vpop.f32.mrb[0].mxu0
    %v6073 = vadd.f32 0.0, %v6072
    %v6074 = vpop.f32.mrb[0].mxu0
    %v6075 = vpop.f32.mrb[0].mxu0
    %6076 = vdwg.mxu0
    %v6079 = vrot.slane %v6071, 7
    %v6080 = vrot.slane %v6073, 7
    %v6083 = vadd.f32 %v6027, %v6079
    %v6084 = vadd.f32 %v6028, %v6080
    %v6085 = vxor.u32 %v6083, 2147483648
    %v6086 = vxor.u32 %v6084, 2147483648
    %v6087 = vmul.f32 %v6085, 1.442695
    %v6088 = vpow.pop %v6087
    %v6089 = vmul.f32 %v6086, 1.442695
    %v6090 = vpow.pop %v6089
    %v6091 = vadd.f32 %v6088, 1.0
    %v6092 = vadd.f32 %v6090, 1.0
    %v6093 = vrcp.pop %v6091
    %v6094 = vmul.f32 1.0, %v6093
    %v6095 = vrcp.pop %v6092
    %v6096 = vmul.f32 1.0, %v6095
    %v6097 = vtanh.pop %v6084
    %v6099 = vrot.slane %v6020, 7
    %v6101 = vmul.f32 %v6094, %v6099
    %v6102 = vmul.f32 %v6094, %v6097
    %6104 = vrot.lane.b32.xlu0 %v6102, 64
    %v6105 = vpop.permute.xlu0 %6104
    %v6107 = vadd.f32 %v6101, %v6105
    %v6108 = vtanh.pop %v6107
    %v6109 = vmul.f32 %v6096, %v6108
    %v6110 = vrot.slane %v5131, 3
    %v6111 = vrot.slane %v5133, 3
    %v6114 = vsel %vm4941, %v5135, %v6110
    %v6115 = vsel %vm4942, %v5137, %v6111
    %v6116 = vpack.c.bf16 %v6109, %v6109
    %v6118 = vshrl.u32 %v6116, 16
    %6120 = vrot.lane.b32.xlu0 %v6118, 64
    %v6121 = vpop.permute.xlu0 %6120
    %v6123 = vsel %vm3156, %v6121, 0
    %6125 = vmatprep.subr.bf16.mxu0 %v5216
    %6126 = vmatpush1.bf16.msra.mxu0 %v5204
    %6127 = vmatprep.subr.bf16.mxu0 %v5232
    %6128 = vmatpush1.bf16.msra.mxu0 %v5224
    %6129 = vmatprep.subr.bf16.mxu0 %v5248
    %6130 = vmatpush1.bf16.msra.mxu0 %v5240
    %6131 = vmatprep.subr.bf16.mxu0 %v5264
    %6132 = vmatpush1.bf16.msra.mxu0 %v5256
    %6133 = vmatprep.subr.bf16.mxu0 0
    %6134 = vmatpush1.bf16.msra.mxu0 0
    %6135 = vmatprep.subr.bf16.mxu0 0
    %6136 = vmatpush1.bf16.msra.mxu0 0
    %6137 = vmatprep.subr.bf16.mxu0 0
    %6138 = vmatpush1.bf16.msra.mxu0 0
    %6139 = vmatprep.subr.bf16.mxu0 0
    %6140 = vmatpush1.bf16.msra.mxu0 0
    %6141 = vmatprep.subr.bf16.mxu0 0
    %6142 = vmatpush1.bf16.msra.mxu0 0
    %6143 = vmatprep.subr.bf16.mxu0 0
    %6144 = vmatpush1.bf16.msra.mxu0 0
    %6145 = vmatprep.subr.bf16.mxu0 0
    %6146 = vmatpush1.bf16.msra.mxu0 0
    %6147 = vmatprep.subr.bf16.mxu0 0
    %6148 = vmatpush1.bf16.msra.mxu0 0
    %6149 = vmatprep.subr.bf16.mxu0 0
    %6150 = vmatpush1.bf16.msra.mxu0 0
    %6151 = vmatprep.subr.bf16.mxu0 0
    %6152 = vmatpush1.bf16.msra.mxu0 0
    %6153 = vmatprep.subr.bf16.mxu0 0
    %6154 = vmatpush1.bf16.msra.mxu0 0
    %6155 = vmatprep.subr.bf16.mxu0 0
    %6156 = vmatpush1.bf16.msra.mxu0 0
    %6157 = vmatprep.mubr.bf16.mxu0 0
    %6158 = vmatmul.mubr.bf16.gmra.mrb[0].mxu0 %v6123
    %v6159 = vpop.f32.mrb[0].mxu0
    %v6160 = vadd.f32 0.0, %v6159
    %v6161 = vpop.f32.mrb[0].mxu0
    %v6162 = vadd.f32 0.0, %v6161
    %v6163 = vpop.f32.mrb[0].mxu0
    %v6164 = vpop.f32.mrb[0].mxu0
    %6165 = vdwg.mxu0
    %v6168 = vrot.slane %v6160, 6
    %v6169 = vrot.slane %v6162, 6
    %v6172 = vadd.f32 %v6114, %v6168
    %v6173 = vadd.f32 %v6115, %v6169
    %v6174 = vxor.u32 %v6172, 2147483648
    %v6175 = vxor.u32 %v6173, 2147483648
    %v6176 = vmul.f32 %v6174, 1.442695
    %v6177 = vpow.pop %v6176
    %v6178 = vmul.f32 %v6175, 1.442695
    %v6179 = vpow.pop %v6178
    %v6180 = vadd.f32 %v6177, 1.0
    %v6181 = vadd.f32 %v6179, 1.0
    %v6182 = vrcp.pop %v6180
    %v6183 = vmul.f32 1.0, %v6182
    %v6184 = vrcp.pop %v6181
    %v6185 = vmul.f32 1.0, %v6184
    %v6186 = vtanh.pop %v6173
    %v6188 = vrot.slane %v6107, 7
    %v6190 = vmul.f32 %v6183, %v6188
    %v6191 = vmul.f32 %v6183, %v6186
    %6193 = vrot.lane.b32.xlu0 %v6191, 64
    %v6194 = vpop.permute.xlu0 %6193
    %v6196 = vadd.f32 %v6190, %v6194
    %v6197 = vtanh.pop %v6196
    %v6198 = vmul.f32 %v6185, %v6197
    %v6199 = vrot.slane %v5131, 1
    %v6200 = vrot.slane %v5133, 1
    %v6203 = vsel %vm4941, %v5135, %v6199
    %v6204 = vsel %vm4942, %v5137, %v6200
    %v6205 = vpack.c.bf16 %v6198, %v6198
    %v6207 = vrot.slane %v6205, 1
    %6208 = vrot.lane.b32.xlu0 %v6207, 64
    %v6209 = vpop.permute.xlu0 %6208
    %v6211 = vsel %vm3156, %v6209, 0
    %6213 = vmatprep.subr.bf16.mxu0 %v5216
    %6214 = vmatpush1.bf16.msra.mxu0 %v5204
    %6215 = vmatprep.subr.bf16.mxu0 %v5232
    %6216 = vmatpush1.bf16.msra.mxu0 %v5224
    %6217 = vmatprep.subr.bf16.mxu0 %v5248
    %6218 = vmatpush1.bf16.msra.mxu0 %v5240
    %6219 = vmatprep.subr.bf16.mxu0 %v5264
    %6220 = vmatpush1.bf16.msra.mxu0 %v5256
    %6221 = vmatprep.subr.bf16.mxu0 0
    %6222 = vmatpush1.bf16.msra.mxu0 0
    %6223 = vmatprep.subr.bf16.mxu0 0
    %6224 = vmatpush1.bf16.msra.mxu0 0
    %6225 = vmatprep.subr.bf16.mxu0 0
    %6226 = vmatpush1.bf16.msra.mxu0 0
    %6227 = vmatprep.subr.bf16.mxu0 0
    %6228 = vmatpush1.bf16.msra.mxu0 0
    %6229 = vmatprep.subr.bf16.mxu0 0
    %6230 = vmatpush1.bf16.msra.mxu0 0
    %6231 = vmatprep.subr.bf16.mxu0 0
    %6232 = vmatpush1.bf16.msra.mxu0 0
    %6233 = vmatprep.subr.bf16.mxu0 0
    %6234 = vmatpush1.bf16.msra.mxu0 0
    %6235 = vmatprep.subr.bf16.mxu0 0
    %6236 = vmatpush1.bf16.msra.mxu0 0
    %6237 = vmatprep.subr.bf16.mxu0 0
    %6238 = vmatpush1.bf16.msra.mxu0 0
    %6239 = vmatprep.subr.bf16.mxu0 0
    %6240 = vmatpush1.bf16.msra.mxu0 0
    %6241 = vmatprep.subr.bf16.mxu0 0
    %6242 = vmatpush1.bf16.msra.mxu0 0
    %6243 = vmatprep.subr.bf16.mxu0 0
    %6244 = vmatpush1.bf16.msra.mxu0 0
    %6245 = vmatprep.mubr.bf16.mxu0 0
    %6246 = vmatmul.mubr.bf16.gmra.mrb[0].mxu0 %v6211
    %v6247 = vpop.f32.mrb[0].mxu0
    %v6248 = vadd.f32 0.0, %v6247
    %v6249 = vpop.f32.mrb[0].mxu0
    %v6250 = vadd.f32 0.0, %v6249
    %v6251 = vpop.f32.mrb[0].mxu0
    %v6252 = vpop.f32.mrb[0].mxu0
    %6253 = vdwg.mxu0
    %v6256 = vrot.slane %v6248, 5
    %v6257 = vrot.slane %v6250, 5
    %v6260 = vadd.f32 %v6203, %v6256
    %v6261 = vadd.f32 %v6204, %v6257
    %v6262 = vxor.u32 %v6260, 2147483648
    %v6263 = vxor.u32 %v6261, 2147483648
    %v6264 = vmul.f32 %v6262, 1.442695
    %v6265 = vpow.pop %v6264
    %v6266 = vmul.f32 %v6263, 1.442695
    %v6267 = vpow.pop %v6266
    %v6268 = vadd.f32 %v6265, 1.0
    %v6269 = vadd.f32 %v6267, 1.0
    %v6270 = vrcp.pop %v6268
    %v6271 = vmul.f32 1.0, %v6270
    %v6272 = vrcp.pop %v6269
    %v6273 = vmul.f32 1.0, %v6272
    %v6274 = vtanh.pop %v6261
    %v6276 = vrot.slane %v6196, 7
    %v6278 = vmul.f32 %v6271, %v6276
    %v6279 = vmul.f32 %v6271, %v6274
    %6281 = vrot.lane.b32.xlu0 %v6279, 64
    %v6282 = vpop.permute.xlu0 %6281
    %v6284 = vadd.f32 %v6278, %v6282
    %v6285 = vtanh.pop %v6284
    %v6286 = vmul.f32 %v6273, %v6285
    %v6287 = vpack.c.bf16 %v6286, %v6286
    %v6289 = vshrl.u32 %v6287, 16
    %v6291 = vrot.slane %v6289, 1
    %6292 = vrot.lane.b32.xlu0 %v6291, 64
    %v6293 = vpop.permute.xlu0 %6292
    %v6295 = vsel %vm3156, %v6293, 0
    %6297 = vmatprep.subr.bf16.mxu0 %v5216
    %6298 = vmatpush1.bf16.msra.mxu0 %v5204
    %6299 = vmatprep.subr.bf16.mxu0 %v5232
    %6300 = vmatpush1.bf16.msra.mxu0 %v5224
    %6301 = vmatprep.subr.bf16.mxu0 %v5248
    %6302 = vmatpush1.bf16.msra.mxu0 %v5240
    %6303 = vmatprep.subr.bf16.mxu0 %v5264
    %6304 = vmatpush1.bf16.msra.mxu0 %v5256
    %6305 = vmatprep.subr.bf16.mxu0 0
    %6306 = vmatpush1.bf16.msra.mxu0 0
    %6307 = vmatprep.subr.bf16.mxu0 0
    %6308 = vmatpush1.bf16.msra.mxu0 0
    %6309 = vmatprep.subr.bf16.mxu0 0
    %6310 = vmatpush1.bf16.msra.mxu0 0
    %6311 = vmatprep.subr.bf16.mxu0 0
    %6312 = vmatpush1.bf16.msra.mxu0 0
    %6313 = vmatprep.subr.bf16.mxu0 0
    %6314 = vmatpush1.bf16.msra.mxu0 0
    %6315 = vmatprep.subr.bf16.mxu0 0
    %6316 = vmatpush1.bf16.msra.mxu0 0
    %6317 = vmatprep.subr.bf16.mxu0 0
    %6318 = vmatpush1.bf16.msra.mxu0 0
    %6319 = vmatprep.subr.bf16.mxu0 0
    %6320 = vmatpush1.bf16.msra.mxu0 0
    %6321 = vmatprep.subr.bf16.mxu0 0
    %6322 = vmatpush1.bf16.msra.mxu0 0
    %6323 = vmatprep.subr.bf16.mxu0 0
    %6324 = vmatpush1.bf16.msra.mxu0 0
    %6325 = vmatprep.subr.bf16.mxu0 0
    %6326 = vmatpush1.bf16.msra.mxu0 0
    %6327 = vmatprep.subr.bf16.mxu0 0
    %6328 = vmatpush1.bf16.msra.mxu0 0
    %6329 = vmatprep.mubr.bf16.mxu0 0
    %6330 = vmatmul.mubr.bf16.gmra.mrb[0].mxu0 %v6295
    %v6331 = vpop.f32.mrb[0].mxu0
    %v6332 = vadd.f32 0.0, %v6331
    %v6333 = vpop.f32.mrb[0].mxu0
    %v6334 = vadd.f32 0.0, %v6333
    %v6335 = vpop.f32.mrb[0].mxu0
    %v6336 = vpop.f32.mrb[0].mxu0
    %6337 = vdwg.mxu0
    %v6340 = vrot.slane %v6332, 4
    %v6341 = vrot.slane %v6334, 4
    %v6344 = vadd.f32 %v5943, %v6340
    %v6345 = vadd.f32 %v5944, %v6341
    %v6346 = vxor.u32 %v6344, 2147483648
    %v6347 = vxor.u32 %v6345, 2147483648
    %v6348 = vmul.f32 %v6346, 1.442695
    %v6349 = vpow.pop %v6348
    %v6350 = vmul.f32 %v6347, 1.442695
    %v6351 = vpow.pop %v6350
    %v6352 = vadd.f32 %v6349, 1.0
    %v6353 = vadd.f32 %v6351, 1.0
    %v6354 = vrcp.pop %v6352
    %v6355 = vmul.f32 1.0, %v6354
    %v6356 = vrcp.pop %v6353
    %v6357 = vmul.f32 1.0, %v6356
    %v6358 = vtanh.pop %v6345
    %v6360 = vrot.slane %v6284, 7
    %v6362 = vmul.f32 %v6355, %v6360
    %v6363 = vmul.f32 %v6355, %v6358
    %6365 = vrot.lane.b32.xlu0 %v6363, 64
    %v6366 = vpop.permute.xlu0 %6365
    %v6368 = vadd.f32 %v6362, %v6366
    %v6369 = vtanh.pop %v6368
    %v6370 = vmul.f32 %v6357, %v6369
    %v6371 = vpack.c.bf16 %v6370, %v6370
    %v6373 = vrot.slane %v6371, 2
    %6374 = vrot.lane.b32.xlu0 %v6373, 64
    %v6375 = vpop.permute.xlu0 %6374
    %v6377 = vsel %vm3156, %v6375, 0
    %6379 = vmatprep.subr.bf16.mxu0 %v5216
    %6380 = vmatpush1.bf16.msra.mxu0 %v5204
    %6381 = vmatprep.subr.bf16.mxu0 %v5232
    %6382 = vmatpush1.bf16.msra.mxu0 %v5224
    %6383 = vmatprep.subr.bf16.mxu0 %v5248
    %6384 = vmatpush1.bf16.msra.mxu0 %v5240
    %6385 = vmatprep.subr.bf16.mxu0 %v5264
    %6386 = vmatpush1.bf16.msra.mxu0 %v5256
    %6387 = vmatprep.subr.bf16.mxu0 0
    %6388 = vmatpush1.bf16.msra.mxu0 0
    %6389 = vmatprep.subr.bf16.mxu0 0
    %6390 = vmatpush1.bf16.msra.mxu0 0
    %6391 = vmatprep.subr.bf16.mxu0 0
    %6392 = vmatpush1.bf16.msra.mxu0 0
    %6393 = vmatprep.subr.bf16.mxu0 0
    %6394 = vmatpush1.bf16.msra.mxu0 0
    %6395 = vmatprep.subr.bf16.mxu0 0
    %6396 = vmatpush1.bf16.msra.mxu0 0
    %6397 = vmatprep.subr.bf16.mxu0 0
    %6398 = vmatpush1.bf16.msra.mxu0 0
    %6399 = vmatprep.subr.bf16.mxu0 0
    %6400 = vmatpush1.bf16.msra.mxu0 0
    %6401 = vmatprep.subr.bf16.mxu0 0
    %6402 = vmatpush1.bf16.msra.mxu0 0
    %6403 = vmatprep.subr.bf16.mxu0 0
    %6404 = vmatpush1.bf16.msra.mxu0 0
    %6405 = vmatprep.subr.bf16.mxu0 0
    %6406 = vmatpush1.bf16.msra.mxu0 0
    %6407 = vmatprep.subr.bf16.mxu0 0
    %6408 = vmatpush1.bf16.msra.mxu0 0
    %6409 = vmatprep.subr.bf16.mxu0 0
    %6410 = vmatpush1.bf16.msra.mxu0 0
    %6411 = vmatprep.mubr.bf16.mxu0 0
    %6412 = vmatmul.mubr.bf16.gmra.mrb[0].mxu0 %v6377
    %v6413 = vpop.f32.mrb[0].mxu0
    %v6414 = vadd.f32 0.0, %v6413
    %v6415 = vpop.f32.mrb[0].mxu0
    %v6416 = vadd.f32 0.0, %v6415
    %v6417 = vpop.f32.mrb[0].mxu0
    %v6418 = vpop.f32.mrb[0].mxu0
    %6419 = vdwg.mxu0
    %v6422 = vrot.slane %v6414, 3
    %v6423 = vrot.slane %v6416, 3
    %v6426 = vadd.f32 %v6027, %v6422
    %v6427 = vadd.f32 %v6028, %v6423
    %v6428 = vxor.u32 %v6426, 2147483648
    %v6429 = vxor.u32 %v6427, 2147483648
    %v6430 = vmul.f32 %v6428, 1.442695
    %v6431 = vpow.pop %v6430
    %v6432 = vmul.f32 %v6429, 1.442695
    %v6433 = vpow.pop %v6432
    %v6434 = vadd.f32 %v6431, 1.0
    %v6435 = vadd.f32 %v6433, 1.0
    %v6436 = vrcp.pop %v6434
    %v6437 = vmul.f32 1.0, %v6436
    %v6438 = vrcp.pop %v6435
    %v6439 = vmul.f32 1.0, %v6438
    %v6440 = vtanh.pop %v6427
    %v6442 = vrot.slane %v6368, 7
    %v6444 = vmul.f32 %v6437, %v6442
    %v6445 = vmul.f32 %v6437, %v6440
    %6447 = vrot.lane.b32.xlu0 %v6445, 64
    %v6448 = vpop.permute.xlu0 %6447
    %v6450 = vadd.f32 %v6444, %v6448
    %v6451 = vtanh.pop %v6450
    %v6452 = vmul.f32 %v6439, %v6451
    %v6453 = vpack.c.bf16 %v6452, %v6452
    %v6455 = vshrl.u32 %v6453, 16
    %v6457 = vrot.slane %v6455, 2
    %6458 = vrot.lane.b32.xlu0 %v6457, 64
    %v6459 = vpop.permute.xlu0 %6458
    %v6461 = vsel %vm3156, %v6459, 0
    %6463 = vmatprep.subr.bf16.mxu0 %v5216
    %6464 = vmatpush1.bf16.msra.mxu0 %v5204
    %6465 = vmatprep.subr.bf16.mxu0 %v5232
    %6466 = vmatpush1.bf16.msra.mxu0 %v5224
    %6467 = vmatprep.subr.bf16.mxu0 %v5248
    %6468 = vmatpush1.bf16.msra.mxu0 %v5240
    %6469 = vmatprep.subr.bf16.mxu0 %v5264
    %6470 = vmatpush1.bf16.msra.mxu0 %v5256
    %6471 = vmatprep.subr.bf16.mxu0 0
    %6472 = vmatpush1.bf16.msra.mxu0 0
    %6473 = vmatprep.subr.bf16.mxu0 0
    %6474 = vmatpush1.bf16.msra.mxu0 0
    %6475 = vmatprep.subr.bf16.mxu0 0
    %6476 = vmatpush1.bf16.msra.mxu0 0
    %6477 = vmatprep.subr.bf16.mxu0 0
    %6478 = vmatpush1.bf16.msra.mxu0 0
    %6479 = vmatprep.subr.bf16.mxu0 0
    %6480 = vmatpush1.bf16.msra.mxu0 0
    %6481 = vmatprep.subr.bf16.mxu0 0
    %6482 = vmatpush1.bf16.msra.mxu0 0
    %6483 = vmatprep.subr.bf16.mxu0 0
    %6484 = vmatpush1.bf16.msra.mxu0 0
    %6485 = vmatprep.subr.bf16.mxu0 0
    %6486 = vmatpush1.bf16.msra.mxu0 0
    %6487 = vmatprep.subr.bf16.mxu0 0
    %6488 = vmatpush1.bf16.msra.mxu0 0
    %6489 = vmatprep.subr.bf16.mxu0 0
    %6490 = vmatpush1.bf16.msra.mxu0 0
    %6491 = vmatprep.subr.bf16.mxu0 0
    %6492 = vmatpush1.bf16.msra.mxu0 0
    %6493 = vmatprep.subr.bf16.mxu0 0
    %6494 = vmatpush1.bf16.msra.mxu0 0
    %6495 = vmatprep.mubr.bf16.mxu0 0
    %6496 = vmatmul.mubr.bf16.gmra.mrb[0].mxu0 %v6461
    %v6497 = vpop.f32.mrb[0].mxu0
    %v6498 = vadd.f32 0.0, %v6497
    %v6499 = vpop.f32.mrb[0].mxu0
    %v6500 = vadd.f32 0.0, %v6499
    %v6501 = vpop.f32.mrb[0].mxu0
    %v6502 = vpop.f32.mrb[0].mxu0
    %6503 = vdwg.mxu0
    %v6506 = vrot.slane %v6498, 2
    %v6507 = vrot.slane %v6500, 2
    %v6510 = vadd.f32 %v6114, %v6506
    %v6511 = vadd.f32 %v6115, %v6507
    %v6512 = vxor.u32 %v6510, 2147483648
    %v6513 = vxor.u32 %v6511, 2147483648
    %v6514 = vmul.f32 %v6512, 1.442695
    %v6515 = vpow.pop %v6514
    %v6516 = vmul.f32 %v6513, 1.442695
    %v6517 = vpow.pop %v6516
    %v6518 = vadd.f32 %v6515, 1.0
    %v6519 = vadd.f32 %v6517, 1.0
    %v6520 = vrcp.pop %v6518
    %v6521 = vmul.f32 1.0, %v6520
    %v6522 = vrcp.pop %v6519
    %v6523 = vmul.f32 1.0, %v6522
    %v6524 = vtanh.pop %v6511
    %v6526 = vrot.slane %v6450, 7
    %v6528 = vmul.f32 %v6521, %v6526
    %v6529 = vmul.f32 %v6521, %v6524
    %6531 = vrot.lane.b32.xlu0 %v6529, 64
    %v6532 = vpop.permute.xlu0 %6531
    %v6534 = vadd.f32 %v6528, %v6532
    %v6535 = vtanh.pop %v6534
    %v6536 = vmul.f32 %v6523, %v6535
    %v6537 = vpack.c.bf16 %v6536, %v6536
    %v6539 = vrot.slane %v6537, 3
    %6540 = vrot.lane.b32.xlu0 %v6539, 64
    %v6541 = vpop.permute.xlu0 %6540
    %v6543 = vsel %vm3156, %v6541, 0
    %6545 = vmatprep.subr.bf16.mxu0 %v5216
    %6546 = vmatpush1.bf16.msra.mxu0 %v5204
    %6547 = vmatprep.subr.bf16.mxu0 %v5232
    %6548 = vmatpush1.bf16.msra.mxu0 %v5224
    %6549 = vmatprep.subr.bf16.mxu0 %v5248
    %6550 = vmatpush1.bf16.msra.mxu0 %v5240
    %6551 = vmatprep.subr.bf16.mxu0 %v5264
    %6552 = vmatpush1.bf16.msra.mxu0 %v5256
    %6553 = vmatprep.subr.bf16.mxu0 0
    %6554 = vmatpush1.bf16.msra.mxu0 0
    %6555 = vmatprep.subr.bf16.mxu0 0
    %6556 = vmatpush1.bf16.msra.mxu0 0
    %6557 = vmatprep.subr.bf16.mxu0 0
    %6558 = vmatpush1.bf16.msra.mxu0 0
    %6559 = vmatprep.subr.bf16.mxu0 0
    %6560 = vmatpush1.bf16.msra.mxu0 0
    %6561 = vmatprep.subr.bf16.mxu0 0
    %6562 = vmatpush1.bf16.msra.mxu0 0
    %6563 = vmatprep.subr.bf16.mxu0 0
    %6564 = vmatpush1.bf16.msra.mxu0 0
    %6565 = vmatprep.subr.bf16.mxu0 0
    %6566 = vmatpush1.bf16.msra.mxu0 0
    %6567 = vmatprep.subr.bf16.mxu0 0
    %6568 = vmatpush1.bf16.msra.mxu0 0
    %6569 = vmatprep.subr.bf16.mxu0 0
    %6570 = vmatpush1.bf16.msra.mxu0 0
    %6571 = vmatprep.subr.bf16.mxu0 0
    %6572 = vmatpush1.bf16.msra.mxu0 0
    %6573 = vmatprep.subr.bf16.mxu0 0
    %6574 = vmatpush1.bf16.msra.mxu0 0
    %6575 = vmatprep.subr.bf16.mxu0 0
    %6576 = vmatpush1.bf16.msra.mxu0 0
    %6577 = vmatprep.mubr.bf16.mxu0 0
    %6578 = vmatmul.mubr.bf16.gmra.mrb[0].mxu0 %v6543
    %v6579 = vpop.f32.mrb[0].mxu0
    %v6580 = vadd.f32 0.0, %v6579
    %v6581 = vpop.f32.mrb[0].mxu0
    %v6582 = vadd.f32 0.0, %v6581
    %v6583 = vpop.f32.mrb[0].mxu0
    %v6584 = vpop.f32.mrb[0].mxu0
    %6585 = vdwg.mxu0
    %v6588 = vrot.slane %v6580, 1
    %v6589 = vrot.slane %v6582, 1
    %v6592 = vadd.f32 %v6203, %v6588
    %v6593 = vadd.f32 %v6204, %v6589
    %v6594 = vxor.u32 %v6592, 2147483648
    %v6595 = vxor.u32 %v6593, 2147483648
    %v6596 = vmul.f32 %v6594, 1.442695
    %v6597 = vpow.pop %v6596
    %v6598 = vmul.f32 %v6595, 1.442695
    %v6599 = vpow.pop %v6598
    %v6600 = vadd.f32 %v6597, 1.0
    %v6601 = vadd.f32 %v6599, 1.0
    %v6602 = vrcp.pop %v6600
    %v6603 = vmul.f32 1.0, %v6602
    %v6604 = vrcp.pop %v6601
    %v6605 = vmul.f32 1.0, %v6604
    %v6606 = vtanh.pop %v6593
    %v6608 = vrot.slane %v6534, 7
    %v6610 = vmul.f32 %v6603, %v6608
    %v6611 = vmul.f32 %v6603, %v6606
    %6613 = vrot.lane.b32.xlu0 %v6611, 64
    %v6614 = vpop.permute.xlu0 %6613
    %v6616 = vadd.f32 %v6610, %v6614
    %v6617 = vtanh.pop %v6616
    %v6618 = vmul.f32 %v6605, %v6617
    %6620 = vrot.lane.b32.xlu0 %v5340, 64
    %v6621 = vpop.permute.xlu0 %6620
    %v6624 = vrot.slane %v6618, 7
    %6625 = vrot.lane.b32.xlu0 %v6624, 64
    %v6626 = vpop.permute.xlu0 %6625
    %v6628 = vsel %vm4941, %v6621, %v6626
    %v6630 = vrot.slane %v5427, 1
    %6631 = vrot.lane.b32.xlu0 %v6630, 64
    %v6632 = vpop.permute.xlu0 %6631
    %v6635 = vrot.slane %v6536, 6
    %6636 = vrot.lane.b32.xlu0 %v6635, 64
    %v6637 = vpop.permute.xlu0 %6636
    %v6639 = vsel %vm4941, %v6632, %v6637
    %v6641 = vrot.slane %v5516, 2
    %6642 = vrot.lane.b32.xlu0 %v6641, 64
    %v6643 = vpop.permute.xlu0 %6642
    %v6646 = vrot.slane %v6452, 5
    %6647 = vrot.lane.b32.xlu0 %v6646, 64
    %v6648 = vpop.permute.xlu0 %6647
    %v6650 = vsel %vm4941, %v6643, %v6648
    %v6652 = vrot.slane %v5604, 3
    %6653 = vrot.lane.b32.xlu0 %v6652, 64
    %v6654 = vpop.permute.xlu0 %6653
    %v6657 = vrot.slane %v6370, 4
    %6658 = vrot.lane.b32.xlu0 %v6657, 64
    %v6659 = vpop.permute.xlu0 %6658
    %v6661 = vsel %vm4941, %v6654, %v6659
    %v6663 = vrot.slane %v5688, 4
    %6664 = vrot.lane.b32.xlu0 %v6663, 64
    %v6665 = vpop.permute.xlu0 %6664
    %v6668 = vrot.slane %v6286, 3
    %6669 = vrot.lane.b32.xlu0 %v6668, 64
    %v6670 = vpop.permute.xlu0 %6669
    %v6672 = vsel %vm4941, %v6665, %v6670
    %v6674 = vrot.slane %v5770, 5
    %6675 = vrot.lane.b32.xlu0 %v6674, 64
    %v6676 = vpop.permute.xlu0 %6675
    %v6679 = vrot.slane %v6198, 2
    %6680 = vrot.lane.b32.xlu0 %v6679, 64
    %v6681 = vpop.permute.xlu0 %6680
    %v6683 = vsel %vm4941, %v6676, %v6681
    %v6685 = vrot.slane %v5854, 6
    %6686 = vrot.lane.b32.xlu0 %v6685, 64
    %v6687 = vpop.permute.xlu0 %6686
    %v6690 = vrot.slane %v6109, 1
    %6691 = vrot.lane.b32.xlu0 %v6690, 64
    %v6692 = vpop.permute.xlu0 %6691
    %v6694 = vsel %vm4941, %v6687, %v6692
    %v6696 = vrot.slane %v5936, 7
    %6697 = vrot.lane.b32.xlu0 %v6696, 64
    %v6698 = vpop.permute.xlu0 %6697
    %6701 = vrot.lane.b32.xlu0 %v6022, 64
    %v6702 = vpop.permute.xlu0 %6701
    %v6704 = vsel %vm4941, %v6698, %v6702
    %v6705 = vsel %vm4941, %v6702, %v6698
    %v6706 = vsel %vm4941, %v6692, %v6687
    %v6707 = vsel %vm4941, %v6681, %v6676
    %v6708 = vsel %vm4941, %v6670, %v6665
    %v6709 = vsel %vm4941, %v6659, %v6654
    %v6710 = vsel %vm4941, %v6648, %v6643
    %v6711 = vsel %vm4941, %v6637, %v6632
    %v6712 = vsel %vm4941, %v6626, %v6621
    %v6714 = vrot.slane %v6639, 7
    %v6717 = vrot.slane %v6650, 6
    %v6720 = vrot.slane %v6661, 5
    %v6723 = vrot.slane %v6672, 4
    %v6726 = vrot.slane %v6683, 3
    %v6729 = vrot.slane %v6694, 2
    %v6732 = vrot.slane %v6704, 1
    %v6735 = vrot.slane %v6706, 7
    %v6738 = vrot.slane %v6707, 6
    %v6741 = vrot.slane %v6708, 5
    %v6744 = vrot.slane %v6709, 4
    %v6747 = vrot.slane %v6710, 3
    %v6750 = vrot.slane %v6711, 2
    %v6753 = vrot.slane %v6712, 1
    %v6755 = vsel %vm722, %v6628, %v6714
    %vm6756 = vcmask 1041408
    %v6757 = vsel %vm6756, %v6755, %v6717
    %vm6758 = vcmask 1042432
    %v6759 = vsel %vm6758, %v6757, %v6720
    %vm6760 = vcmask 1043456
    %v6761 = vsel %vm6760, %v6759, %v6723
    %v6762 = vsel %vm311, %v6761, %v6726
    %vm6763 = vcmask 1045504
    %v6764 = vsel %vm6763, %v6762, %v6729
    %vm6765 = vcmask 1046528
    %v6766 = vsel %vm6765, %v6764, %v6732
    %v6767 = vsel %vm722, %v6705, %v6735
    %v6768 = vsel %vm6756, %v6767, %v6738
    %v6769 = vsel %vm6758, %v6768, %v6741
    %v6770 = vsel %vm6760, %v6769, %v6744
    %v6771 = vsel %vm311, %v6770, %v6747
    %v6772 = vsel %vm6763, %v6771, %v6750
    %v6773 = vsel %vm6765, %v6772, %v6753
    %v6774 = vpack.c.bf16 %v6773, %v6766
    %v6775 = vld [vmem:[#allocation7 + $0x220] sm:$0xff]
    %v6776 = vld [vmem:[#allocation7 + $0x228] sm:$0xff]
    %v6777 = vld [vmem:[#allocation7 + $0x230] sm:$0xff]
    %v6778 = vld [vmem:[#allocation7 + $0x238] sm:$0xff]
    %v6779 = vld [vmem:[#allocation7 + $0x240] sm:$0xff]
    %v6780 = vld [vmem:[#allocation7 + $0x248] sm:$0xff]
    %v6781 = vld [vmem:[#allocation7 + $0x250] sm:$0xff]
    %v6782 = vld [vmem:[#allocation7 + $0x258] sm:$0xff]
    %v6783 = vld [vmem:[#allocation7 + $0x260] sm:$0x11]
    %s6784 = scalar_lea.vmem [#allocation6], 48
    %v6785 = vld [vmem:[%s6784] ss:$8 sm:$0x3]
    %v6787 = vlaneseq
    %v6788 = vshrl.u32 %v6787, 7
    %v6789 = vsub.s32 0, %v6788
    %v6790 = vrot.slane %v6785, %v6789
    %v6791 = vlaneseq
    %v6792 = vshrl.u32 %v6791, 7
    %v6793 = vsub.s32 1, %v6792
    %v6794 = vrot.slane %v6785, %v6793
    %v6806 = vunpack.c.l.b16 %v6775
    %v6807 = vunpack.c.h.b16 %v6775
    %v6808 = vunpack.c.l.b16 %v6776
    %v6809 = vunpack.c.h.b16 %v6776
    %v6810 = vunpack.c.l.b16 %v6777
    %v6811 = vunpack.c.h.b16 %v6777
    %v6812 = vunpack.c.l.b16 %v6778
    %v6813 = vunpack.c.h.b16 %v6778
    %v6814 = vunpack.c.l.b16 %v6779
    %v6815 = vunpack.c.h.b16 %v6779
    %v6816 = vunpack.c.l.b16 %v6780
    %v6817 = vunpack.c.h.b16 %v6780
    %v6818 = vunpack.c.l.b16 %v6781
    %v6819 = vunpack.c.h.b16 %v6781
    %v6820 = vunpack.c.l.b16 %v6782
    %v6821 = vunpack.c.h.b16 %v6782
    %v6822 = vunpack.c.l.b16 %v6783
    %v6823 = vunpack.c.h.b16 %v6783
    %v6824 = vpack.c.b16 %v6808, %v6806
    %v6825 = vpack.c.b16 %v6809, %v6807
    %v6826 = vpack.c.b16 %v6812, %v6810
    %v6827 = vpack.c.b16 %v6813, %v6811
    %v6828 = vpack.c.b16 %v6816, %v6814
    %v6829 = vpack.c.b16 %v6817, %v6815
    %v6830 = vpack.c.b16 %v6820, %v6818
    %v6831 = vpack.c.b16 %v6821, %v6819
    %v6832 = vpack.c.b16 %v6822, %v6822
    %v6833 = vpack.c.b16 %v6823, %v6823
    %v6835 = vshrl.u32 %v6824, 16
    %v6837 = vshll.u32 %v6824, 16
    %v6839 = vrot.slane %v6837, 1
    %v6840 = vor.u32 %v6835, %v6839
    %v6842 = vshll.u32 %v6826, 16
    %v6844 = vrot.slane %v6842, 1
    %v6845 = vsel %vm784, %v6840, %v6844
    %v6847 = vshrl.u32 %v6825, 16
    %v6849 = vshll.u32 %v6825, 16
    %v6851 = vrot.slane %v6849, 1
    %v6852 = vor.u32 %v6847, %v6851
    %v6854 = vshll.u32 %v6827, 16
    %v6856 = vrot.slane %v6854, 1
    %v6857 = vsel %vm784, %v6852, %v6856
    %v6858 = vshrl.u32 %v6826, 16
    %v6860 = vor.u32 %v6858, %v6844
    %v6862 = vshll.u32 %v6828, 16
    %v6864 = vrot.slane %v6862, 1
    %v6865 = vsel %vm784, %v6860, %v6864
    %v6866 = vshrl.u32 %v6827, 16
    %v6868 = vor.u32 %v6866, %v6856
    %v6870 = vshll.u32 %v6829, 16
    %v6872 = vrot.slane %v6870, 1
    %v6873 = vsel %vm784, %v6868, %v6872
    %v6874 = vshrl.u32 %v6828, 16
    %v6876 = vor.u32 %v6874, %v6864
    %v6878 = vshll.u32 %v6830, 16
    %v6880 = vrot.slane %v6878, 1
    %v6881 = vsel %vm784, %v6876, %v6880
    %v6882 = vshrl.u32 %v6829, 16
    %v6884 = vor.u32 %v6882, %v6872
    %v6886 = vshll.u32 %v6831, 16
    %v6888 = vrot.slane %v6886, 1
    %v6889 = vsel %vm784, %v6884, %v6888
    %v6890 = vshrl.u32 %v6830, 16
    %v6892 = vor.u32 %v6890, %v6880
    %v6894 = vshll.u32 %v6832, 16
    %v6896 = vrot.slane %v6894, 1
    %v6897 = vsel %vm784, %v6892, %v6896
    %v6898 = vshrl.u32 %v6831, 16
    %v6900 = vor.u32 %v6898, %v6888
    %v6902 = vshll.u32 %v6833, 16
    %v6904 = vrot.slane %v6902, 1
    %v6905 = vsel %vm784, %v6900, %v6904
    %v6915 = vsel %vm3156, %v6774, 0
    %6917 = vmatprep.subr.bf16.mxu0 %v6857
    %6918 = vmatpush1.bf16.msra.mxu0 %v6845
    %6919 = vmatprep.subr.bf16.mxu0 %v6873
    %6920 = vmatpush1.bf16.msra.mxu0 %v6865
    %6921 = vmatprep.subr.bf16.mxu0 %v6889
    %6922 = vmatpush1.bf16.msra.mxu0 %v6881
    %6923 = vmatprep.subr.bf16.mxu0 %v6905
    %6924 = vmatpush1.bf16.msra.mxu0 %v6897
    %6925 = vmatprep.subr.bf16.mxu0 0
    %6926 = vmatpush1.bf16.msra.mxu0 0
    %6927 = vmatprep.subr.bf16.mxu0 0
    %6928 = vmatpush1.bf16.msra.mxu0 0
    %6929 = vmatprep.subr.bf16.mxu0 0
    %6930 = vmatpush1.bf16.msra.mxu0 0
    %6931 = vmatprep.subr.bf16.mxu0 0
    %6932 = vmatpush1.bf16.msra.mxu0 0
    %6933 = vmatprep.subr.bf16.mxu0 0
    %6934 = vmatpush1.bf16.msra.mxu0 0
    %6935 = vmatprep.subr.bf16.mxu0 0
    %6936 = vmatpush1.bf16.msra.mxu0 0
    %6937 = vmatprep.subr.bf16.mxu0 0
    %6938 = vmatpush1.bf16.msra.mxu0 0
    %6939 = vmatprep.subr.bf16.mxu0 0
    %6940 = vmatpush1.bf16.msra.mxu0 0
    %6941 = vmatprep.subr.bf16.mxu0 0
    %6942 = vmatpush1.bf16.msra.mxu0 0
    %6943 = vmatprep.subr.bf16.mxu0 0
    %6944 = vmatpush1.bf16.msra.mxu0 0
    %6945 = vmatprep.subr.bf16.mxu0 0
    %6946 = vmatpush1.bf16.msra.mxu0 0
    %6947 = vmatprep.subr.bf16.mxu0 0
    %6948 = vmatpush1.bf16.msra.mxu0 0
    %6949 = vmatprep.mubr.bf16.mxu0 0
    %6950 = vmatmul.mubr.bf16.gmra.mrb[0].mxu0 %v6915
    %v6951 = vpop.f32.mrb[0].mxu0
    %v6952 = vadd.f32 %v6790, %v6951
    %v6953 = vpop.f32.mrb[0].mxu0
    %v6954 = vadd.f32 %v6794, %v6953
    %v6955 = vpop.f32.mrb[0].mxu0
    %v6956 = vadd.f32 %v6790, %v6955
    %v6957 = vpop.f32.mrb[0].mxu0
    %v6958 = vadd.f32 %v6794, %v6957
    %6959 = vdwg.mxu0
    %v6960 = vld [vmem:[#allocation7 + $0x260] sm:$0xff]
    %v6961 = vld [vmem:[#allocation7 + $0x268] sm:$0xff]
    %v6962 = vld [vmem:[#allocation7 + $0x270] sm:$0xff]
    %v6963 = vld [vmem:[#allocation7 + $0x278] sm:$0xff]
    %v6964 = vld [vmem:[#allocation7 + $0x280] sm:$0xff]
    %v6965 = vld [vmem:[#allocation7 + $0x288] sm:$0xff]
    %v6966 = vld [vmem:[#allocation7 + $0x290] sm:$0xff]
    %v6967 = vld [vmem:[#allocation7 + $0x298] sm:$0xff]
    %v6968 = vld [vmem:[#allocation7 + $0x2a0] sm:$0x11]
    %v6971 = vrot.slane %v6956, 7
    %v6972 = vrot.slane %v6958, 7
    %v6975 = vsel %vm4941, %v6952, %v6971
    %v6976 = vsel %vm4942, %v6954, %v6972
    %v6986 = vunpack.c.l.b16 %v6960
    %v6987 = vunpack.c.h.b16 %v6960
    %v6988 = vunpack.c.l.b16 %v6961
    %v6989 = vunpack.c.h.b16 %v6961
    %v6990 = vunpack.c.l.b16 %v6962
    %v6991 = vunpack.c.h.b16 %v6962
    %v6992 = vunpack.c.l.b16 %v6963
    %v6993 = vunpack.c.h.b16 %v6963
    %v6994 = vunpack.c.l.b16 %v6964
    %v6995 = vunpack.c.h.b16 %v6964
    %v6996 = vunpack.c.l.b16 %v6965
    %v6997 = vunpack.c.h.b16 %v6965
    %v6998 = vunpack.c.l.b16 %v6966
    %v6999 = vunpack.c.h.b16 %v6966
    %v7000 = vunpack.c.l.b16 %v6967
    %v7001 = vunpack.c.h.b16 %v6967
    %v7002 = vunpack.c.l.b16 %v6968
    %v7003 = vunpack.c.h.b16 %v6968
    %v7004 = vpack.c.b16 %v6988, %v6986
    %v7005 = vpack.c.b16 %v6989, %v6987
    %v7006 = vpack.c.b16 %v6992, %v6990
    %v7007 = vpack.c.b16 %v6993, %v6991
    %v7008 = vpack.c.b16 %v6996, %v6994
    %v7009 = vpack.c.b16 %v6997, %v6995
    %v7010 = vpack.c.b16 %v7000, %v6998
    %v7011 = vpack.c.b16 %v7001, %v6999
    %v7012 = vpack.c.b16 %v7002, %v7002
    %v7013 = vpack.c.b16 %v7003, %v7003
    %v7015 = vshrl.u32 %v7004, 16
    %v7017 = vshll.u32 %v7004, 16
    %v7019 = vrot.slane %v7017, 1
    %v7020 = vor.u32 %v7015, %v7019
    %v7022 = vshll.u32 %v7006, 16
    %v7024 = vrot.slane %v7022, 1
    %v7025 = vsel %vm784, %v7020, %v7024
    %v7027 = vshrl.u32 %v7005, 16
    %v7029 = vshll.u32 %v7005, 16
    %v7031 = vrot.slane %v7029, 1
    %v7032 = vor.u32 %v7027, %v7031
    %v7034 = vshll.u32 %v7007, 16
    %v7036 = vrot.slane %v7034, 1
    %v7037 = vsel %vm784, %v7032, %v7036
    %v7038 = vshrl.u32 %v7006, 16
    %v7040 = vor.u32 %v7038, %v7024
    %v7042 = vshll.u32 %v7008, 16
    %v7044 = vrot.slane %v7042, 1
    %v7045 = vsel %vm784, %v7040, %v7044
    %v7046 = vshrl.u32 %v7007, 16
    %v7048 = vor.u32 %v7046, %v7036
    %v7050 = vshll.u32 %v7009, 16
    %v7052 = vrot.slane %v7050, 1
    %v7053 = vsel %vm784, %v7048, %v7052
    %v7054 = vshrl.u32 %v7008, 16
    %v7056 = vor.u32 %v7054, %v7044
    %v7058 = vshll.u32 %v7010, 16
    %v7060 = vrot.slane %v7058, 1
    %v7061 = vsel %vm784, %v7056, %v7060
    %v7062 = vshrl.u32 %v7009, 16
    %v7064 = vor.u32 %v7062, %v7052
    %v7066 = vshll.u32 %v7011, 16
    %v7068 = vrot.slane %v7066, 1
    %v7069 = vsel %vm784, %v7064, %v7068
    %v7070 = vshrl.u32 %v7010, 16
    %v7072 = vor.u32 %v7070, %v7060
    %v7074 = vshll.u32 %v7012, 16
    %v7076 = vrot.slane %v7074, 1
    %v7077 = vsel %vm784, %v7072, %v7076
    %v7078 = vshrl.u32 %v7011, 16
    %v7080 = vor.u32 %v7078, %v7068
    %v7082 = vshll.u32 %v7013, 16
    %v7084 = vrot.slane %v7082, 1
    %v7085 = vsel %vm784, %v7080, %v7084
    %7094 = vmatprep.subr.bf16.mxu0 %v7037
    %7095 = vmatpush1.bf16.msra.mxu0 %v7025
    %7096 = vmatprep.subr.bf16.mxu0 %v7053
    %7097 = vmatpush1.bf16.msra.mxu0 %v7045
    %7098 = vmatprep.subr.bf16.mxu0 %v7069
    %7099 = vmatpush1.bf16.msra.mxu0 %v7061
    %7100 = vmatprep.subr.bf16.mxu0 %v7085
    %7101 = vmatpush1.bf16.msra.mxu0 %v7077
    %7102 = vmatprep.subr.bf16.mxu0 0
    %7103 = vmatpush1.bf16.msra.mxu0 0
    %7104 = vmatprep.subr.bf16.mxu0 0
    %7105 = vmatpush1.bf16.msra.mxu0 0
    %7106 = vmatprep.subr.bf16.mxu0 0
    %7107 = vmatpush1.bf16.msra.mxu0 0
    %7108 = vmatprep.subr.bf16.mxu0 0
    %7109 = vmatpush1.bf16.msra.mxu0 0
    %7110 = vmatprep.subr.bf16.mxu0 0
    %7111 = vmatpush1.bf16.msra.mxu0 0
    %7112 = vmatprep.subr.bf16.mxu0 0
    %7113 = vmatpush1.bf16.msra.mxu0 0
    %7114 = vmatprep.subr.bf16.mxu0 0
    %7115 = vmatpush1.bf16.msra.mxu0 0
    %7116 = vmatprep.subr.bf16.mxu0 0
    %7117 = vmatpush1.bf16.msra.mxu0 0
    %7118 = vmatprep.subr.bf16.mxu0 0
    %7119 = vmatpush1.bf16.msra.mxu0 0
    %7120 = vmatprep.subr.bf16.mxu0 0
    %7121 = vmatpush1.bf16.msra.mxu0 0
    %7122 = vmatprep.subr.bf16.mxu0 0
    %7123 = vmatpush1.bf16.msra.mxu0 0
    %7124 = vmatprep.subr.bf16.mxu0 0
    %7125 = vmatpush1.bf16.msra.mxu0 0
    %7126 = vmatprep.mubr.bf16.mxu0 0
    %7127 = vmatmul.mubr.bf16.gmra.mrb[0].mxu0 %v5274
    %v7128 = vpop.f32.mrb[0].mxu0
    %v7129 = vadd.f32 0.0, %v7128
    %v7130 = vpop.f32.mrb[0].mxu0
    %v7131 = vadd.f32 0.0, %v7130
    %v7132 = vpop.f32.mrb[0].mxu0
    %v7133 = vpop.f32.mrb[0].mxu0
    %7134 = vdwg.mxu0
    %v7135 = vadd.f32 %v6975, %v7129
    %v7136 = vadd.f32 %v6976, %v7131
    %v7137 = vxor.u32 %v7135, 2147483648
    %v7138 = vxor.u32 %v7136, 2147483648
    %v7139 = vmul.f32 %v7137, 1.442695
    %v7140 = vpow.pop %v7139
    %v7141 = vmul.f32 %v7138, 1.442695
    %v7142 = vpow.pop %v7141
    %v7143 = vadd.f32 %v7140, 1.0
    %v7144 = vadd.f32 %v7142, 1.0
    %v7145 = vrcp.pop %v7143
    %v7146 = vmul.f32 1.0, %v7145
    %v7147 = vrcp.pop %v7144
    %v7148 = vmul.f32 1.0, %v7147
    %v7149 = vtanh.pop %v7136
    %v7150 = vmul.f32 %v7146, 0.0
    %v7151 = vmul.f32 %v7146, %v7149
    %7153 = vrot.lane.b32.xlu0 %v7151, 64
    %v7154 = vpop.permute.xlu0 %7153
    %v7156 = vadd.f32 %v7150, %v7154
    %v7157 = vtanh.pop %v7156
    %v7158 = vmul.f32 %v7148, %v7157
    %v7159 = vrot.slane %v6956, 5
    %v7160 = vrot.slane %v6958, 5
    %v7163 = vsel %vm4941, %v6952, %v7159
    %v7164 = vsel %vm4942, %v6954, %v7160
    %v7165 = vpack.c.bf16 %v7158, %v7158
    %7167 = vrot.lane.b32.xlu0 %v7165, 64
    %v7168 = vpop.permute.xlu0 %7167
    %v7170 = vsel %vm3156, %v7168, 0
    %7172 = vmatprep.subr.bf16.mxu0 %v7037
    %7173 = vmatpush1.bf16.msra.mxu0 %v7025
    %7174 = vmatprep.subr.bf16.mxu0 %v7053
    %7175 = vmatpush1.bf16.msra.mxu0 %v7045
    %7176 = vmatprep.subr.bf16.mxu0 %v7069
    %7177 = vmatpush1.bf16.msra.mxu0 %v7061
    %7178 = vmatprep.subr.bf16.mxu0 %v7085
    %7179 = vmatpush1.bf16.msra.mxu0 %v7077
    %7180 = vmatprep.subr.bf16.mxu0 0
    %7181 = vmatpush1.bf16.msra.mxu0 0
    %7182 = vmatprep.subr.bf16.mxu0 0
    %7183 = vmatpush1.bf16.msra.mxu0 0
    %7184 = vmatprep.subr.bf16.mxu0 0
    %7185 = vmatpush1.bf16.msra.mxu0 0
    %7186 = vmatprep.subr.bf16.mxu0 0
    %7187 = vmatpush1.bf16.msra.mxu0 0
    %7188 = vmatprep.subr.bf16.mxu0 0
    %7189 = vmatpush1.bf16.msra.mxu0 0
    %7190 = vmatprep.subr.bf16.mxu0 0
    %7191 = vmatpush1.bf16.msra.mxu0 0
    %7192 = vmatprep.subr.bf16.mxu0 0
    %7193 = vmatpush1.bf16.msra.mxu0 0
    %7194 = vmatprep.subr.bf16.mxu0 0
    %7195 = vmatpush1.bf16.msra.mxu0 0
    %7196 = vmatprep.subr.bf16.mxu0 0
    %7197 = vmatpush1.bf16.msra.mxu0 0
    %7198 = vmatprep.subr.bf16.mxu0 0
    %7199 = vmatpush1.bf16.msra.mxu0 0
    %7200 = vmatprep.subr.bf16.mxu0 0
    %7201 = vmatpush1.bf16.msra.mxu0 0
    %7202 = vmatprep.subr.bf16.mxu0 0
    %7203 = vmatpush1.bf16.msra.mxu0 0
    %7204 = vmatprep.mubr.bf16.mxu0 0
    %7205 = vmatmul.mubr.bf16.gmra.mrb[0].mxu0 %v7170
    %v7206 = vpop.f32.mrb[0].mxu0
    %v7207 = vadd.f32 0.0, %v7206
    %v7208 = vpop.f32.mrb[0].mxu0
    %v7209 = vadd.f32 0.0, %v7208
    %v7210 = vpop.f32.mrb[0].mxu0
    %v7211 = vpop.f32.mrb[0].mxu0
    %7212 = vdwg.mxu0
    %v7215 = vrot.slane %v7207, 7
    %v7216 = vrot.slane %v7209, 7
    %v7219 = vadd.f32 %v7163, %v7215
    %v7220 = vadd.f32 %v7164, %v7216
    %v7221 = vxor.u32 %v7219, 2147483648
    %v7222 = vxor.u32 %v7220, 2147483648
    %v7223 = vmul.f32 %v7221, 1.442695
    %v7224 = vpow.pop %v7223
    %v7225 = vmul.f32 %v7222, 1.442695
    %v7226 = vpow.pop %v7225
    %v7227 = vadd.f32 %v7224, 1.0
    %v7228 = vadd.f32 %v7226, 1.0
    %v7229 = vrcp.pop %v7227
    %v7230 = vmul.f32 1.0, %v7229
    %v7231 = vrcp.pop %v7228
    %v7232 = vmul.f32 1.0, %v7231
    %v7233 = vtanh.pop %v7220
    %v7235 = vrot.slane %v7156, 7
    %v7237 = vmul.f32 %v7230, %v7235
    %v7238 = vmul.f32 %v7230, %v7233
    %7240 = vrot.lane.b32.xlu0 %v7238, 64
    %v7241 = vpop.permute.xlu0 %7240
    %v7243 = vadd.f32 %v7237, %v7241
    %v7244 = vtanh.pop %v7243
    %v7245 = vmul.f32 %v7232, %v7244
    %v7246 = vrot.slane %v6956, 3
    %v7247 = vrot.slane %v6958, 3
    %v7250 = vsel %vm4941, %v6952, %v7246
    %v7251 = vsel %vm4942, %v6954, %v7247
    %v7252 = vpack.c.bf16 %v7245, %v7245
    %v7254 = vshrl.u32 %v7252, 16
    %7256 = vrot.lane.b32.xlu0 %v7254, 64
    %v7257 = vpop.permute.xlu0 %7256
    %v7259 = vsel %vm3156, %v7257, 0
    %7261 = vmatprep.subr.bf16.mxu0 %v7037
    %7262 = vmatpush1.bf16.msra.mxu0 %v7025
    %7263 = vmatprep.subr.bf16.mxu0 %v7053
    %7264 = vmatpush1.bf16.msra.mxu0 %v7045
    %7265 = vmatprep.subr.bf16.mxu0 %v7069
    %7266 = vmatpush1.bf16.msra.mxu0 %v7061
    %7267 = vmatprep.subr.bf16.mxu0 %v7085
    %7268 = vmatpush1.bf16.msra.mxu0 %v7077
    %7269 = vmatprep.subr.bf16.mxu0 0
    %7270 = vmatpush1.bf16.msra.mxu0 0
    %7271 = vmatprep.subr.bf16.mxu0 0
    %7272 = vmatpush1.bf16.msra.mxu0 0
    %7273 = vmatprep.subr.bf16.mxu0 0
    %7274 = vmatpush1.bf16.msra.mxu0 0
    %7275 = vmatprep.subr.bf16.mxu0 0
    %7276 = vmatpush1.bf16.msra.mxu0 0
    %7277 = vmatprep.subr.bf16.mxu0 0
    %7278 = vmatpush1.bf16.msra.mxu0 0
    %7279 = vmatprep.subr.bf16.mxu0 0
    %7280 = vmatpush1.bf16.msra.mxu0 0
    %7281 = vmatprep.subr.bf16.mxu0 0
    %7282 = vmatpush1.bf16.msra.mxu0 0
    %7283 = vmatprep.subr.bf16.mxu0 0
    %7284 = vmatpush1.bf16.msra.mxu0 0
    %7285 = vmatprep.subr.bf16.mxu0 0
    %7286 = vmatpush1.bf16.msra.mxu0 0
    %7287 = vmatprep.subr.bf16.mxu0 0
    %7288 = vmatpush1.bf16.msra.mxu0 0
    %7289 = vmatprep.subr.bf16.mxu0 0
    %7290 = vmatpush1.bf16.msra.mxu0 0
    %7291 = vmatprep.subr.bf16.mxu0 0
    %7292 = vmatpush1.bf16.msra.mxu0 0
    %7293 = vmatprep.mubr.bf16.mxu0 0
    %7294 = vmatmul.mubr.bf16.gmra.mrb[0].mxu0 %v7259
    %v7295 = vpop.f32.mrb[0].mxu0
    %v7296 = vadd.f32 0.0, %v7295
    %v7297 = vpop.f32.mrb[0].mxu0
    %v7298 = vadd.f32 0.0, %v7297
    %v7299 = vpop.f32.mrb[0].mxu0
    %v7300 = vpop.f32.mrb[0].mxu0
    %7301 = vdwg.mxu0
    %v7304 = vrot.slane %v7296, 6
    %v7305 = vrot.slane %v7298, 6
    %v7308 = vadd.f32 %v7250, %v7304
    %v7309 = vadd.f32 %v7251, %v7305
    %v7310 = vxor.u32 %v7308, 2147483648
    %v7311 = vxor.u32 %v7309, 2147483648
    %v7312 = vmul.f32 %v7310, 1.442695
    %v7313 = vpow.pop %v7312
    %v7314 = vmul.f32 %v7311, 1.442695
    %v7315 = vpow.pop %v7314
    %v7316 = vadd.f32 %v7313, 1.0
    %v7317 = vadd.f32 %v7315, 1.0
    %v7318 = vrcp.pop %v7316
    %v7319 = vmul.f32 1.0, %v7318
    %v7320 = vrcp.pop %v7317
    %v7321 = vmul.f32 1.0, %v7320
    %v7322 = vtanh.pop %v7309
    %v7324 = vrot.slane %v7243, 7
    %v7326 = vmul.f32 %v7319, %v7324
    %v7327 = vmul.f32 %v7319, %v7322
    %7329 = vrot.lane.b32.xlu0 %v7327, 64
    %v7330 = vpop.permute.xlu0 %7329
    %v7332 = vadd.f32 %v7326, %v7330
    %v7333 = vtanh.pop %v7332
    %v7334 = vmul.f32 %v7321, %v7333
    %v7335 = vrot.slane %v6956, 1
    %v7336 = vrot.slane %v6958, 1
    %v7339 = vsel %vm4941, %v6952, %v7335
    %v7340 = vsel %vm4942, %v6954, %v7336
    %v7341 = vpack.c.bf16 %v7334, %v7334
    %v7343 = vrot.slane %v7341, 1
    %7344 = vrot.lane.b32.xlu0 %v7343, 64
    %v7345 = vpop.permute.xlu0 %7344
    %v7347 = vsel %vm3156, %v7345, 0
    %7349 = vmatprep.subr.bf16.mxu0 %v7037
    %7350 = vmatpush1.bf16.msra.mxu0 %v7025
    %7351 = vmatprep.subr.bf16.mxu0 %v7053
    %7352 = vmatpush1.bf16.msra.mxu0 %v7045
    %7353 = vmatprep.subr.bf16.mxu0 %v7069
    %7354 = vmatpush1.bf16.msra.mxu0 %v7061
    %7355 = vmatprep.subr.bf16.mxu0 %v7085
    %7356 = vmatpush1.bf16.msra.mxu0 %v7077
    %7357 = vmatprep.subr.bf16.mxu0 0
    %7358 = vmatpush1.bf16.msra.mxu0 0
    %7359 = vmatprep.subr.bf16.mxu0 0
    %7360 = vmatpush1.bf16.msra.mxu0 0
    %7361 = vmatprep.subr.bf16.mxu0 0
    %7362 = vmatpush1.bf16.msra.mxu0 0
    %7363 = vmatprep.subr.bf16.mxu0 0
    %7364 = vmatpush1.bf16.msra.mxu0 0
    %7365 = vmatprep.subr.bf16.mxu0 0
    %7366 = vmatpush1.bf16.msra.mxu0 0
    %7367 = vmatprep.subr.bf16.mxu0 0
    %7368 = vmatpush1.bf16.msra.mxu0 0
    %7369 = vmatprep.subr.bf16.mxu0 0
    %7370 = vmatpush1.bf16.msra.mxu0 0
    %7371 = vmatprep.subr.bf16.mxu0 0
    %7372 = vmatpush1.bf16.msra.mxu0 0
    %7373 = vmatprep.subr.bf16.mxu0 0
    %7374 = vmatpush1.bf16.msra.mxu0 0
    %7375 = vmatprep.subr.bf16.mxu0 0
    %7376 = vmatpush1.bf16.msra.mxu0 0
    %7377 = vmatprep.subr.bf16.mxu0 0
    %7378 = vmatpush1.bf16.msra.mxu0 0
    %7379 = vmatprep.subr.bf16.mxu0 0
    %7380 = vmatpush1.bf16.msra.mxu0 0
    %7381 = vmatprep.mubr.bf16.mxu0 0
    %7382 = vmatmul.mubr.bf16.gmra.mrb[0].mxu0 %v7347
    %v7383 = vpop.f32.mrb[0].mxu0
    %v7384 = vadd.f32 0.0, %v7383
    %v7385 = vpop.f32.mrb[0].mxu0
    %v7386 = vadd.f32 0.0, %v7385
    %v7387 = vpop.f32.mrb[0].mxu0
    %v7388 = vpop.f32.mrb[0].mxu0
    %7389 = vdwg.mxu0
    %v7392 = vrot.slane %v7384, 5
    %v7393 = vrot.slane %v7386, 5
    %v7396 = vadd.f32 %v7339, %v7392
    %v7397 = vadd.f32 %v7340, %v7393
    %v7398 = vxor.u32 %v7396, 2147483648
    %v7399 = vxor.u32 %v7397, 2147483648
    %v7400 = vmul.f32 %v7398, 1.442695
    %v7401 = vpow.pop %v7400
    %v7402 = vmul.f32 %v7399, 1.442695
    %v7403 = vpow.pop %v7402
    %v7404 = vadd.f32 %v7401, 1.0
    %v7405 = vadd.f32 %v7403, 1.0
    %v7406 = vrcp.pop %v7404
    %v7407 = vmul.f32 1.0, %v7406
    %v7408 = vrcp.pop %v7405
    %v7409 = vmul.f32 1.0, %v7408
    %v7410 = vtanh.pop %v7397
    %v7412 = vrot.slane %v7332, 7
    %v7414 = vmul.f32 %v7407, %v7412
    %v7415 = vmul.f32 %v7407, %v7410
    %7417 = vrot.lane.b32.xlu0 %v7415, 64
    %v7418 = vpop.permute.xlu0 %7417
    %v7420 = vadd.f32 %v7414, %v7418
    %v7421 = vtanh.pop %v7420
    %v7422 = vmul.f32 %v7409, %v7421
    %v7423 = vpack.c.bf16 %v7422, %v7422
    %v7425 = vshrl.u32 %v7423, 16
    %v7427 = vrot.slane %v7425, 1
    %7428 = vrot.lane.b32.xlu0 %v7427, 64
    %v7429 = vpop.permute.xlu0 %7428
    %v7431 = vsel %vm3156, %v7429, 0
    %7433 = vmatprep.subr.bf16.mxu0 %v7037
    %7434 = vmatpush1.bf16.msra.mxu0 %v7025
    %7435 = vmatprep.subr.bf16.mxu0 %v7053
    %7436 = vmatpush1.bf16.msra.mxu0 %v7045
    %7437 = vmatprep.subr.bf16.mxu0 %v7069
    %7438 = vmatpush1.bf16.msra.mxu0 %v7061
    %7439 = vmatprep.subr.bf16.mxu0 %v7085
    %7440 = vmatpush1.bf16.msra.mxu0 %v7077
    %7441 = vmatprep.subr.bf16.mxu0 0
    %7442 = vmatpush1.bf16.msra.mxu0 0
    %7443 = vmatprep.subr.bf16.mxu0 0
    %7444 = vmatpush1.bf16.msra.mxu0 0
    %7445 = vmatprep.subr.bf16.mxu0 0
    %7446 = vmatpush1.bf16.msra.mxu0 0
    %7447 = vmatprep.subr.bf16.mxu0 0
    %7448 = vmatpush1.bf16.msra.mxu0 0
    %7449 = vmatprep.subr.bf16.mxu0 0
    %7450 = vmatpush1.bf16.msra.mxu0 0
    %7451 = vmatprep.subr.bf16.mxu0 0
    %7452 = vmatpush1.bf16.msra.mxu0 0
    %7453 = vmatprep.subr.bf16.mxu0 0
    %7454 = vmatpush1.bf16.msra.mxu0 0
    %7455 = vmatprep.subr.bf16.mxu0 0
    %7456 = vmatpush1.bf16.msra.mxu0 0
    %7457 = vmatprep.subr.bf16.mxu0 0
    %7458 = vmatpush1.bf16.msra.mxu0 0
    %7459 = vmatprep.subr.bf16.mxu0 0
    %7460 = vmatpush1.bf16.msra.mxu0 0
    %7461 = vmatprep.subr.bf16.mxu0 0
    %7462 = vmatpush1.bf16.msra.mxu0 0
    %7463 = vmatprep.subr.bf16.mxu0 0
    %7464 = vmatpush1.bf16.msra.mxu0 0
    %7465 = vmatprep.mubr.bf16.mxu0 0
    %7466 = vmatmul.mubr.bf16.gmra.mrb[0].mxu0 %v7431
    %v7467 = vpop.f32.mrb[0].mxu0
    %v7468 = vadd.f32 0.0, %v7467
    %v7469 = vpop.f32.mrb[0].mxu0
    %v7470 = vadd.f32 0.0, %v7469
    %v7471 = vpop.f32.mrb[0].mxu0
    %v7472 = vpop.f32.mrb[0].mxu0
    %7473 = vdwg.mxu0
    %v7476 = vrot.slane %v7468, 4
    %v7477 = vrot.slane %v7470, 4
    %v7480 = vadd.f32 %v6975, %v7476
    %v7481 = vadd.f32 %v6976, %v7477
    %v7482 = vxor.u32 %v7480, 2147483648
    %v7483 = vxor.u32 %v7481, 2147483648
    %v7484 = vmul.f32 %v7482, 1.442695
    %v7485 = vpow.pop %v7484
    %v7486 = vmul.f32 %v7483, 1.442695
    %v7487 = vpow.pop %v7486
    %v7488 = vadd.f32 %v7485, 1.0
    %v7489 = vadd.f32 %v7487, 1.0
    %v7490 = vrcp.pop %v7488
    %v7491 = vmul.f32 1.0, %v7490
    %v7492 = vrcp.pop %v7489
    %v7493 = vmul.f32 1.0, %v7492
    %v7494 = vtanh.pop %v7481
    %v7496 = vrot.slane %v7420, 7
    %v7498 = vmul.f32 %v7491, %v7496
    %v7499 = vmul.f32 %v7491, %v7494
    %7501 = vrot.lane.b32.xlu0 %v7499, 64
    %v7502 = vpop.permute.xlu0 %7501
    %v7504 = vadd.f32 %v7498, %v7502
    %v7505 = vtanh.pop %v7504
    %v7506 = vmul.f32 %v7493, %v7505
    %v7507 = vpack.c.bf16 %v7506, %v7506
    %v7509 = vrot.slane %v7507, 2
    %7510 = vrot.lane.b32.xlu0 %v7509, 64
    %v7511 = vpop.permute.xlu0 %7510
    %v7513 = vsel %vm3156, %v7511, 0
    %7515 = vmatprep.subr.bf16.mxu0 %v7037
    %7516 = vmatpush1.bf16.msra.mxu0 %v7025
    %7517 = vmatprep.subr.bf16.mxu0 %v7053
    %7518 = vmatpush1.bf16.msra.mxu0 %v7045
    %7519 = vmatprep.subr.bf16.mxu0 %v7069
    %7520 = vmatpush1.bf16.msra.mxu0 %v7061
    %7521 = vmatprep.subr.bf16.mxu0 %v7085
    %7522 = vmatpush1.bf16.msra.mxu0 %v7077
    %7523 = vmatprep.subr.bf16.mxu0 0
    %7524 = vmatpush1.bf16.msra.mxu0 0
    %7525 = vmatprep.subr.bf16.mxu0 0
    %7526 = vmatpush1.bf16.msra.mxu0 0
    %7527 = vmatprep.subr.bf16.mxu0 0
    %7528 = vmatpush1.bf16.msra.mxu0 0
    %7529 = vmatprep.subr.bf16.mxu0 0
    %7530 = vmatpush1.bf16.msra.mxu0 0
    %7531 = vmatprep.subr.bf16.mxu0 0
    %7532 = vmatpush1.bf16.msra.mxu0 0
    %7533 = vmatprep.subr.bf16.mxu0 0
    %7534 = vmatpush1.bf16.msra.mxu0 0
    %7535 = vmatprep.subr.bf16.mxu0 0
    %7536 = vmatpush1.bf16.msra.mxu0 0
    %7537 = vmatprep.subr.bf16.mxu0 0
    %7538 = vmatpush1.bf16.msra.mxu0 0
    %7539 = vmatprep.subr.bf16.mxu0 0
    %7540 = vmatpush1.bf16.msra.mxu0 0
    %7541 = vmatprep.subr.bf16.mxu0 0
    %7542 = vmatpush1.bf16.msra.mxu0 0
    %7543 = vmatprep.subr.bf16.mxu0 0
    %7544 = vmatpush1.bf16.msra.mxu0 0
    %7545 = vmatprep.subr.bf16.mxu0 0
    %7546 = vmatpush1.bf16.msra.mxu0 0
    %7547 = vmatprep.mubr.bf16.mxu0 0
    %7548 = vmatmul.mubr.bf16.gmra.mrb[0].mxu0 %v7513
    %v7549 = vpop.f32.mrb[0].mxu0
    %v7550 = vadd.f32 0.0, %v7549
    %v7551 = vpop.f32.mrb[0].mxu0
    %v7552 = vadd.f32 0.0, %v7551
    %v7553 = vpop.f32.mrb[0].mxu0
    %v7554 = vpop.f32.mrb[0].mxu0
    %7555 = vdwg.mxu0
    %v7558 = vrot.slane %v7550, 3
    %v7559 = vrot.slane %v7552, 3
    %v7562 = vadd.f32 %v7163, %v7558
    %v7563 = vadd.f32 %v7164, %v7559
    %v7564 = vxor.u32 %v7562, 2147483648
    %v7565 = vxor.u32 %v7563, 2147483648
    %v7566 = vmul.f32 %v7564, 1.442695
    %v7567 = vpow.pop %v7566
    %v7568 = vmul.f32 %v7565, 1.442695
    %v7569 = vpow.pop %v7568
    %v7570 = vadd.f32 %v7567, 1.0
    %v7571 = vadd.f32 %v7569, 1.0
    %v7572 = vrcp.pop %v7570
    %v7573 = vmul.f32 1.0, %v7572
    %v7574 = vrcp.pop %v7571
    %v7575 = vmul.f32 1.0, %v7574
    %v7576 = vtanh.pop %v7563
    %v7578 = vrot.slane %v7504, 7
    %v7580 = vmul.f32 %v7573, %v7578
    %v7581 = vmul.f32 %v7573, %v7576
    %7583 = vrot.lane.b32.xlu0 %v7581, 64
    %v7584 = vpop.permute.xlu0 %7583
    %v7586 = vadd.f32 %v7580, %v7584
    %v7587 = vtanh.pop %v7586
    %v7588 = vmul.f32 %v7575, %v7587
    %v7589 = vpack.c.bf16 %v7588, %v7588
    %v7591 = vshrl.u32 %v7589, 16
    %v7593 = vrot.slane %v7591, 2
    %7594 = vrot.lane.b32.xlu0 %v7593, 64
    %v7595 = vpop.permute.xlu0 %7594
    %v7597 = vsel %vm3156, %v7595, 0
    %7599 = vmatprep.subr.bf16.mxu0 %v7037
    %7600 = vmatpush1.bf16.msra.mxu0 %v7025
    %7601 = vmatprep.subr.bf16.mxu0 %v7053
    %7602 = vmatpush1.bf16.msra.mxu0 %v7045
    %7603 = vmatprep.subr.bf16.mxu0 %v7069
    %7604 = vmatpush1.bf16.msra.mxu0 %v7061
    %7605 = vmatprep.subr.bf16.mxu0 %v7085
    %7606 = vmatpush1.bf16.msra.mxu0 %v7077
    %7607 = vmatprep.subr.bf16.mxu0 0
    %7608 = vmatpush1.bf16.msra.mxu0 0
    %7609 = vmatprep.subr.bf16.mxu0 0
    %7610 = vmatpush1.bf16.msra.mxu0 0
    %7611 = vmatprep.subr.bf16.mxu0 0
    %7612 = vmatpush1.bf16.msra.mxu0 0
    %7613 = vmatprep.subr.bf16.mxu0 0
    %7614 = vmatpush1.bf16.msra.mxu0 0
    %7615 = vmatprep.subr.bf16.mxu0 0
    %7616 = vmatpush1.bf16.msra.mxu0 0
    %7617 = vmatprep.subr.bf16.mxu0 0
    %7618 = vmatpush1.bf16.msra.mxu0 0
    %7619 = vmatprep.subr.bf16.mxu0 0
    %7620 = vmatpush1.bf16.msra.mxu0 0
    %7621 = vmatprep.subr.bf16.mxu0 0
    %7622 = vmatpush1.bf16.msra.mxu0 0
    %7623 = vmatprep.subr.bf16.mxu0 0
    %7624 = vmatpush1.bf16.msra.mxu0 0
    %7625 = vmatprep.subr.bf16.mxu0 0
    %7626 = vmatpush1.bf16.msra.mxu0 0
    %7627 = vmatprep.subr.bf16.mxu0 0
    %7628 = vmatpush1.bf16.msra.mxu0 0
    %7629 = vmatprep.subr.bf16.mxu0 0
    %7630 = vmatpush1.bf16.msra.mxu0 0
    %7631 = vmatprep.mubr.bf16.mxu0 0
    %7632 = vmatmul.mubr.bf16.gmra.mrb[0].mxu0 %v7597
    %v7633 = vpop.f32.mrb[0].mxu0
    %v7634 = vadd.f32 0.0, %v7633
    %v7635 = vpop.f32.mrb[0].mxu0
    %v7636 = vadd.f32 0.0, %v7635
    %v7637 = vpop.f32.mrb[0].mxu0
    %v7638 = vpop.f32.mrb[0].mxu0
    %7639 = vdwg.mxu0
    %v7642 = vrot.slane %v7634, 2
    %v7643 = vrot.slane %v7636, 2
    %v7646 = vadd.f32 %v7250, %v7642
    %v7647 = vadd.f32 %v7251, %v7643
    %v7648 = vxor.u32 %v7646, 2147483648
    %v7649 = vxor.u32 %v7647, 2147483648
    %v7650 = vmul.f32 %v7648, 1.442695
    %v7651 = vpow.pop %v7650
    %v7652 = vmul.f32 %v7649, 1.442695
    %v7653 = vpow.pop %v7652
    %v7654 = vadd.f32 %v7651, 1.0
    %v7655 = vadd.f32 %v7653, 1.0
    %v7656 = vrcp.pop %v7654
    %v7657 = vmul.f32 1.0, %v7656
    %v7658 = vrcp.pop %v7655
    %v7659 = vmul.f32 1.0, %v7658
    %v7660 = vtanh.pop %v7647
    %v7662 = vrot.slane %v7586, 7
    %v7664 = vmul.f32 %v7657, %v7662
    %v7665 = vmul.f32 %v7657, %v7660
    %7667 = vrot.lane.b32.xlu0 %v7665, 64
    %v7668 = vpop.permute.xlu0 %7667
    %v7670 = vadd.f32 %v7664, %v7668
    %v7671 = vtanh.pop %v7670
    %v7672 = vmul.f32 %v7659, %v7671
    %v7673 = vpack.c.bf16 %v7672, %v7672
    %v7675 = vrot.slane %v7673, 3
    %7676 = vrot.lane.b32.xlu0 %v7675, 64
    %v7677 = vpop.permute.xlu0 %7676
    %v7679 = vsel %vm3156, %v7677, 0
    %7681 = vmatprep.subr.bf16.mxu0 %v7037
    %7682 = vmatpush1.bf16.msra.mxu0 %v7025
    %7683 = vmatprep.subr.bf16.mxu0 %v7053
    %7684 = vmatpush1.bf16.msra.mxu0 %v7045
    %7685 = vmatprep.subr.bf16.mxu0 %v7069
    %7686 = vmatpush1.bf16.msra.mxu0 %v7061
    %7687 = vmatprep.subr.bf16.mxu0 %v7085
    %7688 = vmatpush1.bf16.msra.mxu0 %v7077
    %7689 = vmatprep.subr.bf16.mxu0 0
    %7690 = vmatpush1.bf16.msra.mxu0 0
    %7691 = vmatprep.subr.bf16.mxu0 0
    %7692 = vmatpush1.bf16.msra.mxu0 0
    %7693 = vmatprep.subr.bf16.mxu0 0
    %7694 = vmatpush1.bf16.msra.mxu0 0
    %7695 = vmatprep.subr.bf16.mxu0 0
    %7696 = vmatpush1.bf16.msra.mxu0 0
    %7697 = vmatprep.subr.bf16.mxu0 0
    %7698 = vmatpush1.bf16.msra.mxu0 0
    %7699 = vmatprep.subr.bf16.mxu0 0
    %7700 = vmatpush1.bf16.msra.mxu0 0
    %7701 = vmatprep.subr.bf16.mxu0 0
    %7702 = vmatpush1.bf16.msra.mxu0 0
    %7703 = vmatprep.subr.bf16.mxu0 0
    %7704 = vmatpush1.bf16.msra.mxu0 0
    %7705 = vmatprep.subr.bf16.mxu0 0
    %7706 = vmatpush1.bf16.msra.mxu0 0
    %7707 = vmatprep.subr.bf16.mxu0 0
    %7708 = vmatpush1.bf16.msra.mxu0 0
    %7709 = vmatprep.subr.bf16.mxu0 0
    %7710 = vmatpush1.bf16.msra.mxu0 0
    %7711 = vmatprep.subr.bf16.mxu0 0
    %7712 = vmatpush1.bf16.msra.mxu0 0
    %7713 = vmatprep.mubr.bf16.mxu0 0
    %7714 = vmatmul.mubr.bf16.gmra.mrb[0].mxu0 %v7679
    %v7715 = vpop.f32.mrb[0].mxu0
    %v7716 = vadd.f32 0.0, %v7715
    %v7717 = vpop.f32.mrb[0].mxu0
    %v7718 = vadd.f32 0.0, %v7717
    %v7719 = vpop.f32.mrb[0].mxu0
    %v7720 = vpop.f32.mrb[0].mxu0
    %7721 = vdwg.mxu0
    %v7724 = vrot.slane %v7716, 1
    %v7725 = vrot.slane %v7718, 1
    %v7728 = vadd.f32 %v7339, %v7724
    %v7729 = vadd.f32 %v7340, %v7725
    %v7730 = vxor.u32 %v7728, 2147483648
    %v7731 = vxor.u32 %v7729, 2147483648
    %v7732 = vmul.f32 %v7730, 1.442695
    %v7733 = vpow.pop %v7732
    %v7734 = vmul.f32 %v7731, 1.442695
    %v7735 = vpow.pop %v7734
    %v7736 = vadd.f32 %v7733, 1.0
    %v7737 = vadd.f32 %v7735, 1.0
    %v7738 = vrcp.pop %v7736
    %v7739 = vmul.f32 1.0, %v7738
    %v7740 = vrcp.pop %v7737
    %v7741 = vmul.f32 1.0, %v7740
    %v7742 = vtanh.pop %v7729
    %v7744 = vrot.slane %v7670, 7
    %v7746 = vmul.f32 %v7739, %v7744
    %v7747 = vmul.f32 %v7739, %v7742
    %7749 = vrot.lane.b32.xlu0 %v7747, 64
    %v7750 = vpop.permute.xlu0 %7749
    %v7752 = vadd.f32 %v7746, %v7750
    %v7753 = vtanh.pop %v7752
    %v7754 = vmul.f32 %v7741, %v7753
    %v7757 = vrot.slane %v6952, 7
    %v7758 = vrot.slane %v6954, 7
    %v7761 = vsel %vm4941, %v6956, %v7757
    %v7762 = vsel %vm4942, %v6958, %v7758
    %v7763 = vpack.c.bf16 %v7754, %v7754
    %v7765 = vshrl.u32 %v7763, 16
    %v7767 = vrot.slane %v7765, 3
    %7768 = vrot.lane.b32.xlu0 %v7767, 64
    %v7769 = vpop.permute.xlu0 %7768
    %v7771 = vsel %vm3156, %v7769, 0
    %7773 = vmatprep.subr.bf16.mxu0 %v7037
    %7774 = vmatpush1.bf16.msra.mxu0 %v7025
    %7775 = vmatprep.subr.bf16.mxu0 %v7053
    %7776 = vmatpush1.bf16.msra.mxu0 %v7045
    %7777 = vmatprep.subr.bf16.mxu0 %v7069
    %7778 = vmatpush1.bf16.msra.mxu0 %v7061
    %7779 = vmatprep.subr.bf16.mxu0 %v7085
    %7780 = vmatpush1.bf16.msra.mxu0 %v7077
    %7781 = vmatprep.subr.bf16.mxu0 0
    %7782 = vmatpush1.bf16.msra.mxu0 0
    %7783 = vmatprep.subr.bf16.mxu0 0
    %7784 = vmatpush1.bf16.msra.mxu0 0
    %7785 = vmatprep.subr.bf16.mxu0 0
    %7786 = vmatpush1.bf16.msra.mxu0 0
    %7787 = vmatprep.subr.bf16.mxu0 0
    %7788 = vmatpush1.bf16.msra.mxu0 0
    %7789 = vmatprep.subr.bf16.mxu0 0
    %7790 = vmatpush1.bf16.msra.mxu0 0
    %7791 = vmatprep.subr.bf16.mxu0 0
    %7792 = vmatpush1.bf16.msra.mxu0 0
    %7793 = vmatprep.subr.bf16.mxu0 0
    %7794 = vmatpush1.bf16.msra.mxu0 0
    %7795 = vmatprep.subr.bf16.mxu0 0
    %7796 = vmatpush1.bf16.msra.mxu0 0
    %7797 = vmatprep.subr.bf16.mxu0 0
    %7798 = vmatpush1.bf16.msra.mxu0 0
    %7799 = vmatprep.subr.bf16.mxu0 0
    %7800 = vmatpush1.bf16.msra.mxu0 0
    %7801 = vmatprep.subr.bf16.mxu0 0
    %7802 = vmatpush1.bf16.msra.mxu0 0
    %7803 = vmatprep.subr.bf16.mxu0 0
    %7804 = vmatpush1.bf16.msra.mxu0 0
    %7805 = vmatprep.mubr.bf16.mxu0 0
    %7806 = vmatmul.mubr.bf16.gmra.mrb[0].mxu0 %v7771
    %v7807 = vpop.f32.mrb[0].mxu0
    %v7808 = vadd.f32 0.0, %v7807
    %v7809 = vpop.f32.mrb[0].mxu0
    %v7810 = vadd.f32 0.0, %v7809
    %v7811 = vpop.f32.mrb[0].mxu0
    %v7812 = vpop.f32.mrb[0].mxu0
    %7813 = vdwg.mxu0
    %v7814 = vadd.f32 %v7761, %v7808
    %v7815 = vadd.f32 %v7762, %v7810
    %v7816 = vxor.u32 %v7814, 2147483648
    %v7817 = vxor.u32 %v7815, 2147483648
    %v7818 = vmul.f32 %v7816, 1.442695
    %v7819 = vpow.pop %v7818
    %v7820 = vmul.f32 %v7817, 1.442695
    %v7821 = vpow.pop %v7820
    %v7822 = vadd.f32 %v7819, 1.0
    %v7823 = vadd.f32 %v7821, 1.0
    %v7824 = vrcp.pop %v7822
    %v7825 = vmul.f32 1.0, %v7824
    %v7826 = vrcp.pop %v7823
    %v7827 = vmul.f32 1.0, %v7826
    %v7828 = vtanh.pop %v7815
    %v7830 = vrot.slane %v7752, 7
    %v7832 = vmul.f32 %v7825, %v7830
    %v7833 = vmul.f32 %v7825, %v7828
    %7835 = vrot.lane.b32.xlu0 %v7833, 64
    %v7836 = vpop.permute.xlu0 %7835
    %v7838 = vadd.f32 %v7832, %v7836
    %v7839 = vtanh.pop %v7838
    %v7840 = vmul.f32 %v7827, %v7839
    %v7841 = vrot.slane %v6952, 5
    %v7842 = vrot.slane %v6954, 5
    %v7845 = vsel %vm4941, %v6956, %v7841
    %v7846 = vsel %vm4942, %v6958, %v7842
    %v7847 = vpack.c.bf16 %v7840, %v7840
    %7849 = vrot.lane.b32.xlu0 %v7847, 64
    %v7850 = vpop.permute.xlu0 %7849
    %v7852 = vsel %vm3156, %v7850, 0
    %7854 = vmatprep.subr.bf16.mxu0 %v7037
    %7855 = vmatpush1.bf16.msra.mxu0 %v7025
    %7856 = vmatprep.subr.bf16.mxu0 %v7053
    %7857 = vmatpush1.bf16.msra.mxu0 %v7045
    %7858 = vmatprep.subr.bf16.mxu0 %v7069
    %7859 = vmatpush1.bf16.msra.mxu0 %v7061
    %7860 = vmatprep.subr.bf16.mxu0 %v7085
    %7861 = vmatpush1.bf16.msra.mxu0 %v7077
    %7862 = vmatprep.subr.bf16.mxu0 0
    %7863 = vmatpush1.bf16.msra.mxu0 0
    %7864 = vmatprep.subr.bf16.mxu0 0
    %7865 = vmatpush1.bf16.msra.mxu0 0
    %7866 = vmatprep.subr.bf16.mxu0 0
    %7867 = vmatpush1.bf16.msra.mxu0 0
    %7868 = vmatprep.subr.bf16.mxu0 0
    %7869 = vmatpush1.bf16.msra.mxu0 0
    %7870 = vmatprep.subr.bf16.mxu0 0
    %7871 = vmatpush1.bf16.msra.mxu0 0
    %7872 = vmatprep.subr.bf16.mxu0 0
    %7873 = vmatpush1.bf16.msra.mxu0 0
    %7874 = vmatprep.subr.bf16.mxu0 0
    %7875 = vmatpush1.bf16.msra.mxu0 0
    %7876 = vmatprep.subr.bf16.mxu0 0
    %7877 = vmatpush1.bf16.msra.mxu0 0
    %7878 = vmatprep.subr.bf16.mxu0 0
    %7879 = vmatpush1.bf16.msra.mxu0 0
    %7880 = vmatprep.subr.bf16.mxu0 0
    %7881 = vmatpush1.bf16.msra.mxu0 0
    %7882 = vmatprep.subr.bf16.mxu0 0
    %7883 = vmatpush1.bf16.msra.mxu0 0
    %7884 = vmatprep.subr.bf16.mxu0 0
    %7885 = vmatpush1.bf16.msra.mxu0 0
    %7886 = vmatprep.mubr.bf16.mxu0 0
    %7887 = vmatmul.mubr.bf16.gmra.mrb[0].mxu0 %v7852
    %v7888 = vpop.f32.mrb[0].mxu0
    %v7889 = vadd.f32 0.0, %v7888
    %v7890 = vpop.f32.mrb[0].mxu0
    %v7891 = vadd.f32 0.0, %v7890
    %v7892 = vpop.f32.mrb[0].mxu0
    %v7893 = vpop.f32.mrb[0].mxu0
    %7894 = vdwg.mxu0
    %v7897 = vrot.slane %v7889, 7
    %v7898 = vrot.slane %v7891, 7
    %v7901 = vadd.f32 %v7845, %v7897
    %v7902 = vadd.f32 %v7846, %v7898
    %v7903 = vxor.u32 %v7901, 2147483648
    %v7904 = vxor.u32 %v7902, 2147483648
    %v7905 = vmul.f32 %v7903, 1.442695
    %v7906 = vpow.pop %v7905
    %v7907 = vmul.f32 %v7904, 1.442695
    %v7908 = vpow.pop %v7907
    %v7909 = vadd.f32 %v7906, 1.0
    %v7910 = vadd.f32 %v7908, 1.0
    %v7911 = vrcp.pop %v7909
    %v7912 = vmul.f32 1.0, %v7911
    %v7913 = vrcp.pop %v7910
    %v7914 = vmul.f32 1.0, %v7913
    %v7915 = vtanh.pop %v7902
    %v7917 = vrot.slane %v7838, 7
    %v7919 = vmul.f32 %v7912, %v7917
    %v7920 = vmul.f32 %v7912, %v7915
    %7922 = vrot.lane.b32.xlu0 %v7920, 64
    %v7923 = vpop.permute.xlu0 %7922
    %v7925 = vadd.f32 %v7919, %v7923
    %v7926 = vtanh.pop %v7925
    %v7927 = vmul.f32 %v7914, %v7926
    %v7928 = vrot.slane %v6952, 3
    %v7929 = vrot.slane %v6954, 3
    %v7932 = vsel %vm4941, %v6956, %v7928
    %v7933 = vsel %vm4942, %v6958, %v7929
    %v7934 = vpack.c.bf16 %v7927, %v7927
    %v7936 = vshrl.u32 %v7934, 16
    %7938 = vrot.lane.b32.xlu0 %v7936, 64
    %v7939 = vpop.permute.xlu0 %7938
    %v7941 = vsel %vm3156, %v7939, 0
    %7943 = vmatprep.subr.bf16.mxu0 %v7037
    %7944 = vmatpush1.bf16.msra.mxu0 %v7025
    %7945 = vmatprep.subr.bf16.mxu0 %v7053
    %7946 = vmatpush1.bf16.msra.mxu0 %v7045
    %7947 = vmatprep.subr.bf16.mxu0 %v7069
    %7948 = vmatpush1.bf16.msra.mxu0 %v7061
    %7949 = vmatprep.subr.bf16.mxu0 %v7085
    %7950 = vmatpush1.bf16.msra.mxu0 %v7077
    %7951 = vmatprep.subr.bf16.mxu0 0
    %7952 = vmatpush1.bf16.msra.mxu0 0
    %7953 = vmatprep.subr.bf16.mxu0 0
    %7954 = vmatpush1.bf16.msra.mxu0 0
    %7955 = vmatprep.subr.bf16.mxu0 0
    %7956 = vmatpush1.bf16.msra.mxu0 0
    %7957 = vmatprep.subr.bf16.mxu0 0
    %7958 = vmatpush1.bf16.msra.mxu0 0
    %7959 = vmatprep.subr.bf16.mxu0 0
    %7960 = vmatpush1.bf16.msra.mxu0 0
    %7961 = vmatprep.subr.bf16.mxu0 0
    %7962 = vmatpush1.bf16.msra.mxu0 0
    %7963 = vmatprep.subr.bf16.mxu0 0
    %7964 = vmatpush1.bf16.msra.mxu0 0
    %7965 = vmatprep.subr.bf16.mxu0 0
    %7966 = vmatpush1.bf16.msra.mxu0 0
    %7967 = vmatprep.subr.bf16.mxu0 0
    %7968 = vmatpush1.bf16.msra.mxu0 0
    %7969 = vmatprep.subr.bf16.mxu0 0
    %7970 = vmatpush1.bf16.msra.mxu0 0
    %7971 = vmatprep.subr.bf16.mxu0 0
    %7972 = vmatpush1.bf16.msra.mxu0 0
    %7973 = vmatprep.subr.bf16.mxu0 0
    %7974 = vmatpush1.bf16.msra.mxu0 0
    %7975 = vmatprep.mubr.bf16.mxu0 0
    %7976 = vmatmul.mubr.bf16.gmra.mrb[0].mxu0 %v7941
    %v7977 = vpop.f32.mrb[0].mxu0
    %v7978 = vadd.f32 0.0, %v7977
    %v7979 = vpop.f32.mrb[0].mxu0
    %v7980 = vadd.f32 0.0, %v7979
    %v7981 = vpop.f32.mrb[0].mxu0
    %v7982 = vpop.f32.mrb[0].mxu0
    %7983 = vdwg.mxu0
    %v7986 = vrot.slane %v7978, 6
    %v7987 = vrot.slane %v7980, 6
    %v7990 = vadd.f32 %v7932, %v7986
    %v7991 = vadd.f32 %v7933, %v7987
    %v7992 = vxor.u32 %v7990, 2147483648
    %v7993 = vxor.u32 %v7991, 2147483648
    %v7994 = vmul.f32 %v7992, 1.442695
    %v7995 = vpow.pop %v7994
    %v7996 = vmul.f32 %v7993, 1.442695
    %v7997 = vpow.pop %v7996
    %v7998 = vadd.f32 %v7995, 1.0
    %v7999 = vadd.f32 %v7997, 1.0
    %v8000 = vrcp.pop %v7998
    %v8001 = vmul.f32 1.0, %v8000
    %v8002 = vrcp.pop %v7999
    %v8003 = vmul.f32 1.0, %v8002
    %v8004 = vtanh.pop %v7991
    %v8006 = vrot.slane %v7925, 7
    %v8008 = vmul.f32 %v8001, %v8006
    %v8009 = vmul.f32 %v8001, %v8004
    %8011 = vrot.lane.b32.xlu0 %v8009, 64
    %v8012 = vpop.permute.xlu0 %8011
    %v8014 = vadd.f32 %v8008, %v8012
    %v8015 = vtanh.pop %v8014
    %v8016 = vmul.f32 %v8003, %v8015
    %v8017 = vrot.slane %v6952, 1
    %v8018 = vrot.slane %v6954, 1
    %v8021 = vsel %vm4941, %v6956, %v8017
    %v8022 = vsel %vm4942, %v6958, %v8018
    %v8023 = vpack.c.bf16 %v8016, %v8016
    %v8025 = vrot.slane %v8023, 1
    %8026 = vrot.lane.b32.xlu0 %v8025, 64
    %v8027 = vpop.permute.xlu0 %8026
    %v8029 = vsel %vm3156, %v8027, 0
    %8031 = vmatprep.subr.bf16.mxu0 %v7037
    %8032 = vmatpush1.bf16.msra.mxu0 %v7025
    %8033 = vmatprep.subr.bf16.mxu0 %v7053
    %8034 = vmatpush1.bf16.msra.mxu0 %v7045
    %8035 = vmatprep.subr.bf16.mxu0 %v7069
    %8036 = vmatpush1.bf16.msra.mxu0 %v7061
    %8037 = vmatprep.subr.bf16.mxu0 %v7085
    %8038 = vmatpush1.bf16.msra.mxu0 %v7077
    %8039 = vmatprep.subr.bf16.mxu0 0
    %8040 = vmatpush1.bf16.msra.mxu0 0
    %8041 = vmatprep.subr.bf16.mxu0 0
    %8042 = vmatpush1.bf16.msra.mxu0 0
    %8043 = vmatprep.subr.bf16.mxu0 0
    %8044 = vmatpush1.bf16.msra.mxu0 0
    %8045 = vmatprep.subr.bf16.mxu0 0
    %8046 = vmatpush1.bf16.msra.mxu0 0
    %8047 = vmatprep.subr.bf16.mxu0 0
    %8048 = vmatpush1.bf16.msra.mxu0 0
    %8049 = vmatprep.subr.bf16.mxu0 0
    %8050 = vmatpush1.bf16.msra.mxu0 0
    %8051 = vmatprep.subr.bf16.mxu0 0
    %8052 = vmatpush1.bf16.msra.mxu0 0
    %8053 = vmatprep.subr.bf16.mxu0 0
    %8054 = vmatpush1.bf16.msra.mxu0 0
    %8055 = vmatprep.subr.bf16.mxu0 0
    %8056 = vmatpush1.bf16.msra.mxu0 0
    %8057 = vmatprep.subr.bf16.mxu0 0
    %8058 = vmatpush1.bf16.msra.mxu0 0
    %8059 = vmatprep.subr.bf16.mxu0 0
    %8060 = vmatpush1.bf16.msra.mxu0 0
    %8061 = vmatprep.subr.bf16.mxu0 0
    %8062 = vmatpush1.bf16.msra.mxu0 0
    %8063 = vmatprep.mubr.bf16.mxu0 0
    %8064 = vmatmul.mubr.bf16.gmra.mrb[0].mxu0 %v8029
    %v8065 = vpop.f32.mrb[0].mxu0
    %v8066 = vadd.f32 0.0, %v8065
    %v8067 = vpop.f32.mrb[0].mxu0
    %v8068 = vadd.f32 0.0, %v8067
    %v8069 = vpop.f32.mrb[0].mxu0
    %v8070 = vpop.f32.mrb[0].mxu0
    %8071 = vdwg.mxu0
    %v8074 = vrot.slane %v8066, 5
    %v8075 = vrot.slane %v8068, 5
    %v8078 = vadd.f32 %v8021, %v8074
    %v8079 = vadd.f32 %v8022, %v8075
    %v8080 = vxor.u32 %v8078, 2147483648
    %v8081 = vxor.u32 %v8079, 2147483648
    %v8082 = vmul.f32 %v8080, 1.442695
    %v8083 = vpow.pop %v8082
    %v8084 = vmul.f32 %v8081, 1.442695
    %v8085 = vpow.pop %v8084
    %v8086 = vadd.f32 %v8083, 1.0
    %v8087 = vadd.f32 %v8085, 1.0
    %v8088 = vrcp.pop %v8086
    %v8089 = vmul.f32 1.0, %v8088
    %v8090 = vrcp.pop %v8087
    %v8091 = vmul.f32 1.0, %v8090
    %v8092 = vtanh.pop %v8079
    %v8094 = vrot.slane %v8014, 7
    %v8096 = vmul.f32 %v8089, %v8094
    %v8097 = vmul.f32 %v8089, %v8092
    %8099 = vrot.lane.b32.xlu0 %v8097, 64
    %v8100 = vpop.permute.xlu0 %8099
    %v8102 = vadd.f32 %v8096, %v8100
    %v8103 = vtanh.pop %v8102
    %v8104 = vmul.f32 %v8091, %v8103
    %v8105 = vpack.c.bf16 %v8104, %v8104
    %v8107 = vshrl.u32 %v8105, 16
    %v8109 = vrot.slane %v8107, 1
    %8110 = vrot.lane.b32.xlu0 %v8109, 64
    %v8111 = vpop.permute.xlu0 %8110
    %v8113 = vsel %vm3156, %v8111, 0
    %8115 = vmatprep.subr.bf16.mxu0 %v7037
    %8116 = vmatpush1.bf16.msra.mxu0 %v7025
    %8117 = vmatprep.subr.bf16.mxu0 %v7053
    %8118 = vmatpush1.bf16.msra.mxu0 %v7045
    %8119 = vmatprep.subr.bf16.mxu0 %v7069
    %8120 = vmatpush1.bf16.msra.mxu0 %v7061
    %8121 = vmatprep.subr.bf16.mxu0 %v7085
    %8122 = vmatpush1.bf16.msra.mxu0 %v7077
    %8123 = vmatprep.subr.bf16.mxu0 0
    %8124 = vmatpush1.bf16.msra.mxu0 0
    %8125 = vmatprep.subr.bf16.mxu0 0
    %8126 = vmatpush1.bf16.msra.mxu0 0
    %8127 = vmatprep.subr.bf16.mxu0 0
    %8128 = vmatpush1.bf16.msra.mxu0 0
    %8129 = vmatprep.subr.bf16.mxu0 0
    %8130 = vmatpush1.bf16.msra.mxu0 0
    %8131 = vmatprep.subr.bf16.mxu0 0
    %8132 = vmatpush1.bf16.msra.mxu0 0
    %8133 = vmatprep.subr.bf16.mxu0 0
    %8134 = vmatpush1.bf16.msra.mxu0 0
    %8135 = vmatprep.subr.bf16.mxu0 0
    %8136 = vmatpush1.bf16.msra.mxu0 0
    %8137 = vmatprep.subr.bf16.mxu0 0
    %8138 = vmatpush1.bf16.msra.mxu0 0
    %8139 = vmatprep.subr.bf16.mxu0 0
    %8140 = vmatpush1.bf16.msra.mxu0 0
    %8141 = vmatprep.subr.bf16.mxu0 0
    %8142 = vmatpush1.bf16.msra.mxu0 0
    %8143 = vmatprep.subr.bf16.mxu0 0
    %8144 = vmatpush1.bf16.msra.mxu0 0
    %8145 = vmatprep.subr.bf16.mxu0 0
    %8146 = vmatpush1.bf16.msra.mxu0 0
    %8147 = vmatprep.mubr.bf16.mxu0 0
    %8148 = vmatmul.mubr.bf16.gmra.mrb[0].mxu0 %v8113
    %v8149 = vpop.f32.mrb[0].mxu0
    %v8150 = vadd.f32 0.0, %v8149
    %v8151 = vpop.f32.mrb[0].mxu0
    %v8152 = vadd.f32 0.0, %v8151
    %v8153 = vpop.f32.mrb[0].mxu0
    %v8154 = vpop.f32.mrb[0].mxu0
    %8155 = vdwg.mxu0
    %v8158 = vrot.slane %v8150, 4
    %v8159 = vrot.slane %v8152, 4
    %v8162 = vadd.f32 %v7761, %v8158
    %v8163 = vadd.f32 %v7762, %v8159
    %v8164 = vxor.u32 %v8162, 2147483648
    %v8165 = vxor.u32 %v8163, 2147483648
    %v8166 = vmul.f32 %v8164, 1.442695
    %v8167 = vpow.pop %v8166
    %v8168 = vmul.f32 %v8165, 1.442695
    %v8169 = vpow.pop %v8168
    %v8170 = vadd.f32 %v8167, 1.0
    %v8171 = vadd.f32 %v8169, 1.0
    %v8172 = vrcp.pop %v8170
    %v8173 = vmul.f32 1.0, %v8172
    %v8174 = vrcp.pop %v8171
    %v8175 = vmul.f32 1.0, %v8174
    %v8176 = vtanh.pop %v8163
    %v8178 = vrot.slane %v8102, 7
    %v8180 = vmul.f32 %v8173, %v8178
    %v8181 = vmul.f32 %v8173, %v8176
    %8183 = vrot.lane.b32.xlu0 %v8181, 64
    %v8184 = vpop.permute.xlu0 %8183
    %v8186 = vadd.f32 %v8180, %v8184
    %v8187 = vtanh.pop %v8186
    %v8188 = vmul.f32 %v8175, %v8187
    %v8189 = vpack.c.bf16 %v8188, %v8188
    %v8191 = vrot.slane %v8189, 2
    %8192 = vrot.lane.b32.xlu0 %v8191, 64
    %v8193 = vpop.permute.xlu0 %8192
    %v8195 = vsel %vm3156, %v8193, 0
    %8197 = vmatprep.subr.bf16.mxu0 %v7037
    %8198 = vmatpush1.bf16.msra.mxu0 %v7025
    %8199 = vmatprep.subr.bf16.mxu0 %v7053
    %8200 = vmatpush1.bf16.msra.mxu0 %v7045
    %8201 = vmatprep.subr.bf16.mxu0 %v7069
    %8202 = vmatpush1.bf16.msra.mxu0 %v7061
    %8203 = vmatprep.subr.bf16.mxu0 %v7085
    %8204 = vmatpush1.bf16.msra.mxu0 %v7077
    %8205 = vmatprep.subr.bf16.mxu0 0
    %8206 = vmatpush1.bf16.msra.mxu0 0
    %8207 = vmatprep.subr.bf16.mxu0 0
    %8208 = vmatpush1.bf16.msra.mxu0 0
    %8209 = vmatprep.subr.bf16.mxu0 0
    %8210 = vmatpush1.bf16.msra.mxu0 0
    %8211 = vmatprep.subr.bf16.mxu0 0
    %8212 = vmatpush1.bf16.msra.mxu0 0
    %8213 = vmatprep.subr.bf16.mxu0 0
    %8214 = vmatpush1.bf16.msra.mxu0 0
    %8215 = vmatprep.subr.bf16.mxu0 0
    %8216 = vmatpush1.bf16.msra.mxu0 0
    %8217 = vmatprep.subr.bf16.mxu0 0
    %8218 = vmatpush1.bf16.msra.mxu0 0
    %8219 = vmatprep.subr.bf16.mxu0 0
    %8220 = vmatpush1.bf16.msra.mxu0 0
    %8221 = vmatprep.subr.bf16.mxu0 0
    %8222 = vmatpush1.bf16.msra.mxu0 0
    %8223 = vmatprep.subr.bf16.mxu0 0
    %8224 = vmatpush1.bf16.msra.mxu0 0
    %8225 = vmatprep.subr.bf16.mxu0 0
    %8226 = vmatpush1.bf16.msra.mxu0 0
    %8227 = vmatprep.subr.bf16.mxu0 0
    %8228 = vmatpush1.bf16.msra.mxu0 0
    %8229 = vmatprep.mubr.bf16.mxu0 0
    %8230 = vmatmul.mubr.bf16.gmra.mrb[0].mxu0 %v8195
    %v8231 = vpop.f32.mrb[0].mxu0
    %v8232 = vadd.f32 0.0, %v8231
    %v8233 = vpop.f32.mrb[0].mxu0
    %v8234 = vadd.f32 0.0, %v8233
    %v8235 = vpop.f32.mrb[0].mxu0
    %v8236 = vpop.f32.mrb[0].mxu0
    %8237 = vdwg.mxu0
    %v8240 = vrot.slane %v8232, 3
    %v8241 = vrot.slane %v8234, 3
    %v8244 = vadd.f32 %v7845, %v8240
    %v8245 = vadd.f32 %v7846, %v8241
    %v8246 = vxor.u32 %v8244, 2147483648
    %v8247 = vxor.u32 %v8245, 2147483648
    %v8248 = vmul.f32 %v8246, 1.442695
    %v8249 = vpow.pop %v8248
    %v8250 = vmul.f32 %v8247, 1.442695
    %v8251 = vpow.pop %v8250
    %v8252 = vadd.f32 %v8249, 1.0
    %v8253 = vadd.f32 %v8251, 1.0
    %v8254 = vrcp.pop %v8252
    %v8255 = vmul.f32 1.0, %v8254
    %v8256 = vrcp.pop %v8253
    %v8257 = vmul.f32 1.0, %v8256
    %v8258 = vtanh.pop %v8245
    %v8260 = vrot.slane %v8186, 7
    %v8262 = vmul.f32 %v8255, %v8260
    %v8263 = vmul.f32 %v8255, %v8258
    %8265 = vrot.lane.b32.xlu0 %v8263, 64
    %v8266 = vpop.permute.xlu0 %8265
    %v8268 = vadd.f32 %v8262, %v8266
    %v8269 = vtanh.pop %v8268
    %v8270 = vmul.f32 %v8257, %v8269
    %v8271 = vpack.c.bf16 %v8270, %v8270
    %v8273 = vshrl.u32 %v8271, 16
    %v8275 = vrot.slane %v8273, 2
    %8276 = vrot.lane.b32.xlu0 %v8275, 64
    %v8277 = vpop.permute.xlu0 %8276
    %v8279 = vsel %vm3156, %v8277, 0
    %8281 = vmatprep.subr.bf16.mxu0 %v7037
    %8282 = vmatpush1.bf16.msra.mxu0 %v7025
    %8283 = vmatprep.subr.bf16.mxu0 %v7053
    %8284 = vmatpush1.bf16.msra.mxu0 %v7045
    %8285 = vmatprep.subr.bf16.mxu0 %v7069
    %8286 = vmatpush1.bf16.msra.mxu0 %v7061
    %8287 = vmatprep.subr.bf16.mxu0 %v7085
    %8288 = vmatpush1.bf16.msra.mxu0 %v7077
    %8289 = vmatprep.subr.bf16.mxu0 0
    %8290 = vmatpush1.bf16.msra.mxu0 0
    %8291 = vmatprep.subr.bf16.mxu0 0
    %8292 = vmatpush1.bf16.msra.mxu0 0
    %8293 = vmatprep.subr.bf16.mxu0 0
    %8294 = vmatpush1.bf16.msra.mxu0 0
    %8295 = vmatprep.subr.bf16.mxu0 0
    %8296 = vmatpush1.bf16.msra.mxu0 0
    %8297 = vmatprep.subr.bf16.mxu0 0
    %8298 = vmatpush1.bf16.msra.mxu0 0
    %8299 = vmatprep.subr.bf16.mxu0 0
    %8300 = vmatpush1.bf16.msra.mxu0 0
    %8301 = vmatprep.subr.bf16.mxu0 0
    %8302 = vmatpush1.bf16.msra.mxu0 0
    %8303 = vmatprep.subr.bf16.mxu0 0
    %8304 = vmatpush1.bf16.msra.mxu0 0
    %8305 = vmatprep.subr.bf16.mxu0 0
    %8306 = vmatpush1.bf16.msra.mxu0 0
    %8307 = vmatprep.subr.bf16.mxu0 0
    %8308 = vmatpush1.bf16.msra.mxu0 0
    %8309 = vmatprep.subr.bf16.mxu0 0
    %8310 = vmatpush1.bf16.msra.mxu0 0
    %8311 = vmatprep.subr.bf16.mxu0 0
    %8312 = vmatpush1.bf16.msra.mxu0 0
    %8313 = vmatprep.mubr.bf16.mxu0 0
    %8314 = vmatmul.mubr.bf16.gmra.mrb[0].mxu0 %v8279
    %v8315 = vpop.f32.mrb[0].mxu0
    %v8316 = vadd.f32 0.0, %v8315
    %v8317 = vpop.f32.mrb[0].mxu0
    %v8318 = vadd.f32 0.0, %v8317
    %v8319 = vpop.f32.mrb[0].mxu0
    %v8320 = vpop.f32.mrb[0].mxu0
    %8321 = vdwg.mxu0
    %v8324 = vrot.slane %v8316, 2
    %v8325 = vrot.slane %v8318, 2
    %v8328 = vadd.f32 %v7932, %v8324
    %v8329 = vadd.f32 %v7933, %v8325
    %v8330 = vxor.u32 %v8328, 2147483648
    %v8331 = vxor.u32 %v8329, 2147483648
    %v8332 = vmul.f32 %v8330, 1.442695
    %v8333 = vpow.pop %v8332
    %v8334 = vmul.f32 %v8331, 1.442695
    %v8335 = vpow.pop %v8334
    %v8336 = vadd.f32 %v8333, 1.0
    %v8337 = vadd.f32 %v8335, 1.0
    %v8338 = vrcp.pop %v8336
    %v8339 = vmul.f32 1.0, %v8338
    %v8340 = vrcp.pop %v8337
    %v8341 = vmul.f32 1.0, %v8340
    %v8342 = vtanh.pop %v8329
    %v8344 = vrot.slane %v8268, 7
    %v8346 = vmul.f32 %v8339, %v8344
    %v8347 = vmul.f32 %v8339, %v8342
    %8349 = vrot.lane.b32.xlu0 %v8347, 64
    %v8350 = vpop.permute.xlu0 %8349
    %v8352 = vadd.f32 %v8346, %v8350
    %v8353 = vtanh.pop %v8352
    %v8354 = vmul.f32 %v8341, %v8353
    %v8355 = vpack.c.bf16 %v8354, %v8354
    %v8357 = vrot.slane %v8355, 3
    %8358 = vrot.lane.b32.xlu0 %v8357, 64
    %v8359 = vpop.permute.xlu0 %8358
    %v8361 = vsel %vm3156, %v8359, 0
    %8363 = vmatprep.subr.bf16.mxu0 %v7037
    %8364 = vmatpush1.bf16.msra.mxu0 %v7025
    %8365 = vmatprep.subr.bf16.mxu0 %v7053
    %8366 = vmatpush1.bf16.msra.mxu0 %v7045
    %8367 = vmatprep.subr.bf16.mxu0 %v7069
    %8368 = vmatpush1.bf16.msra.mxu0 %v7061
    %8369 = vmatprep.subr.bf16.mxu0 %v7085
    %8370 = vmatpush1.bf16.msra.mxu0 %v7077
    %8371 = vmatprep.subr.bf16.mxu0 0
    %8372 = vmatpush1.bf16.msra.mxu0 0
    %8373 = vmatprep.subr.bf16.mxu0 0
    %8374 = vmatpush1.bf16.msra.mxu0 0
    %8375 = vmatprep.subr.bf16.mxu0 0
    %8376 = vmatpush1.bf16.msra.mxu0 0
    %8377 = vmatprep.subr.bf16.mxu0 0
    %8378 = vmatpush1.bf16.msra.mxu0 0
    %8379 = vmatprep.subr.bf16.mxu0 0
    %8380 = vmatpush1.bf16.msra.mxu0 0
    %8381 = vmatprep.subr.bf16.mxu0 0
    %8382 = vmatpush1.bf16.msra.mxu0 0
    %8383 = vmatprep.subr.bf16.mxu0 0
    %8384 = vmatpush1.bf16.msra.mxu0 0
    %8385 = vmatprep.subr.bf16.mxu0 0
    %8386 = vmatpush1.bf16.msra.mxu0 0
    %8387 = vmatprep.subr.bf16.mxu0 0
    %8388 = vmatpush1.bf16.msra.mxu0 0
    %8389 = vmatprep.subr.bf16.mxu0 0
    %8390 = vmatpush1.bf16.msra.mxu0 0
    %8391 = vmatprep.subr.bf16.mxu0 0
    %8392 = vmatpush1.bf16.msra.mxu0 0
    %8393 = vmatprep.subr.bf16.mxu0 0
    %8394 = vmatpush1.bf16.msra.mxu0 0
    %8395 = vmatprep.mubr.bf16.mxu0 0
    %8396 = vmatmul.mubr.bf16.gmra.mrb[0].mxu0 %v8361
    %v8397 = vpop.f32.mrb[0].mxu0
    %v8398 = vadd.f32 0.0, %v8397
    %v8399 = vpop.f32.mrb[0].mxu0
    %v8400 = vadd.f32 0.0, %v8399
    %v8401 = vpop.f32.mrb[0].mxu0
    %v8402 = vpop.f32.mrb[0].mxu0
    %8403 = vdwg.mxu0
    %v8406 = vrot.slane %v8398, 1
    %v8407 = vrot.slane %v8400, 1
    %v8410 = vadd.f32 %v8021, %v8406
    %v8411 = vadd.f32 %v8022, %v8407
    %v8412 = vxor.u32 %v8410, 2147483648
    %v8413 = vxor.u32 %v8411, 2147483648
    %v8414 = vmul.f32 %v8412, 1.442695
    %v8415 = vpow.pop %v8414
    %v8416 = vmul.f32 %v8413, 1.442695
    %v8417 = vpow.pop %v8416
    %v8418 = vadd.f32 %v8415, 1.0
    %v8419 = vadd.f32 %v8417, 1.0
    %v8420 = vrcp.pop %v8418
    %v8421 = vmul.f32 1.0, %v8420
    %v8422 = vrcp.pop %v8419
    %v8423 = vmul.f32 1.0, %v8422
    %v8424 = vtanh.pop %v8411
    %v8426 = vrot.slane %v8352, 7
    %v8428 = vmul.f32 %v8421, %v8426
    %v8429 = vmul.f32 %v8421, %v8424
    %8431 = vrot.lane.b32.xlu0 %v8429, 64
    %v8432 = vpop.permute.xlu0 %8431
    %v8434 = vadd.f32 %v8428, %v8432
    %v8435 = vtanh.pop %v8434
    %v8436 = vmul.f32 %v8423, %v8435
    %8438 = vrot.lane.b32.xlu0 %v7158, 64
    %v8439 = vpop.permute.xlu0 %8438
    %v8442 = vrot.slane %v8436, 7
    %8443 = vrot.lane.b32.xlu0 %v8442, 64
    %v8444 = vpop.permute.xlu0 %8443
    %v8446 = vsel %vm4941, %v8439, %v8444
    %v8448 = vrot.slane %v7245, 1
    %8449 = vrot.lane.b32.xlu0 %v8448, 64
    %v8450 = vpop.permute.xlu0 %8449
    %v8453 = vrot.slane %v8354, 6
    %8454 = vrot.lane.b32.xlu0 %v8453, 64
    %v8455 = vpop.permute.xlu0 %8454
    %v8457 = vsel %vm4941, %v8450, %v8455
    %v8459 = vrot.slane %v7334, 2
    %8460 = vrot.lane.b32.xlu0 %v8459, 64
    %v8461 = vpop.permute.xlu0 %8460
    %v8464 = vrot.slane %v8270, 5
    %8465 = vrot.lane.b32.xlu0 %v8464, 64
    %v8466 = vpop.permute.xlu0 %8465
    %v8468 = vsel %vm4941, %v8461, %v8466
    %v8470 = vrot.slane %v7422, 3
    %8471 = vrot.lane.b32.xlu0 %v8470, 64
    %v8472 = vpop.permute.xlu0 %8471
    %v8475 = vrot.slane %v8188, 4
    %8476 = vrot.lane.b32.xlu0 %v8475, 64
    %v8477 = vpop.permute.xlu0 %8476
    %v8479 = vsel %vm4941, %v8472, %v8477
    %v8481 = vrot.slane %v7506, 4
    %8482 = vrot.lane.b32.xlu0 %v8481, 64
    %v8483 = vpop.permute.xlu0 %8482
    %v8486 = vrot.slane %v8104, 3
    %8487 = vrot.lane.b32.xlu0 %v8486, 64
    %v8488 = vpop.permute.xlu0 %8487
    %v8490 = vsel %vm4941, %v8483, %v8488
    %v8492 = vrot.slane %v7588, 5
    %8493 = vrot.lane.b32.xlu0 %v8492, 64
    %v8494 = vpop.permute.xlu0 %8493
    %v8497 = vrot.slane %v8016, 2
    %8498 = vrot.lane.b32.xlu0 %v8497, 64
    %v8499 = vpop.permute.xlu0 %8498
    %v8501 = vsel %vm4941, %v8494, %v8499
    %v8503 = vrot.slane %v7672, 6
    %8504 = vrot.lane.b32.xlu0 %v8503, 64
    %v8505 = vpop.permute.xlu0 %8504
    %v8508 = vrot.slane %v7927, 1
    %8509 = vrot.lane.b32.xlu0 %v8508, 64
    %v8510 = vpop.permute.xlu0 %8509
    %v8512 = vsel %vm4941, %v8505, %v8510
    %v8514 = vrot.slane %v7754, 7
    %8515 = vrot.lane.b32.xlu0 %v8514, 64
    %v8516 = vpop.permute.xlu0 %8515
    %8519 = vrot.lane.b32.xlu0 %v7840, 64
    %v8520 = vpop.permute.xlu0 %8519
    %v8522 = vsel %vm4941, %v8516, %v8520
    %v8523 = vsel %vm4941, %v8520, %v8516
    %v8524 = vsel %vm4941, %v8510, %v8505
    %v8525 = vsel %vm4941, %v8499, %v8494
    %v8526 = vsel %vm4941, %v8488, %v8483
    %v8527 = vsel %vm4941, %v8477, %v8472
    %v8528 = vsel %vm4941, %v8466, %v8461
    %v8529 = vsel %vm4941, %v8455, %v8450
    %v8530 = vsel %vm4941, %v8444, %v8439
    %v8532 = vrot.slane %v8457, 7
    %v8535 = vrot.slane %v8468, 6
    %v8538 = vrot.slane %v8479, 5
    %v8541 = vrot.slane %v8490, 4
    %v8544 = vrot.slane %v8501, 3
    %v8547 = vrot.slane %v8512, 2
    %v8550 = vrot.slane %v8522, 1
    %v8553 = vrot.slane %v8524, 7
    %v8556 = vrot.slane %v8525, 6
    %v8559 = vrot.slane %v8526, 5
    %v8562 = vrot.slane %v8527, 4
    %v8565 = vrot.slane %v8528, 3
    %v8568 = vrot.slane %v8529, 2
    %v8571 = vrot.slane %v8530, 1
    %v8573 = vsel %vm722, %v8446, %v8532
    %v8574 = vsel %vm6756, %v8573, %v8535
    %v8575 = vsel %vm6758, %v8574, %v8538
    %v8576 = vsel %vm6760, %v8575, %v8541
    %v8577 = vsel %vm311, %v8576, %v8544
    %v8578 = vsel %vm6763, %v8577, %v8547
    %v8579 = vsel %vm6765, %v8578, %v8550
    %v8580 = vsel %vm722, %v8523, %v8553
    %v8581 = vsel %vm6756, %v8580, %v8556
    %v8582 = vsel %vm6758, %v8581, %v8559
    %v8583 = vsel %vm6760, %v8582, %v8562
    %v8584 = vsel %vm311, %v8583, %v8565
    %v8585 = vsel %vm6763, %v8584, %v8568
    %v8586 = vsel %vm6765, %v8585, %v8571
    %v8587 = vpack.c.bf16 %v8586, %v8579
    %v8588 = vld [vmem:[#allocation7 + $0x2a0] sm:$0xf]
    %v8589 = vld [vmem:[#allocation7 + $0x2a8] sm:$0xf]
    %v8590 = vld [vmem:[#allocation7 + $0x2b0] sm:$0xf]
    %v8591 = vld [vmem:[#allocation7 + $0x2b8] sm:$0xf]
    %v8592 = vld [vmem:[#allocation7 + $0x2c0] sm:$0xf]
    %v8593 = vld [vmem:[#allocation7 + $0x2c8] sm:$0xf]
    %v8594 = vld [vmem:[#allocation7 + $0x2d0] sm:$0xf]
    %v8595 = vld [vmem:[#allocation7 + $0x2d8] sm:$0xf]
    %v8596 = vld [vmem:[#allocation7 + $0x2e0] sm:$0x1]
    %v8597 = vld [vmem:[#allocation6 + $0x5] ss:$0 sm:$0xff]
    %v8607 = vunpack.c.l.b16 %v8588
    %v8608 = vunpack.c.l.b16 %v8589
    %v8609 = vunpack.c.l.b16 %v8590
    %v8610 = vunpack.c.l.b16 %v8591
    %v8611 = vunpack.c.l.b16 %v8592
    %v8612 = vunpack.c.l.b16 %v8593
    %v8613 = vunpack.c.l.b16 %v8594
    %v8614 = vunpack.c.l.b16 %v8595
    %v8615 = vunpack.c.l.b16 %v8596
    %v8616 = vpack.c.b16 %v8608, %v8607
    %v8617 = vpack.c.b16 %v8610, %v8609
    %v8618 = vpack.c.b16 %v8612, %v8611
    %v8619 = vpack.c.b16 %v8614, %v8613
    %v8620 = vpack.c.b16 %v8615, %v8615
    %v8622 = vshrl.u32 %v8616, 16
    %v8624 = vshll.u32 %v8616, 16
    %v8626 = vrot.slane %v8624, 1
    %v8627 = vor.u32 %v8622, %v8626
    %v8629 = vshll.u32 %v8617, 16
    %v8631 = vrot.slane %v8629, 1
    %v8632 = vsel %vm784, %v8627, %v8631
    %v8633 = vshrl.u32 %v8617, 16
    %v8635 = vor.u32 %v8633, %v8631
    %v8637 = vshll.u32 %v8618, 16
    %v8639 = vrot.slane %v8637, 1
    %v8640 = vsel %vm784, %v8635, %v8639
    %v8641 = vshrl.u32 %v8618, 16
    %v8643 = vor.u32 %v8641, %v8639
    %v8645 = vshll.u32 %v8619, 16
    %v8647 = vrot.slane %v8645, 1
    %v8648 = vsel %vm784, %v8643, %v8647
    %v8649 = vshrl.u32 %v8619, 16
    %v8651 = vor.u32 %v8649, %v8647
    %v8653 = vshll.u32 %v8620, 16
    %v8655 = vrot.slane %v8653, 1
    %v8656 = vsel %vm784, %v8651, %v8655
    %v8662 = vsel %vm3156, %v8587, 0
    %8664 = vmatprep.subr.bf16.mxu0 0
    %8665 = vmatpush1.bf16.msra.mxu0 %v8632
    %8666 = vmatprep.subr.bf16.mxu0 0
    %8667 = vmatpush1.bf16.msra.mxu0 %v8640
    %8668 = vmatprep.subr.bf16.mxu0 0
    %8669 = vmatpush1.bf16.msra.mxu0 %v8648
    %8670 = vmatprep.subr.bf16.mxu0 0
    %8671 = vmatpush1.bf16.msra.mxu0 %v8656
    %8672 = vmatprep.subr.bf16.mxu0 0
    %8673 = vmatpush1.bf16.msra.mxu0 0
    %8674 = vmatprep.subr.bf16.mxu0 0
    %8675 = vmatpush1.bf16.msra.mxu0 0
    %8676 = vmatprep.subr.bf16.mxu0 0
    %8677 = vmatpush1.bf16.msra.mxu0 0
    %8678 = vmatprep.subr.bf16.mxu0 0
    %8679 = vmatpush1.bf16.msra.mxu0 0
    %8680 = vmatprep.subr.bf16.mxu0 0
    %8681 = vmatpush1.bf16.msra.mxu0 0
    %8682 = vmatprep.subr.bf16.mxu0 0
    %8683 = vmatpush1.bf16.msra.mxu0 0
    %8684 = vmatprep.subr.bf16.mxu0 0
    %8685 = vmatpush1.bf16.msra.mxu0 0
    %8686 = vmatprep.subr.bf16.mxu0 0
    %8687 = vmatpush1.bf16.msra.mxu0 0
    %8688 = vmatprep.subr.bf16.mxu0 0
    %8689 = vmatpush1.bf16.msra.mxu0 0
    %8690 = vmatprep.subr.bf16.mxu0 0
    %8691 = vmatpush1.bf16.msra.mxu0 0
    %8692 = vmatprep.subr.bf16.mxu0 0
    %8693 = vmatpush1.bf16.msra.mxu0 0
    %8694 = vmatprep.subr.bf16.mxu0 0
    %8695 = vmatpush1.bf16.msra.mxu0 0
    %8696 = vmatprep.mubr.bf16.mxu0 0
    %8697 = vmatmul.mubr.bf16.gmra.mrb[0].mxu0 %v8662
    %v8698 = vpop.f32.mrb[0].mxu0
    %v8699 = vadd.f32 %v8597, %v8698
    %v8700 = vpop.f32.mrb[0].mxu0
    %v8701 = vpop.f32.mrb[0].mxu0
    %v8702 = vadd.f32 %v8597, %v8701
    %v8703 = vpop.f32.mrb[0].mxu0
    %8704 = vdwg.mxu0
    %v8705 = vtanh.pop %v8699
    %v8706 = vtanh.pop %v8702
    %v8707 = vpack.c.bf16 %v8706, %v8705
    %v8708 = vld [vmem:[#allocation7 + $0x2e0] sm:$0xf]
    %v8709 = vld [vmem:[#allocation7 + $0x2e8] sm:$0xf]
    %v8710 = vld [vmem:[#allocation7 + $0x2f0] sm:$0xf]
    %v8711 = vld [vmem:[#allocation7 + $0x2f8] sm:$0xf]
    %v8712 = vld [vmem:[#allocation7 + $0x300] sm:$0x1]
    %v8718 = vunpack.c.l.b16 %v8708
    %v8719 = vunpack.c.l.b16 %v8709
    %v8720 = vunpack.c.l.b16 %v8710
    %v8721 = vunpack.c.l.b16 %v8711
    %v8722 = vunpack.c.l.b16 %v8712
    %v8723 = vpack.c.b16 %v8719, %v8718
    %v8724 = vpack.c.b16 %v8721, %v8720
    %v8725 = vpack.c.b16 %v8722, %v8722
    %v8727 = vshrl.u32 %v8723, 16
    %v8729 = vshll.u32 %v8723, 16
    %v8731 = vrot.slane %v8729, 1
    %v8732 = vor.u32 %v8727, %v8731
    %v8734 = vshll.u32 %v8724, 16
    %v8736 = vrot.slane %v8734, 1
    %v8737 = vsel %vm784, %v8732, %v8736
    %v8738 = vshrl.u32 %v8724, 16
    %v8740 = vor.u32 %v8738, %v8736
    %v8742 = vshll.u32 %v8725, 16
    %v8744 = vrot.slane %v8742, 1
    %v8745 = vsel %vm784, %v8740, %v8744
    %v8749 = vsel %vm1577, %v8707, 0
    %8751 = vmatprep.subr.bf16.mxu0 0
    %8752 = vmatpush1.bf16.msra.mxu0 %v8737
    %8753 = vmatprep.subr.bf16.mxu0 0
    %8754 = vmatpush1.bf16.msra.mxu0 %v8745
    %8755 = vmatprep.subr.bf16.mxu0 0
    %8756 = vmatpush1.bf16.msra.mxu0 0
    %8757 = vmatprep.subr.bf16.mxu0 0
    %8758 = vmatpush1.bf16.msra.mxu0 0
    %8759 = vmatprep.subr.bf16.mxu0 0
    %8760 = vmatpush1.bf16.msra.mxu0 0
    %8761 = vmatprep.subr.bf16.mxu0 0
    %8762 = vmatpush1.bf16.msra.mxu0 0
    %8763 = vmatprep.subr.bf16.mxu0 0
    %8764 = vmatpush1.bf16.msra.mxu0 0
    %8765 = vmatprep.subr.bf16.mxu0 0
    %8766 = vmatpush1.bf16.msra.mxu0 0
    %8767 = vmatprep.subr.bf16.mxu0 0
    %8768 = vmatpush1.bf16.msra.mxu0 0
    %8769 = vmatprep.subr.bf16.mxu0 0
    %8770 = vmatpush1.bf16.msra.mxu0 0
    %8771 = vmatprep.subr.bf16.mxu0 0
    %8772 = vmatpush1.bf16.msra.mxu0 0
    %8773 = vmatprep.subr.bf16.mxu0 0
    %8774 = vmatpush1.bf16.msra.mxu0 0
    %8775 = vmatprep.subr.bf16.mxu0 0
    %8776 = vmatpush1.bf16.msra.mxu0 0
    %8777 = vmatprep.subr.bf16.mxu0 0
    %8778 = vmatpush1.bf16.msra.mxu0 0
    %8779 = vmatprep.subr.bf16.mxu0 0
    %8780 = vmatpush1.bf16.msra.mxu0 0
    %8781 = vmatprep.subr.bf16.mxu0 0
    %8782 = vmatpush1.bf16.msra.mxu0 0
    %8783 = vmatprep.mubr.bf16.mxu0 0
    %8784 = vmatmul.mubr.bf16.gmra.mrb[0].mxu0 %v8749
    %v8785 = vpop.f32.mrb[0].mxu0
    %v8786 = vadd.f32 0.0, %v8785
    %v8787 = vpop.f32.mrb[0].mxu0
    %v8788 = vpop.f32.mrb[0].mxu0
    %v8789 = vadd.f32 0.0, %v8788
    %v8790 = vpop.f32.mrb[0].mxu0
    %8791 = vdwg.mxu0
    %vm8792 = vcmask 15360
    %v8793 = vsel %vm8792, %v8786, -inf
    %v8794 = vsel %vm8792, %v8789, -inf
    %v8795 = vmax.f32 %v8793, %v8794
    %v8796 = vrot.slane %v8795, 4
    %v8797 = vmax.f32 %v8795, %v8796
    %v8798 = vrot.slane %v8797, 2
    %v8799 = vmax.f32 %v8797, %v8798
    %v8800 = vrot.slane %v8799, 1
    %v8801 = vmax.f32 %v8799, %v8800
    %v8802 = vsub.f32 %v8786, %v8801
    %v8803 = vsub.f32 %v8789, %v8801
    %v8804 = vmul.f32 %v8802, 1.442695
    %v8805 = vpow.pop %v8804
    %v8806 = vmul.f32 %v8803, 1.442695
    %v8807 = vpow.pop %v8806
    %v8808 = vsel %vm8792, %v8805, 0.0
    %v8809 = vsel %vm8792, %v8807, 0.0
    %v8810 = vadd.f32 %v8808, %v8809
    %v8811 = vrot.slane %v8810, 4
    %v8812 = vadd.f32 %v8810, %v8811
    %v8813 = vrot.slane %v8812, 2
    %v8814 = vadd.f32 %v8812, %v8813
    %v8815 = vrot.slane %v8814, 1
    %v8816 = vadd.f32 %v8814, %v8815
    %v8817 = vrcp.pop %v8816
    %v8818 = vmul.f32 %v8805, %v8817
    %v8819 = vmul.f32 %v8807, %v8817
    %v8820 = vld [vmem:[#allocation7 + $0x300] sm:$0xf]
    %v8821 = vld [vmem:[#allocation7 + $0x308] sm:$0xf]
    %v8822 = vld [vmem:[#allocation7 + $0x310] sm:$0xf]
    %v8823 = vld [vmem:[#allocation7 + $0x318] sm:$0xf]
    %v8824 = vld [vmem:[#allocation7 + $0x320] sm:$0x1]
    %v8825 = vld [vmem:[#allocation6 + $0x6] ss:$0 sm:$0xff]
    %8827 = vset.pattern.permute.xlu0 0
    %8828 = vperm.xlu0 %8827, %v8818
    %v8829 = vpop.permute.xlu0 %8828
    %8832 = vset.pattern.permute.xlu0 0
    %8833 = vperm.xlu0 %8832, %v8819
    %v8834 = vpop.permute.xlu0 %8833
    %v8836 = vmul.f32 %v8829, %v8579
    %v8837 = vmul.f32 %v8834, %v8586
    %v8838 = vsel %vm1577, %v8836, 0.0
    %v8839 = vsel %vm1577, %v8837, 0.0
    %v8840 = vadd.f32 %v8838, %v8839
    %v8841 = vrot.slane %v8840, 4
    %v8842 = vadd.f32 %v8840, %v8841
    %v8843 = vrot.slane %v8842, 2
    %v8844 = vadd.f32 %v8842, %v8843
    %v8845 = vrot.slane %v8844, 1
    %v8846 = vadd.f32 %v8844, %v8845
    %v8847 = vpack.c.bf16 %v8846, %v8846
    %v8853 = vunpack.c.l.b16 %v8820
    %v8854 = vunpack.c.l.b16 %v8821
    %v8855 = vunpack.c.l.b16 %v8822
    %v8856 = vunpack.c.l.b16 %v8823
    %v8857 = vunpack.c.l.b16 %v8824
    %v8858 = vpack.c.b16 %v8854, %v8853
    %v8859 = vpack.c.b16 %v8856, %v8855
    %v8860 = vpack.c.b16 %v8857, %v8857
    %v8862 = vshrl.u32 %v8858, 16
    %v8864 = vshll.u32 %v8858, 16
    %v8866 = vrot.slane %v8864, 1
    %v8867 = vor.u32 %v8862, %v8866
    %v8869 = vshll.u32 %v8859, 16
    %v8871 = vrot.slane %v8869, 1
    %v8872 = vsel %vm784, %v8867, %v8871
    %v8873 = vshrl.u32 %v8859, 16
    %v8875 = vor.u32 %v8873, %v8871
    %v8877 = vshll.u32 %v8860, 16
    %v8879 = vrot.slane %v8877, 1
    %v8880 = vsel %vm784, %v8875, %v8879
    %v8884 = vsel %vm1577, %v8847, 0
    %8886 = vmatprep.subr.bf16.mxu0 0
    %8887 = vmatpush1.bf16.msra.mxu0 %v8872
    %8888 = vmatprep.subr.bf16.mxu0 0
    %8889 = vmatpush1.bf16.msra.mxu0 %v8880
    %8890 = vmatprep.subr.bf16.mxu0 0
    %8891 = vmatpush1.bf16.msra.mxu0 0
    %8892 = vmatprep.subr.bf16.mxu0 0
    %8893 = vmatpush1.bf16.msra.mxu0 0
    %8894 = vmatprep.subr.bf16.mxu0 0
    %8895 = vmatpush1.bf16.msra.mxu0 0
    %8896 = vmatprep.subr.bf16.mxu0 0
    %8897 = vmatpush1.bf16.msra.mxu0 0
    %8898 = vmatprep.subr.bf16.mxu0 0
    %8899 = vmatpush1.bf16.msra.mxu0 0
    %8900 = vmatprep.subr.bf16.mxu0 0
    %8901 = vmatpush1.bf16.msra.mxu0 0
    %8902 = vmatprep.subr.bf16.mxu0 0
    %8903 = vmatpush1.bf16.msra.mxu0 0
    %8904 = vmatprep.subr.bf16.mxu0 0
    %8905 = vmatpush1.bf16.msra.mxu0 0
    %8906 = vmatprep.subr.bf16.mxu0 0
    %8907 = vmatpush1.bf16.msra.mxu0 0
    %8908 = vmatprep.subr.bf16.mxu0 0
    %8909 = vmatpush1.bf16.msra.mxu0 0
    %8910 = vmatprep.subr.bf16.mxu0 0
    %8911 = vmatpush1.bf16.msra.mxu0 0
    %8912 = vmatprep.subr.bf16.mxu0 0
    %8913 = vmatpush1.bf16.msra.mxu0 0
    %8914 = vmatprep.subr.bf16.mxu0 0
    %8915 = vmatpush1.bf16.msra.mxu0 0
    %8916 = vmatprep.subr.bf16.mxu0 0
    %8917 = vmatpush1.bf16.msra.mxu0 0
    %8918 = vmatprep.mubr.bf16.mxu0 0
    %8919 = vmatmul.mubr.bf16.gmra.mrb[0].mxu0 %v8884
    %v8920 = vpop.f32.mrb[0].mxu0
    %v8921 = vadd.f32 %v8825, %v8920
    %v8922 = vpop.f32.mrb[0].mxu0
    %v8923 = vpop.f32.mrb[0].mxu0
    %v8924 = vpop.f32.mrb[0].mxu0
    %8925 = vdwg.mxu0
    %8926 = vset.pattern.permute.xlu0 1
    %8927 = vperm.xlu0 %8926, %v8818
    %v8928 = vpop.permute.xlu0 %8927
    %8930 = vset.pattern.permute.xlu0 1
    %8931 = vperm.xlu0 %8930, %v8819
    %v8932 = vpop.permute.xlu0 %8931
    %v8934 = vmul.f32 %v8928, %v8579
    %v8935 = vmul.f32 %v8932, %v8586
    %vm8936 = vcmask 523520
    %v8937 = vsel %vm8936, %v8934, 0.0
    %v8938 = vsel %vm8936, %v8935, 0.0
    %v8939 = vadd.f32 %v8937, %v8938
    %v8940 = vrot.slane %v8939, 4
    %v8941 = vadd.f32 %v8939, %v8940
    %v8942 = vrot.slane %v8941, 2
    %v8943 = vadd.f32 %v8941, %v8942
    %v8944 = vrot.slane %v8943, 1
    %v8945 = vadd.f32 %v8943, %v8944
    %v8946 = vpack.c.bf16 %v8945, %v8945
    %8948 = vrot.lane.b32.xlu0 %v8946, 96
    %v8949 = vpop.permute.xlu0 %8948
    %v8951 = vsel %vm1577, %v8949, 0
    %8953 = vmatprep.subr.bf16.mxu0 0
    %8954 = vmatpush1.bf16.msra.mxu0 %v8872
    %8955 = vmatprep.subr.bf16.mxu0 0
    %8956 = vmatpush1.bf16.msra.mxu0 %v8880
    %8957 = vmatprep.subr.bf16.mxu0 0
    %8958 = vmatpush1.bf16.msra.mxu0 0
    %8959 = vmatprep.subr.bf16.mxu0 0
    %8960 = vmatpush1.bf16.msra.mxu0 0
    %8961 = vmatprep.subr.bf16.mxu0 0
    %8962 = vmatpush1.bf16.msra.mxu0 0
    %8963 = vmatprep.subr.bf16.mxu0 0
    %8964 = vmatpush1.bf16.msra.mxu0 0
    %8965 = vmatprep.subr.bf16.mxu0 0
    %8966 = vmatpush1.bf16.msra.mxu0 0
    %8967 = vmatprep.subr.bf16.mxu0 0
    %8968 = vmatpush1.bf16.msra.mxu0 0
    %8969 = vmatprep.subr.bf16.mxu0 0
    %8970 = vmatpush1.bf16.msra.mxu0 0
    %8971 = vmatprep.subr.bf16.mxu0 0
    %8972 = vmatpush1.bf16.msra.mxu0 0
    %8973 = vmatprep.subr.bf16.mxu0 0
    %8974 = vmatpush1.bf16.msra.mxu0 0
    %8975 = vmatprep.subr.bf16.mxu0 0
    %8976 = vmatpush1.bf16.msra.mxu0 0
    %8977 = vmatprep.subr.bf16.mxu0 0
    %8978 = vmatpush1.bf16.msra.mxu0 0
    %8979 = vmatprep.subr.bf16.mxu0 0
    %8980 = vmatpush1.bf16.msra.mxu0 0
    %8981 = vmatprep.subr.bf16.mxu0 0
    %8982 = vmatpush1.bf16.msra.mxu0 0
    %8983 = vmatprep.subr.bf16.mxu0 0
    %8984 = vmatpush1.bf16.msra.mxu0 0
    %8985 = vmatprep.mubr.bf16.mxu0 0
    %8986 = vmatmul.mubr.bf16.gmra.mrb[0].mxu0 %v8951
    %v8987 = vpop.f32.mrb[0].mxu0
    %v8988 = vadd.f32 %v8825, %v8987
    %v8989 = vpop.f32.mrb[0].mxu0
    %v8990 = vpop.f32.mrb[0].mxu0
    %v8991 = vpop.f32.mrb[0].mxu0
    %8992 = vdwg.mxu0
    %v8994 = vrot.slane %v8988, 7
    %v8996 = vsel %vm722, %v8921, %v8994
    %vm8997 = vcmask 1024
    %8998 = vst.msk [vmem:[%s5] sm:$0x3] %vm8997, %v8996
    // Predicated region
    $region38: #{mos_predictor_forward.1} parent=1 // pred_check
      _
    $region39: #{mos_predictor_forward.1} parent=1 // pred_check_branch
      %9000 = sbr.rel (0) target = $region41
    $region40: #{mos_predictor_forward.1} parent=1 // pred_region
      _
    $region41: #{mos_predictor_forward.1} parent=1 // pred_fallthru
      _
    // Predicated region
    $region42: #{mos_predictor_forward.1} parent=1 // pred_check
      _
    $region43: #{mos_predictor_forward.1} parent=1 // pred_check_branch
      %9002 = sbr.rel (0) target = $region45
    $region44: #{mos_predictor_forward.1} parent=1 // pred_region
      _
    $region45: #{mos_predictor_forward.1} parent=1 // pred_fallthru
      _
    %9003 = vsyncpa [#allocation3], 1
    %9004 = vsyncpa [#allocation5], 1
    %9005 = vsyncpa [#allocation8], 1

</llo_original>
